<compile_context>
chip_gen: v7x
topology: tpu7x:2x2x1
jax: 0.10.0
libtpu: 0.0.40
codegen_flags: <defaults>
</compile_context>

<pallas_src>
import functools

import numpy as np
import jax
import jax.numpy as jnp
from jax.experimental import pallas as pl
from jax.experimental.pallas import tpu as pltpu

# ----------------------------- model config ---------------------------------
BATCH = 2
CHANNELS = 3
IMAGE_SIZE = 32
PATCH_SIZE = 8
GRID = IMAGE_SIZE // PATCH_SIZE                   # 4
NUM_PATCHES = GRID * GRID                         # 16 (perfect square)
EMBED_DIM = 32                                    # vision_hidden_size
NUM_HEADS = 4
HEAD_DIM = EMBED_DIM // NUM_HEADS                 # 8
INTERMEDIATE = 64
NUM_LAYERS = 2
LN_EPS = 1e-6

SCALE_FACTOR = 2                                  # connector scale_factor
TEXT_HIDDEN = 48                                  # connector text_hidden_size
CONNECTOR_IN = EMBED_DIM * SCALE_FACTOR ** 2      # 128


# --------------------- pixel-shuffle as a row permutation --------------------
def _pixel_shuffle_selector(batch, seq, sf):
  """Permutation matrix P such that (P @ x) stacks, per feature-group g,
  the rows of x that pixel_shuffle would concatenate into output token t.

  Row index of P:  g * (batch*out_seq) + b * out_seq + t
  Column index:    b * seq + src_token(g, t)
  """
  h = w = int(seq ** 0.5)
  assert h * w == seq, "sequence length must be a perfect square"
  ho, wo = h // sf, w // sf
  out_seq = ho * wo
  n = batch * seq
  sel = np.zeros((n, n), np.float32)
  for g in range(sf * sf):
    gi, gj = g // sf, g % sf
    for b in range(batch):
      for t in range(out_seq):
        i2, j = t // wo, t % wo
        src = (i2 * sf + gi) * w + (j * sf + gj)
        dst = g * (batch * out_seq) + b * out_seq + t
        sel[dst, b * seq + src] = 1.0
  return jnp.asarray(sel)


# ----------------------------- the fused kernel ------------------------------
def _encoder_kernel(
    xpatch_ref, patch_w_ref, patch_b_ref, pos_ref,
    ln1_g_ref, ln1_b_ref, wqkv_ref, bqkv_ref, wo_ref, bo_ref,
    ln2_g_ref, ln2_b_ref, w1_ref, b1_ref, w2_ref, b2_ref,
    final_g_ref, final_b_ref, sel_ref, proj_w_ref,
    out_ref, *, batch, seq, out_seq):
  f32 = jnp.float32
  scale = 1.0 / (HEAD_DIM ** 0.5)

  def mm(a, b):
    # Note: default MXU precision with f32 accumulation.  Set
    # precision=jax.lax.Precision.HIGHEST here if bit-level parity with the
    # f32 PyTorch reference is required.
    return jnp.dot(a, b, preferred_element_type=f32)

  def layer_norm(v, g, b):
    mu = jnp.mean(v, axis=-1, keepdims=True)
    var = jnp.mean(jnp.square(v - mu), axis=-1, keepdims=True)
    return (v - mu) * jax.lax.rsqrt(var + LN_EPS) * g + b

  # ---- patch embedding (Conv2d k=stride=patch as matmul) + pos embedding ----
  x = mm(xpatch_ref[...], patch_w_ref[...]) + patch_b_ref[...] + pos_ref[...]

  # ---- transformer blocks (statically unrolled) ----
  for l in range(NUM_LAYERS):
    wqkv = wqkv_ref[l]
    bqkv = bqkv_ref[l]
    wo = wo_ref[l]
    bo = bo_ref[l]

    # --- multi-head self attention (pre-LN, fused QKV projection) ---
    h = layer_norm(x, ln1_g_ref[l], ln1_b_ref[l])
    qkv = mm(h, wqkv) + bqkv                                  # (B*S, 3D)

    batch_rows = []
    for bi in range(batch):
      r0 = bi * seq
      acc = None
      for hi in range(NUM_HEADS):
        c0 = hi * HEAD_DIM
        q = qkv[r0:r0 + seq, c0:c0 + HEAD_DIM]
        k = qkv[r0:r0 + seq, EMBED_DIM + c0:EMBED_DIM + c0 + HEAD_DIM]
        v = qkv[r0:r0 + seq, 2 * EMBED_DIM + c0:2 * EMBED_DIM + c0 + HEAD_DIM]
        # scores: contract head_dim directly (no k.T materialization)
        s = jax.lax.dot_general(q, k, (((1,), (1,)), ((), ())),
                                preferred_element_type=f32) * scale
        m = jnp.max(s, axis=-1, keepdims=True)
        e = jnp.exp(s - m)
        p = e * pl.reciprocal(jnp.sum(e, axis=-1, keepdims=True), approx=True)
        ctx = mm(p, v)                                        # (S, Dh)
        # fold the output projection per head: concat_h(ctx_h) @ Wo
        #   == sum_h ctx_h @ Wo[h*Dh:(h+1)*Dh, :]
        contrib = mm(ctx, wo[c0:c0 + HEAD_DIM, :])            # (S, D)
        acc = contrib if acc is None else acc + contrib
      batch_rows.append(acc)
    attn = jnp.concatenate(batch_rows, axis=0) if batch > 1 else batch_rows[0]
    x = x + attn + bo                                         # residual (in-VMEM)

    # --- MLP (GELU tanh) ---
    h = layer_norm(x, ln2_g_ref[l], ln2_b_ref[l])
    h = mm(h, w1_ref[l]) + b1_ref[l]
    c = 0.7978845608028654                                    # sqrt(2/pi)
    h = 0.5 * h * (1.0 + jnp.tanh(c * (h + 0.044715 * h * h * h)))
    x = x + mm(h, w2_ref[l]) + b2_ref[l]                      # residual

  # ---- final LayerNorm ----
  x = layer_norm(x, final_g_ref[...], final_b_ref[...])

  # ---- connector: pixel shuffle (row-permutation matmul) + projection ----
  y = mm(sel_ref[...], x)                 # (sf^2 * B*out_seq, D), grouped by g
  rows = batch * out_seq
  out = None
  for g in range(SCALE_FACTOR * SCALE_FACTOR):
    part = mm(y[g * rows:(g + 1) * rows, :],
              proj_w_ref[g * EMBED_DIM:(g + 1) * EMBED_DIM, :])
    out = part if out is None else out + part
  out_ref[...] = out                      # (B*out_seq, TEXT_HIDDEN)


# ----------------------------- wrapper ---------------------------------------
def _full_spec(shape):
  zero = (0,) * len(shape)

  def idx(i):
    del i
    return zero

  return pl.BlockSpec(shape, idx)


def full_vision_encoder(params, pixel_values):
  B, C, H, W = pixel_values.shape
  p = PATCH_SIZE
  gh, gw = H // p, W // p
  S = gh * gw
  out_seq = S // (SCALE_FACTOR ** 2)

  # Patch extraction (pure data movement, XLA glue); matmul is in the kernel.
  xp = (pixel_values.reshape(B, C, gh, p, gw, p)
        .transpose(0, 2, 4, 1, 3, 5)
        .reshape(B * S, C * p * p))
  pos = jnp.tile(params["pos_emb"], (B, 1))              # (B*S, D)
  sel = _pixel_shuffle_selector(B, S, SCALE_FACTOR)      # trace-time constant

  args = (xp, params["patch_w"], params["patch_b"], pos,
          params["ln1_g"], params["ln1_b"], params["wqkv"], params["bqkv"],
          params["wo"], params["bo"], params["ln2_g"], params["ln2_b"],
          params["w1"], params["b1"], params["w2"], params["b2"],
          params["final_g"], params["final_b"], sel, params["proj_w"])

  kernel = functools.partial(_encoder_kernel, batch=B, seq=S, out_seq=out_seq)

  out = pl.pallas_call(
      kernel,
      grid=(1,),
      out_shape=jax.ShapeDtypeStruct((B * out_seq, TEXT_HIDDEN), jnp.float32),
      in_specs=[_full_spec(a.shape) for a in args],
      out_specs=_full_spec((B * out_seq, TEXT_HIDDEN)),
      compiler_params=pltpu.CompilerParams(
          dimension_semantics=("arbitrary",)),
  )(*args)
  return out.reshape(B, out_seq, TEXT_HIDDEN)


# ----------------------------- parameter init --------------------------------
def init_params(key):
  keys = iter(jax.random.split(key, 32))

  def nrm(shape, std=0.02):
    return jax.random.normal(next(keys), shape, dtype=jnp.float32) * std

  L, D, F = NUM_LAYERS, EMBED_DIM, INTERMEDIATE
  params = {
      # patch embedding
      "patch_w": nrm((CHANNELS * PATCH_SIZE * PATCH_SIZE, D)),
      "patch_b": nrm((1, D)),
      "pos_emb": nrm((NUM_PATCHES, D)),
      # stacked per-layer weights (leading dim = layer)
      "ln1_g": jnp.ones((L, 1, D), jnp.float32),
      "ln1_b": jnp.zeros((L, 1, D), jnp.float32),
      "wqkv": nrm((L, D, 3 * D)),      # [Wq | Wk | Wv] fused along N
      "bqkv": nrm((L, 1, 3 * D)),
      "wo": nrm((L, D, D)),
      "bo": nrm((L, 1, D)),
      "ln2_g": jnp.ones((L, 1, D), jnp.float32),
      "ln2_b": jnp.zeros((L, 1, D), jnp.float32),
      "w1": nrm((L, D, F)),
      "b1": nrm((L, 1, F)),
      "w2": nrm((L, F, D)),
      "b2": nrm((L, 1, D)),
      # final LN + connector
      "final_g": jnp.ones((1, D), jnp.float32),
      "final_b": jnp.zeros((1, D), jnp.float32),
      "proj_w": nrm((CONNECTOR_IN, TEXT_HIDDEN)),
  }
  return params


# ----------------------------- main -------------------------------------------
if __name__ == "__main__":
  key = jax.random.PRNGKey(0)
  pkey, xkey = jax.random.split(key)
  params = init_params(pkey)
  pixel_values = jax.random.normal(
      xkey, (BATCH, CHANNELS, IMAGE_SIZE, IMAGE_SIZE), dtype=jnp.float32)

  fwd = jax.jit(full_vision_encoder)
  out = fwd(params, pixel_values)
  out = jax.block_until_ready(out)

  expected_seq = NUM_PATCHES // (SCALE_FACTOR ** 2)
  assert out.shape == (BATCH, expected_seq, TEXT_HIDDEN), out.shape
  assert out.dtype == jnp.float32
  assert bool(jnp.all(jnp.isfinite(out)))
  print("KERNEL_OK")
</pallas_src>

<mosaic_0001>
module attributes {stable_mosaic.version = 11 : i64} {
  func.func @_encoder_kernel(%arg0: i32, %arg1: memref<32x192xf32, #tpu.memory_space<vmem>>, %arg2: memref<192x32xf32, #tpu.memory_space<vmem>>, %arg3: memref<1x32xf32, #tpu.memory_space<vmem>>, %arg4: memref<32x32xf32, #tpu.memory_space<vmem>>, %arg5: memref<2x1x32xf32, #tpu.memory_space<vmem>>, %arg6: memref<2x1x32xf32, #tpu.memory_space<vmem>>, %arg7: memref<2x32x96xf32, #tpu.memory_space<vmem>>, %arg8: memref<2x1x96xf32, #tpu.memory_space<vmem>>, %arg9: memref<2x32x32xf32, #tpu.memory_space<vmem>>, %arg10: memref<2x1x32xf32, #tpu.memory_space<vmem>>, %arg11: memref<2x1x32xf32, #tpu.memory_space<vmem>>, %arg12: memref<2x1x32xf32, #tpu.memory_space<vmem>>, %arg13: memref<2x32x64xf32, #tpu.memory_space<vmem>>, %arg14: memref<2x1x64xf32, #tpu.memory_space<vmem>>, %arg15: memref<2x64x32xf32, #tpu.memory_space<vmem>>, %arg16: memref<2x1x32xf32, #tpu.memory_space<vmem>>, %arg17: memref<1x32xf32, #tpu.memory_space<vmem>>, %arg18: memref<1x32xf32, #tpu.memory_space<vmem>>, %arg19: memref<32x32xf32, #tpu.memory_space<vmem>>, %arg20: memref<128x48xf32, #tpu.memory_space<vmem>>, %arg21: memref<8x48xf32, #tpu.memory_space<vmem>>) attributes {dimension_semantics = [#tpu.dimension_semantics<arbitrary>], iteration_bounds = array<i64: 1>, scalar_prefetch = 0 : i64, scratch_operands = 0 : i64, tpu.core_type = #tpu.core_type<tc>, window_params = [{pipeline_mode = #tpu.pipeline_mode<synchronous>, transform_indices = @transform_0, window_bounds = array<i64: 32, 192>}, {pipeline_mode = #tpu.pipeline_mode<synchronous>, transform_indices = @transform_1, window_bounds = array<i64: 192, 32>}, {pipeline_mode = #tpu.pipeline_mode<synchronous>, transform_indices = @transform_2, window_bounds = array<i64: 1, 32>}, {pipeline_mode = #tpu.pipeline_mode<synchronous>, transform_indices = @transform_3, window_bounds = array<i64: 32, 32>}, {pipeline_mode = #tpu.pipeline_mode<synchronous>, transform_indices = @transform_4, window_bounds = array<i64: 2, 1, 32>}, {pipeline_mode = #tpu.pipeline_mode<synchronous>, transform_indices = @transform_5, window_bounds = array<i64: 2, 1, 32>}, {pipeline_mode = #tpu.pipeline_mode<synchronous>, transform_indices = @transform_6, window_bounds = array<i64: 2, 32, 96>}, {pipeline_mode = #tpu.pipeline_mode<synchronous>, transform_indices = @transform_7, window_bounds = array<i64: 2, 1, 96>}, {pipeline_mode = #tpu.pipeline_mode<synchronous>, transform_indices = @transform_8, window_bounds = array<i64: 2, 32, 32>}, {pipeline_mode = #tpu.pipeline_mode<synchronous>, transform_indices = @transform_9, window_bounds = array<i64: 2, 1, 32>}, {pipeline_mode = #tpu.pipeline_mode<synchronous>, transform_indices = @transform_10, window_bounds = array<i64: 2, 1, 32>}, {pipeline_mode = #tpu.pipeline_mode<synchronous>, transform_indices = @transform_11, window_bounds = array<i64: 2, 1, 32>}, {pipeline_mode = #tpu.pipeline_mode<synchronous>, transform_indices = @transform_12, window_bounds = array<i64: 2, 32, 64>}, {pipeline_mode = #tpu.pipeline_mode<synchronous>, transform_indices = @transform_13, window_bounds = array<i64: 2, 1, 64>}, {pipeline_mode = #tpu.pipeline_mode<synchronous>, transform_indices = @transform_14, window_bounds = array<i64: 2, 64, 32>}, {pipeline_mode = #tpu.pipeline_mode<synchronous>, transform_indices = @transform_15, window_bounds = array<i64: 2, 1, 32>}, {pipeline_mode = #tpu.pipeline_mode<synchronous>, transform_indices = @transform_16, window_bounds = array<i64: 1, 32>}, {pipeline_mode = #tpu.pipeline_mode<synchronous>, transform_indices = @transform_17, window_bounds = array<i64: 1, 32>}, {pipeline_mode = #tpu.pipeline_mode<synchronous>, transform_indices = @transform_18, window_bounds = array<i64: 32, 32>}, {pipeline_mode = #tpu.pipeline_mode<synchronous>, transform_indices = @transform_19, window_bounds = array<i64: 128, 48>}, {pipeline_mode = #tpu.pipeline_mode<synchronous>, transform_indices = @transform_20, window_bounds = array<i64: 8, 48>}]} {
    %c0 = arith.constant 0 : index
    %c0_0 = arith.constant 0 : index
    %0 = vector.load %arg1[%c0, %c0_0] : memref<32x192xf32, #tpu.memory_space<vmem>>, vector<32x192xf32>
    %c0_1 = arith.constant 0 : index
    %c0_2 = arith.constant 0 : index
    %1 = vector.load %arg2[%c0_1, %c0_2] : memref<192x32xf32, #tpu.memory_space<vmem>>, vector<192x32xf32>
    %cst = arith.constant dense<0.000000e+00> : vector<32x32xf32>
    %2 = tpu.matmul %0, %1, %cst {dimension_numbers = #tpu.dot_dimension_numbers<[1], [0], [0], [1], [0, 0, 1, 1], [], []>} : vector<32x192xf32>, vector<192x32xf32>, vector<32x32xf32> -> vector<32x32xf32>
    %c0_3 = arith.constant 0 : index
    %c0_4 = arith.constant 0 : index
    %3 = vector.load %arg3[%c0_3, %c0_4] : memref<1x32xf32, #tpu.memory_space<vmem>>, vector<1x32xf32>
    %4 = vector.broadcast %3 : vector<1x32xf32> to vector<32x32xf32>
    %5 = arith.addf %2, %4 : vector<32x32xf32>
    %c0_5 = arith.constant 0 : index
    %c0_6 = arith.constant 0 : index
    %6 = vector.load %arg4[%c0_5, %c0_6] : memref<32x32xf32, #tpu.memory_space<vmem>>, vector<32x32xf32>
    %7 = arith.addf %5, %6 : vector<32x32xf32>
    %c0_7 = arith.constant 0 : index
    %c0_8 = arith.constant 0 : index
    %c0_9 = arith.constant 0 : index
    %8 = vector.load %arg7[%c0_7, %c0_8, %c0_9] : memref<2x32x96xf32, #tpu.memory_space<vmem>>, vector<1x32x96xf32>
    %9 = vector.shape_cast %8 : vector<1x32x96xf32> to vector<32x96xf32>
    %c0_10 = arith.constant 0 : index
    %c0_11 = arith.constant 0 : index
    %c0_12 = arith.constant 0 : index
    %10 = vector.load %arg8[%c0_10, %c0_11, %c0_12] : memref<2x1x96xf32, #tpu.memory_space<vmem>>, vector<1x1x96xf32>
    %11 = vector.shape_cast %10 : vector<1x1x96xf32> to vector<1x96xf32>
    %c0_13 = arith.constant 0 : index
    %c0_14 = arith.constant 0 : index
    %c0_15 = arith.constant 0 : index
    %12 = vector.load %arg9[%c0_13, %c0_14, %c0_15] : memref<2x32x32xf32, #tpu.memory_space<vmem>>, vector<1x32x32xf32>
    %13 = vector.shape_cast %12 : vector<1x32x32xf32> to vector<32x32xf32>
    %c0_16 = arith.constant 0 : index
    %c0_17 = arith.constant 0 : index
    %c0_18 = arith.constant 0 : index
    %14 = vector.load %arg10[%c0_16, %c0_17, %c0_18] : memref<2x1x32xf32, #tpu.memory_space<vmem>>, vector<1x1x32xf32>
    %15 = vector.shape_cast %14 : vector<1x1x32xf32> to vector<1x32xf32>
    %c0_19 = arith.constant 0 : index
    %c0_20 = arith.constant 0 : index
    %c0_21 = arith.constant 0 : index
    %16 = vector.load %arg5[%c0_19, %c0_20, %c0_21] : memref<2x1x32xf32, #tpu.memory_space<vmem>>, vector<1x1x32xf32>
    %17 = vector.shape_cast %16 : vector<1x1x32xf32> to vector<1x32xf32>
    %c0_22 = arith.constant 0 : index
    %c0_23 = arith.constant 0 : index
    %c0_24 = arith.constant 0 : index
    %18 = vector.load %arg6[%c0_22, %c0_23, %c0_24] : memref<2x1x32xf32, #tpu.memory_space<vmem>>, vector<1x1x32xf32>
    %19 = vector.shape_cast %18 : vector<1x1x32xf32> to vector<1x32xf32>
    %cst_25 = arith.constant dense<0.000000e+00> : vector<32xf32>
    %20 = vector.multi_reduction <add>, %7, %cst_25 [1] : vector<32x32xf32> to vector<32xf32>
    %21 = vector.shape_cast %20 : vector<32xf32> to vector<32x1xf32>
    %cst_26 = arith.constant 3.200000e+01 : f32
    %22 = vector.broadcast %cst_26 : f32 to vector<32x1xf32>
    %23 = arith.divf %21, %22 : vector<32x1xf32>
    %24 = vector.broadcast %23 : vector<32x1xf32> to vector<32x32xf32>
    %25 = arith.subf %7, %24 : vector<32x32xf32>
    %26 = arith.mulf %25, %25 : vector<32x32xf32>
    %cst_27 = arith.constant dense<0.000000e+00> : vector<32xf32>
    %27 = vector.multi_reduction <add>, %26, %cst_27 [1] : vector<32x32xf32> to vector<32xf32>
    %28 = vector.shape_cast %27 : vector<32xf32> to vector<32x1xf32>
    %cst_28 = arith.constant 3.200000e+01 : f32
    %29 = vector.broadcast %cst_28 : f32 to vector<32x1xf32>
    %30 = arith.divf %28, %29 : vector<32x1xf32>
    %31 = vector.broadcast %23 : vector<32x1xf32> to vector<32x32xf32>
    %32 = arith.subf %7, %31 : vector<32x32xf32>
    %cst_29 = arith.constant 9.99999997E-7 : f32
    %33 = vector.broadcast %cst_29 : f32 to vector<32x1xf32>
    %34 = arith.addf %30, %33 : vector<32x1xf32>
    %35 = math.rsqrt %34 : vector<32x1xf32>
    %36 = vector.broadcast %35 : vector<32x1xf32> to vector<32x32xf32>
    %37 = arith.mulf %32, %36 : vector<32x32xf32>
    %38 = vector.broadcast %17 : vector<1x32xf32> to vector<32x32xf32>
    %39 = arith.mulf %37, %38 : vector<32x32xf32>
    %40 = vector.broadcast %19 : vector<1x32xf32> to vector<32x32xf32>
    %41 = arith.addf %39, %40 : vector<32x32xf32>
    %cst_30 = arith.constant dense<0.000000e+00> : vector<32x96xf32>
    %42 = tpu.matmul %41, %9, %cst_30 {dimension_numbers = #tpu.dot_dimension_numbers<[1], [0], [0], [1], [0, 0, 1, 1], [], []>} : vector<32x32xf32>, vector<32x96xf32>, vector<32x96xf32> -> vector<32x96xf32>
    %43 = vector.broadcast %11 : vector<1x96xf32> to vector<32x96xf32>
    %44 = arith.addf %42, %43 : vector<32x96xf32>
    %45 = vector.extract_strided_slice %44 {offsets = [0, 0], sizes = [16, 8], strides = [1, 1]} : vector<32x96xf32> to vector<16x8xf32>
    %46 = vector.extract_strided_slice %44 {offsets = [0, 32], sizes = [16, 8], strides = [1, 1]} : vector<32x96xf32> to vector<16x8xf32>
    %47 = vector.extract_strided_slice %44 {offsets = [0, 64], sizes = [16, 8], strides = [1, 1]} : vector<32x96xf32> to vector<16x8xf32>
    %cst_31 = arith.constant dense<0.000000e+00> : vector<16x16xf32>
    %48 = tpu.matmul %45, %46, %cst_31 {dimension_numbers = #tpu.dot_dimension_numbers<[1], [1], [0], [0], [0, 0, 1, 0], [], []>} : vector<16x8xf32>, vector<16x8xf32>, vector<16x16xf32> -> vector<16x16xf32>
    %cst_32 = arith.constant 0.353553385 : f32
    %49 = vector.broadcast %cst_32 : f32 to vector<16x16xf32>
    %50 = arith.mulf %48, %49 : vector<16x16xf32>
    %cst_33 = arith.constant dense<0xFF800000> : vector<16xf32>
    %51 = vector.multi_reduction <maximumf>, %50, %cst_33 [1] : vector<16x16xf32> to vector<16xf32>
    %52 = vector.shape_cast %51 : vector<16xf32> to vector<16x1xf32>
    %53 = vector.broadcast %52 : vector<16x1xf32> to vector<16x16xf32>
    %54 = arith.subf %50, %53 : vector<16x16xf32>
    %55 = math.exp %54 : vector<16x16xf32>
    %cst_34 = arith.constant dense<0.000000e+00> : vector<16xf32>
    %56 = vector.multi_reduction <add>, %55, %cst_34 [1] : vector<16x16xf32> to vector<16xf32>
    %57 = vector.shape_cast %56 : vector<16xf32> to vector<16x1xf32>
    %58 = tpu.reciprocal %57 {approx = true} : vector<16x1xf32> -> vector<16x1xf32>
    %59 = vector.broadcast %58 : vector<16x1xf32> to vector<16x16xf32>
    %60 = arith.mulf %55, %59 : vector<16x16xf32>
    %cst_35 = arith.constant dense<0.000000e+00> : vector<16x8xf32>
    %61 = tpu.matmul %60, %47, %cst_35 {dimension_numbers = #tpu.dot_dimension_numbers<[1], [0], [0], [1], [0, 0, 1, 1], [], []>} : vector<16x16xf32>, vector<16x8xf32>, vector<16x8xf32> -> vector<16x8xf32>
    %62 = vector.extract_strided_slice %13 {offsets = [0, 0], sizes = [8, 32], strides = [1, 1]} : vector<32x32xf32> to vector<8x32xf32>
    %cst_36 = arith.constant dense<0.000000e+00> : vector<16x32xf32>
    %63 = tpu.matmul %61, %62, %cst_36 {dimension_numbers = #tpu.dot_dimension_numbers<[1], [0], [0], [1], [0, 0, 1, 1], [], []>} : vector<16x8xf32>, vector<8x32xf32>, vector<16x32xf32> -> vector<16x32xf32>
    %64 = vector.extract_strided_slice %44 {offsets = [0, 8], sizes = [16, 8], strides = [1, 1]} : vector<32x96xf32> to vector<16x8xf32>
    %65 = vector.extract_strided_slice %44 {offsets = [0, 40], sizes = [16, 8], strides = [1, 1]} : vector<32x96xf32> to vector<16x8xf32>
    %66 = vector.extract_strided_slice %44 {offsets = [0, 72], sizes = [16, 8], strides = [1, 1]} : vector<32x96xf32> to vector<16x8xf32>
    %cst_37 = arith.constant dense<0.000000e+00> : vector<16x16xf32>
    %67 = tpu.matmul %64, %65, %cst_37 {dimension_numbers = #tpu.dot_dimension_numbers<[1], [1], [0], [0], [0, 0, 1, 0], [], []>} : vector<16x8xf32>, vector<16x8xf32>, vector<16x16xf32> -> vector<16x16xf32>
    %cst_38 = arith.constant 0.353553385 : f32
    %68 = vector.broadcast %cst_38 : f32 to vector<16x16xf32>
    %69 = arith.mulf %67, %68 : vector<16x16xf32>
    %cst_39 = arith.constant dense<0xFF800000> : vector<16xf32>
    %70 = vector.multi_reduction <maximumf>, %69, %cst_39 [1] : vector<16x16xf32> to vector<16xf32>
    %71 = vector.shape_cast %70 : vector<16xf32> to vector<16x1xf32>
    %72 = vector.broadcast %71 : vector<16x1xf32> to vector<16x16xf32>
    %73 = arith.subf %69, %72 : vector<16x16xf32>
    %74 = math.exp %73 : vector<16x16xf32>
    %cst_40 = arith.constant dense<0.000000e+00> : vector<16xf32>
    %75 = vector.multi_reduction <add>, %74, %cst_40 [1] : vector<16x16xf32> to vector<16xf32>
    %76 = vector.shape_cast %75 : vector<16xf32> to vector<16x1xf32>
    %77 = tpu.reciprocal %76 {approx = true} : vector<16x1xf32> -> vector<16x1xf32>
    %78 = vector.broadcast %77 : vector<16x1xf32> to vector<16x16xf32>
    %79 = arith.mulf %74, %78 : vector<16x16xf32>
    %cst_41 = arith.constant dense<0.000000e+00> : vector<16x8xf32>
    %80 = tpu.matmul %79, %66, %cst_41 {dimension_numbers = #tpu.dot_dimension_numbers<[1], [0], [0], [1], [0, 0, 1, 1], [], []>} : vector<16x16xf32>, vector<16x8xf32>, vector<16x8xf32> -> vector<16x8xf32>
    %81 = vector.extract_strided_slice %13 {offsets = [8, 0], sizes = [8, 32], strides = [1, 1]} : vector<32x32xf32> to vector<8x32xf32>
    %cst_42 = arith.constant dense<0.000000e+00> : vector<16x32xf32>
    %82 = tpu.matmul %80, %81, %cst_42 {dimension_numbers = #tpu.dot_dimension_numbers<[1], [0], [0], [1], [0, 0, 1, 1], [], []>} : vector<16x8xf32>, vector<8x32xf32>, vector<16x32xf32> -> vector<16x32xf32>
    %83 = arith.addf %63, %82 : vector<16x32xf32>
    %84 = vector.extract_strided_slice %44 {offsets = [0, 16], sizes = [16, 8], strides = [1, 1]} : vector<32x96xf32> to vector<16x8xf32>
    %85 = vector.extract_strided_slice %44 {offsets = [0, 48], sizes = [16, 8], strides = [1, 1]} : vector<32x96xf32> to vector<16x8xf32>
    %86 = vector.extract_strided_slice %44 {offsets = [0, 80], sizes = [16, 8], strides = [1, 1]} : vector<32x96xf32> to vector<16x8xf32>
    %cst_43 = arith.constant dense<0.000000e+00> : vector<16x16xf32>
    %87 = tpu.matmul %84, %85, %cst_43 {dimension_numbers = #tpu.dot_dimension_numbers<[1], [1], [0], [0], [0, 0, 1, 0], [], []>} : vector<16x8xf32>, vector<16x8xf32>, vector<16x16xf32> -> vector<16x16xf32>
    %cst_44 = arith.constant 0.353553385 : f32
    %88 = vector.broadcast %cst_44 : f32 to vector<16x16xf32>
    %89 = arith.mulf %87, %88 : vector<16x16xf32>
    %cst_45 = arith.constant dense<0xFF800000> : vector<16xf32>
    %90 = vector.multi_reduction <maximumf>, %89, %cst_45 [1] : vector<16x16xf32> to vector<16xf32>
    %91 = vector.shape_cast %90 : vector<16xf32> to vector<16x1xf32>
    %92 = vector.broadcast %91 : vector<16x1xf32> to vector<16x16xf32>
    %93 = arith.subf %89, %92 : vector<16x16xf32>
    %94 = math.exp %93 : vector<16x16xf32>
    %cst_46 = arith.constant dense<0.000000e+00> : vector<16xf32>
    %95 = vector.multi_reduction <add>, %94, %cst_46 [1] : vector<16x16xf32> to vector<16xf32>
    %96 = vector.shape_cast %95 : vector<16xf32> to vector<16x1xf32>
    %97 = tpu.reciprocal %96 {approx = true} : vector<16x1xf32> -> vector<16x1xf32>
    %98 = vector.broadcast %97 : vector<16x1xf32> to vector<16x16xf32>
    %99 = arith.mulf %94, %98 : vector<16x16xf32>
    %cst_47 = arith.constant dense<0.000000e+00> : vector<16x8xf32>
    %100 = tpu.matmul %99, %86, %cst_47 {dimension_numbers = #tpu.dot_dimension_numbers<[1], [0], [0], [1], [0, 0, 1, 1], [], []>} : vector<16x16xf32>, vector<16x8xf32>, vector<16x8xf32> -> vector<16x8xf32>
    %101 = vector.extract_strided_slice %13 {offsets = [16, 0], sizes = [8, 32], strides = [1, 1]} : vector<32x32xf32> to vector<8x32xf32>
    %cst_48 = arith.constant dense<0.000000e+00> : vector<16x32xf32>
    %102 = tpu.matmul %100, %101, %cst_48 {dimension_numbers = #tpu.dot_dimension_numbers<[1], [0], [0], [1], [0, 0, 1, 1], [], []>} : vector<16x8xf32>, vector<8x32xf32>, vector<16x32xf32> -> vector<16x32xf32>
    %103 = arith.addf %83, %102 : vector<16x32xf32>
    %104 = vector.extract_strided_slice %44 {offsets = [0, 24], sizes = [16, 8], strides = [1, 1]} : vector<32x96xf32> to vector<16x8xf32>
    %105 = vector.extract_strided_slice %44 {offsets = [0, 56], sizes = [16, 8], strides = [1, 1]} : vector<32x96xf32> to vector<16x8xf32>
    %106 = vector.extract_strided_slice %44 {offsets = [0, 88], sizes = [16, 8], strides = [1, 1]} : vector<32x96xf32> to vector<16x8xf32>
    %cst_49 = arith.constant dense<0.000000e+00> : vector<16x16xf32>
    %107 = tpu.matmul %104, %105, %cst_49 {dimension_numbers = #tpu.dot_dimension_numbers<[1], [1], [0], [0], [0, 0, 1, 0], [], []>} : vector<16x8xf32>, vector<16x8xf32>, vector<16x16xf32> -> vector<16x16xf32>
    %cst_50 = arith.constant 0.353553385 : f32
    %108 = vector.broadcast %cst_50 : f32 to vector<16x16xf32>
    %109 = arith.mulf %107, %108 : vector<16x16xf32>
    %cst_51 = arith.constant dense<0xFF800000> : vector<16xf32>
    %110 = vector.multi_reduction <maximumf>, %109, %cst_51 [1] : vector<16x16xf32> to vector<16xf32>
    %111 = vector.shape_cast %110 : vector<16xf32> to vector<16x1xf32>
    %112 = vector.broadcast %111 : vector<16x1xf32> to vector<16x16xf32>
    %113 = arith.subf %109, %112 : vector<16x16xf32>
    %114 = math.exp %113 : vector<16x16xf32>
    %cst_52 = arith.constant dense<0.000000e+00> : vector<16xf32>
    %115 = vector.multi_reduction <add>, %114, %cst_52 [1] : vector<16x16xf32> to vector<16xf32>
    %116 = vector.shape_cast %115 : vector<16xf32> to vector<16x1xf32>
    %117 = tpu.reciprocal %116 {approx = true} : vector<16x1xf32> -> vector<16x1xf32>
    %118 = vector.broadcast %117 : vector<16x1xf32> to vector<16x16xf32>
    %119 = arith.mulf %114, %118 : vector<16x16xf32>
    %cst_53 = arith.constant dense<0.000000e+00> : vector<16x8xf32>
    %120 = tpu.matmul %119, %106, %cst_53 {dimension_numbers = #tpu.dot_dimension_numbers<[1], [0], [0], [1], [0, 0, 1, 1], [], []>} : vector<16x16xf32>, vector<16x8xf32>, vector<16x8xf32> -> vector<16x8xf32>
    %121 = vector.extract_strided_slice %13 {offsets = [24, 0], sizes = [8, 32], strides = [1, 1]} : vector<32x32xf32> to vector<8x32xf32>
    %cst_54 = arith.constant dense<0.000000e+00> : vector<16x32xf32>
    %122 = tpu.matmul %120, %121, %cst_54 {dimension_numbers = #tpu.dot_dimension_numbers<[1], [0], [0], [1], [0, 0, 1, 1], [], []>} : vector<16x8xf32>, vector<8x32xf32>, vector<16x32xf32> -> vector<16x32xf32>
    %123 = arith.addf %103, %122 : vector<16x32xf32>
    %124 = vector.extract_strided_slice %44 {offsets = [16, 0], sizes = [16, 8], strides = [1, 1]} : vector<32x96xf32> to vector<16x8xf32>
    %125 = vector.extract_strided_slice %44 {offsets = [16, 32], sizes = [16, 8], strides = [1, 1]} : vector<32x96xf32> to vector<16x8xf32>
    %126 = vector.extract_strided_slice %44 {offsets = [16, 64], sizes = [16, 8], strides = [1, 1]} : vector<32x96xf32> to vector<16x8xf32>
    %cst_55 = arith.constant dense<0.000000e+00> : vector<16x16xf32>
    %127 = tpu.matmul %124, %125, %cst_55 {dimension_numbers = #tpu.dot_dimension_numbers<[1], [1], [0], [0], [0, 0, 1, 0], [], []>} : vector<16x8xf32>, vector<16x8xf32>, vector<16x16xf32> -> vector<16x16xf32>
    %cst_56 = arith.constant 0.353553385 : f32
    %128 = vector.broadcast %cst_56 : f32 to vector<16x16xf32>
    %129 = arith.mulf %127, %128 : vector<16x16xf32>
    %cst_57 = arith.constant dense<0xFF800000> : vector<16xf32>
    %130 = vector.multi_reduction <maximumf>, %129, %cst_57 [1] : vector<16x16xf32> to vector<16xf32>
    %131 = vector.shape_cast %130 : vector<16xf32> to vector<16x1xf32>
    %132 = vector.broadcast %131 : vector<16x1xf32> to vector<16x16xf32>
    %133 = arith.subf %129, %132 : vector<16x16xf32>
    %134 = math.exp %133 : vector<16x16xf32>
    %cst_58 = arith.constant dense<0.000000e+00> : vector<16xf32>
    %135 = vector.multi_reduction <add>, %134, %cst_58 [1] : vector<16x16xf32> to vector<16xf32>
    %136 = vector.shape_cast %135 : vector<16xf32> to vector<16x1xf32>
    %137 = tpu.reciprocal %136 {approx = true} : vector<16x1xf32> -> vector<16x1xf32>
    %138 = vector.broadcast %137 : vector<16x1xf32> to vector<16x16xf32>
    %139 = arith.mulf %134, %138 : vector<16x16xf32>
    %cst_59 = arith.constant dense<0.000000e+00> : vector<16x8xf32>
    %140 = tpu.matmul %139, %126, %cst_59 {dimension_numbers = #tpu.dot_dimension_numbers<[1], [0], [0], [1], [0, 0, 1, 1], [], []>} : vector<16x16xf32>, vector<16x8xf32>, vector<16x8xf32> -> vector<16x8xf32>
    %141 = vector.extract_strided_slice %13 {offsets = [0, 0], sizes = [8, 32], strides = [1, 1]} : vector<32x32xf32> to vector<8x32xf32>
    %cst_60 = arith.constant dense<0.000000e+00> : vector<16x32xf32>
    %142 = tpu.matmul %140, %141, %cst_60 {dimension_numbers = #tpu.dot_dimension_numbers<[1], [0], [0], [1], [0, 0, 1, 1], [], []>} : vector<16x8xf32>, vector<8x32xf32>, vector<16x32xf32> -> vector<16x32xf32>
    %143 = vector.extract_strided_slice %44 {offsets = [16, 8], sizes = [16, 8], strides = [1, 1]} : vector<32x96xf32> to vector<16x8xf32>
    %144 = vector.extract_strided_slice %44 {offsets = [16, 40], sizes = [16, 8], strides = [1, 1]} : vector<32x96xf32> to vector<16x8xf32>
    %145 = vector.extract_strided_slice %44 {offsets = [16, 72], sizes = [16, 8], strides = [1, 1]} : vector<32x96xf32> to vector<16x8xf32>
    %cst_61 = arith.constant dense<0.000000e+00> : vector<16x16xf32>
    %146 = tpu.matmul %143, %144, %cst_61 {dimension_numbers = #tpu.dot_dimension_numbers<[1], [1], [0], [0], [0, 0, 1, 0], [], []>} : vector<16x8xf32>, vector<16x8xf32>, vector<16x16xf32> -> vector<16x16xf32>
    %cst_62 = arith.constant 0.353553385 : f32
    %147 = vector.broadcast %cst_62 : f32 to vector<16x16xf32>
    %148 = arith.mulf %146, %147 : vector<16x16xf32>
    %cst_63 = arith.constant dense<0xFF800000> : vector<16xf32>
    %149 = vector.multi_reduction <maximumf>, %148, %cst_63 [1] : vector<16x16xf32> to vector<16xf32>
    %150 = vector.shape_cast %149 : vector<16xf32> to vector<16x1xf32>
    %151 = vector.broadcast %150 : vector<16x1xf32> to vector<16x16xf32>
    %152 = arith.subf %148, %151 : vector<16x16xf32>
    %153 = math.exp %152 : vector<16x16xf32>
    %cst_64 = arith.constant dense<0.000000e+00> : vector<16xf32>
    %154 = vector.multi_reduction <add>, %153, %cst_64 [1] : vector<16x16xf32> to vector<16xf32>
    %155 = vector.shape_cast %154 : vector<16xf32> to vector<16x1xf32>
    %156 = tpu.reciprocal %155 {approx = true} : vector<16x1xf32> -> vector<16x1xf32>
    %157 = vector.broadcast %156 : vector<16x1xf32> to vector<16x16xf32>
    %158 = arith.mulf %153, %157 : vector<16x16xf32>
    %cst_65 = arith.constant dense<0.000000e+00> : vector<16x8xf32>
    %159 = tpu.matmul %158, %145, %cst_65 {dimension_numbers = #tpu.dot_dimension_numbers<[1], [0], [0], [1], [0, 0, 1, 1], [], []>} : vector<16x16xf32>, vector<16x8xf32>, vector<16x8xf32> -> vector<16x8xf32>
    %160 = vector.extract_strided_slice %13 {offsets = [8, 0], sizes = [8, 32], strides = [1, 1]} : vector<32x32xf32> to vector<8x32xf32>
    %cst_66 = arith.constant dense<0.000000e+00> : vector<16x32xf32>
    %161 = tpu.matmul %159, %160, %cst_66 {dimension_numbers = #tpu.dot_dimension_numbers<[1], [0], [0], [1], [0, 0, 1, 1], [], []>} : vector<16x8xf32>, vector<8x32xf32>, vector<16x32xf32> -> vector<16x32xf32>
    %162 = arith.addf %142, %161 : vector<16x32xf32>
    %163 = vector.extract_strided_slice %44 {offsets = [16, 16], sizes = [16, 8], strides = [1, 1]} : vector<32x96xf32> to vector<16x8xf32>
    %164 = vector.extract_strided_slice %44 {offsets = [16, 48], sizes = [16, 8], strides = [1, 1]} : vector<32x96xf32> to vector<16x8xf32>
    %165 = vector.extract_strided_slice %44 {offsets = [16, 80], sizes = [16, 8], strides = [1, 1]} : vector<32x96xf32> to vector<16x8xf32>
    %cst_67 = arith.constant dense<0.000000e+00> : vector<16x16xf32>
    %166 = tpu.matmul %163, %164, %cst_67 {dimension_numbers = #tpu.dot_dimension_numbers<[1], [1], [0], [0], [0, 0, 1, 0], [], []>} : vector<16x8xf32>, vector<16x8xf32>, vector<16x16xf32> -> vector<16x16xf32>
    %cst_68 = arith.constant 0.353553385 : f32
    %167 = vector.broadcast %cst_68 : f32 to vector<16x16xf32>
    %168 = arith.mulf %166, %167 : vector<16x16xf32>
    %cst_69 = arith.constant dense<0xFF800000> : vector<16xf32>
    %169 = vector.multi_reduction <maximumf>, %168, %cst_69 [1] : vector<16x16xf32> to vector<16xf32>
    %170 = vector.shape_cast %169 : vector<16xf32> to vector<16x1xf32>
    %171 = vector.broadcast %170 : vector<16x1xf32> to vector<16x16xf32>
    %172 = arith.subf %168, %171 : vector<16x16xf32>
    %173 = math.exp %172 : vector<16x16xf32>
    %cst_70 = arith.constant dense<0.000000e+00> : vector<16xf32>
    %174 = vector.multi_reduction <add>, %173, %cst_70 [1] : vector<16x16xf32> to vector<16xf32>
    %175 = vector.shape_cast %174 : vector<16xf32> to vector<16x1xf32>
    %176 = tpu.reciprocal %175 {approx = true} : vector<16x1xf32> -> vector<16x1xf32>
    %177 = vector.broadcast %176 : vector<16x1xf32> to vector<16x16xf32>
    %178 = arith.mulf %173, %177 : vector<16x16xf32>
    %cst_71 = arith.constant dense<0.000000e+00> : vector<16x8xf32>
    %179 = tpu.matmul %178, %165, %cst_71 {dimension_numbers = #tpu.dot_dimension_numbers<[1], [0], [0], [1], [0, 0, 1, 1], [], []>} : vector<16x16xf32>, vector<16x8xf32>, vector<16x8xf32> -> vector<16x8xf32>
    %180 = vector.extract_strided_slice %13 {offsets = [16, 0], sizes = [8, 32], strides = [1, 1]} : vector<32x32xf32> to vector<8x32xf32>
    %cst_72 = arith.constant dense<0.000000e+00> : vector<16x32xf32>
    %181 = tpu.matmul %179, %180, %cst_72 {dimension_numbers = #tpu.dot_dimension_numbers<[1], [0], [0], [1], [0, 0, 1, 1], [], []>} : vector<16x8xf32>, vector<8x32xf32>, vector<16x32xf32> -> vector<16x32xf32>
    %182 = arith.addf %162, %181 : vector<16x32xf32>
    %183 = vector.extract_strided_slice %44 {offsets = [16, 24], sizes = [16, 8], strides = [1, 1]} : vector<32x96xf32> to vector<16x8xf32>
    %184 = vector.extract_strided_slice %44 {offsets = [16, 56], sizes = [16, 8], strides = [1, 1]} : vector<32x96xf32> to vector<16x8xf32>
    %185 = vector.extract_strided_slice %44 {offsets = [16, 88], sizes = [16, 8], strides = [1, 1]} : vector<32x96xf32> to vector<16x8xf32>
    %cst_73 = arith.constant dense<0.000000e+00> : vector<16x16xf32>
    %186 = tpu.matmul %183, %184, %cst_73 {dimension_numbers = #tpu.dot_dimension_numbers<[1], [1], [0], [0], [0, 0, 1, 0], [], []>} : vector<16x8xf32>, vector<16x8xf32>, vector<16x16xf32> -> vector<16x16xf32>
    %cst_74 = arith.constant 0.353553385 : f32
    %187 = vector.broadcast %cst_74 : f32 to vector<16x16xf32>
    %188 = arith.mulf %186, %187 : vector<16x16xf32>
    %cst_75 = arith.constant dense<0xFF800000> : vector<16xf32>
    %189 = vector.multi_reduction <maximumf>, %188, %cst_75 [1] : vector<16x16xf32> to vector<16xf32>
    %190 = vector.shape_cast %189 : vector<16xf32> to vector<16x1xf32>
    %191 = vector.broadcast %190 : vector<16x1xf32> to vector<16x16xf32>
    %192 = arith.subf %188, %191 : vector<16x16xf32>
    %193 = math.exp %192 : vector<16x16xf32>
    %cst_76 = arith.constant dense<0.000000e+00> : vector<16xf32>
    %194 = vector.multi_reduction <add>, %193, %cst_76 [1] : vector<16x16xf32> to vector<16xf32>
    %195 = vector.shape_cast %194 : vector<16xf32> to vector<16x1xf32>
    %196 = tpu.reciprocal %195 {approx = true} : vector<16x1xf32> -> vector<16x1xf32>
    %197 = vector.broadcast %196 : vector<16x1xf32> to vector<16x16xf32>
    %198 = arith.mulf %193, %197 : vector<16x16xf32>
    %cst_77 = arith.constant dense<0.000000e+00> : vector<16x8xf32>
    %199 = tpu.matmul %198, %185, %cst_77 {dimension_numbers = #tpu.dot_dimension_numbers<[1], [0], [0], [1], [0, 0, 1, 1], [], []>} : vector<16x16xf32>, vector<16x8xf32>, vector<16x8xf32> -> vector<16x8xf32>
    %200 = vector.extract_strided_slice %13 {offsets = [24, 0], sizes = [8, 32], strides = [1, 1]} : vector<32x32xf32> to vector<8x32xf32>
    %cst_78 = arith.constant dense<0.000000e+00> : vector<16x32xf32>
    %201 = tpu.matmul %199, %200, %cst_78 {dimension_numbers = #tpu.dot_dimension_numbers<[1], [0], [0], [1], [0, 0, 1, 1], [], []>} : vector<16x8xf32>, vector<8x32xf32>, vector<16x32xf32> -> vector<16x32xf32>
    %202 = arith.addf %182, %201 : vector<16x32xf32>
    %203 = tpu.concatenate %123, %202 in 0 : vector<16x32xf32>, vector<16x32xf32> -> vector<32x32xf32>
    %204 = arith.addf %7, %203 : vector<32x32xf32>
    %205 = vector.broadcast %15 : vector<1x32xf32> to vector<32x32xf32>
    %206 = arith.addf %204, %205 : vector<32x32xf32>
    %c0_79 = arith.constant 0 : index
    %c0_80 = arith.constant 0 : index
    %c0_81 = arith.constant 0 : index
    %207 = vector.load %arg11[%c0_79, %c0_80, %c0_81] : memref<2x1x32xf32, #tpu.memory_space<vmem>>, vector<1x1x32xf32>
    %208 = vector.shape_cast %207 : vector<1x1x32xf32> to vector<1x32xf32>
    %c0_82 = arith.constant 0 : index
    %c0_83 = arith.constant 0 : index
    %c0_84 = arith.constant 0 : index
    %209 = vector.load %arg12[%c0_82, %c0_83, %c0_84] : memref<2x1x32xf32, #tpu.memory_space<vmem>>, vector<1x1x32xf32>
    %210 = vector.shape_cast %209 : vector<1x1x32xf32> to vector<1x32xf32>
    %cst_85 = arith.constant dense<0.000000e+00> : vector<32xf32>
    %211 = vector.multi_reduction <add>, %206, %cst_85 [1] : vector<32x32xf32> to vector<32xf32>
    %212 = vector.shape_cast %211 : vector<32xf32> to vector<32x1xf32>
    %cst_86 = arith.constant 3.200000e+01 : f32
    %213 = vector.broadcast %cst_86 : f32 to vector<32x1xf32>
    %214 = arith.divf %212, %213 : vector<32x1xf32>
    %215 = vector.broadcast %214 : vector<32x1xf32> to vector<32x32xf32>
    %216 = arith.subf %206, %215 : vector<32x32xf32>
    %217 = arith.mulf %216, %216 : vector<32x32xf32>
    %cst_87 = arith.constant dense<0.000000e+00> : vector<32xf32>
    %218 = vector.multi_reduction <add>, %217, %cst_87 [1] : vector<32x32xf32> to vector<32xf32>
    %219 = vector.shape_cast %218 : vector<32xf32> to vector<32x1xf32>
    %cst_88 = arith.constant 3.200000e+01 : f32
    %220 = vector.broadcast %cst_88 : f32 to vector<32x1xf32>
    %221 = arith.divf %219, %220 : vector<32x1xf32>
    %222 = vector.broadcast %214 : vector<32x1xf32> to vector<32x32xf32>
    %223 = arith.subf %206, %222 : vector<32x32xf32>
    %cst_89 = arith.constant 9.99999997E-7 : f32
    %224 = vector.broadcast %cst_89 : f32 to vector<32x1xf32>
    %225 = arith.addf %221, %224 : vector<32x1xf32>
    %226 = math.rsqrt %225 : vector<32x1xf32>
    %227 = vector.broadcast %226 : vector<32x1xf32> to vector<32x32xf32>
    %228 = arith.mulf %223, %227 : vector<32x32xf32>
    %229 = vector.broadcast %208 : vector<1x32xf32> to vector<32x32xf32>
    %230 = arith.mulf %228, %229 : vector<32x32xf32>
    %231 = vector.broadcast %210 : vector<1x32xf32> to vector<32x32xf32>
    %232 = arith.addf %230, %231 : vector<32x32xf32>
    %c0_90 = arith.constant 0 : index
    %c0_91 = arith.constant 0 : index
    %c0_92 = arith.constant 0 : index
    %233 = vector.load %arg13[%c0_90, %c0_91, %c0_92] : memref<2x32x64xf32, #tpu.memory_space<vmem>>, vector<1x32x64xf32>
    %234 = vector.shape_cast %233 : vector<1x32x64xf32> to vector<32x64xf32>
    %cst_93 = arith.constant dense<0.000000e+00> : vector<32x64xf32>
    %235 = tpu.matmul %232, %234, %cst_93 {dimension_numbers = #tpu.dot_dimension_numbers<[1], [0], [0], [1], [0, 0, 1, 1], [], []>} : vector<32x32xf32>, vector<32x64xf32>, vector<32x64xf32> -> vector<32x64xf32>
    %c0_94 = arith.constant 0 : index
    %c0_95 = arith.constant 0 : index
    %c0_96 = arith.constant 0 : index
    %236 = vector.load %arg14[%c0_94, %c0_95, %c0_96] : memref<2x1x64xf32, #tpu.memory_space<vmem>>, vector<1x1x64xf32>
    %237 = vector.shape_cast %236 : vector<1x1x64xf32> to vector<1x64xf32>
    %238 = vector.broadcast %237 : vector<1x64xf32> to vector<32x64xf32>
    %239 = arith.addf %235, %238 : vector<32x64xf32>
    %cst_97 = arith.constant 5.000000e-01 : f32
    %240 = vector.broadcast %cst_97 : f32 to vector<32x64xf32>
    %241 = arith.mulf %240, %239 : vector<32x64xf32>
    %cst_98 = arith.constant 4.471500e-02 : f32
    %242 = vector.broadcast %cst_98 : f32 to vector<32x64xf32>
    %243 = arith.mulf %242, %239 : vector<32x64xf32>
    %244 = arith.mulf %243, %239 : vector<32x64xf32>
    %245 = arith.mulf %244, %239 : vector<32x64xf32>
    %246 = arith.addf %239, %245 : vector<32x64xf32>
    %cst_99 = arith.constant 0.797884583 : f32
    %247 = vector.broadcast %cst_99 : f32 to vector<32x64xf32>
    %248 = arith.mulf %247, %246 : vector<32x64xf32>
    %249 = math.tanh %248 : vector<32x64xf32>
    %cst_100 = arith.constant 1.000000e+00 : f32
    %250 = vector.broadcast %cst_100 : f32 to vector<32x64xf32>
    %251 = arith.addf %250, %249 : vector<32x64xf32>
    %252 = arith.mulf %241, %251 : vector<32x64xf32>
    %c0_101 = arith.constant 0 : index
    %c0_102 = arith.constant 0 : index
    %c0_103 = arith.constant 0 : index
    %253 = vector.load %arg15[%c0_101, %c0_102, %c0_103] : memref<2x64x32xf32, #tpu.memory_space<vmem>>, vector<1x64x32xf32>
    %254 = vector.shape_cast %253 : vector<1x64x32xf32> to vector<64x32xf32>
    %cst_104 = arith.constant dense<0.000000e+00> : vector<32x32xf32>
    %255 = tpu.matmul %252, %254, %cst_104 {dimension_numbers = #tpu.dot_dimension_numbers<[1], [0], [0], [1], [0, 0, 1, 1], [], []>} : vector<32x64xf32>, vector<64x32xf32>, vector<32x32xf32> -> vector<32x32xf32>
    %256 = arith.addf %206, %255 : vector<32x32xf32>
    %c0_105 = arith.constant 0 : index
    %c0_106 = arith.constant 0 : index
    %c0_107 = arith.constant 0 : index
    %257 = vector.load %arg16[%c0_105, %c0_106, %c0_107] : memref<2x1x32xf32, #tpu.memory_space<vmem>>, vector<1x1x32xf32>
    %258 = vector.shape_cast %257 : vector<1x1x32xf32> to vector<1x32xf32>
    %259 = vector.broadcast %258 : vector<1x32xf32> to vector<32x32xf32>
    %260 = arith.addf %256, %259 : vector<32x32xf32>
    %c1 = arith.constant 1 : index
    %c0_108 = arith.constant 0 : index
    %c0_109 = arith.constant 0 : index
    %261 = vector.load %arg7[%c1, %c0_108, %c0_109] : memref<2x32x96xf32, #tpu.memory_space<vmem>>, vector<1x32x96xf32>
    %262 = vector.shape_cast %261 : vector<1x32x96xf32> to vector<32x96xf32>
    %c1_110 = arith.constant 1 : index
    %c0_111 = arith.constant 0 : index
    %c0_112 = arith.constant 0 : index
    %263 = vector.load %arg8[%c1_110, %c0_111, %c0_112] : memref<2x1x96xf32, #tpu.memory_space<vmem>>, vector<1x1x96xf32>
    %264 = vector.shape_cast %263 : vector<1x1x96xf32> to vector<1x96xf32>
    %c1_113 = arith.constant 1 : index
    %c0_114 = arith.constant 0 : index
    %c0_115 = arith.constant 0 : index
    %265 = vector.load %arg9[%c1_113, %c0_114, %c0_115] : memref<2x32x32xf32, #tpu.memory_space<vmem>>, vector<1x32x32xf32>
    %266 = vector.shape_cast %265 : vector<1x32x32xf32> to vector<32x32xf32>
    %c1_116 = arith.constant 1 : index
    %c0_117 = arith.constant 0 : index
    %c0_118 = arith.constant 0 : index
    %267 = vector.load %arg10[%c1_116, %c0_117, %c0_118] : memref<2x1x32xf32, #tpu.memory_space<vmem>>, vector<1x1x32xf32>
    %268 = vector.shape_cast %267 : vector<1x1x32xf32> to vector<1x32xf32>
    %c1_119 = arith.constant 1 : index
    %c0_120 = arith.constant 0 : index
    %c0_121 = arith.constant 0 : index
    %269 = vector.load %arg5[%c1_119, %c0_120, %c0_121] : memref<2x1x32xf32, #tpu.memory_space<vmem>>, vector<1x1x32xf32>
    %270 = vector.shape_cast %269 : vector<1x1x32xf32> to vector<1x32xf32>
    %c1_122 = arith.constant 1 : index
    %c0_123 = arith.constant 0 : index
    %c0_124 = arith.constant 0 : index
    %271 = vector.load %arg6[%c1_122, %c0_123, %c0_124] : memref<2x1x32xf32, #tpu.memory_space<vmem>>, vector<1x1x32xf32>
    %272 = vector.shape_cast %271 : vector<1x1x32xf32> to vector<1x32xf32>
    %cst_125 = arith.constant dense<0.000000e+00> : vector<32xf32>
    %273 = vector.multi_reduction <add>, %260, %cst_125 [1] : vector<32x32xf32> to vector<32xf32>
    %274 = vector.shape_cast %273 : vector<32xf32> to vector<32x1xf32>
    %cst_126 = arith.constant 3.200000e+01 : f32
    %275 = vector.broadcast %cst_126 : f32 to vector<32x1xf32>
    %276 = arith.divf %274, %275 : vector<32x1xf32>
    %277 = vector.broadcast %276 : vector<32x1xf32> to vector<32x32xf32>
    %278 = arith.subf %260, %277 : vector<32x32xf32>
    %279 = arith.mulf %278, %278 : vector<32x32xf32>
    %cst_127 = arith.constant dense<0.000000e+00> : vector<32xf32>
    %280 = vector.multi_reduction <add>, %279, %cst_127 [1] : vector<32x32xf32> to vector<32xf32>
    %281 = vector.shape_cast %280 : vector<32xf32> to vector<32x1xf32>
    %cst_128 = arith.constant 3.200000e+01 : f32
    %282 = vector.broadcast %cst_128 : f32 to vector<32x1xf32>
    %283 = arith.divf %281, %282 : vector<32x1xf32>
    %284 = vector.broadcast %276 : vector<32x1xf32> to vector<32x32xf32>
    %285 = arith.subf %260, %284 : vector<32x32xf32>
    %cst_129 = arith.constant 9.99999997E-7 : f32
    %286 = vector.broadcast %cst_129 : f32 to vector<32x1xf32>
    %287 = arith.addf %283, %286 : vector<32x1xf32>
    %288 = math.rsqrt %287 : vector<32x1xf32>
    %289 = vector.broadcast %288 : vector<32x1xf32> to vector<32x32xf32>
    %290 = arith.mulf %285, %289 : vector<32x32xf32>
    %291 = vector.broadcast %270 : vector<1x32xf32> to vector<32x32xf32>
    %292 = arith.mulf %290, %291 : vector<32x32xf32>
    %293 = vector.broadcast %272 : vector<1x32xf32> to vector<32x32xf32>
    %294 = arith.addf %292, %293 : vector<32x32xf32>
    %cst_130 = arith.constant dense<0.000000e+00> : vector<32x96xf32>
    %295 = tpu.matmul %294, %262, %cst_130 {dimension_numbers = #tpu.dot_dimension_numbers<[1], [0], [0], [1], [0, 0, 1, 1], [], []>} : vector<32x32xf32>, vector<32x96xf32>, vector<32x96xf32> -> vector<32x96xf32>
    %296 = vector.broadcast %264 : vector<1x96xf32> to vector<32x96xf32>
    %297 = arith.addf %295, %296 : vector<32x96xf32>
    %298 = vector.extract_strided_slice %297 {offsets = [0, 0], sizes = [16, 8], strides = [1, 1]} : vector<32x96xf32> to vector<16x8xf32>
    %299 = vector.extract_strided_slice %297 {offsets = [0, 32], sizes = [16, 8], strides = [1, 1]} : vector<32x96xf32> to vector<16x8xf32>
    %300 = vector.extract_strided_slice %297 {offsets = [0, 64], sizes = [16, 8], strides = [1, 1]} : vector<32x96xf32> to vector<16x8xf32>
    %cst_131 = arith.constant dense<0.000000e+00> : vector<16x16xf32>
    %301 = tpu.matmul %298, %299, %cst_131 {dimension_numbers = #tpu.dot_dimension_numbers<[1], [1], [0], [0], [0, 0, 1, 0], [], []>} : vector<16x8xf32>, vector<16x8xf32>, vector<16x16xf32> -> vector<16x16xf32>
    %cst_132 = arith.constant 0.353553385 : f32
    %302 = vector.broadcast %cst_132 : f32 to vector<16x16xf32>
    %303 = arith.mulf %301, %302 : vector<16x16xf32>
    %cst_133 = arith.constant dense<0xFF800000> : vector<16xf32>
    %304 = vector.multi_reduction <maximumf>, %303, %cst_133 [1] : vector<16x16xf32> to vector<16xf32>
    %305 = vector.shape_cast %304 : vector<16xf32> to vector<16x1xf32>
    %306 = vector.broadcast %305 : vector<16x1xf32> to vector<16x16xf32>
    %307 = arith.subf %303, %306 : vector<16x16xf32>
    %308 = math.exp %307 : vector<16x16xf32>
    %cst_134 = arith.constant dense<0.000000e+00> : vector<16xf32>
    %309 = vector.multi_reduction <add>, %308, %cst_134 [1] : vector<16x16xf32> to vector<16xf32>
    %310 = vector.shape_cast %309 : vector<16xf32> to vector<16x1xf32>
    %311 = tpu.reciprocal %310 {approx = true} : vector<16x1xf32> -> vector<16x1xf32>
    %312 = vector.broadcast %311 : vector<16x1xf32> to vector<16x16xf32>
    %313 = arith.mulf %308, %312 : vector<16x16xf32>
    %cst_135 = arith.constant dense<0.000000e+00> : vector<16x8xf32>
    %314 = tpu.matmul %313, %300, %cst_135 {dimension_numbers = #tpu.dot_dimension_numbers<[1], [0], [0], [1], [0, 0, 1, 1], [], []>} : vector<16x16xf32>, vector<16x8xf32>, vector<16x8xf32> -> vector<16x8xf32>
    %315 = vector.extract_strided_slice %266 {offsets = [0, 0], sizes = [8, 32], strides = [1, 1]} : vector<32x32xf32> to vector<8x32xf32>
    %cst_136 = arith.constant dense<0.000000e+00> : vector<16x32xf32>
    %316 = tpu.matmul %314, %315, %cst_136 {dimension_numbers = #tpu.dot_dimension_numbers<[1], [0], [0], [1], [0, 0, 1, 1], [], []>} : vector<16x8xf32>, vector<8x32xf32>, vector<16x32xf32> -> vector<16x32xf32>
    %317 = vector.extract_strided_slice %297 {offsets = [0, 8], sizes = [16, 8], strides = [1, 1]} : vector<32x96xf32> to vector<16x8xf32>
    %318 = vector.extract_strided_slice %297 {offsets = [0, 40], sizes = [16, 8], strides = [1, 1]} : vector<32x96xf32> to vector<16x8xf32>
    %319 = vector.extract_strided_slice %297 {offsets = [0, 72], sizes = [16, 8], strides = [1, 1]} : vector<32x96xf32> to vector<16x8xf32>
    %cst_137 = arith.constant dense<0.000000e+00> : vector<16x16xf32>
    %320 = tpu.matmul %317, %318, %cst_137 {dimension_numbers = #tpu.dot_dimension_numbers<[1], [1], [0], [0], [0, 0, 1, 0], [], []>} : vector<16x8xf32>, vector<16x8xf32>, vector<16x16xf32> -> vector<16x16xf32>
    %cst_138 = arith.constant 0.353553385 : f32
    %321 = vector.broadcast %cst_138 : f32 to vector<16x16xf32>
    %322 = arith.mulf %320, %321 : vector<16x16xf32>
    %cst_139 = arith.constant dense<0xFF800000> : vector<16xf32>
    %323 = vector.multi_reduction <maximumf>, %322, %cst_139 [1] : vector<16x16xf32> to vector<16xf32>
    %324 = vector.shape_cast %323 : vector<16xf32> to vector<16x1xf32>
    %325 = vector.broadcast %324 : vector<16x1xf32> to vector<16x16xf32>
    %326 = arith.subf %322, %325 : vector<16x16xf32>
    %327 = math.exp %326 : vector<16x16xf32>
    %cst_140 = arith.constant dense<0.000000e+00> : vector<16xf32>
    %328 = vector.multi_reduction <add>, %327, %cst_140 [1] : vector<16x16xf32> to vector<16xf32>
    %329 = vector.shape_cast %328 : vector<16xf32> to vector<16x1xf32>
    %330 = tpu.reciprocal %329 {approx = true} : vector<16x1xf32> -> vector<16x1xf32>
    %331 = vector.broadcast %330 : vector<16x1xf32> to vector<16x16xf32>
    %332 = arith.mulf %327, %331 : vector<16x16xf32>
    %cst_141 = arith.constant dense<0.000000e+00> : vector<16x8xf32>
    %333 = tpu.matmul %332, %319, %cst_141 {dimension_numbers = #tpu.dot_dimension_numbers<[1], [0], [0], [1], [0, 0, 1, 1], [], []>} : vector<16x16xf32>, vector<16x8xf32>, vector<16x8xf32> -> vector<16x8xf32>
    %334 = vector.extract_strided_slice %266 {offsets = [8, 0], sizes = [8, 32], strides = [1, 1]} : vector<32x32xf32> to vector<8x32xf32>
    %cst_142 = arith.constant dense<0.000000e+00> : vector<16x32xf32>
    %335 = tpu.matmul %333, %334, %cst_142 {dimension_numbers = #tpu.dot_dimension_numbers<[1], [0], [0], [1], [0, 0, 1, 1], [], []>} : vector<16x8xf32>, vector<8x32xf32>, vector<16x32xf32> -> vector<16x32xf32>
    %336 = arith.addf %316, %335 : vector<16x32xf32>
    %337 = vector.extract_strided_slice %297 {offsets = [0, 16], sizes = [16, 8], strides = [1, 1]} : vector<32x96xf32> to vector<16x8xf32>
    %338 = vector.extract_strided_slice %297 {offsets = [0, 48], sizes = [16, 8], strides = [1, 1]} : vector<32x96xf32> to vector<16x8xf32>
    %339 = vector.extract_strided_slice %297 {offsets = [0, 80], sizes = [16, 8], strides = [1, 1]} : vector<32x96xf32> to vector<16x8xf32>
    %cst_143 = arith.constant dense<0.000000e+00> : vector<16x16xf32>
    %340 = tpu.matmul %337, %338, %cst_143 {dimension_numbers = #tpu.dot_dimension_numbers<[1], [1], [0], [0], [0, 0, 1, 0], [], []>} : vector<16x8xf32>, vector<16x8xf32>, vector<16x16xf32> -> vector<16x16xf32>
    %cst_144 = arith.constant 0.353553385 : f32
    %341 = vector.broadcast %cst_144 : f32 to vector<16x16xf32>
    %342 = arith.mulf %340, %341 : vector<16x16xf32>
    %cst_145 = arith.constant dense<0xFF800000> : vector<16xf32>
    %343 = vector.multi_reduction <maximumf>, %342, %cst_145 [1] : vector<16x16xf32> to vector<16xf32>
    %344 = vector.shape_cast %343 : vector<16xf32> to vector<16x1xf32>
    %345 = vector.broadcast %344 : vector<16x1xf32> to vector<16x16xf32>
    %346 = arith.subf %342, %345 : vector<16x16xf32>
    %347 = math.exp %346 : vector<16x16xf32>
    %cst_146 = arith.constant dense<0.000000e+00> : vector<16xf32>
    %348 = vector.multi_reduction <add>, %347, %cst_146 [1] : vector<16x16xf32> to vector<16xf32>
    %349 = vector.shape_cast %348 : vector<16xf32> to vector<16x1xf32>
    %350 = tpu.reciprocal %349 {approx = true} : vector<16x1xf32> -> vector<16x1xf32>
    %351 = vector.broadcast %350 : vector<16x1xf32> to vector<16x16xf32>
    %352 = arith.mulf %347, %351 : vector<16x16xf32>
    %cst_147 = arith.constant dense<0.000000e+00> : vector<16x8xf32>
    %353 = tpu.matmul %352, %339, %cst_147 {dimension_numbers = #tpu.dot_dimension_numbers<[1], [0], [0], [1], [0, 0, 1, 1], [], []>} : vector<16x16xf32>, vector<16x8xf32>, vector<16x8xf32> -> vector<16x8xf32>
    %354 = vector.extract_strided_slice %266 {offsets = [16, 0], sizes = [8, 32], strides = [1, 1]} : vector<32x32xf32> to vector<8x32xf32>
    %cst_148 = arith.constant dense<0.000000e+00> : vector<16x32xf32>
    %355 = tpu.matmul %353, %354, %cst_148 {dimension_numbers = #tpu.dot_dimension_numbers<[1], [0], [0], [1], [0, 0, 1, 1], [], []>} : vector<16x8xf32>, vector<8x32xf32>, vector<16x32xf32> -> vector<16x32xf32>
    %356 = arith.addf %336, %355 : vector<16x32xf32>
    %357 = vector.extract_strided_slice %297 {offsets = [0, 24], sizes = [16, 8], strides = [1, 1]} : vector<32x96xf32> to vector<16x8xf32>
    %358 = vector.extract_strided_slice %297 {offsets = [0, 56], sizes = [16, 8], strides = [1, 1]} : vector<32x96xf32> to vector<16x8xf32>
    %359 = vector.extract_strided_slice %297 {offsets = [0, 88], sizes = [16, 8], strides = [1, 1]} : vector<32x96xf32> to vector<16x8xf32>
    %cst_149 = arith.constant dense<0.000000e+00> : vector<16x16xf32>
    %360 = tpu.matmul %357, %358, %cst_149 {dimension_numbers = #tpu.dot_dimension_numbers<[1], [1], [0], [0], [0, 0, 1, 0], [], []>} : vector<16x8xf32>, vector<16x8xf32>, vector<16x16xf32> -> vector<16x16xf32>
    %cst_150 = arith.constant 0.353553385 : f32
    %361 = vector.broadcast %cst_150 : f32 to vector<16x16xf32>
    %362 = arith.mulf %360, %361 : vector<16x16xf32>
    %cst_151 = arith.constant dense<0xFF800000> : vector<16xf32>
    %363 = vector.multi_reduction <maximumf>, %362, %cst_151 [1] : vector<16x16xf32> to vector<16xf32>
    %364 = vector.shape_cast %363 : vector<16xf32> to vector<16x1xf32>
    %365 = vector.broadcast %364 : vector<16x1xf32> to vector<16x16xf32>
    %366 = arith.subf %362, %365 : vector<16x16xf32>
    %367 = math.exp %366 : vector<16x16xf32>
    %cst_152 = arith.constant dense<0.000000e+00> : vector<16xf32>
    %368 = vector.multi_reduction <add>, %367, %cst_152 [1] : vector<16x16xf32> to vector<16xf32>
    %369 = vector.shape_cast %368 : vector<16xf32> to vector<16x1xf32>
    %370 = tpu.reciprocal %369 {approx = true} : vector<16x1xf32> -> vector<16x1xf32>
    %371 = vector.broadcast %370 : vector<16x1xf32> to vector<16x16xf32>
    %372 = arith.mulf %367, %371 : vector<16x16xf32>
    %cst_153 = arith.constant dense<0.000000e+00> : vector<16x8xf32>
    %373 = tpu.matmul %372, %359, %cst_153 {dimension_numbers = #tpu.dot_dimension_numbers<[1], [0], [0], [1], [0, 0, 1, 1], [], []>} : vector<16x16xf32>, vector<16x8xf32>, vector<16x8xf32> -> vector<16x8xf32>
    %374 = vector.extract_strided_slice %266 {offsets = [24, 0], sizes = [8, 32], strides = [1, 1]} : vector<32x32xf32> to vector<8x32xf32>
    %cst_154 = arith.constant dense<0.000000e+00> : vector<16x32xf32>
    %375 = tpu.matmul %373, %374, %cst_154 {dimension_numbers = #tpu.dot_dimension_numbers<[1], [0], [0], [1], [0, 0, 1, 1], [], []>} : vector<16x8xf32>, vector<8x32xf32>, vector<16x32xf32> -> vector<16x32xf32>
    %376 = arith.addf %356, %375 : vector<16x32xf32>
    %377 = vector.extract_strided_slice %297 {offsets = [16, 0], sizes = [16, 8], strides = [1, 1]} : vector<32x96xf32> to vector<16x8xf32>
    %378 = vector.extract_strided_slice %297 {offsets = [16, 32], sizes = [16, 8], strides = [1, 1]} : vector<32x96xf32> to vector<16x8xf32>
    %379 = vector.extract_strided_slice %297 {offsets = [16, 64], sizes = [16, 8], strides = [1, 1]} : vector<32x96xf32> to vector<16x8xf32>
    %cst_155 = arith.constant dense<0.000000e+00> : vector<16x16xf32>
    %380 = tpu.matmul %377, %378, %cst_155 {dimension_numbers = #tpu.dot_dimension_numbers<[1], [1], [0], [0], [0, 0, 1, 0], [], []>} : vector<16x8xf32>, vector<16x8xf32>, vector<16x16xf32> -> vector<16x16xf32>
    %cst_156 = arith.constant 0.353553385 : f32
    %381 = vector.broadcast %cst_156 : f32 to vector<16x16xf32>
    %382 = arith.mulf %380, %381 : vector<16x16xf32>
    %cst_157 = arith.constant dense<0xFF800000> : vector<16xf32>
    %383 = vector.multi_reduction <maximumf>, %382, %cst_157 [1] : vector<16x16xf32> to vector<16xf32>
    %384 = vector.shape_cast %383 : vector<16xf32> to vector<16x1xf32>
    %385 = vector.broadcast %384 : vector<16x1xf32> to vector<16x16xf32>
    %386 = arith.subf %382, %385 : vector<16x16xf32>
    %387 = math.exp %386 : vector<16x16xf32>
    %cst_158 = arith.constant dense<0.000000e+00> : vector<16xf32>
    %388 = vector.multi_reduction <add>, %387, %cst_158 [1] : vector<16x16xf32> to vector<16xf32>
    %389 = vector.shape_cast %388 : vector<16xf32> to vector<16x1xf32>
    %390 = tpu.reciprocal %389 {approx = true} : vector<16x1xf32> -> vector<16x1xf32>
    %391 = vector.broadcast %390 : vector<16x1xf32> to vector<16x16xf32>
    %392 = arith.mulf %387, %391 : vector<16x16xf32>
    %cst_159 = arith.constant dense<0.000000e+00> : vector<16x8xf32>
    %393 = tpu.matmul %392, %379, %cst_159 {dimension_numbers = #tpu.dot_dimension_numbers<[1], [0], [0], [1], [0, 0, 1, 1], [], []>} : vector<16x16xf32>, vector<16x8xf32>, vector<16x8xf32> -> vector<16x8xf32>
    %394 = vector.extract_strided_slice %266 {offsets = [0, 0], sizes = [8, 32], strides = [1, 1]} : vector<32x32xf32> to vector<8x32xf32>
    %cst_160 = arith.constant dense<0.000000e+00> : vector<16x32xf32>
    %395 = tpu.matmul %393, %394, %cst_160 {dimension_numbers = #tpu.dot_dimension_numbers<[1], [0], [0], [1], [0, 0, 1, 1], [], []>} : vector<16x8xf32>, vector<8x32xf32>, vector<16x32xf32> -> vector<16x32xf32>
    %396 = vector.extract_strided_slice %297 {offsets = [16, 8], sizes = [16, 8], strides = [1, 1]} : vector<32x96xf32> to vector<16x8xf32>
    %397 = vector.extract_strided_slice %297 {offsets = [16, 40], sizes = [16, 8], strides = [1, 1]} : vector<32x96xf32> to vector<16x8xf32>
    %398 = vector.extract_strided_slice %297 {offsets = [16, 72], sizes = [16, 8], strides = [1, 1]} : vector<32x96xf32> to vector<16x8xf32>
    %cst_161 = arith.constant dense<0.000000e+00> : vector<16x16xf32>
    %399 = tpu.matmul %396, %397, %cst_161 {dimension_numbers = #tpu.dot_dimension_numbers<[1], [1], [0], [0], [0, 0, 1, 0], [], []>} : vector<16x8xf32>, vector<16x8xf32>, vector<16x16xf32> -> vector<16x16xf32>
    %cst_162 = arith.constant 0.353553385 : f32
    %400 = vector.broadcast %cst_162 : f32 to vector<16x16xf32>
    %401 = arith.mulf %399, %400 : vector<16x16xf32>
    %cst_163 = arith.constant dense<0xFF800000> : vector<16xf32>
    %402 = vector.multi_reduction <maximumf>, %401, %cst_163 [1] : vector<16x16xf32> to vector<16xf32>
    %403 = vector.shape_cast %402 : vector<16xf32> to vector<16x1xf32>
    %404 = vector.broadcast %403 : vector<16x1xf32> to vector<16x16xf32>
    %405 = arith.subf %401, %404 : vector<16x16xf32>
    %406 = math.exp %405 : vector<16x16xf32>
    %cst_164 = arith.constant dense<0.000000e+00> : vector<16xf32>
    %407 = vector.multi_reduction <add>, %406, %cst_164 [1] : vector<16x16xf32> to vector<16xf32>
    %408 = vector.shape_cast %407 : vector<16xf32> to vector<16x1xf32>
    %409 = tpu.reciprocal %408 {approx = true} : vector<16x1xf32> -> vector<16x1xf32>
    %410 = vector.broadcast %409 : vector<16x1xf32> to vector<16x16xf32>
    %411 = arith.mulf %406, %410 : vector<16x16xf32>
    %cst_165 = arith.constant dense<0.000000e+00> : vector<16x8xf32>
    %412 = tpu.matmul %411, %398, %cst_165 {dimension_numbers = #tpu.dot_dimension_numbers<[1], [0], [0], [1], [0, 0, 1, 1], [], []>} : vector<16x16xf32>, vector<16x8xf32>, vector<16x8xf32> -> vector<16x8xf32>
    %413 = vector.extract_strided_slice %266 {offsets = [8, 0], sizes = [8, 32], strides = [1, 1]} : vector<32x32xf32> to vector<8x32xf32>
    %cst_166 = arith.constant dense<0.000000e+00> : vector<16x32xf32>
    %414 = tpu.matmul %412, %413, %cst_166 {dimension_numbers = #tpu.dot_dimension_numbers<[1], [0], [0], [1], [0, 0, 1, 1], [], []>} : vector<16x8xf32>, vector<8x32xf32>, vector<16x32xf32> -> vector<16x32xf32>
    %415 = arith.addf %395, %414 : vector<16x32xf32>
    %416 = vector.extract_strided_slice %297 {offsets = [16, 16], sizes = [16, 8], strides = [1, 1]} : vector<32x96xf32> to vector<16x8xf32>
    %417 = vector.extract_strided_slice %297 {offsets = [16, 48], sizes = [16, 8], strides = [1, 1]} : vector<32x96xf32> to vector<16x8xf32>
    %418 = vector.extract_strided_slice %297 {offsets = [16, 80], sizes = [16, 8], strides = [1, 1]} : vector<32x96xf32> to vector<16x8xf32>
    %cst_167 = arith.constant dense<0.000000e+00> : vector<16x16xf32>
    %419 = tpu.matmul %416, %417, %cst_167 {dimension_numbers = #tpu.dot_dimension_numbers<[1], [1], [0], [0], [0, 0, 1, 0], [], []>} : vector<16x8xf32>, vector<16x8xf32>, vector<16x16xf32> -> vector<16x16xf32>
    %cst_168 = arith.constant 0.353553385 : f32
    %420 = vector.broadcast %cst_168 : f32 to vector<16x16xf32>
    %421 = arith.mulf %419, %420 : vector<16x16xf32>
    %cst_169 = arith.constant dense<0xFF800000> : vector<16xf32>
    %422 = vector.multi_reduction <maximumf>, %421, %cst_169 [1] : vector<16x16xf32> to vector<16xf32>
    %423 = vector.shape_cast %422 : vector<16xf32> to vector<16x1xf32>
    %424 = vector.broadcast %423 : vector<16x1xf32> to vector<16x16xf32>
    %425 = arith.subf %421, %424 : vector<16x16xf32>
    %426 = math.exp %425 : vector<16x16xf32>
    %cst_170 = arith.constant dense<0.000000e+00> : vector<16xf32>
    %427 = vector.multi_reduction <add>, %426, %cst_170 [1] : vector<16x16xf32> to vector<16xf32>
    %428 = vector.shape_cast %427 : vector<16xf32> to vector<16x1xf32>
    %429 = tpu.reciprocal %428 {approx = true} : vector<16x1xf32> -> vector<16x1xf32>
    %430 = vector.broadcast %429 : vector<16x1xf32> to vector<16x16xf32>
    %431 = arith.mulf %426, %430 : vector<16x16xf32>
    %cst_171 = arith.constant dense<0.000000e+00> : vector<16x8xf32>
    %432 = tpu.matmul %431, %418, %cst_171 {dimension_numbers = #tpu.dot_dimension_numbers<[1], [0], [0], [1], [0, 0, 1, 1], [], []>} : vector<16x16xf32>, vector<16x8xf32>, vector<16x8xf32> -> vector<16x8xf32>
    %433 = vector.extract_strided_slice %266 {offsets = [16, 0], sizes = [8, 32], strides = [1, 1]} : vector<32x32xf32> to vector<8x32xf32>
    %cst_172 = arith.constant dense<0.000000e+00> : vector<16x32xf32>
    %434 = tpu.matmul %432, %433, %cst_172 {dimension_numbers = #tpu.dot_dimension_numbers<[1], [0], [0], [1], [0, 0, 1, 1], [], []>} : vector<16x8xf32>, vector<8x32xf32>, vector<16x32xf32> -> vector<16x32xf32>
    %435 = arith.addf %415, %434 : vector<16x32xf32>
    %436 = vector.extract_strided_slice %297 {offsets = [16, 24], sizes = [16, 8], strides = [1, 1]} : vector<32x96xf32> to vector<16x8xf32>
    %437 = vector.extract_strided_slice %297 {offsets = [16, 56], sizes = [16, 8], strides = [1, 1]} : vector<32x96xf32> to vector<16x8xf32>
    %438 = vector.extract_strided_slice %297 {offsets = [16, 88], sizes = [16, 8], strides = [1, 1]} : vector<32x96xf32> to vector<16x8xf32>
    %cst_173 = arith.constant dense<0.000000e+00> : vector<16x16xf32>
    %439 = tpu.matmul %436, %437, %cst_173 {dimension_numbers = #tpu.dot_dimension_numbers<[1], [1], [0], [0], [0, 0, 1, 0], [], []>} : vector<16x8xf32>, vector<16x8xf32>, vector<16x16xf32> -> vector<16x16xf32>
    %cst_174 = arith.constant 0.353553385 : f32
    %440 = vector.broadcast %cst_174 : f32 to vector<16x16xf32>
    %441 = arith.mulf %439, %440 : vector<16x16xf32>
    %cst_175 = arith.constant dense<0xFF800000> : vector<16xf32>
    %442 = vector.multi_reduction <maximumf>, %441, %cst_175 [1] : vector<16x16xf32> to vector<16xf32>
    %443 = vector.shape_cast %442 : vector<16xf32> to vector<16x1xf32>
    %444 = vector.broadcast %443 : vector<16x1xf32> to vector<16x16xf32>
    %445 = arith.subf %441, %444 : vector<16x16xf32>
    %446 = math.exp %445 : vector<16x16xf32>
    %cst_176 = arith.constant dense<0.000000e+00> : vector<16xf32>
    %447 = vector.multi_reduction <add>, %446, %cst_176 [1] : vector<16x16xf32> to vector<16xf32>
    %448 = vector.shape_cast %447 : vector<16xf32> to vector<16x1xf32>
    %449 = tpu.reciprocal %448 {approx = true} : vector<16x1xf32> -> vector<16x1xf32>
    %450 = vector.broadcast %449 : vector<16x1xf32> to vector<16x16xf32>
    %451 = arith.mulf %446, %450 : vector<16x16xf32>
    %cst_177 = arith.constant dense<0.000000e+00> : vector<16x8xf32>
    %452 = tpu.matmul %451, %438, %cst_177 {dimension_numbers = #tpu.dot_dimension_numbers<[1], [0], [0], [1], [0, 0, 1, 1], [], []>} : vector<16x16xf32>, vector<16x8xf32>, vector<16x8xf32> -> vector<16x8xf32>
    %453 = vector.extract_strided_slice %266 {offsets = [24, 0], sizes = [8, 32], strides = [1, 1]} : vector<32x32xf32> to vector<8x32xf32>
    %cst_178 = arith.constant dense<0.000000e+00> : vector<16x32xf32>
    %454 = tpu.matmul %452, %453, %cst_178 {dimension_numbers = #tpu.dot_dimension_numbers<[1], [0], [0], [1], [0, 0, 1, 1], [], []>} : vector<16x8xf32>, vector<8x32xf32>, vector<16x32xf32> -> vector<16x32xf32>
    %455 = arith.addf %435, %454 : vector<16x32xf32>
    %456 = tpu.concatenate %376, %455 in 0 : vector<16x32xf32>, vector<16x32xf32> -> vector<32x32xf32>
    %457 = arith.addf %260, %456 : vector<32x32xf32>
    %458 = vector.broadcast %268 : vector<1x32xf32> to vector<32x32xf32>
    %459 = arith.addf %457, %458 : vector<32x32xf32>
    %c1_179 = arith.constant 1 : index
    %c0_180 = arith.constant 0 : index
    %c0_181 = arith.constant 0 : index
    %460 = vector.load %arg11[%c1_179, %c0_180, %c0_181] : memref<2x1x32xf32, #tpu.memory_space<vmem>>, vector<1x1x32xf32>
    %461 = vector.shape_cast %460 : vector<1x1x32xf32> to vector<1x32xf32>
    %c1_182 = arith.constant 1 : index
    %c0_183 = arith.constant 0 : index
    %c0_184 = arith.constant 0 : index
    %462 = vector.load %arg12[%c1_182, %c0_183, %c0_184] : memref<2x1x32xf32, #tpu.memory_space<vmem>>, vector<1x1x32xf32>
    %463 = vector.shape_cast %462 : vector<1x1x32xf32> to vector<1x32xf32>
    %cst_185 = arith.constant dense<0.000000e+00> : vector<32xf32>
    %464 = vector.multi_reduction <add>, %459, %cst_185 [1] : vector<32x32xf32> to vector<32xf32>
    %465 = vector.shape_cast %464 : vector<32xf32> to vector<32x1xf32>
    %cst_186 = arith.constant 3.200000e+01 : f32
    %466 = vector.broadcast %cst_186 : f32 to vector<32x1xf32>
    %467 = arith.divf %465, %466 : vector<32x1xf32>
    %468 = vector.broadcast %467 : vector<32x1xf32> to vector<32x32xf32>
    %469 = arith.subf %459, %468 : vector<32x32xf32>
    %470 = arith.mulf %469, %469 : vector<32x32xf32>
    %cst_187 = arith.constant dense<0.000000e+00> : vector<32xf32>
    %471 = vector.multi_reduction <add>, %470, %cst_187 [1] : vector<32x32xf32> to vector<32xf32>
    %472 = vector.shape_cast %471 : vector<32xf32> to vector<32x1xf32>
    %cst_188 = arith.constant 3.200000e+01 : f32
    %473 = vector.broadcast %cst_188 : f32 to vector<32x1xf32>
    %474 = arith.divf %472, %473 : vector<32x1xf32>
    %475 = vector.broadcast %467 : vector<32x1xf32> to vector<32x32xf32>
    %476 = arith.subf %459, %475 : vector<32x32xf32>
    %cst_189 = arith.constant 9.99999997E-7 : f32
    %477 = vector.broadcast %cst_189 : f32 to vector<32x1xf32>
    %478 = arith.addf %474, %477 : vector<32x1xf32>
    %479 = math.rsqrt %478 : vector<32x1xf32>
    %480 = vector.broadcast %479 : vector<32x1xf32> to vector<32x32xf32>
    %481 = arith.mulf %476, %480 : vector<32x32xf32>
    %482 = vector.broadcast %461 : vector<1x32xf32> to vector<32x32xf32>
    %483 = arith.mulf %481, %482 : vector<32x32xf32>
    %484 = vector.broadcast %463 : vector<1x32xf32> to vector<32x32xf32>
    %485 = arith.addf %483, %484 : vector<32x32xf32>
    %c1_190 = arith.constant 1 : index
    %c0_191 = arith.constant 0 : index
    %c0_192 = arith.constant 0 : index
    %486 = vector.load %arg13[%c1_190, %c0_191, %c0_192] : memref<2x32x64xf32, #tpu.memory_space<vmem>>, vector<1x32x64xf32>
    %487 = vector.shape_cast %486 : vector<1x32x64xf32> to vector<32x64xf32>
    %cst_193 = arith.constant dense<0.000000e+00> : vector<32x64xf32>
    %488 = tpu.matmul %485, %487, %cst_193 {dimension_numbers = #tpu.dot_dimension_numbers<[1], [0], [0], [1], [0, 0, 1, 1], [], []>} : vector<32x32xf32>, vector<32x64xf32>, vector<32x64xf32> -> vector<32x64xf32>
    %c1_194 = arith.constant 1 : index
    %c0_195 = arith.constant 0 : index
    %c0_196 = arith.constant 0 : index
    %489 = vector.load %arg14[%c1_194, %c0_195, %c0_196] : memref<2x1x64xf32, #tpu.memory_space<vmem>>, vector<1x1x64xf32>
    %490 = vector.shape_cast %489 : vector<1x1x64xf32> to vector<1x64xf32>
    %491 = vector.broadcast %490 : vector<1x64xf32> to vector<32x64xf32>
    %492 = arith.addf %488, %491 : vector<32x64xf32>
    %cst_197 = arith.constant 5.000000e-01 : f32
    %493 = vector.broadcast %cst_197 : f32 to vector<32x64xf32>
    %494 = arith.mulf %493, %492 : vector<32x64xf32>
    %cst_198 = arith.constant 4.471500e-02 : f32
    %495 = vector.broadcast %cst_198 : f32 to vector<32x64xf32>
    %496 = arith.mulf %495, %492 : vector<32x64xf32>
    %497 = arith.mulf %496, %492 : vector<32x64xf32>
    %498 = arith.mulf %497, %492 : vector<32x64xf32>
    %499 = arith.addf %492, %498 : vector<32x64xf32>
    %cst_199 = arith.constant 0.797884583 : f32
    %500 = vector.broadcast %cst_199 : f32 to vector<32x64xf32>
    %501 = arith.mulf %500, %499 : vector<32x64xf32>
    %502 = math.tanh %501 : vector<32x64xf32>
    %cst_200 = arith.constant 1.000000e+00 : f32
    %503 = vector.broadcast %cst_200 : f32 to vector<32x64xf32>
    %504 = arith.addf %503, %502 : vector<32x64xf32>
    %505 = arith.mulf %494, %504 : vector<32x64xf32>
    %c1_201 = arith.constant 1 : index
    %c0_202 = arith.constant 0 : index
    %c0_203 = arith.constant 0 : index
    %506 = vector.load %arg15[%c1_201, %c0_202, %c0_203] : memref<2x64x32xf32, #tpu.memory_space<vmem>>, vector<1x64x32xf32>
    %507 = vector.shape_cast %506 : vector<1x64x32xf32> to vector<64x32xf32>
    %cst_204 = arith.constant dense<0.000000e+00> : vector<32x32xf32>
    %508 = tpu.matmul %505, %507, %cst_204 {dimension_numbers = #tpu.dot_dimension_numbers<[1], [0], [0], [1], [0, 0, 1, 1], [], []>} : vector<32x64xf32>, vector<64x32xf32>, vector<32x32xf32> -> vector<32x32xf32>
    %509 = arith.addf %459, %508 : vector<32x32xf32>
    %c1_205 = arith.constant 1 : index
    %c0_206 = arith.constant 0 : index
    %c0_207 = arith.constant 0 : index
    %510 = vector.load %arg16[%c1_205, %c0_206, %c0_207] : memref<2x1x32xf32, #tpu.memory_space<vmem>>, vector<1x1x32xf32>
    %511 = vector.shape_cast %510 : vector<1x1x32xf32> to vector<1x32xf32>
    %512 = vector.broadcast %511 : vector<1x32xf32> to vector<32x32xf32>
    %513 = arith.addf %509, %512 : vector<32x32xf32>
    %c0_208 = arith.constant 0 : index
    %c0_209 = arith.constant 0 : index
    %514 = vector.load %arg17[%c0_208, %c0_209] : memref<1x32xf32, #tpu.memory_space<vmem>>, vector<1x32xf32>
    %c0_210 = arith.constant 0 : index
    %c0_211 = arith.constant 0 : index
    %515 = vector.load %arg18[%c0_210, %c0_211] : memref<1x32xf32, #tpu.memory_space<vmem>>, vector<1x32xf32>
    %cst_212 = arith.constant dense<0.000000e+00> : vector<32xf32>
    %516 = vector.multi_reduction <add>, %513, %cst_212 [1] : vector<32x32xf32> to vector<32xf32>
    %517 = vector.shape_cast %516 : vector<32xf32> to vector<32x1xf32>
    %cst_213 = arith.constant 3.200000e+01 : f32
    %518 = vector.broadcast %cst_213 : f32 to vector<32x1xf32>
    %519 = arith.divf %517, %518 : vector<32x1xf32>
    %520 = vector.broadcast %519 : vector<32x1xf32> to vector<32x32xf32>
    %521 = arith.subf %513, %520 : vector<32x32xf32>
    %522 = arith.mulf %521, %521 : vector<32x32xf32>
    %cst_214 = arith.constant dense<0.000000e+00> : vector<32xf32>
    %523 = vector.multi_reduction <add>, %522, %cst_214 [1] : vector<32x32xf32> to vector<32xf32>
    %524 = vector.shape_cast %523 : vector<32xf32> to vector<32x1xf32>
    %cst_215 = arith.constant 3.200000e+01 : f32
    %525 = vector.broadcast %cst_215 : f32 to vector<32x1xf32>
    %526 = arith.divf %524, %525 : vector<32x1xf32>
    %527 = vector.broadcast %519 : vector<32x1xf32> to vector<32x32xf32>
    %528 = arith.subf %513, %527 : vector<32x32xf32>
    %cst_216 = arith.constant 9.99999997E-7 : f32
    %529 = vector.broadcast %cst_216 : f32 to vector<32x1xf32>
    %530 = arith.addf %526, %529 : vector<32x1xf32>
    %531 = math.rsqrt %530 : vector<32x1xf32>
    %532 = vector.broadcast %531 : vector<32x1xf32> to vector<32x32xf32>
    %533 = arith.mulf %528, %532 : vector<32x32xf32>
    %534 = vector.broadcast %514 : vector<1x32xf32> to vector<32x32xf32>
    %535 = arith.mulf %533, %534 : vector<32x32xf32>
    %536 = vector.broadcast %515 : vector<1x32xf32> to vector<32x32xf32>
    %537 = arith.addf %535, %536 : vector<32x32xf32>
    %c0_217 = arith.constant 0 : index
    %c0_218 = arith.constant 0 : index
    %538 = vector.load %arg19[%c0_217, %c0_218] : memref<32x32xf32, #tpu.memory_space<vmem>>, vector<32x32xf32>
    %cst_219 = arith.constant dense<0.000000e+00> : vector<32x32xf32>
    %539 = tpu.matmul %538, %537, %cst_219 {dimension_numbers = #tpu.dot_dimension_numbers<[1], [0], [0], [1], [0, 0, 1, 1], [], []>} : vector<32x32xf32>, vector<32x32xf32>, vector<32x32xf32> -> vector<32x32xf32>
    %540 = vector.extract_strided_slice %539 {offsets = [0, 0], sizes = [8, 32], strides = [1, 1]} : vector<32x32xf32> to vector<8x32xf32>
    %c0_220 = arith.constant 0 : index
    %c0_221 = arith.constant 0 : index
    %541 = vector.load %arg20[%c0_220, %c0_221] : memref<128x48xf32, #tpu.memory_space<vmem>>, vector<32x48xf32>
    %cst_222 = arith.constant dense<0.000000e+00> : vector<8x48xf32>
    %542 = tpu.matmul %540, %541, %cst_222 {dimension_numbers = #tpu.dot_dimension_numbers<[1], [0], [0], [1], [0, 0, 1, 1], [], []>} : vector<8x32xf32>, vector<32x48xf32>, vector<8x48xf32> -> vector<8x48xf32>
    %543 = vector.extract_strided_slice %539 {offsets = [8, 0], sizes = [8, 32], strides = [1, 1]} : vector<32x32xf32> to vector<8x32xf32>
    %c32 = arith.constant 32 : index
    %c0_223 = arith.constant 0 : index
    %544 = vector.load %arg20[%c32, %c0_223] : memref<128x48xf32, #tpu.memory_space<vmem>>, vector<32x48xf32>
    %cst_224 = arith.constant dense<0.000000e+00> : vector<8x48xf32>
    %545 = tpu.matmul %543, %544, %cst_224 {dimension_numbers = #tpu.dot_dimension_numbers<[1], [0], [0], [1], [0, 0, 1, 1], [], []>} : vector<8x32xf32>, vector<32x48xf32>, vector<8x48xf32> -> vector<8x48xf32>
    %546 = arith.addf %542, %545 : vector<8x48xf32>
    %547 = vector.extract_strided_slice %539 {offsets = [16, 0], sizes = [8, 32], strides = [1, 1]} : vector<32x32xf32> to vector<8x32xf32>
    %c64 = arith.constant 64 : index
    %c0_225 = arith.constant 0 : index
    %548 = vector.load %arg20[%c64, %c0_225] : memref<128x48xf32, #tpu.memory_space<vmem>>, vector<32x48xf32>
    %cst_226 = arith.constant dense<0.000000e+00> : vector<8x48xf32>
    %549 = tpu.matmul %547, %548, %cst_226 {dimension_numbers = #tpu.dot_dimension_numbers<[1], [0], [0], [1], [0, 0, 1, 1], [], []>} : vector<8x32xf32>, vector<32x48xf32>, vector<8x48xf32> -> vector<8x48xf32>
    %550 = arith.addf %546, %549 : vector<8x48xf32>
    %551 = vector.extract_strided_slice %539 {offsets = [24, 0], sizes = [8, 32], strides = [1, 1]} : vector<32x32xf32> to vector<8x32xf32>
    %c96 = arith.constant 96 : index
    %c0_227 = arith.constant 0 : index
    %552 = vector.load %arg20[%c96, %c0_227] : memref<128x48xf32, #tpu.memory_space<vmem>>, vector<32x48xf32>
    %cst_228 = arith.constant dense<0.000000e+00> : vector<8x48xf32>
    %553 = tpu.matmul %551, %552, %cst_228 {dimension_numbers = #tpu.dot_dimension_numbers<[1], [0], [0], [1], [0, 0, 1, 1], [], []>} : vector<8x32xf32>, vector<32x48xf32>, vector<8x48xf32> -> vector<8x48xf32>
    %554 = arith.addf %550, %553 : vector<8x48xf32>
    %c0_229 = arith.constant 0 : index
    %c0_230 = arith.constant 0 : index
    %555 = vector.load %arg21[%c0_229, %c0_230] : memref<8x48xf32, #tpu.memory_space<vmem>>, vector<8x48xf32>
    tpu.vector_store %arg21[%c0_229, %c0_230], %554 {strides = array<i32>} : memref<8x48xf32, #tpu.memory_space<vmem>>, vector<8x48xf32>,
    return
  }
  func.func @transform_0(%arg0: i32) -> (i32, i32) {
    %c0_i32 = arith.constant 0 : i32
    %c0_i32_0 = arith.constant 0 : i32
    %c0_i32_1 = arith.constant 0 : i32
    return %c0_i32, %c0_i32_0 : i32, i32
  }
  func.func @transform_1(%arg0: i32) -> (i32, i32) {
    %c0_i32 = arith.constant 0 : i32
    %c0_i32_0 = arith.constant 0 : i32
    %c0_i32_1 = arith.constant 0 : i32
    return %c0_i32, %c0_i32_0 : i32, i32
  }
  func.func @transform_2(%arg0: i32) -> (i32, i32) {
    %c0_i32 = arith.constant 0 : i32
    %c0_i32_0 = arith.constant 0 : i32
    %c0_i32_1 = arith.constant 0 : i32
    return %c0_i32, %c0_i32_0 : i32, i32
  }
  func.func @transform_3(%arg0: i32) -> (i32, i32) {
    %c0_i32 = arith.constant 0 : i32
    %c0_i32_0 = arith.constant 0 : i32
    %c0_i32_1 = arith.constant 0 : i32
    return %c0_i32, %c0_i32_0 : i32, i32
  }
  func.func @transform_4(%arg0: i32) -> (i32, i32, i32) {
    %c0_i32 = arith.constant 0 : i32
    %c0_i32_0 = arith.constant 0 : i32
    %c0_i32_1 = arith.constant 0 : i32
    %c0_i32_2 = arith.constant 0 : i32
    return %c0_i32, %c0_i32_0, %c0_i32_1 : i32, i32, i32
  }
  func.func @transform_5(%arg0: i32) -> (i32, i32, i32) {
    %c0_i32 = arith.constant 0 : i32
    %c0_i32_0 = arith.constant 0 : i32
    %c0_i32_1 = arith.constant 0 : i32
    %c0_i32_2 = arith.constant 0 : i32
    return %c0_i32, %c0_i32_0, %c0_i32_1 : i32, i32, i32
  }
  func.func @transform_6(%arg0: i32) -> (i32, i32, i32) {
    %c0_i32 = arith.constant 0 : i32
    %c0_i32_0 = arith.constant 0 : i32
    %c0_i32_1 = arith.constant 0 : i32
    %c0_i32_2 = arith.constant 0 : i32
    return %c0_i32, %c0_i32_0, %c0_i32_1 : i32, i32, i32
  }
  func.func @transform_7(%arg0: i32) -> (i32, i32, i32) {
    %c0_i32 = arith.constant 0 : i32
    %c0_i32_0 = arith.constant 0 : i32
    %c0_i32_1 = arith.constant 0 : i32
    %c0_i32_2 = arith.constant 0 : i32
    return %c0_i32, %c0_i32_0, %c0_i32_1 : i32, i32, i32
  }
  func.func @transform_8(%arg0: i32) -> (i32, i32, i32) {
    %c0_i32 = arith.constant 0 : i32
    %c0_i32_0 = arith.constant 0 : i32
    %c0_i32_1 = arith.constant 0 : i32
    %c0_i32_2 = arith.constant 0 : i32
    return %c0_i32, %c0_i32_0, %c0_i32_1 : i32, i32, i32
  }
  func.func @transform_9(%arg0: i32) -> (i32, i32, i32) {
    %c0_i32 = arith.constant 0 : i32
    %c0_i32_0 = arith.constant 0 : i32
    %c0_i32_1 = arith.constant 0 : i32
    %c0_i32_2 = arith.constant 0 : i32
    return %c0_i32, %c0_i32_0, %c0_i32_1 : i32, i32, i32
  }
  func.func @transform_10(%arg0: i32) -> (i32, i32, i32) {
    %c0_i32 = arith.constant 0 : i32
    %c0_i32_0 = arith.constant 0 : i32
    %c0_i32_1 = arith.constant 0 : i32
    %c0_i32_2 = arith.constant 0 : i32
    return %c0_i32, %c0_i32_0, %c0_i32_1 : i32, i32, i32
  }
  func.func @transform_11(%arg0: i32) -> (i32, i32, i32) {
    %c0_i32 = arith.constant 0 : i32
    %c0_i32_0 = arith.constant 0 : i32
    %c0_i32_1 = arith.constant 0 : i32
    %c0_i32_2 = arith.constant 0 : i32
    return %c0_i32, %c0_i32_0, %c0_i32_1 : i32, i32, i32
  }
  func.func @transform_12(%arg0: i32) -> (i32, i32, i32) {
    %c0_i32 = arith.constant 0 : i32
    %c0_i32_0 = arith.constant 0 : i32
    %c0_i32_1 = arith.constant 0 : i32
    %c0_i32_2 = arith.constant 0 : i32
    return %c0_i32, %c0_i32_0, %c0_i32_1 : i32, i32, i32
  }
  func.func @transform_13(%arg0: i32) -> (i32, i32, i32) {
    %c0_i32 = arith.constant 0 : i32
    %c0_i32_0 = arith.constant 0 : i32
    %c0_i32_1 = arith.constant 0 : i32
    %c0_i32_2 = arith.constant 0 : i32
    return %c0_i32, %c0_i32_0, %c0_i32_1 : i32, i32, i32
  }
  func.func @transform_14(%arg0: i32) -> (i32, i32, i32) {
    %c0_i32 = arith.constant 0 : i32
    %c0_i32_0 = arith.constant 0 : i32
    %c0_i32_1 = arith.constant 0 : i32
    %c0_i32_2 = arith.constant 0 : i32
    return %c0_i32, %c0_i32_0, %c0_i32_1 : i32, i32, i32
  }
  func.func @transform_15(%arg0: i32) -> (i32, i32, i32) {
    %c0_i32 = arith.constant 0 : i32
    %c0_i32_0 = arith.constant 0 : i32
    %c0_i32_1 = arith.constant 0 : i32
    %c0_i32_2 = arith.constant 0 : i32
    return %c0_i32, %c0_i32_0, %c0_i32_1 : i32, i32, i32
  }
  func.func @transform_16(%arg0: i32) -> (i32, i32) {
    %c0_i32 = arith.constant 0 : i32
    %c0_i32_0 = arith.constant 0 : i32
    %c0_i32_1 = arith.constant 0 : i32
    return %c0_i32, %c0_i32_0 : i32, i32
  }
  func.func @transform_17(%arg0: i32) -> (i32, i32) {
    %c0_i32 = arith.constant 0 : i32
    %c0_i32_0 = arith.constant 0 : i32
    %c0_i32_1 = arith.constant 0 : i32
    return %c0_i32, %c0_i32_0 : i32, i32
  }
  func.func @transform_18(%arg0: i32) -> (i32, i32) {
    %c0_i32 = arith.constant 0 : i32
    %c0_i32_0 = arith.constant 0 : i32
    %c0_i32_1 = arith.constant 0 : i32
    return %c0_i32, %c0_i32_0 : i32, i32
  }
  func.func @transform_19(%arg0: i32) -> (i32, i32) {
    %c0_i32 = arith.constant 0 : i32
    %c0_i32_0 = arith.constant 0 : i32
    %c0_i32_1 = arith.constant 0 : i32
    return %c0_i32, %c0_i32_0 : i32, i32
  }
  func.func @transform_20(%arg0: i32) -> (i32, i32) {
    %c0_i32 = arith.constant 0 : i32
    %c0_i32_0 = arith.constant 0 : i32
    %c0_i32_1 = arith.constant 0 : i32
    return %c0_i32, %c0_i32_0 : i32, i32
  }
}

</mosaic_0001>

<llo_original>
// kernel: full_vision_encoder.1
$region0: #{full_vision_encoder.1}
  #allocation0 [shape = 'u32[]', space=smem, size = 0x4, offset = 0x4, fixed_abs, tag = 'smem constant byte address 0x4 - core index']
  #allocation1 [shape = 'u32[144,128]{1,0:T(1,128)}', space=vmem, size = 0x12000, scoped, tag = 'internal scratch']
  %s0 = inlined_call_operand.vmem [shape: f32[32,192], index: 0, kind: input, shape index: {}]
  %s1 = inlined_call_operand.vmem [shape: f32[192,32], index: 1, kind: input, shape index: {}]
  %s2 = inlined_call_operand.vmem [shape: f32[1,32], index: 2, kind: input, shape index: {}]
  %s3 = inlined_call_operand.vmem [shape: f32[32,32], index: 3, kind: input, shape index: {}]
  %s4 = inlined_call_operand.vmem [shape: f32[2,1,32], index: 4, kind: input, shape index: {}]
  %s5 = inlined_call_operand.vmem [shape: f32[2,1,32], index: 5, kind: input, shape index: {}]
  %s6 = inlined_call_operand.vmem [shape: f32[2,32,96], index: 6, kind: input, shape index: {}]
  %s7 = inlined_call_operand.vmem [shape: f32[2,1,96], index: 7, kind: input, shape index: {}]
  %s8 = inlined_call_operand.vmem [shape: f32[2,32,32], index: 8, kind: input, shape index: {}]
  %s9 = inlined_call_operand.vmem [shape: f32[2,1,32], index: 9, kind: input, shape index: {}]
  %s10 = inlined_call_operand.vmem [shape: f32[2,1,32], index: 10, kind: input, shape index: {}]
  %s11 = inlined_call_operand.vmem [shape: f32[2,1,32], index: 11, kind: input, shape index: {}]
  %s12 = inlined_call_operand.vmem [shape: f32[2,32,64], index: 12, kind: input, shape index: {}]
  %s13 = inlined_call_operand.vmem [shape: f32[2,1,64], index: 13, kind: input, shape index: {}]
  %s14 = inlined_call_operand.vmem [shape: f32[2,64,32], index: 14, kind: input, shape index: {}]
  %s15 = inlined_call_operand.vmem [shape: f32[2,1,32], index: 15, kind: input, shape index: {}]
  %s16 = inlined_call_operand.vmem [shape: f32[1,32], index: 16, kind: input, shape index: {}]
  %s17 = inlined_call_operand.vmem [shape: f32[1,32], index: 17, kind: input, shape index: {}]
  %s18 = inlined_call_operand.vmem [shape: f32[32,32], index: 18, kind: input, shape index: {}]
  %s19 = inlined_call_operand.vmem [shape: f32[128,48], index: 19, kind: input, shape index: {}]
  %s20 = inlined_call_operand.hbm [shape: f32[8,48], index: 20, kind: output, shape index: {}]
  %s21 = sld [smem:[#allocation0]]
  $region90: #{full_vision_encoder.1} parent=0
    _
  %s23 = ssub.s32 1, %s21
  %s24 = scalar_select 0, %s23, %s21
  $region1: #{full_vision_encoder.1} parent=0
    #allocation2 [shape = 'u8[4096]{0}', space=vmem, size = 0x1000, scoped, tag = 'output window, operand 0, single buffered']
    #allocation3 [shape = 's32[1]{0}', space=sflag, size = 0x4, scoped, tag = 'scoped memory for full_vision_encoder.1']
    %25 = vsyncpa [#allocation3], 0
    // Predicated region
    $region2: #{full_vision_encoder.1} parent=1 // pred_check
      _
    $region3: #{full_vision_encoder.1} parent=1 // pred_check_branch
      %27 = sbr.rel (0) target = $region5
    $region4: #{full_vision_encoder.1} parent=1 // pred_region
      _
    $region5: #{full_vision_encoder.1} parent=1 // pred_fallthru
      _
    // Predicated region
    $region6: #{full_vision_encoder.1} parent=1 // pred_check
      _
    $region7: #{full_vision_encoder.1} parent=1 // pred_check_branch
      %29 = sbr.rel (0) target = $region9
    $region8: #{full_vision_encoder.1} parent=1 // pred_region
      _
    $region9: #{full_vision_encoder.1} parent=1 // pred_fallthru
      _
    // Predicated region
    $region10: #{full_vision_encoder.1} parent=1 // pred_check
      _
    $region11: #{full_vision_encoder.1} parent=1 // pred_check_branch
      %31 = sbr.rel (0) target = $region13
    $region12: #{full_vision_encoder.1} parent=1 // pred_region
      _
    $region13: #{full_vision_encoder.1} parent=1 // pred_fallthru
      _
    // Predicated region
    $region14: #{full_vision_encoder.1} parent=1 // pred_check
      _
    $region15: #{full_vision_encoder.1} parent=1 // pred_check_branch
      %33 = sbr.rel (0) target = $region17
    $region16: #{full_vision_encoder.1} parent=1 // pred_region
      _
    $region17: #{full_vision_encoder.1} parent=1 // pred_fallthru
      _
    // Predicated region
    $region18: #{full_vision_encoder.1} parent=1 // pred_check
      _
    $region19: #{full_vision_encoder.1} parent=1 // pred_check_branch
      %35 = sbr.rel (0) target = $region21
    $region20: #{full_vision_encoder.1} parent=1 // pred_region
      _
    $region21: #{full_vision_encoder.1} parent=1 // pred_fallthru
      _
    // Predicated region
    $region22: #{full_vision_encoder.1} parent=1 // pred_check
      _
    $region23: #{full_vision_encoder.1} parent=1 // pred_check_branch
      %37 = sbr.rel (0) target = $region25
    $region24: #{full_vision_encoder.1} parent=1 // pred_region
      _
    $region25: #{full_vision_encoder.1} parent=1 // pred_fallthru
      _
    // Predicated region
    $region26: #{full_vision_encoder.1} parent=1 // pred_check
      _
    $region27: #{full_vision_encoder.1} parent=1 // pred_check_branch
      %39 = sbr.rel (0) target = $region29
    $region28: #{full_vision_encoder.1} parent=1 // pred_region
      _
    $region29: #{full_vision_encoder.1} parent=1 // pred_fallthru
      _
    // Predicated region
    $region30: #{full_vision_encoder.1} parent=1 // pred_check
      _
    $region31: #{full_vision_encoder.1} parent=1 // pred_check_branch
      %41 = sbr.rel (0) target = $region33
    $region32: #{full_vision_encoder.1} parent=1 // pred_region
      _
    $region33: #{full_vision_encoder.1} parent=1 // pred_fallthru
      _
    // Predicated region
    $region34: #{full_vision_encoder.1} parent=1 // pred_check
      _
    $region35: #{full_vision_encoder.1} parent=1 // pred_check_branch
      %43 = sbr.rel (0) target = $region37
    $region36: #{full_vision_encoder.1} parent=1 // pred_region
      _
    $region37: #{full_vision_encoder.1} parent=1 // pred_fallthru
      _
    // Predicated region
    $region38: #{full_vision_encoder.1} parent=1 // pred_check
      _
    $region39: #{full_vision_encoder.1} parent=1 // pred_check_branch
      %45 = sbr.rel (0) target = $region41
    $region40: #{full_vision_encoder.1} parent=1 // pred_region
      _
    $region41: #{full_vision_encoder.1} parent=1 // pred_fallthru
      _
    // Predicated region
    $region42: #{full_vision_encoder.1} parent=1 // pred_check
      _
    $region43: #{full_vision_encoder.1} parent=1 // pred_check_branch
      %47 = sbr.rel (0) target = $region45
    $region44: #{full_vision_encoder.1} parent=1 // pred_region
      _
    $region45: #{full_vision_encoder.1} parent=1 // pred_fallthru
      _
    // Predicated region
    $region46: #{full_vision_encoder.1} parent=1 // pred_check
      _
    $region47: #{full_vision_encoder.1} parent=1 // pred_check_branch
      %49 = sbr.rel (0) target = $region49
    $region48: #{full_vision_encoder.1} parent=1 // pred_region
      _
    $region49: #{full_vision_encoder.1} parent=1 // pred_fallthru
      _
    // Predicated region
    $region50: #{full_vision_encoder.1} parent=1 // pred_check
      _
    $region51: #{full_vision_encoder.1} parent=1 // pred_check_branch
      %51 = sbr.rel (0) target = $region53
    $region52: #{full_vision_encoder.1} parent=1 // pred_region
      _
    $region53: #{full_vision_encoder.1} parent=1 // pred_fallthru
      _
    // Predicated region
    $region54: #{full_vision_encoder.1} parent=1 // pred_check
      _
    $region55: #{full_vision_encoder.1} parent=1 // pred_check_branch
      %53 = sbr.rel (0) target = $region57
    $region56: #{full_vision_encoder.1} parent=1 // pred_region
      _
    $region57: #{full_vision_encoder.1} parent=1 // pred_fallthru
      _
    // Predicated region
    $region58: #{full_vision_encoder.1} parent=1 // pred_check
      _
    $region59: #{full_vision_encoder.1} parent=1 // pred_check_branch
      %55 = sbr.rel (0) target = $region61
    $region60: #{full_vision_encoder.1} parent=1 // pred_region
      _
    $region61: #{full_vision_encoder.1} parent=1 // pred_fallthru
      _
    // Predicated region
    $region62: #{full_vision_encoder.1} parent=1 // pred_check
      _
    $region63: #{full_vision_encoder.1} parent=1 // pred_check_branch
      %57 = sbr.rel (0) target = $region65
    $region64: #{full_vision_encoder.1} parent=1 // pred_region
      _
    $region65: #{full_vision_encoder.1} parent=1 // pred_fallthru
      _
    // Predicated region
    $region66: #{full_vision_encoder.1} parent=1 // pred_check
      _
    $region67: #{full_vision_encoder.1} parent=1 // pred_check_branch
      %59 = sbr.rel (0) target = $region69
    $region68: #{full_vision_encoder.1} parent=1 // pred_region
      _
    $region69: #{full_vision_encoder.1} parent=1 // pred_fallthru
      _
    // Predicated region
    $region70: #{full_vision_encoder.1} parent=1 // pred_check
      _
    $region71: #{full_vision_encoder.1} parent=1 // pred_check_branch
      %61 = sbr.rel (0) target = $region73
    $region72: #{full_vision_encoder.1} parent=1 // pred_region
      _
    $region73: #{full_vision_encoder.1} parent=1 // pred_fallthru
      _
    // Predicated region
    $region74: #{full_vision_encoder.1} parent=1 // pred_check
      _
    $region75: #{full_vision_encoder.1} parent=1 // pred_check_branch
      %63 = sbr.rel (0) target = $region77
    $region76: #{full_vision_encoder.1} parent=1 // pred_region
      _
    $region77: #{full_vision_encoder.1} parent=1 // pred_fallthru
      _
    // Predicated region
    $region78: #{full_vision_encoder.1} parent=1 // pred_check
      _
    $region79: #{full_vision_encoder.1} parent=1 // pred_check_branch
      %65 = sbr.rel (0) target = $region81
    $region80: #{full_vision_encoder.1} parent=1 // pred_region
      _
    $region81: #{full_vision_encoder.1} parent=1 // pred_fallthru
      _
    %v66 = vld [vmem:[%s0] sm:$0xff]
    %v67 = vld [vmem:[%s0 + $0x8] sm:$0xff]
    %v68 = vld [vmem:[%s0 + $0x10] sm:$0xff]
    %v69 = vld [vmem:[%s0 + $0x18] sm:$0xff]
    %v70 = vld [vmem:[%s0 + $0x20] sm:$0xff]
    %v71 = vld [vmem:[%s0 + $0x28] sm:$0xff]
    %v72 = vld [vmem:[%s0 + $0x30] sm:$0xff]
    %v73 = vld [vmem:[%s0 + $0x38] sm:$0xff]
    %v74 = vld [vmem:[%s1] sm:$0xff]
    %v75 = vld [vmem:[%s1 + $0x8] sm:$0xff]
    %v76 = vld [vmem:[%s1 + $0x10] sm:$0xff]
    %v77 = vld [vmem:[%s1 + $0x18] sm:$0xff]
    %v78 = vld [vmem:[%s1 + $0x20] sm:$0xff]
    %v79 = vld [vmem:[%s1 + $0x28] sm:$0xff]
    %v80 = vld [vmem:[%s1 + $0x30] sm:$0xff]
    %v81 = vld [vmem:[%s1 + $0x38] sm:$0xff]
    %v82 = vld [vmem:[%s1 + $0x40] sm:$0xff]
    %v83 = vld [vmem:[%s1 + $0x48] sm:$0xff]
    %v84 = vld [vmem:[%s1 + $0x50] sm:$0xff]
    %v85 = vld [vmem:[%s1 + $0x58] sm:$0xff]
    %v86 = vld [vmem:[%s1 + $0x60] sm:$0xff]
    %v87 = vld [vmem:[%s1 + $0x68] sm:$0xff]
    %v88 = vld [vmem:[%s1 + $0x70] sm:$0xff]
    %v89 = vld [vmem:[%s1 + $0x78] sm:$0xff]
    %v90 = vld [vmem:[%s1 + $0x80] sm:$0xff]
    %v91 = vld [vmem:[%s1 + $0x88] sm:$0xff]
    %v92 = vld [vmem:[%s1 + $0x90] sm:$0xff]
    %v93 = vld [vmem:[%s1 + $0x98] sm:$0xff]
    %v94 = vld [vmem:[%s1 + $0xa0] sm:$0xff]
    %v95 = vld [vmem:[%s1 + $0xa8] sm:$0xff]
    %v96 = vld [vmem:[%s1 + $0xb0] sm:$0xff]
    %v97 = vld [vmem:[%s1 + $0xb8] sm:$0xff]
    %v98 = vld [vmem:[%s2] sm:$0x1]
    %v100 = vlaneseq
    %v101 = vshrl.u32 %v100, 7
    %v102 = vsub.s32 0, %v101
    %v103 = vrot.slane %v98, %v102
    %vm105 = vcmask 523264
    %v107 = vsel %vm105, %v67, 0
    %v110 = vsel %vm105, %v69, 0
    %v113 = vsel %vm105, %v71, 0
    %v116 = vsel %vm105, %v73, 0
    %118 = vmatprep.subr.mxu0 0.0
    %119 = vmatpush1.msra.mxu0 %v74
    %120 = vmatprep.subr.mxu0 0.0
    %121 = vmatpush1.msra.mxu0 %v75
    %122 = vmatprep.subr.mxu0 0.0
    %123 = vmatpush1.msra.mxu0 %v76
    %124 = vmatprep.subr.mxu0 0.0
    %125 = vmatpush1.msra.mxu0 %v77
    %126 = vmatprep.subr.mxu0 0.0
    %127 = vmatpush1.msra.mxu0 %v78
    %128 = vmatprep.subr.mxu0 0.0
    %129 = vmatpush1.msra.mxu0 %v79
    %130 = vmatprep.subr.mxu0 0.0
    %131 = vmatpush1.msra.mxu0 %v80
    %132 = vmatprep.subr.mxu0 0.0
    %133 = vmatpush1.msra.mxu0 %v81
    %134 = vmatprep.subr.mxu0 0.0
    %135 = vmatpush1.msra.mxu0 %v82
    %136 = vmatprep.subr.mxu0 0.0
    %137 = vmatpush1.msra.mxu0 %v83
    %138 = vmatprep.subr.mxu0 0.0
    %139 = vmatpush1.msra.mxu0 %v84
    %140 = vmatprep.subr.mxu0 0.0
    %141 = vmatpush1.msra.mxu0 %v85
    %142 = vmatprep.subr.mxu0 0.0
    %143 = vmatpush1.msra.mxu0 %v86
    %144 = vmatprep.subr.mxu0 0.0
    %145 = vmatpush1.msra.mxu0 %v87
    %146 = vmatprep.subr.mxu0 0.0
    %147 = vmatpush1.msra.mxu0 %v88
    %148 = vmatprep.subr.mxu0 0.0
    %149 = vmatpush1.msra.mxu0 %v89
    %150 = vmatprep.subr.mxu0 0.0
    %151 = vmatpush1.msra.mxu0 %v90
    %152 = vmatprep.subr.mxu0 0.0
    %153 = vmatpush1.msra.mxu0 %v91
    %154 = vmatprep.subr.mxu0 0.0
    %155 = vmatpush1.msra.mxu0 %v92
    %156 = vmatprep.subr.mxu0 0.0
    %157 = vmatpush1.msra.mxu0 %v93
    %158 = vmatprep.subr.mxu0 0.0
    %159 = vmatpush1.msra.mxu0 %v94
    %160 = vmatprep.subr.mxu0 0.0
    %161 = vmatpush1.msra.mxu0 %v95
    %162 = vmatprep.subr.mxu0 0.0
    %163 = vmatpush1.msra.mxu0 %v96
    %164 = vmatprep.subr.mxu0 0.0
    %165 = vmatpush1.msra.mxu0 %v97
    %166 = vmatprep.subr.mxu0 0.0
    %167 = vmatpush1.msra.mxu0 0.0
    %168 = vmatprep.subr.mxu0 0.0
    %169 = vmatpush1.msra.mxu0 0.0
    %170 = vmatprep.subr.mxu0 0.0
    %171 = vmatpush1.msra.mxu0 0.0
    %172 = vmatprep.subr.mxu0 0.0
    %173 = vmatpush1.msra.mxu0 0.0
    %174 = vmatprep.subr.mxu0 0.0
    %175 = vmatpush1.msra.mxu0 0.0
    %176 = vmatprep.subr.mxu0 0.0
    %177 = vmatpush1.msra.mxu0 0.0
    %178 = vmatprep.subr.mxu0 0.0
    %179 = vmatpush1.msra.mxu0 0.0
    %180 = vmatprep.subr.mxu0 0.0
    %181 = vmatpush1.msra.mxu0 0.0
    %182 = vmatprep.mubr.f32.mxu0 %v107
    %183 = vmatmul.mubr.f32.gmra.mrb[0].mxu0 %v66
    %v184 = vpop.f32.mrb[0].mxu0
    %v185 = vadd.f32 %v103, %v184
    %v186 = vpop.f32.mrb[0].mxu0
    %187 = vmatprep.mubr.f32.mxu0 %v110
    %188 = vmatmul.mubr.f32.gmra.mrb[0].mxu0 %v68
    %v189 = vpop.f32.mrb[0].mxu0
    %v190 = vadd.f32 %v103, %v189
    %v191 = vpop.f32.mrb[0].mxu0
    %192 = vmatprep.mubr.f32.mxu0 %v113
    %193 = vmatmul.mubr.f32.gmra.mrb[0].mxu0 %v70
    %v194 = vpop.f32.mrb[0].mxu0
    %v195 = vadd.f32 %v103, %v194
    %v196 = vpop.f32.mrb[0].mxu0
    %197 = vmatprep.mubr.f32.mxu0 %v116
    %198 = vmatmul.mubr.f32.gmra.mrb[0].mxu0 %v72
    %v199 = vpop.f32.mrb[0].mxu0
    %v200 = vadd.f32 %v103, %v199
    %v201 = vpop.f32.mrb[0].mxu0
    %202 = vdwg.mxu0
    %v203 = vld [vmem:[%s3] sm:$0xff]
    %v204 = vld [vmem:[%s3 + $0x8] sm:$0xff]
    %v205 = vld [vmem:[%s3 + $0x10] sm:$0xff]
    %v206 = vld [vmem:[%s3 + $0x18] sm:$0xff]
    %v207 = vadd.f32 %v185, %v203
    %v208 = vadd.f32 %v190, %v204
    %v209 = vadd.f32 %v195, %v205
    %v210 = vadd.f32 %v200, %v206
    %v211 = vld [vmem:[%s6] sm:$0xff]
    %v212 = vld [vmem:[%s6 + $0x8] sm:$0xff]
    %v213 = vld [vmem:[%s6 + $0x10] sm:$0xff]
    %v214 = vld [vmem:[%s6 + $0x18] sm:$0xff]
    %v215 = vld [vmem:[%s7] sm:$0x1]
    %v216 = vld [vmem:[%s8] sm:$0xff]
    %v217 = vld [vmem:[%s8 + $0x8] sm:$0xff]
    %v218 = vld [vmem:[%s8 + $0x10] sm:$0xff]
    %v219 = vld [vmem:[%s8 + $0x18] sm:$0xff]
    %v220 = vld [vmem:[%s9] sm:$0x1]
    %v221 = vld [vmem:[%s4] sm:$0x1]
    %v222 = vld [vmem:[%s5] sm:$0x1]
    %vm223 = vcmask 261120
    %v224 = vsel %vm223, %v207, 0.0
    %225 = vadd.xlane.f32.xlu0 %v224
    %v226 = vpop.xlane.xlu0 %225
    %v227 = vsel %vm223, %v208, 0.0
    %228 = vadd.xlane.f32.xlu0 %v227
    %v229 = vpop.xlane.xlu0 %228
    %v230 = vsel %vm223, %v209, 0.0
    %231 = vadd.xlane.f32.xlu0 %v230
    %v232 = vpop.xlane.xlu0 %231
    %v233 = vsel %vm223, %v210, 0.0
    %234 = vadd.xlane.f32.xlu0 %v233
    %v235 = vpop.xlane.xlu0 %234
    %v236 = vrcp.pop 32.0
    %v237 = vmul.f32 %v226, %v236
    %v238 = vmul.f32 %v229, %v236
    %v239 = vmul.f32 %v232, %v236
    %v240 = vmul.f32 %v235, %v236
    %v241 = vsub.f32 %v207, %v237
    %v242 = vsub.f32 %v208, %v238
    %v243 = vsub.f32 %v209, %v239
    %v244 = vsub.f32 %v210, %v240
    %v245 = vmul.f32 %v241, %v241
    %v246 = vmul.f32 %v242, %v242
    %v247 = vmul.f32 %v243, %v243
    %v248 = vmul.f32 %v244, %v244
    %v249 = vsel %vm223, %v245, 0.0
    %250 = vadd.xlane.f32.xlu0 %v249
    %v251 = vpop.xlane.xlu0 %250
    %v252 = vsel %vm223, %v246, 0.0
    %253 = vadd.xlane.f32.xlu0 %v252
    %v254 = vpop.xlane.xlu0 %253
    %v255 = vsel %vm223, %v247, 0.0
    %256 = vadd.xlane.f32.xlu0 %v255
    %v257 = vpop.xlane.xlu0 %256
    %v258 = vsel %vm223, %v248, 0.0
    %259 = vadd.xlane.f32.xlu0 %v258
    %v260 = vpop.xlane.xlu0 %259
    %v261 = vmul.f32 %v251, %v236
    %v262 = vmul.f32 %v254, %v236
    %v263 = vmul.f32 %v257, %v236
    %v264 = vmul.f32 %v260, %v236
    %v265 = vadd.f32 %v261, 1e-06
    %v266 = vadd.f32 %v262, 1e-06
    %v267 = vadd.f32 %v263, 1e-06
    %v268 = vadd.f32 %v264, 1e-06
    %v269 = vrsqrt.pop %v265
    %v270 = vrsqrt.pop %v266
    %v271 = vrsqrt.pop %v267
    %v272 = vrsqrt.pop %v268
    %v273 = vmul.f32 %v241, %v269
    %v274 = vmul.f32 %v242, %v270
    %v275 = vmul.f32 %v243, %v271
    %v276 = vmul.f32 %v244, %v272
    %v278 = vlaneseq
    %v279 = vshrl.u32 %v278, 7
    %v280 = vsub.s32 0, %v279
    %v281 = vrot.slane %v221, %v280
    %v283 = vmul.f32 %v273, %v281
    %v284 = vmul.f32 %v274, %v281
    %v285 = vmul.f32 %v275, %v281
    %v286 = vmul.f32 %v276, %v281
    %v288 = vlaneseq
    %v289 = vshrl.u32 %v288, 7
    %v290 = vsub.s32 0, %v289
    %v291 = vrot.slane %v222, %v290
    %v293 = vadd.f32 %v283, %v291
    %v294 = vadd.f32 %v284, %v291
    %v295 = vadd.f32 %v285, %v291
    %v296 = vadd.f32 %v286, %v291
    %v298 = vlaneseq
    %v299 = vshrl.u32 %v298, 7
    %v300 = vsub.s32 0, %v299
    %v301 = vrot.slane %v215, %v300
    %v304 = vsel %vm223, %v293, 0
    %v307 = vsel %vm223, %v294, 0
    %v310 = vsel %vm223, %v295, 0
    %v313 = vsel %vm223, %v296, 0
    %315 = vmatprep.subr.mxu0 0.0
    %316 = vmatpush1.msra.mxu0 %v211
    %317 = vmatprep.subr.mxu0 0.0
    %318 = vmatpush1.msra.mxu0 %v212
    %319 = vmatprep.subr.mxu0 0.0
    %320 = vmatpush1.msra.mxu0 %v213
    %321 = vmatprep.subr.mxu0 0.0
    %322 = vmatpush1.msra.mxu0 %v214
    %323 = vmatprep.subr.mxu0 0.0
    %324 = vmatpush1.msra.mxu0 0.0
    %325 = vmatprep.subr.mxu0 0.0
    %326 = vmatpush1.msra.mxu0 0.0
    %327 = vmatprep.subr.mxu0 0.0
    %328 = vmatpush1.msra.mxu0 0.0
    %329 = vmatprep.subr.mxu0 0.0
    %330 = vmatpush1.msra.mxu0 0.0
    %331 = vmatprep.subr.mxu0 0.0
    %332 = vmatpush1.msra.mxu0 0.0
    %333 = vmatprep.subr.mxu0 0.0
    %334 = vmatpush1.msra.mxu0 0.0
    %335 = vmatprep.subr.mxu0 0.0
    %336 = vmatpush1.msra.mxu0 0.0
    %337 = vmatprep.subr.mxu0 0.0
    %338 = vmatpush1.msra.mxu0 0.0
    %339 = vmatprep.subr.mxu0 0.0
    %340 = vmatpush1.msra.mxu0 0.0
    %341 = vmatprep.subr.mxu0 0.0
    %342 = vmatpush1.msra.mxu0 0.0
    %343 = vmatprep.subr.mxu0 0.0
    %344 = vmatpush1.msra.mxu0 0.0
    %345 = vmatprep.subr.mxu0 0.0
    %346 = vmatpush1.msra.mxu0 0.0
    %347 = vmatprep.subr.mxu0 0.0
    %348 = vmatpush1.msra.mxu0 0.0
    %349 = vmatprep.subr.mxu0 0.0
    %350 = vmatpush1.msra.mxu0 0.0
    %351 = vmatprep.subr.mxu0 0.0
    %352 = vmatpush1.msra.mxu0 0.0
    %353 = vmatprep.subr.mxu0 0.0
    %354 = vmatpush1.msra.mxu0 0.0
    %355 = vmatprep.subr.mxu0 0.0
    %356 = vmatpush1.msra.mxu0 0.0
    %357 = vmatprep.subr.mxu0 0.0
    %358 = vmatpush1.msra.mxu0 0.0
    %359 = vmatprep.subr.mxu0 0.0
    %360 = vmatpush1.msra.mxu0 0.0
    %361 = vmatprep.subr.mxu0 0.0
    %362 = vmatpush1.msra.mxu0 0.0
    %363 = vmatprep.subr.mxu0 0.0
    %364 = vmatpush1.msra.mxu0 0.0
    %365 = vmatprep.subr.mxu0 0.0
    %366 = vmatpush1.msra.mxu0 0.0
    %367 = vmatprep.subr.mxu0 0.0
    %368 = vmatpush1.msra.mxu0 0.0
    %369 = vmatprep.subr.mxu0 0.0
    %370 = vmatpush1.msra.mxu0 0.0
    %371 = vmatprep.subr.mxu0 0.0
    %372 = vmatpush1.msra.mxu0 0.0
    %373 = vmatprep.subr.mxu0 0.0
    %374 = vmatpush1.msra.mxu0 0.0
    %375 = vmatprep.subr.mxu0 0.0
    %376 = vmatpush1.msra.mxu0 0.0
    %377 = vmatprep.subr.mxu0 0.0
    %378 = vmatpush1.msra.mxu0 0.0
    %379 = vmatprep.mubr.f32.mxu0 0.0
    %380 = vmatmul.mubr.f32.gmra.mrb[0].mxu0 %v304
    %v381 = vpop.f32.mrb[0].mxu0
    %v382 = vadd.f32 %v301, %v381
    %v383 = vpop.f32.mrb[0].mxu0
    %384 = vmatprep.mubr.f32.mxu0 0.0
    %385 = vmatmul.mubr.f32.gmra.mrb[0].mxu0 %v307
    %v386 = vpop.f32.mrb[0].mxu0
    %v387 = vadd.f32 %v301, %v386
    %v388 = vpop.f32.mrb[0].mxu0
    %389 = vmatprep.mubr.f32.mxu0 0.0
    %390 = vmatmul.mubr.f32.gmra.mrb[0].mxu0 %v310
    %v391 = vpop.f32.mrb[0].mxu0
    %v392 = vadd.f32 %v301, %v391
    %v393 = vpop.f32.mrb[0].mxu0
    %394 = vmatprep.mubr.f32.mxu0 0.0
    %395 = vmatmul.mubr.f32.gmra.mrb[0].mxu0 %v313
    %v396 = vpop.f32.mrb[0].mxu0
    %v397 = vadd.f32 %v301, %v396
    %v398 = vpop.f32.mrb[0].mxu0
    %399 = vdwg.mxu0
    %402 = vrot.lane.b32.xlu0 %v382, 96
    %v403 = vpop.permute.xlu0 %402
    %404 = vrot.lane.b32.xlu0 %v387, 96
    %v405 = vpop.permute.xlu0 %404
    %vm406 = vcmask 64512
    %v407 = vsel %vm406, %v382, 0
    %v409 = vsel %vm406, %v387, 0
    %v411 = vsel %vm406, %v403, 0
    %v413 = vsel %vm406, %v405, 0
    %415 = vmatprep.subr.mxu0 0.0
    %416 = vmatpush1.xpose.msra.mxu0 %v411
    %417 = vmatprep.subr.mxu0 0.0
    %418 = vmatpush1.xpose.msra.mxu0 %v413
    %419 = vmatprep.subr.mxu0 0.0
    %420 = vmatpush1.xpose.msra.mxu0 0.0
    %421 = vmatprep.subr.mxu0 0.0
    %422 = vmatpush1.xpose.msra.mxu0 0.0
    %423 = vmatprep.subr.mxu0 0.0
    %424 = vmatpush1.xpose.msra.mxu0 0.0
    %425 = vmatprep.subr.mxu0 0.0
    %426 = vmatpush1.xpose.msra.mxu0 0.0
    %427 = vmatprep.subr.mxu0 0.0
    %428 = vmatpush1.xpose.msra.mxu0 0.0
    %429 = vmatprep.subr.mxu0 0.0
    %430 = vmatpush1.xpose.msra.mxu0 0.0
    %431 = vmatprep.subr.mxu0 0.0
    %432 = vmatpush1.xpose.msra.mxu0 0.0
    %433 = vmatprep.subr.mxu0 0.0
    %434 = vmatpush1.xpose.msra.mxu0 0.0
    %435 = vmatprep.subr.mxu0 0.0
    %436 = vmatpush1.xpose.msra.mxu0 0.0
    %437 = vmatprep.subr.mxu0 0.0
    %438 = vmatpush1.xpose.msra.mxu0 0.0
    %439 = vmatprep.subr.mxu0 0.0
    %440 = vmatpush1.xpose.msra.mxu0 0.0
    %441 = vmatprep.subr.mxu0 0.0
    %442 = vmatpush1.xpose.msra.mxu0 0.0
    %443 = vmatprep.subr.mxu0 0.0
    %444 = vmatpush1.xpose.msra.mxu0 0.0
    %445 = vmatprep.subr.mxu0 0.0
    %446 = vmatpush1.xpose.msra.mxu0 0.0
    %447 = vmatprep.subr.mxu0 0.0
    %448 = vmatpush1.xpose.msra.mxu0 0.0
    %449 = vmatprep.subr.mxu0 0.0
    %450 = vmatpush1.xpose.msra.mxu0 0.0
    %451 = vmatprep.subr.mxu0 0.0
    %452 = vmatpush1.xpose.msra.mxu0 0.0
    %453 = vmatprep.subr.mxu0 0.0
    %454 = vmatpush1.xpose.msra.mxu0 0.0
    %455 = vmatprep.subr.mxu0 0.0
    %456 = vmatpush1.xpose.msra.mxu0 0.0
    %457 = vmatprep.subr.mxu0 0.0
    %458 = vmatpush1.xpose.msra.mxu0 0.0
    %459 = vmatprep.subr.mxu0 0.0
    %460 = vmatpush1.xpose.msra.mxu0 0.0
    %461 = vmatprep.subr.mxu0 0.0
    %462 = vmatpush1.xpose.msra.mxu0 0.0
    %463 = vmatprep.subr.mxu0 0.0
    %464 = vmatpush1.xpose.msra.mxu0 0.0
    %465 = vmatprep.subr.mxu0 0.0
    %466 = vmatpush1.xpose.msra.mxu0 0.0
    %467 = vmatprep.subr.mxu0 0.0
    %468 = vmatpush1.xpose.msra.mxu0 0.0
    %469 = vmatprep.subr.mxu0 0.0
    %470 = vmatpush1.xpose.msra.mxu0 0.0
    %471 = vmatprep.subr.mxu0 0.0
    %472 = vmatpush1.xpose.msra.mxu0 0.0
    %473 = vmatprep.subr.mxu0 0.0
    %474 = vmatpush1.xpose.msra.mxu0 0.0
    %475 = vmatprep.subr.mxu0 0.0
    %476 = vmatpush1.xpose.msra.mxu0 0.0
    %477 = vmatprep.subr.mxu0 0.0
    %478 = vmatpush1.xpose.msra.mxu0 0.0
    %479 = vmatprep.mubr.f32.mxu0 0.0
    %480 = vmatmul.mubr.f32.gmra.mrb[0].mxu0 %v407
    %v481 = vpop.f32.mrb[0].mxu0
    %v482 = vadd.f32 0.0, %v481
    %v483 = vpop.f32.mrb[0].mxu0
    %484 = vmatprep.mubr.f32.mxu0 0.0
    %485 = vmatmul.mubr.f32.gmra.mrb[0].mxu0 %v409
    %v486 = vpop.f32.mrb[0].mxu0
    %v487 = vadd.f32 0.0, %v486
    %v488 = vpop.f32.mrb[0].mxu0
    %489 = vdwg.mxu0
    %v490 = vmul.f32 %v482, 0.35355338
    %v491 = vmul.f32 %v487, 0.35355338
    %vm492 = vcmask 130048
    %v493 = vsel %vm492, %v490, -inf
    %494 = vmax.xlane.f32.xlu0 %v493
    %v495 = vpop.xlane.xlu0 %494
    %v496 = vsel %vm492, %v491, -inf
    %497 = vmax.xlane.f32.xlu0 %v496
    %v498 = vpop.xlane.xlu0 %497
    %v499 = vsub.f32 %v490, %v495
    %v500 = vsub.f32 %v491, %v498
    %v501 = vmul.f32 %v499, 1.442695
    %v502 = vpow.pop %v501
    %v503 = vmul.f32 %v500, 1.442695
    %v504 = vpow.pop %v503
    %v505 = vsel %vm492, %v502, 0.0
    %506 = vadd.xlane.f32.xlu0 %v505
    %v507 = vpop.xlane.xlu0 %506
    %v508 = vsel %vm492, %v504, 0.0
    %509 = vadd.xlane.f32.xlu0 %v508
    %v510 = vpop.xlane.xlu0 %509
    %v511 = vrcp.pop %v507
    %v512 = vrcp.pop %v510
    %v513 = vmul.f32 %v502, %v511
    %v514 = vmul.f32 %v504, %v512
    %515 = vrot.lane.b32.xlu0 %v382, 64
    %v516 = vpop.permute.xlu0 %515
    %517 = vrot.lane.b32.xlu0 %v387, 64
    %v518 = vpop.permute.xlu0 %517
    %v522 = vsel %vm492, %v513, 0
    %v525 = vsel %vm492, %v514, 0
    %527 = vmatprep.subr.mxu0 0.0
    %528 = vmatpush1.msra.mxu0 %v516
    %529 = vmatprep.subr.mxu0 0.0
    %530 = vmatpush1.msra.mxu0 %v518
    %531 = vmatprep.subr.mxu0 0.0
    %532 = vmatpush1.msra.mxu0 0.0
    %533 = vmatprep.subr.mxu0 0.0
    %534 = vmatpush1.msra.mxu0 0.0
    %535 = vmatprep.subr.mxu0 0.0
    %536 = vmatpush1.msra.mxu0 0.0
    %537 = vmatprep.subr.mxu0 0.0
    %538 = vmatpush1.msra.mxu0 0.0
    %539 = vmatprep.subr.mxu0 0.0
    %540 = vmatpush1.msra.mxu0 0.0
    %541 = vmatprep.subr.mxu0 0.0
    %542 = vmatpush1.msra.mxu0 0.0
    %543 = vmatprep.subr.mxu0 0.0
    %544 = vmatpush1.msra.mxu0 0.0
    %545 = vmatprep.subr.mxu0 0.0
    %546 = vmatpush1.msra.mxu0 0.0
    %547 = vmatprep.subr.mxu0 0.0
    %548 = vmatpush1.msra.mxu0 0.0
    %549 = vmatprep.subr.mxu0 0.0
    %550 = vmatpush1.msra.mxu0 0.0
    %551 = vmatprep.subr.mxu0 0.0
    %552 = vmatpush1.msra.mxu0 0.0
    %553 = vmatprep.subr.mxu0 0.0
    %554 = vmatpush1.msra.mxu0 0.0
    %555 = vmatprep.subr.mxu0 0.0
    %556 = vmatpush1.msra.mxu0 0.0
    %557 = vmatprep.subr.mxu0 0.0
    %558 = vmatpush1.msra.mxu0 0.0
    %559 = vmatprep.subr.mxu0 0.0
    %560 = vmatpush1.msra.mxu0 0.0
    %561 = vmatprep.subr.mxu0 0.0
    %562 = vmatpush1.msra.mxu0 0.0
    %563 = vmatprep.subr.mxu0 0.0
    %564 = vmatpush1.msra.mxu0 0.0
    %565 = vmatprep.subr.mxu0 0.0
    %566 = vmatpush1.msra.mxu0 0.0
    %567 = vmatprep.subr.mxu0 0.0
    %568 = vmatpush1.msra.mxu0 0.0
    %569 = vmatprep.subr.mxu0 0.0
    %570 = vmatpush1.msra.mxu0 0.0
    %571 = vmatprep.subr.mxu0 0.0
    %572 = vmatpush1.msra.mxu0 0.0
    %573 = vmatprep.subr.mxu0 0.0
    %574 = vmatpush1.msra.mxu0 0.0
    %575 = vmatprep.subr.mxu0 0.0
    %576 = vmatpush1.msra.mxu0 0.0
    %577 = vmatprep.subr.mxu0 0.0
    %578 = vmatpush1.msra.mxu0 0.0
    %579 = vmatprep.subr.mxu0 0.0
    %580 = vmatpush1.msra.mxu0 0.0
    %581 = vmatprep.subr.mxu0 0.0
    %582 = vmatpush1.msra.mxu0 0.0
    %583 = vmatprep.subr.mxu0 0.0
    %584 = vmatpush1.msra.mxu0 0.0
    %585 = vmatprep.subr.mxu0 0.0
    %586 = vmatpush1.msra.mxu0 0.0
    %587 = vmatprep.subr.mxu0 0.0
    %588 = vmatpush1.msra.mxu0 0.0
    %589 = vmatprep.subr.mxu0 0.0
    %590 = vmatpush1.msra.mxu0 0.0
    %591 = vmatprep.mubr.f32.mxu0 0.0
    %592 = vmatmul.mubr.f32.gmra.mrb[0].mxu0 %v522
    %v593 = vpop.f32.mrb[0].mxu0
    %v594 = vadd.f32 0.0, %v593
    %v595 = vpop.f32.mrb[0].mxu0
    %596 = vmatprep.mubr.f32.mxu0 0.0
    %597 = vmatmul.mubr.f32.gmra.mrb[0].mxu0 %v525
    %v598 = vpop.f32.mrb[0].mxu0
    %v599 = vadd.f32 0.0, %v598
    %v600 = vpop.f32.mrb[0].mxu0
    %601 = vdwg.mxu0
    %602 = vrot.lane.b32.xlu0 %v382, 120
    %v603 = vpop.permute.xlu0 %602
    %604 = vrot.lane.b32.xlu0 %v387, 120
    %v605 = vpop.permute.xlu0 %604
    %606 = vrot.lane.b32.xlu0 %v382, 88
    %v607 = vpop.permute.xlu0 %606
    %608 = vrot.lane.b32.xlu0 %v387, 88
    %v609 = vpop.permute.xlu0 %608
    %v610 = vsel %vm406, %v603, 0
    %v612 = vsel %vm406, %v605, 0
    %v614 = vsel %vm406, %v607, 0
    %v616 = vsel %vm406, %v609, 0
    %618 = vmatprep.subr.mxu0 0.0
    %619 = vmatpush1.xpose.msra.mxu0 %v614
    %620 = vmatprep.subr.mxu0 0.0
    %621 = vmatpush1.xpose.msra.mxu0 %v616
    %622 = vmatprep.subr.mxu0 0.0
    %623 = vmatpush1.xpose.msra.mxu0 0.0
    %624 = vmatprep.subr.mxu0 0.0
    %625 = vmatpush1.xpose.msra.mxu0 0.0
    %626 = vmatprep.subr.mxu0 0.0
    %627 = vmatpush1.xpose.msra.mxu0 0.0
    %628 = vmatprep.subr.mxu0 0.0
    %629 = vmatpush1.xpose.msra.mxu0 0.0
    %630 = vmatprep.subr.mxu0 0.0
    %631 = vmatpush1.xpose.msra.mxu0 0.0
    %632 = vmatprep.subr.mxu0 0.0
    %633 = vmatpush1.xpose.msra.mxu0 0.0
    %634 = vmatprep.subr.mxu0 0.0
    %635 = vmatpush1.xpose.msra.mxu0 0.0
    %636 = vmatprep.subr.mxu0 0.0
    %637 = vmatpush1.xpose.msra.mxu0 0.0
    %638 = vmatprep.subr.mxu0 0.0
    %639 = vmatpush1.xpose.msra.mxu0 0.0
    %640 = vmatprep.subr.mxu0 0.0
    %641 = vmatpush1.xpose.msra.mxu0 0.0
    %642 = vmatprep.subr.mxu0 0.0
    %643 = vmatpush1.xpose.msra.mxu0 0.0
    %644 = vmatprep.subr.mxu0 0.0
    %645 = vmatpush1.xpose.msra.mxu0 0.0
    %646 = vmatprep.subr.mxu0 0.0
    %647 = vmatpush1.xpose.msra.mxu0 0.0
    %648 = vmatprep.subr.mxu0 0.0
    %649 = vmatpush1.xpose.msra.mxu0 0.0
    %650 = vmatprep.subr.mxu0 0.0
    %651 = vmatpush1.xpose.msra.mxu0 0.0
    %652 = vmatprep.subr.mxu0 0.0
    %653 = vmatpush1.xpose.msra.mxu0 0.0
    %654 = vmatprep.subr.mxu0 0.0
    %655 = vmatpush1.xpose.msra.mxu0 0.0
    %656 = vmatprep.subr.mxu0 0.0
    %657 = vmatpush1.xpose.msra.mxu0 0.0
    %658 = vmatprep.subr.mxu0 0.0
    %659 = vmatpush1.xpose.msra.mxu0 0.0
    %660 = vmatprep.subr.mxu0 0.0
    %661 = vmatpush1.xpose.msra.mxu0 0.0
    %662 = vmatprep.subr.mxu0 0.0
    %663 = vmatpush1.xpose.msra.mxu0 0.0
    %664 = vmatprep.subr.mxu0 0.0
    %665 = vmatpush1.xpose.msra.mxu0 0.0
    %666 = vmatprep.subr.mxu0 0.0
    %667 = vmatpush1.xpose.msra.mxu0 0.0
    %668 = vmatprep.subr.mxu0 0.0
    %669 = vmatpush1.xpose.msra.mxu0 0.0
    %670 = vmatprep.subr.mxu0 0.0
    %671 = vmatpush1.xpose.msra.mxu0 0.0
    %672 = vmatprep.subr.mxu0 0.0
    %673 = vmatpush1.xpose.msra.mxu0 0.0
    %674 = vmatprep.subr.mxu0 0.0
    %675 = vmatpush1.xpose.msra.mxu0 0.0
    %676 = vmatprep.subr.mxu0 0.0
    %677 = vmatpush1.xpose.msra.mxu0 0.0
    %678 = vmatprep.subr.mxu0 0.0
    %679 = vmatpush1.xpose.msra.mxu0 0.0
    %680 = vmatprep.subr.mxu0 0.0
    %681 = vmatpush1.xpose.msra.mxu0 0.0
    %682 = vmatprep.mubr.f32.mxu0 0.0
    %683 = vmatmul.mubr.f32.gmra.mrb[0].mxu0 %v610
    %v684 = vpop.f32.mrb[0].mxu0
    %v685 = vadd.f32 0.0, %v684
    %v686 = vpop.f32.mrb[0].mxu0
    %687 = vmatprep.mubr.f32.mxu0 0.0
    %688 = vmatmul.mubr.f32.gmra.mrb[0].mxu0 %v612
    %v689 = vpop.f32.mrb[0].mxu0
    %v690 = vadd.f32 0.0, %v689
    %v691 = vpop.f32.mrb[0].mxu0
    %692 = vdwg.mxu0
    %v693 = vmul.f32 %v685, 0.35355338
    %v694 = vmul.f32 %v690, 0.35355338
    %v695 = vsel %vm492, %v693, -inf
    %696 = vmax.xlane.f32.xlu0 %v695
    %v697 = vpop.xlane.xlu0 %696
    %v698 = vsel %vm492, %v694, -inf
    %699 = vmax.xlane.f32.xlu0 %v698
    %v700 = vpop.xlane.xlu0 %699
    %v701 = vsub.f32 %v693, %v697
    %v702 = vsub.f32 %v694, %v700
    %v703 = vmul.f32 %v701, 1.442695
    %v704 = vpow.pop %v703
    %v705 = vmul.f32 %v702, 1.442695
    %v706 = vpow.pop %v705
    %v707 = vsel %vm492, %v704, 0.0
    %708 = vadd.xlane.f32.xlu0 %v707
    %v709 = vpop.xlane.xlu0 %708
    %v710 = vsel %vm492, %v706, 0.0
    %711 = vadd.xlane.f32.xlu0 %v710
    %v712 = vpop.xlane.xlu0 %711
    %v713 = vrcp.pop %v709
    %v714 = vrcp.pop %v712
    %v715 = vmul.f32 %v704, %v713
    %v716 = vmul.f32 %v706, %v714
    %717 = vrot.lane.b32.xlu0 %v382, 56
    %v718 = vpop.permute.xlu0 %717
    %719 = vrot.lane.b32.xlu0 %v387, 56
    %v720 = vpop.permute.xlu0 %719
    %v724 = vsel %vm492, %v715, 0
    %v727 = vsel %vm492, %v716, 0
    %729 = vmatprep.subr.mxu0 0.0
    %730 = vmatpush1.msra.mxu0 %v718
    %731 = vmatprep.subr.mxu0 0.0
    %732 = vmatpush1.msra.mxu0 %v720
    %733 = vmatprep.subr.mxu0 0.0
    %734 = vmatpush1.msra.mxu0 0.0
    %735 = vmatprep.subr.mxu0 0.0
    %736 = vmatpush1.msra.mxu0 0.0
    %737 = vmatprep.subr.mxu0 0.0
    %738 = vmatpush1.msra.mxu0 0.0
    %739 = vmatprep.subr.mxu0 0.0
    %740 = vmatpush1.msra.mxu0 0.0
    %741 = vmatprep.subr.mxu0 0.0
    %742 = vmatpush1.msra.mxu0 0.0
    %743 = vmatprep.subr.mxu0 0.0
    %744 = vmatpush1.msra.mxu0 0.0
    %745 = vmatprep.subr.mxu0 0.0
    %746 = vmatpush1.msra.mxu0 0.0
    %747 = vmatprep.subr.mxu0 0.0
    %748 = vmatpush1.msra.mxu0 0.0
    %749 = vmatprep.subr.mxu0 0.0
    %750 = vmatpush1.msra.mxu0 0.0
    %751 = vmatprep.subr.mxu0 0.0
    %752 = vmatpush1.msra.mxu0 0.0
    %753 = vmatprep.subr.mxu0 0.0
    %754 = vmatpush1.msra.mxu0 0.0
    %755 = vmatprep.subr.mxu0 0.0
    %756 = vmatpush1.msra.mxu0 0.0
    %757 = vmatprep.subr.mxu0 0.0
    %758 = vmatpush1.msra.mxu0 0.0
    %759 = vmatprep.subr.mxu0 0.0
    %760 = vmatpush1.msra.mxu0 0.0
    %761 = vmatprep.subr.mxu0 0.0
    %762 = vmatpush1.msra.mxu0 0.0
    %763 = vmatprep.subr.mxu0 0.0
    %764 = vmatpush1.msra.mxu0 0.0
    %765 = vmatprep.subr.mxu0 0.0
    %766 = vmatpush1.msra.mxu0 0.0
    %767 = vmatprep.subr.mxu0 0.0
    %768 = vmatpush1.msra.mxu0 0.0
    %769 = vmatprep.subr.mxu0 0.0
    %770 = vmatpush1.msra.mxu0 0.0
    %771 = vmatprep.subr.mxu0 0.0
    %772 = vmatpush1.msra.mxu0 0.0
    %773 = vmatprep.subr.mxu0 0.0
    %774 = vmatpush1.msra.mxu0 0.0
    %775 = vmatprep.subr.mxu0 0.0
    %776 = vmatpush1.msra.mxu0 0.0
    %777 = vmatprep.subr.mxu0 0.0
    %778 = vmatpush1.msra.mxu0 0.0
    %779 = vmatprep.subr.mxu0 0.0
    %780 = vmatpush1.msra.mxu0 0.0
    %781 = vmatprep.subr.mxu0 0.0
    %782 = vmatpush1.msra.mxu0 0.0
    %783 = vmatprep.subr.mxu0 0.0
    %784 = vmatpush1.msra.mxu0 0.0
    %785 = vmatprep.subr.mxu0 0.0
    %786 = vmatpush1.msra.mxu0 0.0
    %787 = vmatprep.subr.mxu0 0.0
    %788 = vmatpush1.msra.mxu0 0.0
    %789 = vmatprep.subr.mxu0 0.0
    %790 = vmatpush1.msra.mxu0 0.0
    %791 = vmatprep.subr.mxu0 0.0
    %792 = vmatpush1.msra.mxu0 0.0
    %793 = vmatprep.mubr.f32.mxu0 0.0
    %794 = vmatmul.mubr.f32.gmra.mrb[0].mxu0 %v724
    %v795 = vpop.f32.mrb[0].mxu0
    %v796 = vadd.f32 0.0, %v795
    %v797 = vpop.f32.mrb[0].mxu0
    %798 = vmatprep.mubr.f32.mxu0 0.0
    %799 = vmatmul.mubr.f32.gmra.mrb[0].mxu0 %v727
    %v800 = vpop.f32.mrb[0].mxu0
    %v801 = vadd.f32 0.0, %v800
    %v802 = vpop.f32.mrb[0].mxu0
    %803 = vdwg.mxu0
    %v805 = vsel %vm406, %v796, 0
    %v808 = vsel %vm406, %v801, 0
    %810 = vmatprep.subr.mxu0 0.0
    %811 = vmatpush1.msra.mxu0 %v217
    %812 = vmatprep.subr.mxu0 0.0
    %813 = vmatpush1.msra.mxu0 0.0
    %814 = vmatprep.subr.mxu0 0.0
    %815 = vmatpush1.msra.mxu0 0.0
    %816 = vmatprep.subr.mxu0 0.0
    %817 = vmatpush1.msra.mxu0 0.0
    %818 = vmatprep.subr.mxu0 0.0
    %819 = vmatpush1.msra.mxu0 0.0
    %820 = vmatprep.subr.mxu0 0.0
    %821 = vmatpush1.msra.mxu0 0.0
    %822 = vmatprep.subr.mxu0 0.0
    %823 = vmatpush1.msra.mxu0 0.0
    %824 = vmatprep.subr.mxu0 0.0
    %825 = vmatpush1.msra.mxu0 0.0
    %826 = vmatprep.subr.mxu0 0.0
    %827 = vmatpush1.msra.mxu0 0.0
    %828 = vmatprep.subr.mxu0 0.0
    %829 = vmatpush1.msra.mxu0 0.0
    %830 = vmatprep.subr.mxu0 0.0
    %831 = vmatpush1.msra.mxu0 0.0
    %832 = vmatprep.subr.mxu0 0.0
    %833 = vmatpush1.msra.mxu0 0.0
    %834 = vmatprep.subr.mxu0 0.0
    %835 = vmatpush1.msra.mxu0 0.0
    %836 = vmatprep.subr.mxu0 0.0
    %837 = vmatpush1.msra.mxu0 0.0
    %838 = vmatprep.subr.mxu0 0.0
    %839 = vmatpush1.msra.mxu0 0.0
    %840 = vmatprep.subr.mxu0 0.0
    %841 = vmatpush1.msra.mxu0 0.0
    %842 = vmatprep.subr.mxu0 0.0
    %843 = vmatpush1.msra.mxu0 0.0
    %844 = vmatprep.subr.mxu0 0.0
    %845 = vmatpush1.msra.mxu0 0.0
    %846 = vmatprep.subr.mxu0 0.0
    %847 = vmatpush1.msra.mxu0 0.0
    %848 = vmatprep.subr.mxu0 0.0
    %849 = vmatpush1.msra.mxu0 0.0
    %850 = vmatprep.subr.mxu0 0.0
    %851 = vmatpush1.msra.mxu0 0.0
    %852 = vmatprep.subr.mxu0 0.0
    %853 = vmatpush1.msra.mxu0 0.0
    %854 = vmatprep.subr.mxu0 0.0
    %855 = vmatpush1.msra.mxu0 0.0
    %856 = vmatprep.subr.mxu0 0.0
    %857 = vmatpush1.msra.mxu0 0.0
    %858 = vmatprep.subr.mxu0 0.0
    %859 = vmatpush1.msra.mxu0 0.0
    %860 = vmatprep.subr.mxu0 0.0
    %861 = vmatpush1.msra.mxu0 0.0
    %862 = vmatprep.subr.mxu0 0.0
    %863 = vmatpush1.msra.mxu0 0.0
    %864 = vmatprep.subr.mxu0 0.0
    %865 = vmatpush1.msra.mxu0 0.0
    %866 = vmatprep.subr.mxu0 0.0
    %867 = vmatpush1.msra.mxu0 0.0
    %868 = vmatprep.subr.mxu0 0.0
    %869 = vmatpush1.msra.mxu0 0.0
    %870 = vmatprep.subr.mxu0 0.0
    %871 = vmatpush1.msra.mxu0 0.0
    %872 = vmatprep.subr.mxu0 0.0
    %873 = vmatpush1.msra.mxu0 0.0
    %874 = vmatprep.mubr.f32.mxu0 0.0
    %875 = vmatmul.mubr.f32.gmra.mrb[0].mxu0 %v805
    %v876 = vpop.f32.mrb[0].mxu0
    %v877 = vadd.f32 0.0, %v876
    %v878 = vpop.f32.mrb[0].mxu0
    %879 = vmatprep.mubr.f32.mxu0 0.0
    %880 = vmatmul.mubr.f32.gmra.mrb[0].mxu0 %v808
    %v881 = vpop.f32.mrb[0].mxu0
    %v882 = vadd.f32 0.0, %v881
    %v883 = vpop.f32.mrb[0].mxu0
    %884 = vdwg.mxu0
    %v886 = vsel %vm406, %v594, 0
    %v889 = vsel %vm406, %v599, 0
    %891 = vmatprep.subr.mxu0 0.0
    %892 = vmatpush1.msra.mxu0 %v216
    %893 = vmatprep.subr.mxu0 0.0
    %894 = vmatpush1.msra.mxu0 0.0
    %895 = vmatprep.subr.mxu0 0.0
    %896 = vmatpush1.msra.mxu0 0.0
    %897 = vmatprep.subr.mxu0 0.0
    %898 = vmatpush1.msra.mxu0 0.0
    %899 = vmatprep.subr.mxu0 0.0
    %900 = vmatpush1.msra.mxu0 0.0
    %901 = vmatprep.subr.mxu0 0.0
    %902 = vmatpush1.msra.mxu0 0.0
    %903 = vmatprep.subr.mxu0 0.0
    %904 = vmatpush1.msra.mxu0 0.0
    %905 = vmatprep.subr.mxu0 0.0
    %906 = vmatpush1.msra.mxu0 0.0
    %907 = vmatprep.subr.mxu0 0.0
    %908 = vmatpush1.msra.mxu0 0.0
    %909 = vmatprep.subr.mxu0 0.0
    %910 = vmatpush1.msra.mxu0 0.0
    %911 = vmatprep.subr.mxu0 0.0
    %912 = vmatpush1.msra.mxu0 0.0
    %913 = vmatprep.subr.mxu0 0.0
    %914 = vmatpush1.msra.mxu0 0.0
    %915 = vmatprep.subr.mxu0 0.0
    %916 = vmatpush1.msra.mxu0 0.0
    %917 = vmatprep.subr.mxu0 0.0
    %918 = vmatpush1.msra.mxu0 0.0
    %919 = vmatprep.subr.mxu0 0.0
    %920 = vmatpush1.msra.mxu0 0.0
    %921 = vmatprep.subr.mxu0 0.0
    %922 = vmatpush1.msra.mxu0 0.0
    %923 = vmatprep.subr.mxu0 0.0
    %924 = vmatpush1.msra.mxu0 0.0
    %925 = vmatprep.subr.mxu0 0.0
    %926 = vmatpush1.msra.mxu0 0.0
    %927 = vmatprep.subr.mxu0 0.0
    %928 = vmatpush1.msra.mxu0 0.0
    %929 = vmatprep.subr.mxu0 0.0
    %930 = vmatpush1.msra.mxu0 0.0
    %931 = vmatprep.subr.mxu0 0.0
    %932 = vmatpush1.msra.mxu0 0.0
    %933 = vmatprep.subr.mxu0 0.0
    %934 = vmatpush1.msra.mxu0 0.0
    %935 = vmatprep.subr.mxu0 0.0
    %936 = vmatpush1.msra.mxu0 0.0
    %937 = vmatprep.subr.mxu0 0.0
    %938 = vmatpush1.msra.mxu0 0.0
    %939 = vmatprep.subr.mxu0 0.0
    %940 = vmatpush1.msra.mxu0 0.0
    %941 = vmatprep.subr.mxu0 0.0
    %942 = vmatpush1.msra.mxu0 0.0
    %943 = vmatprep.subr.mxu0 0.0
    %944 = vmatpush1.msra.mxu0 0.0
    %945 = vmatprep.subr.mxu0 0.0
    %946 = vmatpush1.msra.mxu0 0.0
    %947 = vmatprep.subr.mxu0 0.0
    %948 = vmatpush1.msra.mxu0 0.0
    %949 = vmatprep.subr.mxu0 0.0
    %950 = vmatpush1.msra.mxu0 0.0
    %951 = vmatprep.subr.mxu0 0.0
    %952 = vmatpush1.msra.mxu0 0.0
    %953 = vmatprep.subr.mxu0 0.0
    %954 = vmatpush1.msra.mxu0 0.0
    %955 = vmatprep.mubr.f32.mxu0 0.0
    %956 = vmatmul.mubr.f32.gmra.mrb[0].mxu0 %v886
    %v957 = vpop.f32.mrb[0].mxu0
    %v958 = vadd.f32 %v877, %v957
    %v959 = vpop.f32.mrb[0].mxu0
    %960 = vmatprep.mubr.f32.mxu0 0.0
    %961 = vmatmul.mubr.f32.gmra.mrb[0].mxu0 %v889
    %v962 = vpop.f32.mrb[0].mxu0
    %v963 = vadd.f32 %v882, %v962
    %v964 = vpop.f32.mrb[0].mxu0
    %965 = vdwg.mxu0
    %966 = vrot.lane.b32.xlu0 %v382, 112
    %v967 = vpop.permute.xlu0 %966
    %968 = vrot.lane.b32.xlu0 %v387, 112
    %v969 = vpop.permute.xlu0 %968
    %970 = vrot.lane.b32.xlu0 %v382, 80
    %v971 = vpop.permute.xlu0 %970
    %972 = vrot.lane.b32.xlu0 %v387, 80
    %v973 = vpop.permute.xlu0 %972
    %v974 = vsel %vm406, %v967, 0
    %v976 = vsel %vm406, %v969, 0
    %v978 = vsel %vm406, %v971, 0
    %v980 = vsel %vm406, %v973, 0
    %982 = vmatprep.subr.mxu0 0.0
    %983 = vmatpush1.xpose.msra.mxu0 %v978
    %984 = vmatprep.subr.mxu0 0.0
    %985 = vmatpush1.xpose.msra.mxu0 %v980
    %986 = vmatprep.subr.mxu0 0.0
    %987 = vmatpush1.xpose.msra.mxu0 0.0
    %988 = vmatprep.subr.mxu0 0.0
    %989 = vmatpush1.xpose.msra.mxu0 0.0
    %990 = vmatprep.subr.mxu0 0.0
    %991 = vmatpush1.xpose.msra.mxu0 0.0
    %992 = vmatprep.subr.mxu0 0.0
    %993 = vmatpush1.xpose.msra.mxu0 0.0
    %994 = vmatprep.subr.mxu0 0.0
    %995 = vmatpush1.xpose.msra.mxu0 0.0
    %996 = vmatprep.subr.mxu0 0.0
    %997 = vmatpush1.xpose.msra.mxu0 0.0
    %998 = vmatprep.subr.mxu0 0.0
    %999 = vmatpush1.xpose.msra.mxu0 0.0
    %1000 = vmatprep.subr.mxu0 0.0
    %1001 = vmatpush1.xpose.msra.mxu0 0.0
    %1002 = vmatprep.subr.mxu0 0.0
    %1003 = vmatpush1.xpose.msra.mxu0 0.0
    %1004 = vmatprep.subr.mxu0 0.0
    %1005 = vmatpush1.xpose.msra.mxu0 0.0
    %1006 = vmatprep.subr.mxu0 0.0
    %1007 = vmatpush1.xpose.msra.mxu0 0.0
    %1008 = vmatprep.subr.mxu0 0.0
    %1009 = vmatpush1.xpose.msra.mxu0 0.0
    %1010 = vmatprep.subr.mxu0 0.0
    %1011 = vmatpush1.xpose.msra.mxu0 0.0
    %1012 = vmatprep.subr.mxu0 0.0
    %1013 = vmatpush1.xpose.msra.mxu0 0.0
    %1014 = vmatprep.subr.mxu0 0.0
    %1015 = vmatpush1.xpose.msra.mxu0 0.0
    %1016 = vmatprep.subr.mxu0 0.0
    %1017 = vmatpush1.xpose.msra.mxu0 0.0
    %1018 = vmatprep.subr.mxu0 0.0
    %1019 = vmatpush1.xpose.msra.mxu0 0.0
    %1020 = vmatprep.subr.mxu0 0.0
    %1021 = vmatpush1.xpose.msra.mxu0 0.0
    %1022 = vmatprep.subr.mxu0 0.0
    %1023 = vmatpush1.xpose.msra.mxu0 0.0
    %1024 = vmatprep.subr.mxu0 0.0
    %1025 = vmatpush1.xpose.msra.mxu0 0.0
    %1026 = vmatprep.subr.mxu0 0.0
    %1027 = vmatpush1.xpose.msra.mxu0 0.0
    %1028 = vmatprep.subr.mxu0 0.0
    %1029 = vmatpush1.xpose.msra.mxu0 0.0
    %1030 = vmatprep.subr.mxu0 0.0
    %1031 = vmatpush1.xpose.msra.mxu0 0.0
    %1032 = vmatprep.subr.mxu0 0.0
    %1033 = vmatpush1.xpose.msra.mxu0 0.0
    %1034 = vmatprep.subr.mxu0 0.0
    %1035 = vmatpush1.xpose.msra.mxu0 0.0
    %1036 = vmatprep.subr.mxu0 0.0
    %1037 = vmatpush1.xpose.msra.mxu0 0.0
    %1038 = vmatprep.subr.mxu0 0.0
    %1039 = vmatpush1.xpose.msra.mxu0 0.0
    %1040 = vmatprep.subr.mxu0 0.0
    %1041 = vmatpush1.xpose.msra.mxu0 0.0
    %1042 = vmatprep.subr.mxu0 0.0
    %1043 = vmatpush1.xpose.msra.mxu0 0.0
    %1044 = vmatprep.subr.mxu0 0.0
    %1045 = vmatpush1.xpose.msra.mxu0 0.0
    %1046 = vmatprep.mubr.f32.mxu0 0.0
    %1047 = vmatmul.mubr.f32.gmra.mrb[0].mxu0 %v974
    %v1048 = vpop.f32.mrb[0].mxu0
    %v1049 = vadd.f32 0.0, %v1048
    %v1050 = vpop.f32.mrb[0].mxu0
    %1051 = vmatprep.mubr.f32.mxu0 0.0
    %1052 = vmatmul.mubr.f32.gmra.mrb[0].mxu0 %v976
    %v1053 = vpop.f32.mrb[0].mxu0
    %v1054 = vadd.f32 0.0, %v1053
    %v1055 = vpop.f32.mrb[0].mxu0
    %1056 = vdwg.mxu0
    %v1057 = vmul.f32 %v1049, 0.35355338
    %v1058 = vmul.f32 %v1054, 0.35355338
    %v1059 = vsel %vm492, %v1057, -inf
    %1060 = vmax.xlane.f32.xlu0 %v1059
    %v1061 = vpop.xlane.xlu0 %1060
    %v1062 = vsel %vm492, %v1058, -inf
    %1063 = vmax.xlane.f32.xlu0 %v1062
    %v1064 = vpop.xlane.xlu0 %1063
    %v1065 = vsub.f32 %v1057, %v1061
    %v1066 = vsub.f32 %v1058, %v1064
    %v1067 = vmul.f32 %v1065, 1.442695
    %v1068 = vpow.pop %v1067
    %v1069 = vmul.f32 %v1066, 1.442695
    %v1070 = vpow.pop %v1069
    %v1071 = vsel %vm492, %v1068, 0.0
    %1072 = vadd.xlane.f32.xlu0 %v1071
    %v1073 = vpop.xlane.xlu0 %1072
    %v1074 = vsel %vm492, %v1070, 0.0
    %1075 = vadd.xlane.f32.xlu0 %v1074
    %v1076 = vpop.xlane.xlu0 %1075
    %v1077 = vrcp.pop %v1073
    %v1078 = vrcp.pop %v1076
    %v1079 = vmul.f32 %v1068, %v1077
    %v1080 = vmul.f32 %v1070, %v1078
    %1081 = vrot.lane.b32.xlu0 %v382, 48
    %v1082 = vpop.permute.xlu0 %1081
    %1083 = vrot.lane.b32.xlu0 %v387, 48
    %v1084 = vpop.permute.xlu0 %1083
    %v1088 = vsel %vm492, %v1079, 0
    %v1091 = vsel %vm492, %v1080, 0
    %1093 = vmatprep.subr.mxu0 0.0
    %1094 = vmatpush1.msra.mxu0 %v1082
    %1095 = vmatprep.subr.mxu0 0.0
    %1096 = vmatpush1.msra.mxu0 %v1084
    %1097 = vmatprep.subr.mxu0 0.0
    %1098 = vmatpush1.msra.mxu0 0.0
    %1099 = vmatprep.subr.mxu0 0.0
    %1100 = vmatpush1.msra.mxu0 0.0
    %1101 = vmatprep.subr.mxu0 0.0
    %1102 = vmatpush1.msra.mxu0 0.0
    %1103 = vmatprep.subr.mxu0 0.0
    %1104 = vmatpush1.msra.mxu0 0.0
    %1105 = vmatprep.subr.mxu0 0.0
    %1106 = vmatpush1.msra.mxu0 0.0
    %1107 = vmatprep.subr.mxu0 0.0
    %1108 = vmatpush1.msra.mxu0 0.0
    %1109 = vmatprep.subr.mxu0 0.0
    %1110 = vmatpush1.msra.mxu0 0.0
    %1111 = vmatprep.subr.mxu0 0.0
    %1112 = vmatpush1.msra.mxu0 0.0
    %1113 = vmatprep.subr.mxu0 0.0
    %1114 = vmatpush1.msra.mxu0 0.0
    %1115 = vmatprep.subr.mxu0 0.0
    %1116 = vmatpush1.msra.mxu0 0.0
    %1117 = vmatprep.subr.mxu0 0.0
    %1118 = vmatpush1.msra.mxu0 0.0
    %1119 = vmatprep.subr.mxu0 0.0
    %1120 = vmatpush1.msra.mxu0 0.0
    %1121 = vmatprep.subr.mxu0 0.0
    %1122 = vmatpush1.msra.mxu0 0.0
    %1123 = vmatprep.subr.mxu0 0.0
    %1124 = vmatpush1.msra.mxu0 0.0
    %1125 = vmatprep.subr.mxu0 0.0
    %1126 = vmatpush1.msra.mxu0 0.0
    %1127 = vmatprep.subr.mxu0 0.0
    %1128 = vmatpush1.msra.mxu0 0.0
    %1129 = vmatprep.subr.mxu0 0.0
    %1130 = vmatpush1.msra.mxu0 0.0
    %1131 = vmatprep.subr.mxu0 0.0
    %1132 = vmatpush1.msra.mxu0 0.0
    %1133 = vmatprep.subr.mxu0 0.0
    %1134 = vmatpush1.msra.mxu0 0.0
    %1135 = vmatprep.subr.mxu0 0.0
    %1136 = vmatpush1.msra.mxu0 0.0
    %1137 = vmatprep.subr.mxu0 0.0
    %1138 = vmatpush1.msra.mxu0 0.0
    %1139 = vmatprep.subr.mxu0 0.0
    %1140 = vmatpush1.msra.mxu0 0.0
    %1141 = vmatprep.subr.mxu0 0.0
    %1142 = vmatpush1.msra.mxu0 0.0
    %1143 = vmatprep.subr.mxu0 0.0
    %1144 = vmatpush1.msra.mxu0 0.0
    %1145 = vmatprep.subr.mxu0 0.0
    %1146 = vmatpush1.msra.mxu0 0.0
    %1147 = vmatprep.subr.mxu0 0.0
    %1148 = vmatpush1.msra.mxu0 0.0
    %1149 = vmatprep.subr.mxu0 0.0
    %1150 = vmatpush1.msra.mxu0 0.0
    %1151 = vmatprep.subr.mxu0 0.0
    %1152 = vmatpush1.msra.mxu0 0.0
    %1153 = vmatprep.subr.mxu0 0.0
    %1154 = vmatpush1.msra.mxu0 0.0
    %1155 = vmatprep.subr.mxu0 0.0
    %1156 = vmatpush1.msra.mxu0 0.0
    %1157 = vmatprep.mubr.f32.mxu0 0.0
    %1158 = vmatmul.mubr.f32.gmra.mrb[0].mxu0 %v1088
    %v1159 = vpop.f32.mrb[0].mxu0
    %v1160 = vadd.f32 0.0, %v1159
    %v1161 = vpop.f32.mrb[0].mxu0
    %1162 = vmatprep.mubr.f32.mxu0 0.0
    %1163 = vmatmul.mubr.f32.gmra.mrb[0].mxu0 %v1091
    %v1164 = vpop.f32.mrb[0].mxu0
    %v1165 = vadd.f32 0.0, %v1164
    %v1166 = vpop.f32.mrb[0].mxu0
    %1167 = vdwg.mxu0
    %v1169 = vsel %vm406, %v1160, 0
    %v1172 = vsel %vm406, %v1165, 0
    %1174 = vmatprep.subr.mxu0 0.0
    %1175 = vmatpush1.msra.mxu0 %v218
    %1176 = vmatprep.subr.mxu0 0.0
    %1177 = vmatpush1.msra.mxu0 0.0
    %1178 = vmatprep.subr.mxu0 0.0
    %1179 = vmatpush1.msra.mxu0 0.0
    %1180 = vmatprep.subr.mxu0 0.0
    %1181 = vmatpush1.msra.mxu0 0.0
    %1182 = vmatprep.subr.mxu0 0.0
    %1183 = vmatpush1.msra.mxu0 0.0
    %1184 = vmatprep.subr.mxu0 0.0
    %1185 = vmatpush1.msra.mxu0 0.0
    %1186 = vmatprep.subr.mxu0 0.0
    %1187 = vmatpush1.msra.mxu0 0.0
    %1188 = vmatprep.subr.mxu0 0.0
    %1189 = vmatpush1.msra.mxu0 0.0
    %1190 = vmatprep.subr.mxu0 0.0
    %1191 = vmatpush1.msra.mxu0 0.0
    %1192 = vmatprep.subr.mxu0 0.0
    %1193 = vmatpush1.msra.mxu0 0.0
    %1194 = vmatprep.subr.mxu0 0.0
    %1195 = vmatpush1.msra.mxu0 0.0
    %1196 = vmatprep.subr.mxu0 0.0
    %1197 = vmatpush1.msra.mxu0 0.0
    %1198 = vmatprep.subr.mxu0 0.0
    %1199 = vmatpush1.msra.mxu0 0.0
    %1200 = vmatprep.subr.mxu0 0.0
    %1201 = vmatpush1.msra.mxu0 0.0
    %1202 = vmatprep.subr.mxu0 0.0
    %1203 = vmatpush1.msra.mxu0 0.0
    %1204 = vmatprep.subr.mxu0 0.0
    %1205 = vmatpush1.msra.mxu0 0.0
    %1206 = vmatprep.subr.mxu0 0.0
    %1207 = vmatpush1.msra.mxu0 0.0
    %1208 = vmatprep.subr.mxu0 0.0
    %1209 = vmatpush1.msra.mxu0 0.0
    %1210 = vmatprep.subr.mxu0 0.0
    %1211 = vmatpush1.msra.mxu0 0.0
    %1212 = vmatprep.subr.mxu0 0.0
    %1213 = vmatpush1.msra.mxu0 0.0
    %1214 = vmatprep.subr.mxu0 0.0
    %1215 = vmatpush1.msra.mxu0 0.0
    %1216 = vmatprep.subr.mxu0 0.0
    %1217 = vmatpush1.msra.mxu0 0.0
    %1218 = vmatprep.subr.mxu0 0.0
    %1219 = vmatpush1.msra.mxu0 0.0
    %1220 = vmatprep.subr.mxu0 0.0
    %1221 = vmatpush1.msra.mxu0 0.0
    %1222 = vmatprep.subr.mxu0 0.0
    %1223 = vmatpush1.msra.mxu0 0.0
    %1224 = vmatprep.subr.mxu0 0.0
    %1225 = vmatpush1.msra.mxu0 0.0
    %1226 = vmatprep.subr.mxu0 0.0
    %1227 = vmatpush1.msra.mxu0 0.0
    %1228 = vmatprep.subr.mxu0 0.0
    %1229 = vmatpush1.msra.mxu0 0.0
    %1230 = vmatprep.subr.mxu0 0.0
    %1231 = vmatpush1.msra.mxu0 0.0
    %1232 = vmatprep.subr.mxu0 0.0
    %1233 = vmatpush1.msra.mxu0 0.0
    %1234 = vmatprep.subr.mxu0 0.0
    %1235 = vmatpush1.msra.mxu0 0.0
    %1236 = vmatprep.subr.mxu0 0.0
    %1237 = vmatpush1.msra.mxu0 0.0
    %1238 = vmatprep.mubr.f32.mxu0 0.0
    %1239 = vmatmul.mubr.f32.gmra.mrb[0].mxu0 %v1169
    %v1240 = vpop.f32.mrb[0].mxu0
    %v1241 = vadd.f32 0.0, %v1240
    %v1242 = vpop.f32.mrb[0].mxu0
    %1243 = vmatprep.mubr.f32.mxu0 0.0
    %1244 = vmatmul.mubr.f32.gmra.mrb[0].mxu0 %v1172
    %v1245 = vpop.f32.mrb[0].mxu0
    %v1246 = vadd.f32 0.0, %v1245
    %v1247 = vpop.f32.mrb[0].mxu0
    %1248 = vdwg.mxu0
    %v1249 = vadd.f32 %v958, %v1241
    %v1250 = vadd.f32 %v963, %v1246
    %1251 = vrot.lane.b32.xlu0 %v382, 104
    %v1252 = vpop.permute.xlu0 %1251
    %1253 = vrot.lane.b32.xlu0 %v387, 104
    %v1254 = vpop.permute.xlu0 %1253
    %1255 = vrot.lane.b32.xlu0 %v382, 72
    %v1256 = vpop.permute.xlu0 %1255
    %1257 = vrot.lane.b32.xlu0 %v387, 72
    %v1258 = vpop.permute.xlu0 %1257
    %v1259 = vsel %vm406, %v1252, 0
    %v1261 = vsel %vm406, %v1254, 0
    %v1263 = vsel %vm406, %v1256, 0
    %v1265 = vsel %vm406, %v1258, 0
    %1267 = vmatprep.subr.mxu0 0.0
    %1268 = vmatpush1.xpose.msra.mxu0 %v1263
    %1269 = vmatprep.subr.mxu0 0.0
    %1270 = vmatpush1.xpose.msra.mxu0 %v1265
    %1271 = vmatprep.subr.mxu0 0.0
    %1272 = vmatpush1.xpose.msra.mxu0 0.0
    %1273 = vmatprep.subr.mxu0 0.0
    %1274 = vmatpush1.xpose.msra.mxu0 0.0
    %1275 = vmatprep.subr.mxu0 0.0
    %1276 = vmatpush1.xpose.msra.mxu0 0.0
    %1277 = vmatprep.subr.mxu0 0.0
    %1278 = vmatpush1.xpose.msra.mxu0 0.0
    %1279 = vmatprep.subr.mxu0 0.0
    %1280 = vmatpush1.xpose.msra.mxu0 0.0
    %1281 = vmatprep.subr.mxu0 0.0
    %1282 = vmatpush1.xpose.msra.mxu0 0.0
    %1283 = vmatprep.subr.mxu0 0.0
    %1284 = vmatpush1.xpose.msra.mxu0 0.0
    %1285 = vmatprep.subr.mxu0 0.0
    %1286 = vmatpush1.xpose.msra.mxu0 0.0
    %1287 = vmatprep.subr.mxu0 0.0
    %1288 = vmatpush1.xpose.msra.mxu0 0.0
    %1289 = vmatprep.subr.mxu0 0.0
    %1290 = vmatpush1.xpose.msra.mxu0 0.0
    %1291 = vmatprep.subr.mxu0 0.0
    %1292 = vmatpush1.xpose.msra.mxu0 0.0
    %1293 = vmatprep.subr.mxu0 0.0
    %1294 = vmatpush1.xpose.msra.mxu0 0.0
    %1295 = vmatprep.subr.mxu0 0.0
    %1296 = vmatpush1.xpose.msra.mxu0 0.0
    %1297 = vmatprep.subr.mxu0 0.0
    %1298 = vmatpush1.xpose.msra.mxu0 0.0
    %1299 = vmatprep.subr.mxu0 0.0
    %1300 = vmatpush1.xpose.msra.mxu0 0.0
    %1301 = vmatprep.subr.mxu0 0.0
    %1302 = vmatpush1.xpose.msra.mxu0 0.0
    %1303 = vmatprep.subr.mxu0 0.0
    %1304 = vmatpush1.xpose.msra.mxu0 0.0
    %1305 = vmatprep.subr.mxu0 0.0
    %1306 = vmatpush1.xpose.msra.mxu0 0.0
    %1307 = vmatprep.subr.mxu0 0.0
    %1308 = vmatpush1.xpose.msra.mxu0 0.0
    %1309 = vmatprep.subr.mxu0 0.0
    %1310 = vmatpush1.xpose.msra.mxu0 0.0
    %1311 = vmatprep.subr.mxu0 0.0
    %1312 = vmatpush1.xpose.msra.mxu0 0.0
    %1313 = vmatprep.subr.mxu0 0.0
    %1314 = vmatpush1.xpose.msra.mxu0 0.0
    %1315 = vmatprep.subr.mxu0 0.0
    %1316 = vmatpush1.xpose.msra.mxu0 0.0
    %1317 = vmatprep.subr.mxu0 0.0
    %1318 = vmatpush1.xpose.msra.mxu0 0.0
    %1319 = vmatprep.subr.mxu0 0.0
    %1320 = vmatpush1.xpose.msra.mxu0 0.0
    %1321 = vmatprep.subr.mxu0 0.0
    %1322 = vmatpush1.xpose.msra.mxu0 0.0
    %1323 = vmatprep.subr.mxu0 0.0
    %1324 = vmatpush1.xpose.msra.mxu0 0.0
    %1325 = vmatprep.subr.mxu0 0.0
    %1326 = vmatpush1.xpose.msra.mxu0 0.0
    %1327 = vmatprep.subr.mxu0 0.0
    %1328 = vmatpush1.xpose.msra.mxu0 0.0
    %1329 = vmatprep.subr.mxu0 0.0
    %1330 = vmatpush1.xpose.msra.mxu0 0.0
    %1331 = vmatprep.mubr.f32.mxu0 0.0
    %1332 = vmatmul.mubr.f32.gmra.mrb[0].mxu0 %v1259
    %v1333 = vpop.f32.mrb[0].mxu0
    %v1334 = vadd.f32 0.0, %v1333
    %v1335 = vpop.f32.mrb[0].mxu0
    %1336 = vmatprep.mubr.f32.mxu0 0.0
    %1337 = vmatmul.mubr.f32.gmra.mrb[0].mxu0 %v1261
    %v1338 = vpop.f32.mrb[0].mxu0
    %v1339 = vadd.f32 0.0, %v1338
    %v1340 = vpop.f32.mrb[0].mxu0
    %1341 = vdwg.mxu0
    %v1342 = vmul.f32 %v1334, 0.35355338
    %v1343 = vmul.f32 %v1339, 0.35355338
    %v1344 = vsel %vm492, %v1342, -inf
    %1345 = vmax.xlane.f32.xlu0 %v1344
    %v1346 = vpop.xlane.xlu0 %1345
    %v1347 = vsel %vm492, %v1343, -inf
    %1348 = vmax.xlane.f32.xlu0 %v1347
    %v1349 = vpop.xlane.xlu0 %1348
    %v1350 = vsub.f32 %v1342, %v1346
    %v1351 = vsub.f32 %v1343, %v1349
    %v1352 = vmul.f32 %v1350, 1.442695
    %v1353 = vpow.pop %v1352
    %v1354 = vmul.f32 %v1351, 1.442695
    %v1355 = vpow.pop %v1354
    %v1356 = vsel %vm492, %v1353, 0.0
    %1357 = vadd.xlane.f32.xlu0 %v1356
    %v1358 = vpop.xlane.xlu0 %1357
    %v1359 = vsel %vm492, %v1355, 0.0
    %1360 = vadd.xlane.f32.xlu0 %v1359
    %v1361 = vpop.xlane.xlu0 %1360
    %v1362 = vrcp.pop %v1358
    %v1363 = vrcp.pop %v1361
    %v1364 = vmul.f32 %v1353, %v1362
    %v1365 = vmul.f32 %v1355, %v1363
    %1366 = vrot.lane.b32.xlu0 %v382, 40
    %v1367 = vpop.permute.xlu0 %1366
    %1368 = vrot.lane.b32.xlu0 %v387, 40
    %v1369 = vpop.permute.xlu0 %1368
    %v1373 = vsel %vm492, %v1364, 0
    %v1376 = vsel %vm492, %v1365, 0
    %1378 = vmatprep.subr.mxu0 0.0
    %1379 = vmatpush1.msra.mxu0 %v1367
    %1380 = vmatprep.subr.mxu0 0.0
    %1381 = vmatpush1.msra.mxu0 %v1369
    %1382 = vmatprep.subr.mxu0 0.0
    %1383 = vmatpush1.msra.mxu0 0.0
    %1384 = vmatprep.subr.mxu0 0.0
    %1385 = vmatpush1.msra.mxu0 0.0
    %1386 = vmatprep.subr.mxu0 0.0
    %1387 = vmatpush1.msra.mxu0 0.0
    %1388 = vmatprep.subr.mxu0 0.0
    %1389 = vmatpush1.msra.mxu0 0.0
    %1390 = vmatprep.subr.mxu0 0.0
    %1391 = vmatpush1.msra.mxu0 0.0
    %1392 = vmatprep.subr.mxu0 0.0
    %1393 = vmatpush1.msra.mxu0 0.0
    %1394 = vmatprep.subr.mxu0 0.0
    %1395 = vmatpush1.msra.mxu0 0.0
    %1396 = vmatprep.subr.mxu0 0.0
    %1397 = vmatpush1.msra.mxu0 0.0
    %1398 = vmatprep.subr.mxu0 0.0
    %1399 = vmatpush1.msra.mxu0 0.0
    %1400 = vmatprep.subr.mxu0 0.0
    %1401 = vmatpush1.msra.mxu0 0.0
    %1402 = vmatprep.subr.mxu0 0.0
    %1403 = vmatpush1.msra.mxu0 0.0
    %1404 = vmatprep.subr.mxu0 0.0
    %1405 = vmatpush1.msra.mxu0 0.0
    %1406 = vmatprep.subr.mxu0 0.0
    %1407 = vmatpush1.msra.mxu0 0.0
    %1408 = vmatprep.subr.mxu0 0.0
    %1409 = vmatpush1.msra.mxu0 0.0
    %1410 = vmatprep.subr.mxu0 0.0
    %1411 = vmatpush1.msra.mxu0 0.0
    %1412 = vmatprep.subr.mxu0 0.0
    %1413 = vmatpush1.msra.mxu0 0.0
    %1414 = vmatprep.subr.mxu0 0.0
    %1415 = vmatpush1.msra.mxu0 0.0
    %1416 = vmatprep.subr.mxu0 0.0
    %1417 = vmatpush1.msra.mxu0 0.0
    %1418 = vmatprep.subr.mxu0 0.0
    %1419 = vmatpush1.msra.mxu0 0.0
    %1420 = vmatprep.subr.mxu0 0.0
    %1421 = vmatpush1.msra.mxu0 0.0
    %1422 = vmatprep.subr.mxu0 0.0
    %1423 = vmatpush1.msra.mxu0 0.0
    %1424 = vmatprep.subr.mxu0 0.0
    %1425 = vmatpush1.msra.mxu0 0.0
    %1426 = vmatprep.subr.mxu0 0.0
    %1427 = vmatpush1.msra.mxu0 0.0
    %1428 = vmatprep.subr.mxu0 0.0
    %1429 = vmatpush1.msra.mxu0 0.0
    %1430 = vmatprep.subr.mxu0 0.0
    %1431 = vmatpush1.msra.mxu0 0.0
    %1432 = vmatprep.subr.mxu0 0.0
    %1433 = vmatpush1.msra.mxu0 0.0
    %1434 = vmatprep.subr.mxu0 0.0
    %1435 = vmatpush1.msra.mxu0 0.0
    %1436 = vmatprep.subr.mxu0 0.0
    %1437 = vmatpush1.msra.mxu0 0.0
    %1438 = vmatprep.subr.mxu0 0.0
    %1439 = vmatpush1.msra.mxu0 0.0
    %1440 = vmatprep.subr.mxu0 0.0
    %1441 = vmatpush1.msra.mxu0 0.0
    %1442 = vmatprep.mubr.f32.mxu0 0.0
    %1443 = vmatmul.mubr.f32.gmra.mrb[0].mxu0 %v1373
    %v1444 = vpop.f32.mrb[0].mxu0
    %v1445 = vadd.f32 0.0, %v1444
    %v1446 = vpop.f32.mrb[0].mxu0
    %1447 = vmatprep.mubr.f32.mxu0 0.0
    %1448 = vmatmul.mubr.f32.gmra.mrb[0].mxu0 %v1376
    %v1449 = vpop.f32.mrb[0].mxu0
    %v1450 = vadd.f32 0.0, %v1449
    %v1451 = vpop.f32.mrb[0].mxu0
    %1452 = vdwg.mxu0
    %v1454 = vsel %vm406, %v1445, 0
    %v1457 = vsel %vm406, %v1450, 0
    %1459 = vmatprep.subr.mxu0 0.0
    %1460 = vmatpush1.msra.mxu0 %v219
    %1461 = vmatprep.subr.mxu0 0.0
    %1462 = vmatpush1.msra.mxu0 0.0
    %1463 = vmatprep.subr.mxu0 0.0
    %1464 = vmatpush1.msra.mxu0 0.0
    %1465 = vmatprep.subr.mxu0 0.0
    %1466 = vmatpush1.msra.mxu0 0.0
    %1467 = vmatprep.subr.mxu0 0.0
    %1468 = vmatpush1.msra.mxu0 0.0
    %1469 = vmatprep.subr.mxu0 0.0
    %1470 = vmatpush1.msra.mxu0 0.0
    %1471 = vmatprep.subr.mxu0 0.0
    %1472 = vmatpush1.msra.mxu0 0.0
    %1473 = vmatprep.subr.mxu0 0.0
    %1474 = vmatpush1.msra.mxu0 0.0
    %1475 = vmatprep.subr.mxu0 0.0
    %1476 = vmatpush1.msra.mxu0 0.0
    %1477 = vmatprep.subr.mxu0 0.0
    %1478 = vmatpush1.msra.mxu0 0.0
    %1479 = vmatprep.subr.mxu0 0.0
    %1480 = vmatpush1.msra.mxu0 0.0
    %1481 = vmatprep.subr.mxu0 0.0
    %1482 = vmatpush1.msra.mxu0 0.0
    %1483 = vmatprep.subr.mxu0 0.0
    %1484 = vmatpush1.msra.mxu0 0.0
    %1485 = vmatprep.subr.mxu0 0.0
    %1486 = vmatpush1.msra.mxu0 0.0
    %1487 = vmatprep.subr.mxu0 0.0
    %1488 = vmatpush1.msra.mxu0 0.0
    %1489 = vmatprep.subr.mxu0 0.0
    %1490 = vmatpush1.msra.mxu0 0.0
    %1491 = vmatprep.subr.mxu0 0.0
    %1492 = vmatpush1.msra.mxu0 0.0
    %1493 = vmatprep.subr.mxu0 0.0
    %1494 = vmatpush1.msra.mxu0 0.0
    %1495 = vmatprep.subr.mxu0 0.0
    %1496 = vmatpush1.msra.mxu0 0.0
    %1497 = vmatprep.subr.mxu0 0.0
    %1498 = vmatpush1.msra.mxu0 0.0
    %1499 = vmatprep.subr.mxu0 0.0
    %1500 = vmatpush1.msra.mxu0 0.0
    %1501 = vmatprep.subr.mxu0 0.0
    %1502 = vmatpush1.msra.mxu0 0.0
    %1503 = vmatprep.subr.mxu0 0.0
    %1504 = vmatpush1.msra.mxu0 0.0
    %1505 = vmatprep.subr.mxu0 0.0
    %1506 = vmatpush1.msra.mxu0 0.0
    %1507 = vmatprep.subr.mxu0 0.0
    %1508 = vmatpush1.msra.mxu0 0.0
    %1509 = vmatprep.subr.mxu0 0.0
    %1510 = vmatpush1.msra.mxu0 0.0
    %1511 = vmatprep.subr.mxu0 0.0
    %1512 = vmatpush1.msra.mxu0 0.0
    %1513 = vmatprep.subr.mxu0 0.0
    %1514 = vmatpush1.msra.mxu0 0.0
    %1515 = vmatprep.subr.mxu0 0.0
    %1516 = vmatpush1.msra.mxu0 0.0
    %1517 = vmatprep.subr.mxu0 0.0
    %1518 = vmatpush1.msra.mxu0 0.0
    %1519 = vmatprep.subr.mxu0 0.0
    %1520 = vmatpush1.msra.mxu0 0.0
    %1521 = vmatprep.subr.mxu0 0.0
    %1522 = vmatpush1.msra.mxu0 0.0
    %1523 = vmatprep.mubr.f32.mxu0 0.0
    %1524 = vmatmul.mubr.f32.gmra.mrb[0].mxu0 %v1454
    %v1525 = vpop.f32.mrb[0].mxu0
    %v1526 = vadd.f32 0.0, %v1525
    %v1527 = vpop.f32.mrb[0].mxu0
    %1528 = vmatprep.mubr.f32.mxu0 0.0
    %1529 = vmatmul.mubr.f32.gmra.mrb[0].mxu0 %v1457
    %v1530 = vpop.f32.mrb[0].mxu0
    %v1531 = vadd.f32 0.0, %v1530
    %v1532 = vpop.f32.mrb[0].mxu0
    %1533 = vdwg.mxu0
    %v1534 = vadd.f32 %v1249, %v1526
    %v1535 = vadd.f32 %v1250, %v1531
    %1538 = vrot.lane.b32.xlu0 %v392, 96
    %v1539 = vpop.permute.xlu0 %1538
    %1540 = vrot.lane.b32.xlu0 %v397, 96
    %v1541 = vpop.permute.xlu0 %1540
    %v1542 = vsel %vm406, %v392, 0
    %v1544 = vsel %vm406, %v397, 0
    %v1546 = vsel %vm406, %v1539, 0
    %v1548 = vsel %vm406, %v1541, 0
    %1550 = vmatprep.subr.mxu0 0.0
    %1551 = vmatpush1.xpose.msra.mxu0 %v1546
    %1552 = vmatprep.subr.mxu0 0.0
    %1553 = vmatpush1.xpose.msra.mxu0 %v1548
    %1554 = vmatprep.subr.mxu0 0.0
    %1555 = vmatpush1.xpose.msra.mxu0 0.0
    %1556 = vmatprep.subr.mxu0 0.0
    %1557 = vmatpush1.xpose.msra.mxu0 0.0
    %1558 = vmatprep.subr.mxu0 0.0
    %1559 = vmatpush1.xpose.msra.mxu0 0.0
    %1560 = vmatprep.subr.mxu0 0.0
    %1561 = vmatpush1.xpose.msra.mxu0 0.0
    %1562 = vmatprep.subr.mxu0 0.0
    %1563 = vmatpush1.xpose.msra.mxu0 0.0
    %1564 = vmatprep.subr.mxu0 0.0
    %1565 = vmatpush1.xpose.msra.mxu0 0.0
    %1566 = vmatprep.subr.mxu0 0.0
    %1567 = vmatpush1.xpose.msra.mxu0 0.0
    %1568 = vmatprep.subr.mxu0 0.0
    %1569 = vmatpush1.xpose.msra.mxu0 0.0
    %1570 = vmatprep.subr.mxu0 0.0
    %1571 = vmatpush1.xpose.msra.mxu0 0.0
    %1572 = vmatprep.subr.mxu0 0.0
    %1573 = vmatpush1.xpose.msra.mxu0 0.0
    %1574 = vmatprep.subr.mxu0 0.0
    %1575 = vmatpush1.xpose.msra.mxu0 0.0
    %1576 = vmatprep.subr.mxu0 0.0
    %1577 = vmatpush1.xpose.msra.mxu0 0.0
    %1578 = vmatprep.subr.mxu0 0.0
    %1579 = vmatpush1.xpose.msra.mxu0 0.0
    %1580 = vmatprep.subr.mxu0 0.0
    %1581 = vmatpush1.xpose.msra.mxu0 0.0
    %1582 = vmatprep.subr.mxu0 0.0
    %1583 = vmatpush1.xpose.msra.mxu0 0.0
    %1584 = vmatprep.subr.mxu0 0.0
    %1585 = vmatpush1.xpose.msra.mxu0 0.0
    %1586 = vmatprep.subr.mxu0 0.0
    %1587 = vmatpush1.xpose.msra.mxu0 0.0
    %1588 = vmatprep.subr.mxu0 0.0
    %1589 = vmatpush1.xpose.msra.mxu0 0.0
    %1590 = vmatprep.subr.mxu0 0.0
    %1591 = vmatpush1.xpose.msra.mxu0 0.0
    %1592 = vmatprep.subr.mxu0 0.0
    %1593 = vmatpush1.xpose.msra.mxu0 0.0
    %1594 = vmatprep.subr.mxu0 0.0
    %1595 = vmatpush1.xpose.msra.mxu0 0.0
    %1596 = vmatprep.subr.mxu0 0.0
    %1597 = vmatpush1.xpose.msra.mxu0 0.0
    %1598 = vmatprep.subr.mxu0 0.0
    %1599 = vmatpush1.xpose.msra.mxu0 0.0
    %1600 = vmatprep.subr.mxu0 0.0
    %1601 = vmatpush1.xpose.msra.mxu0 0.0
    %1602 = vmatprep.subr.mxu0 0.0
    %1603 = vmatpush1.xpose.msra.mxu0 0.0
    %1604 = vmatprep.subr.mxu0 0.0
    %1605 = vmatpush1.xpose.msra.mxu0 0.0
    %1606 = vmatprep.subr.mxu0 0.0
    %1607 = vmatpush1.xpose.msra.mxu0 0.0
    %1608 = vmatprep.subr.mxu0 0.0
    %1609 = vmatpush1.xpose.msra.mxu0 0.0
    %1610 = vmatprep.subr.mxu0 0.0
    %1611 = vmatpush1.xpose.msra.mxu0 0.0
    %1612 = vmatprep.subr.mxu0 0.0
    %1613 = vmatpush1.xpose.msra.mxu0 0.0
    %1614 = vmatprep.mubr.f32.mxu0 0.0
    %1615 = vmatmul.mubr.f32.gmra.mrb[0].mxu0 %v1542
    %v1616 = vpop.f32.mrb[0].mxu0
    %v1617 = vadd.f32 0.0, %v1616
    %v1618 = vpop.f32.mrb[0].mxu0
    %1619 = vmatprep.mubr.f32.mxu0 0.0
    %1620 = vmatmul.mubr.f32.gmra.mrb[0].mxu0 %v1544
    %v1621 = vpop.f32.mrb[0].mxu0
    %v1622 = vadd.f32 0.0, %v1621
    %v1623 = vpop.f32.mrb[0].mxu0
    %1624 = vdwg.mxu0
    %v1625 = vmul.f32 %v1617, 0.35355338
    %v1626 = vmul.f32 %v1622, 0.35355338
    %v1627 = vsel %vm492, %v1625, -inf
    %1628 = vmax.xlane.f32.xlu0 %v1627
    %v1629 = vpop.xlane.xlu0 %1628
    %v1630 = vsel %vm492, %v1626, -inf
    %1631 = vmax.xlane.f32.xlu0 %v1630
    %v1632 = vpop.xlane.xlu0 %1631
    %v1633 = vsub.f32 %v1625, %v1629
    %v1634 = vsub.f32 %v1626, %v1632
    %v1635 = vmul.f32 %v1633, 1.442695
    %v1636 = vpow.pop %v1635
    %v1637 = vmul.f32 %v1634, 1.442695
    %v1638 = vpow.pop %v1637
    %v1639 = vsel %vm492, %v1636, 0.0
    %1640 = vadd.xlane.f32.xlu0 %v1639
    %v1641 = vpop.xlane.xlu0 %1640
    %v1642 = vsel %vm492, %v1638, 0.0
    %1643 = vadd.xlane.f32.xlu0 %v1642
    %v1644 = vpop.xlane.xlu0 %1643
    %v1645 = vrcp.pop %v1641
    %v1646 = vrcp.pop %v1644
    %v1647 = vmul.f32 %v1636, %v1645
    %v1648 = vmul.f32 %v1638, %v1646
    %1649 = vrot.lane.b32.xlu0 %v392, 64
    %v1650 = vpop.permute.xlu0 %1649
    %1651 = vrot.lane.b32.xlu0 %v397, 64
    %v1652 = vpop.permute.xlu0 %1651
    %v1656 = vsel %vm492, %v1647, 0
    %v1659 = vsel %vm492, %v1648, 0
    %1661 = vmatprep.subr.mxu0 0.0
    %1662 = vmatpush1.msra.mxu0 %v1650
    %1663 = vmatprep.subr.mxu0 0.0
    %1664 = vmatpush1.msra.mxu0 %v1652
    %1665 = vmatprep.subr.mxu0 0.0
    %1666 = vmatpush1.msra.mxu0 0.0
    %1667 = vmatprep.subr.mxu0 0.0
    %1668 = vmatpush1.msra.mxu0 0.0
    %1669 = vmatprep.subr.mxu0 0.0
    %1670 = vmatpush1.msra.mxu0 0.0
    %1671 = vmatprep.subr.mxu0 0.0
    %1672 = vmatpush1.msra.mxu0 0.0
    %1673 = vmatprep.subr.mxu0 0.0
    %1674 = vmatpush1.msra.mxu0 0.0
    %1675 = vmatprep.subr.mxu0 0.0
    %1676 = vmatpush1.msra.mxu0 0.0
    %1677 = vmatprep.subr.mxu0 0.0
    %1678 = vmatpush1.msra.mxu0 0.0
    %1679 = vmatprep.subr.mxu0 0.0
    %1680 = vmatpush1.msra.mxu0 0.0
    %1681 = vmatprep.subr.mxu0 0.0
    %1682 = vmatpush1.msra.mxu0 0.0
    %1683 = vmatprep.subr.mxu0 0.0
    %1684 = vmatpush1.msra.mxu0 0.0
    %1685 = vmatprep.subr.mxu0 0.0
    %1686 = vmatpush1.msra.mxu0 0.0
    %1687 = vmatprep.subr.mxu0 0.0
    %1688 = vmatpush1.msra.mxu0 0.0
    %1689 = vmatprep.subr.mxu0 0.0
    %1690 = vmatpush1.msra.mxu0 0.0
    %1691 = vmatprep.subr.mxu0 0.0
    %1692 = vmatpush1.msra.mxu0 0.0
    %1693 = vmatprep.subr.mxu0 0.0
    %1694 = vmatpush1.msra.mxu0 0.0
    %1695 = vmatprep.subr.mxu0 0.0
    %1696 = vmatpush1.msra.mxu0 0.0
    %1697 = vmatprep.subr.mxu0 0.0
    %1698 = vmatpush1.msra.mxu0 0.0
    %1699 = vmatprep.subr.mxu0 0.0
    %1700 = vmatpush1.msra.mxu0 0.0
    %1701 = vmatprep.subr.mxu0 0.0
    %1702 = vmatpush1.msra.mxu0 0.0
    %1703 = vmatprep.subr.mxu0 0.0
    %1704 = vmatpush1.msra.mxu0 0.0
    %1705 = vmatprep.subr.mxu0 0.0
    %1706 = vmatpush1.msra.mxu0 0.0
    %1707 = vmatprep.subr.mxu0 0.0
    %1708 = vmatpush1.msra.mxu0 0.0
    %1709 = vmatprep.subr.mxu0 0.0
    %1710 = vmatpush1.msra.mxu0 0.0
    %1711 = vmatprep.subr.mxu0 0.0
    %1712 = vmatpush1.msra.mxu0 0.0
    %1713 = vmatprep.subr.mxu0 0.0
    %1714 = vmatpush1.msra.mxu0 0.0
    %1715 = vmatprep.subr.mxu0 0.0
    %1716 = vmatpush1.msra.mxu0 0.0
    %1717 = vmatprep.subr.mxu0 0.0
    %1718 = vmatpush1.msra.mxu0 0.0
    %1719 = vmatprep.subr.mxu0 0.0
    %1720 = vmatpush1.msra.mxu0 0.0
    %1721 = vmatprep.subr.mxu0 0.0
    %1722 = vmatpush1.msra.mxu0 0.0
    %1723 = vmatprep.subr.mxu0 0.0
    %1724 = vmatpush1.msra.mxu0 0.0
    %1725 = vmatprep.mubr.f32.mxu0 0.0
    %1726 = vmatmul.mubr.f32.gmra.mrb[0].mxu0 %v1656
    %v1727 = vpop.f32.mrb[0].mxu0
    %v1728 = vadd.f32 0.0, %v1727
    %v1729 = vpop.f32.mrb[0].mxu0
    %1730 = vmatprep.mubr.f32.mxu0 0.0
    %1731 = vmatmul.mubr.f32.gmra.mrb[0].mxu0 %v1659
    %v1732 = vpop.f32.mrb[0].mxu0
    %v1733 = vadd.f32 0.0, %v1732
    %v1734 = vpop.f32.mrb[0].mxu0
    %1735 = vdwg.mxu0
    %1736 = vrot.lane.b32.xlu0 %v392, 120
    %v1737 = vpop.permute.xlu0 %1736
    %1738 = vrot.lane.b32.xlu0 %v397, 120
    %v1739 = vpop.permute.xlu0 %1738
    %1740 = vrot.lane.b32.xlu0 %v392, 88
    %v1741 = vpop.permute.xlu0 %1740
    %1742 = vrot.lane.b32.xlu0 %v397, 88
    %v1743 = vpop.permute.xlu0 %1742
    %v1744 = vsel %vm406, %v1737, 0
    %v1746 = vsel %vm406, %v1739, 0
    %v1748 = vsel %vm406, %v1741, 0
    %v1750 = vsel %vm406, %v1743, 0
    %1752 = vmatprep.subr.mxu0 0.0
    %1753 = vmatpush1.xpose.msra.mxu0 %v1748
    %1754 = vmatprep.subr.mxu0 0.0
    %1755 = vmatpush1.xpose.msra.mxu0 %v1750
    %1756 = vmatprep.subr.mxu0 0.0
    %1757 = vmatpush1.xpose.msra.mxu0 0.0
    %1758 = vmatprep.subr.mxu0 0.0
    %1759 = vmatpush1.xpose.msra.mxu0 0.0
    %1760 = vmatprep.subr.mxu0 0.0
    %1761 = vmatpush1.xpose.msra.mxu0 0.0
    %1762 = vmatprep.subr.mxu0 0.0
    %1763 = vmatpush1.xpose.msra.mxu0 0.0
    %1764 = vmatprep.subr.mxu0 0.0
    %1765 = vmatpush1.xpose.msra.mxu0 0.0
    %1766 = vmatprep.subr.mxu0 0.0
    %1767 = vmatpush1.xpose.msra.mxu0 0.0
    %1768 = vmatprep.subr.mxu0 0.0
    %1769 = vmatpush1.xpose.msra.mxu0 0.0
    %1770 = vmatprep.subr.mxu0 0.0
    %1771 = vmatpush1.xpose.msra.mxu0 0.0
    %1772 = vmatprep.subr.mxu0 0.0
    %1773 = vmatpush1.xpose.msra.mxu0 0.0
    %1774 = vmatprep.subr.mxu0 0.0
    %1775 = vmatpush1.xpose.msra.mxu0 0.0
    %1776 = vmatprep.subr.mxu0 0.0
    %1777 = vmatpush1.xpose.msra.mxu0 0.0
    %1778 = vmatprep.subr.mxu0 0.0
    %1779 = vmatpush1.xpose.msra.mxu0 0.0
    %1780 = vmatprep.subr.mxu0 0.0
    %1781 = vmatpush1.xpose.msra.mxu0 0.0
    %1782 = vmatprep.subr.mxu0 0.0
    %1783 = vmatpush1.xpose.msra.mxu0 0.0
    %1784 = vmatprep.subr.mxu0 0.0
    %1785 = vmatpush1.xpose.msra.mxu0 0.0
    %1786 = vmatprep.subr.mxu0 0.0
    %1787 = vmatpush1.xpose.msra.mxu0 0.0
    %1788 = vmatprep.subr.mxu0 0.0
    %1789 = vmatpush1.xpose.msra.mxu0 0.0
    %1790 = vmatprep.subr.mxu0 0.0
    %1791 = vmatpush1.xpose.msra.mxu0 0.0
    %1792 = vmatprep.subr.mxu0 0.0
    %1793 = vmatpush1.xpose.msra.mxu0 0.0
    %1794 = vmatprep.subr.mxu0 0.0
    %1795 = vmatpush1.xpose.msra.mxu0 0.0
    %1796 = vmatprep.subr.mxu0 0.0
    %1797 = vmatpush1.xpose.msra.mxu0 0.0
    %1798 = vmatprep.subr.mxu0 0.0
    %1799 = vmatpush1.xpose.msra.mxu0 0.0
    %1800 = vmatprep.subr.mxu0 0.0
    %1801 = vmatpush1.xpose.msra.mxu0 0.0
    %1802 = vmatprep.subr.mxu0 0.0
    %1803 = vmatpush1.xpose.msra.mxu0 0.0
    %1804 = vmatprep.subr.mxu0 0.0
    %1805 = vmatpush1.xpose.msra.mxu0 0.0
    %1806 = vmatprep.subr.mxu0 0.0
    %1807 = vmatpush1.xpose.msra.mxu0 0.0
    %1808 = vmatprep.subr.mxu0 0.0
    %1809 = vmatpush1.xpose.msra.mxu0 0.0
    %1810 = vmatprep.subr.mxu0 0.0
    %1811 = vmatpush1.xpose.msra.mxu0 0.0
    %1812 = vmatprep.subr.mxu0 0.0
    %1813 = vmatpush1.xpose.msra.mxu0 0.0
    %1814 = vmatprep.subr.mxu0 0.0
    %1815 = vmatpush1.xpose.msra.mxu0 0.0
    %1816 = vmatprep.mubr.f32.mxu0 0.0
    %1817 = vmatmul.mubr.f32.gmra.mrb[0].mxu0 %v1744
    %v1818 = vpop.f32.mrb[0].mxu0
    %v1819 = vadd.f32 0.0, %v1818
    %v1820 = vpop.f32.mrb[0].mxu0
    %1821 = vmatprep.mubr.f32.mxu0 0.0
    %1822 = vmatmul.mubr.f32.gmra.mrb[0].mxu0 %v1746
    %v1823 = vpop.f32.mrb[0].mxu0
    %v1824 = vadd.f32 0.0, %v1823
    %v1825 = vpop.f32.mrb[0].mxu0
    %1826 = vdwg.mxu0
    %v1827 = vmul.f32 %v1819, 0.35355338
    %v1828 = vmul.f32 %v1824, 0.35355338
    %v1829 = vsel %vm492, %v1827, -inf
    %1830 = vmax.xlane.f32.xlu0 %v1829
    %v1831 = vpop.xlane.xlu0 %1830
    %v1832 = vsel %vm492, %v1828, -inf
    %1833 = vmax.xlane.f32.xlu0 %v1832
    %v1834 = vpop.xlane.xlu0 %1833
    %v1835 = vsub.f32 %v1827, %v1831
    %v1836 = vsub.f32 %v1828, %v1834
    %v1837 = vmul.f32 %v1835, 1.442695
    %v1838 = vpow.pop %v1837
    %v1839 = vmul.f32 %v1836, 1.442695
    %v1840 = vpow.pop %v1839
    %v1841 = vsel %vm492, %v1838, 0.0
    %1842 = vadd.xlane.f32.xlu0 %v1841
    %v1843 = vpop.xlane.xlu0 %1842
    %v1844 = vsel %vm492, %v1840, 0.0
    %1845 = vadd.xlane.f32.xlu0 %v1844
    %v1846 = vpop.xlane.xlu0 %1845
    %v1847 = vrcp.pop %v1843
    %v1848 = vrcp.pop %v1846
    %v1849 = vmul.f32 %v1838, %v1847
    %v1850 = vmul.f32 %v1840, %v1848
    %1851 = vrot.lane.b32.xlu0 %v392, 56
    %v1852 = vpop.permute.xlu0 %1851
    %1853 = vrot.lane.b32.xlu0 %v397, 56
    %v1854 = vpop.permute.xlu0 %1853
    %v1858 = vsel %vm492, %v1849, 0
    %v1861 = vsel %vm492, %v1850, 0
    %1863 = vmatprep.subr.mxu0 0.0
    %1864 = vmatpush1.msra.mxu0 %v1852
    %1865 = vmatprep.subr.mxu0 0.0
    %1866 = vmatpush1.msra.mxu0 %v1854
    %1867 = vmatprep.subr.mxu0 0.0
    %1868 = vmatpush1.msra.mxu0 0.0
    %1869 = vmatprep.subr.mxu0 0.0
    %1870 = vmatpush1.msra.mxu0 0.0
    %1871 = vmatprep.subr.mxu0 0.0
    %1872 = vmatpush1.msra.mxu0 0.0
    %1873 = vmatprep.subr.mxu0 0.0
    %1874 = vmatpush1.msra.mxu0 0.0
    %1875 = vmatprep.subr.mxu0 0.0
    %1876 = vmatpush1.msra.mxu0 0.0
    %1877 = vmatprep.subr.mxu0 0.0
    %1878 = vmatpush1.msra.mxu0 0.0
    %1879 = vmatprep.subr.mxu0 0.0
    %1880 = vmatpush1.msra.mxu0 0.0
    %1881 = vmatprep.subr.mxu0 0.0
    %1882 = vmatpush1.msra.mxu0 0.0
    %1883 = vmatprep.subr.mxu0 0.0
    %1884 = vmatpush1.msra.mxu0 0.0
    %1885 = vmatprep.subr.mxu0 0.0
    %1886 = vmatpush1.msra.mxu0 0.0
    %1887 = vmatprep.subr.mxu0 0.0
    %1888 = vmatpush1.msra.mxu0 0.0
    %1889 = vmatprep.subr.mxu0 0.0
    %1890 = vmatpush1.msra.mxu0 0.0
    %1891 = vmatprep.subr.mxu0 0.0
    %1892 = vmatpush1.msra.mxu0 0.0
    %1893 = vmatprep.subr.mxu0 0.0
    %1894 = vmatpush1.msra.mxu0 0.0
    %1895 = vmatprep.subr.mxu0 0.0
    %1896 = vmatpush1.msra.mxu0 0.0
    %1897 = vmatprep.subr.mxu0 0.0
    %1898 = vmatpush1.msra.mxu0 0.0
    %1899 = vmatprep.subr.mxu0 0.0
    %1900 = vmatpush1.msra.mxu0 0.0
    %1901 = vmatprep.subr.mxu0 0.0
    %1902 = vmatpush1.msra.mxu0 0.0
    %1903 = vmatprep.subr.mxu0 0.0
    %1904 = vmatpush1.msra.mxu0 0.0
    %1905 = vmatprep.subr.mxu0 0.0
    %1906 = vmatpush1.msra.mxu0 0.0
    %1907 = vmatprep.subr.mxu0 0.0
    %1908 = vmatpush1.msra.mxu0 0.0
    %1909 = vmatprep.subr.mxu0 0.0
    %1910 = vmatpush1.msra.mxu0 0.0
    %1911 = vmatprep.subr.mxu0 0.0
    %1912 = vmatpush1.msra.mxu0 0.0
    %1913 = vmatprep.subr.mxu0 0.0
    %1914 = vmatpush1.msra.mxu0 0.0
    %1915 = vmatprep.subr.mxu0 0.0
    %1916 = vmatpush1.msra.mxu0 0.0
    %1917 = vmatprep.subr.mxu0 0.0
    %1918 = vmatpush1.msra.mxu0 0.0
    %1919 = vmatprep.subr.mxu0 0.0
    %1920 = vmatpush1.msra.mxu0 0.0
    %1921 = vmatprep.subr.mxu0 0.0
    %1922 = vmatpush1.msra.mxu0 0.0
    %1923 = vmatprep.subr.mxu0 0.0
    %1924 = vmatpush1.msra.mxu0 0.0
    %1925 = vmatprep.subr.mxu0 0.0
    %1926 = vmatpush1.msra.mxu0 0.0
    %1927 = vmatprep.mubr.f32.mxu0 0.0
    %1928 = vmatmul.mubr.f32.gmra.mrb[0].mxu0 %v1858
    %v1929 = vpop.f32.mrb[0].mxu0
    %v1930 = vadd.f32 0.0, %v1929
    %v1931 = vpop.f32.mrb[0].mxu0
    %1932 = vmatprep.mubr.f32.mxu0 0.0
    %1933 = vmatmul.mubr.f32.gmra.mrb[0].mxu0 %v1861
    %v1934 = vpop.f32.mrb[0].mxu0
    %v1935 = vadd.f32 0.0, %v1934
    %v1936 = vpop.f32.mrb[0].mxu0
    %1937 = vdwg.mxu0
    %v1939 = vsel %vm406, %v1930, 0
    %v1942 = vsel %vm406, %v1935, 0
    %1944 = vmatprep.subr.mxu0 0.0
    %1945 = vmatpush1.msra.mxu0 %v217
    %1946 = vmatprep.subr.mxu0 0.0
    %1947 = vmatpush1.msra.mxu0 0.0
    %1948 = vmatprep.subr.mxu0 0.0
    %1949 = vmatpush1.msra.mxu0 0.0
    %1950 = vmatprep.subr.mxu0 0.0
    %1951 = vmatpush1.msra.mxu0 0.0
    %1952 = vmatprep.subr.mxu0 0.0
    %1953 = vmatpush1.msra.mxu0 0.0
    %1954 = vmatprep.subr.mxu0 0.0
    %1955 = vmatpush1.msra.mxu0 0.0
    %1956 = vmatprep.subr.mxu0 0.0
    %1957 = vmatpush1.msra.mxu0 0.0
    %1958 = vmatprep.subr.mxu0 0.0
    %1959 = vmatpush1.msra.mxu0 0.0
    %1960 = vmatprep.subr.mxu0 0.0
    %1961 = vmatpush1.msra.mxu0 0.0
    %1962 = vmatprep.subr.mxu0 0.0
    %1963 = vmatpush1.msra.mxu0 0.0
    %1964 = vmatprep.subr.mxu0 0.0
    %1965 = vmatpush1.msra.mxu0 0.0
    %1966 = vmatprep.subr.mxu0 0.0
    %1967 = vmatpush1.msra.mxu0 0.0
    %1968 = vmatprep.subr.mxu0 0.0
    %1969 = vmatpush1.msra.mxu0 0.0
    %1970 = vmatprep.subr.mxu0 0.0
    %1971 = vmatpush1.msra.mxu0 0.0
    %1972 = vmatprep.subr.mxu0 0.0
    %1973 = vmatpush1.msra.mxu0 0.0
    %1974 = vmatprep.subr.mxu0 0.0
    %1975 = vmatpush1.msra.mxu0 0.0
    %1976 = vmatprep.subr.mxu0 0.0
    %1977 = vmatpush1.msra.mxu0 0.0
    %1978 = vmatprep.subr.mxu0 0.0
    %1979 = vmatpush1.msra.mxu0 0.0
    %1980 = vmatprep.subr.mxu0 0.0
    %1981 = vmatpush1.msra.mxu0 0.0
    %1982 = vmatprep.subr.mxu0 0.0
    %1983 = vmatpush1.msra.mxu0 0.0
    %1984 = vmatprep.subr.mxu0 0.0
    %1985 = vmatpush1.msra.mxu0 0.0
    %1986 = vmatprep.subr.mxu0 0.0
    %1987 = vmatpush1.msra.mxu0 0.0
    %1988 = vmatprep.subr.mxu0 0.0
    %1989 = vmatpush1.msra.mxu0 0.0
    %1990 = vmatprep.subr.mxu0 0.0
    %1991 = vmatpush1.msra.mxu0 0.0
    %1992 = vmatprep.subr.mxu0 0.0
    %1993 = vmatpush1.msra.mxu0 0.0
    %1994 = vmatprep.subr.mxu0 0.0
    %1995 = vmatpush1.msra.mxu0 0.0
    %1996 = vmatprep.subr.mxu0 0.0
    %1997 = vmatpush1.msra.mxu0 0.0
    %1998 = vmatprep.subr.mxu0 0.0
    %1999 = vmatpush1.msra.mxu0 0.0
    %2000 = vmatprep.subr.mxu0 0.0
    %2001 = vmatpush1.msra.mxu0 0.0
    %2002 = vmatprep.subr.mxu0 0.0
    %2003 = vmatpush1.msra.mxu0 0.0
    %2004 = vmatprep.subr.mxu0 0.0
    %2005 = vmatpush1.msra.mxu0 0.0
    %2006 = vmatprep.subr.mxu0 0.0
    %2007 = vmatpush1.msra.mxu0 0.0
    %2008 = vmatprep.mubr.f32.mxu0 0.0
    %2009 = vmatmul.mubr.f32.gmra.mrb[0].mxu0 %v1939
    %v2010 = vpop.f32.mrb[0].mxu0
    %v2011 = vadd.f32 0.0, %v2010
    %v2012 = vpop.f32.mrb[0].mxu0
    %2013 = vmatprep.mubr.f32.mxu0 0.0
    %2014 = vmatmul.mubr.f32.gmra.mrb[0].mxu0 %v1942
    %v2015 = vpop.f32.mrb[0].mxu0
    %v2016 = vadd.f32 0.0, %v2015
    %v2017 = vpop.f32.mrb[0].mxu0
    %2018 = vdwg.mxu0
    %v2020 = vsel %vm406, %v1728, 0
    %v2023 = vsel %vm406, %v1733, 0
    %2025 = vmatprep.subr.mxu0 0.0
    %2026 = vmatpush1.msra.mxu0 %v216
    %2027 = vmatprep.subr.mxu0 0.0
    %2028 = vmatpush1.msra.mxu0 0.0
    %2029 = vmatprep.subr.mxu0 0.0
    %2030 = vmatpush1.msra.mxu0 0.0
    %2031 = vmatprep.subr.mxu0 0.0
    %2032 = vmatpush1.msra.mxu0 0.0
    %2033 = vmatprep.subr.mxu0 0.0
    %2034 = vmatpush1.msra.mxu0 0.0
    %2035 = vmatprep.subr.mxu0 0.0
    %2036 = vmatpush1.msra.mxu0 0.0
    %2037 = vmatprep.subr.mxu0 0.0
    %2038 = vmatpush1.msra.mxu0 0.0
    %2039 = vmatprep.subr.mxu0 0.0
    %2040 = vmatpush1.msra.mxu0 0.0
    %2041 = vmatprep.subr.mxu0 0.0
    %2042 = vmatpush1.msra.mxu0 0.0
    %2043 = vmatprep.subr.mxu0 0.0
    %2044 = vmatpush1.msra.mxu0 0.0
    %2045 = vmatprep.subr.mxu0 0.0
    %2046 = vmatpush1.msra.mxu0 0.0
    %2047 = vmatprep.subr.mxu0 0.0
    %2048 = vmatpush1.msra.mxu0 0.0
    %2049 = vmatprep.subr.mxu0 0.0
    %2050 = vmatpush1.msra.mxu0 0.0
    %2051 = vmatprep.subr.mxu0 0.0
    %2052 = vmatpush1.msra.mxu0 0.0
    %2053 = vmatprep.subr.mxu0 0.0
    %2054 = vmatpush1.msra.mxu0 0.0
    %2055 = vmatprep.subr.mxu0 0.0
    %2056 = vmatpush1.msra.mxu0 0.0
    %2057 = vmatprep.subr.mxu0 0.0
    %2058 = vmatpush1.msra.mxu0 0.0
    %2059 = vmatprep.subr.mxu0 0.0
    %2060 = vmatpush1.msra.mxu0 0.0
    %2061 = vmatprep.subr.mxu0 0.0
    %2062 = vmatpush1.msra.mxu0 0.0
    %2063 = vmatprep.subr.mxu0 0.0
    %2064 = vmatpush1.msra.mxu0 0.0
    %2065 = vmatprep.subr.mxu0 0.0
    %2066 = vmatpush1.msra.mxu0 0.0
    %2067 = vmatprep.subr.mxu0 0.0
    %2068 = vmatpush1.msra.mxu0 0.0
    %2069 = vmatprep.subr.mxu0 0.0
    %2070 = vmatpush1.msra.mxu0 0.0
    %2071 = vmatprep.subr.mxu0 0.0
    %2072 = vmatpush1.msra.mxu0 0.0
    %2073 = vmatprep.subr.mxu0 0.0
    %2074 = vmatpush1.msra.mxu0 0.0
    %2075 = vmatprep.subr.mxu0 0.0
    %2076 = vmatpush1.msra.mxu0 0.0
    %2077 = vmatprep.subr.mxu0 0.0
    %2078 = vmatpush1.msra.mxu0 0.0
    %2079 = vmatprep.subr.mxu0 0.0
    %2080 = vmatpush1.msra.mxu0 0.0
    %2081 = vmatprep.subr.mxu0 0.0
    %2082 = vmatpush1.msra.mxu0 0.0
    %2083 = vmatprep.subr.mxu0 0.0
    %2084 = vmatpush1.msra.mxu0 0.0
    %2085 = vmatprep.subr.mxu0 0.0
    %2086 = vmatpush1.msra.mxu0 0.0
    %2087 = vmatprep.subr.mxu0 0.0
    %2088 = vmatpush1.msra.mxu0 0.0
    %2089 = vmatprep.mubr.f32.mxu0 0.0
    %2090 = vmatmul.mubr.f32.gmra.mrb[0].mxu0 %v2020
    %v2091 = vpop.f32.mrb[0].mxu0
    %v2092 = vadd.f32 %v2011, %v2091
    %v2093 = vpop.f32.mrb[0].mxu0
    %2094 = vmatprep.mubr.f32.mxu0 0.0
    %2095 = vmatmul.mubr.f32.gmra.mrb[0].mxu0 %v2023
    %v2096 = vpop.f32.mrb[0].mxu0
    %v2097 = vadd.f32 %v2016, %v2096
    %v2098 = vpop.f32.mrb[0].mxu0
    %2099 = vdwg.mxu0
    %2100 = vrot.lane.b32.xlu0 %v392, 112
    %v2101 = vpop.permute.xlu0 %2100
    %2102 = vrot.lane.b32.xlu0 %v397, 112
    %v2103 = vpop.permute.xlu0 %2102
    %2104 = vrot.lane.b32.xlu0 %v392, 80
    %v2105 = vpop.permute.xlu0 %2104
    %2106 = vrot.lane.b32.xlu0 %v397, 80
    %v2107 = vpop.permute.xlu0 %2106
    %v2108 = vsel %vm406, %v2101, 0
    %v2110 = vsel %vm406, %v2103, 0
    %v2112 = vsel %vm406, %v2105, 0
    %v2114 = vsel %vm406, %v2107, 0
    %2116 = vmatprep.subr.mxu0 0.0
    %2117 = vmatpush1.xpose.msra.mxu0 %v2112
    %2118 = vmatprep.subr.mxu0 0.0
    %2119 = vmatpush1.xpose.msra.mxu0 %v2114
    %2120 = vmatprep.subr.mxu0 0.0
    %2121 = vmatpush1.xpose.msra.mxu0 0.0
    %2122 = vmatprep.subr.mxu0 0.0
    %2123 = vmatpush1.xpose.msra.mxu0 0.0
    %2124 = vmatprep.subr.mxu0 0.0
    %2125 = vmatpush1.xpose.msra.mxu0 0.0
    %2126 = vmatprep.subr.mxu0 0.0
    %2127 = vmatpush1.xpose.msra.mxu0 0.0
    %2128 = vmatprep.subr.mxu0 0.0
    %2129 = vmatpush1.xpose.msra.mxu0 0.0
    %2130 = vmatprep.subr.mxu0 0.0
    %2131 = vmatpush1.xpose.msra.mxu0 0.0
    %2132 = vmatprep.subr.mxu0 0.0
    %2133 = vmatpush1.xpose.msra.mxu0 0.0
    %2134 = vmatprep.subr.mxu0 0.0
    %2135 = vmatpush1.xpose.msra.mxu0 0.0
    %2136 = vmatprep.subr.mxu0 0.0
    %2137 = vmatpush1.xpose.msra.mxu0 0.0
    %2138 = vmatprep.subr.mxu0 0.0
    %2139 = vmatpush1.xpose.msra.mxu0 0.0
    %2140 = vmatprep.subr.mxu0 0.0
    %2141 = vmatpush1.xpose.msra.mxu0 0.0
    %2142 = vmatprep.subr.mxu0 0.0
    %2143 = vmatpush1.xpose.msra.mxu0 0.0
    %2144 = vmatprep.subr.mxu0 0.0
    %2145 = vmatpush1.xpose.msra.mxu0 0.0
    %2146 = vmatprep.subr.mxu0 0.0
    %2147 = vmatpush1.xpose.msra.mxu0 0.0
    %2148 = vmatprep.subr.mxu0 0.0
    %2149 = vmatpush1.xpose.msra.mxu0 0.0
    %2150 = vmatprep.subr.mxu0 0.0
    %2151 = vmatpush1.xpose.msra.mxu0 0.0
    %2152 = vmatprep.subr.mxu0 0.0
    %2153 = vmatpush1.xpose.msra.mxu0 0.0
    %2154 = vmatprep.subr.mxu0 0.0
    %2155 = vmatpush1.xpose.msra.mxu0 0.0
    %2156 = vmatprep.subr.mxu0 0.0
    %2157 = vmatpush1.xpose.msra.mxu0 0.0
    %2158 = vmatprep.subr.mxu0 0.0
    %2159 = vmatpush1.xpose.msra.mxu0 0.0
    %2160 = vmatprep.subr.mxu0 0.0
    %2161 = vmatpush1.xpose.msra.mxu0 0.0
    %2162 = vmatprep.subr.mxu0 0.0
    %2163 = vmatpush1.xpose.msra.mxu0 0.0
    %2164 = vmatprep.subr.mxu0 0.0
    %2165 = vmatpush1.xpose.msra.mxu0 0.0
    %2166 = vmatprep.subr.mxu0 0.0
    %2167 = vmatpush1.xpose.msra.mxu0 0.0
    %2168 = vmatprep.subr.mxu0 0.0
    %2169 = vmatpush1.xpose.msra.mxu0 0.0
    %2170 = vmatprep.subr.mxu0 0.0
    %2171 = vmatpush1.xpose.msra.mxu0 0.0
    %2172 = vmatprep.subr.mxu0 0.0
    %2173 = vmatpush1.xpose.msra.mxu0 0.0
    %2174 = vmatprep.subr.mxu0 0.0
    %2175 = vmatpush1.xpose.msra.mxu0 0.0
    %2176 = vmatprep.subr.mxu0 0.0
    %2177 = vmatpush1.xpose.msra.mxu0 0.0
    %2178 = vmatprep.subr.mxu0 0.0
    %2179 = vmatpush1.xpose.msra.mxu0 0.0
    %2180 = vmatprep.mubr.f32.mxu0 0.0
    %2181 = vmatmul.mubr.f32.gmra.mrb[0].mxu0 %v2108
    %v2182 = vpop.f32.mrb[0].mxu0
    %v2183 = vadd.f32 0.0, %v2182
    %v2184 = vpop.f32.mrb[0].mxu0
    %2185 = vmatprep.mubr.f32.mxu0 0.0
    %2186 = vmatmul.mubr.f32.gmra.mrb[0].mxu0 %v2110
    %v2187 = vpop.f32.mrb[0].mxu0
    %v2188 = vadd.f32 0.0, %v2187
    %v2189 = vpop.f32.mrb[0].mxu0
    %2190 = vdwg.mxu0
    %v2191 = vmul.f32 %v2183, 0.35355338
    %v2192 = vmul.f32 %v2188, 0.35355338
    %v2193 = vsel %vm492, %v2191, -inf
    %2194 = vmax.xlane.f32.xlu0 %v2193
    %v2195 = vpop.xlane.xlu0 %2194
    %v2196 = vsel %vm492, %v2192, -inf
    %2197 = vmax.xlane.f32.xlu0 %v2196
    %v2198 = vpop.xlane.xlu0 %2197
    %v2199 = vsub.f32 %v2191, %v2195
    %v2200 = vsub.f32 %v2192, %v2198
    %v2201 = vmul.f32 %v2199, 1.442695
    %v2202 = vpow.pop %v2201
    %v2203 = vmul.f32 %v2200, 1.442695
    %v2204 = vpow.pop %v2203
    %v2205 = vsel %vm492, %v2202, 0.0
    %2206 = vadd.xlane.f32.xlu0 %v2205
    %v2207 = vpop.xlane.xlu0 %2206
    %v2208 = vsel %vm492, %v2204, 0.0
    %2209 = vadd.xlane.f32.xlu0 %v2208
    %v2210 = vpop.xlane.xlu0 %2209
    %v2211 = vrcp.pop %v2207
    %v2212 = vrcp.pop %v2210
    %v2213 = vmul.f32 %v2202, %v2211
    %v2214 = vmul.f32 %v2204, %v2212
    %2215 = vrot.lane.b32.xlu0 %v392, 48
    %v2216 = vpop.permute.xlu0 %2215
    %2217 = vrot.lane.b32.xlu0 %v397, 48
    %v2218 = vpop.permute.xlu0 %2217
    %v2222 = vsel %vm492, %v2213, 0
    %v2225 = vsel %vm492, %v2214, 0
    %2227 = vmatprep.subr.mxu0 0.0
    %2228 = vmatpush1.msra.mxu0 %v2216
    %2229 = vmatprep.subr.mxu0 0.0
    %2230 = vmatpush1.msra.mxu0 %v2218
    %2231 = vmatprep.subr.mxu0 0.0
    %2232 = vmatpush1.msra.mxu0 0.0
    %2233 = vmatprep.subr.mxu0 0.0
    %2234 = vmatpush1.msra.mxu0 0.0
    %2235 = vmatprep.subr.mxu0 0.0
    %2236 = vmatpush1.msra.mxu0 0.0
    %2237 = vmatprep.subr.mxu0 0.0
    %2238 = vmatpush1.msra.mxu0 0.0
    %2239 = vmatprep.subr.mxu0 0.0
    %2240 = vmatpush1.msra.mxu0 0.0
    %2241 = vmatprep.subr.mxu0 0.0
    %2242 = vmatpush1.msra.mxu0 0.0
    %2243 = vmatprep.subr.mxu0 0.0
    %2244 = vmatpush1.msra.mxu0 0.0
    %2245 = vmatprep.subr.mxu0 0.0
    %2246 = vmatpush1.msra.mxu0 0.0
    %2247 = vmatprep.subr.mxu0 0.0
    %2248 = vmatpush1.msra.mxu0 0.0
    %2249 = vmatprep.subr.mxu0 0.0
    %2250 = vmatpush1.msra.mxu0 0.0
    %2251 = vmatprep.subr.mxu0 0.0
    %2252 = vmatpush1.msra.mxu0 0.0
    %2253 = vmatprep.subr.mxu0 0.0
    %2254 = vmatpush1.msra.mxu0 0.0
    %2255 = vmatprep.subr.mxu0 0.0
    %2256 = vmatpush1.msra.mxu0 0.0
    %2257 = vmatprep.subr.mxu0 0.0
    %2258 = vmatpush1.msra.mxu0 0.0
    %2259 = vmatprep.subr.mxu0 0.0
    %2260 = vmatpush1.msra.mxu0 0.0
    %2261 = vmatprep.subr.mxu0 0.0
    %2262 = vmatpush1.msra.mxu0 0.0
    %2263 = vmatprep.subr.mxu0 0.0
    %2264 = vmatpush1.msra.mxu0 0.0
    %2265 = vmatprep.subr.mxu0 0.0
    %2266 = vmatpush1.msra.mxu0 0.0
    %2267 = vmatprep.subr.mxu0 0.0
    %2268 = vmatpush1.msra.mxu0 0.0
    %2269 = vmatprep.subr.mxu0 0.0
    %2270 = vmatpush1.msra.mxu0 0.0
    %2271 = vmatprep.subr.mxu0 0.0
    %2272 = vmatpush1.msra.mxu0 0.0
    %2273 = vmatprep.subr.mxu0 0.0
    %2274 = vmatpush1.msra.mxu0 0.0
    %2275 = vmatprep.subr.mxu0 0.0
    %2276 = vmatpush1.msra.mxu0 0.0
    %2277 = vmatprep.subr.mxu0 0.0
    %2278 = vmatpush1.msra.mxu0 0.0
    %2279 = vmatprep.subr.mxu0 0.0
    %2280 = vmatpush1.msra.mxu0 0.0
    %2281 = vmatprep.subr.mxu0 0.0
    %2282 = vmatpush1.msra.mxu0 0.0
    %2283 = vmatprep.subr.mxu0 0.0
    %2284 = vmatpush1.msra.mxu0 0.0
    %2285 = vmatprep.subr.mxu0 0.0
    %2286 = vmatpush1.msra.mxu0 0.0
    %2287 = vmatprep.subr.mxu0 0.0
    %2288 = vmatpush1.msra.mxu0 0.0
    %2289 = vmatprep.subr.mxu0 0.0
    %2290 = vmatpush1.msra.mxu0 0.0
    %2291 = vmatprep.mubr.f32.mxu0 0.0
    %2292 = vmatmul.mubr.f32.gmra.mrb[0].mxu0 %v2222
    %v2293 = vpop.f32.mrb[0].mxu0
    %v2294 = vadd.f32 0.0, %v2293
    %v2295 = vpop.f32.mrb[0].mxu0
    %2296 = vmatprep.mubr.f32.mxu0 0.0
    %2297 = vmatmul.mubr.f32.gmra.mrb[0].mxu0 %v2225
    %v2298 = vpop.f32.mrb[0].mxu0
    %v2299 = vadd.f32 0.0, %v2298
    %v2300 = vpop.f32.mrb[0].mxu0
    %2301 = vdwg.mxu0
    %v2303 = vsel %vm406, %v2294, 0
    %v2306 = vsel %vm406, %v2299, 0
    %2308 = vmatprep.subr.mxu0 0.0
    %2309 = vmatpush1.msra.mxu0 %v218
    %2310 = vmatprep.subr.mxu0 0.0
    %2311 = vmatpush1.msra.mxu0 0.0
    %2312 = vmatprep.subr.mxu0 0.0
    %2313 = vmatpush1.msra.mxu0 0.0
    %2314 = vmatprep.subr.mxu0 0.0
    %2315 = vmatpush1.msra.mxu0 0.0
    %2316 = vmatprep.subr.mxu0 0.0
    %2317 = vmatpush1.msra.mxu0 0.0
    %2318 = vmatprep.subr.mxu0 0.0
    %2319 = vmatpush1.msra.mxu0 0.0
    %2320 = vmatprep.subr.mxu0 0.0
    %2321 = vmatpush1.msra.mxu0 0.0
    %2322 = vmatprep.subr.mxu0 0.0
    %2323 = vmatpush1.msra.mxu0 0.0
    %2324 = vmatprep.subr.mxu0 0.0
    %2325 = vmatpush1.msra.mxu0 0.0
    %2326 = vmatprep.subr.mxu0 0.0
    %2327 = vmatpush1.msra.mxu0 0.0
    %2328 = vmatprep.subr.mxu0 0.0
    %2329 = vmatpush1.msra.mxu0 0.0
    %2330 = vmatprep.subr.mxu0 0.0
    %2331 = vmatpush1.msra.mxu0 0.0
    %2332 = vmatprep.subr.mxu0 0.0
    %2333 = vmatpush1.msra.mxu0 0.0
    %2334 = vmatprep.subr.mxu0 0.0
    %2335 = vmatpush1.msra.mxu0 0.0
    %2336 = vmatprep.subr.mxu0 0.0
    %2337 = vmatpush1.msra.mxu0 0.0
    %2338 = vmatprep.subr.mxu0 0.0
    %2339 = vmatpush1.msra.mxu0 0.0
    %2340 = vmatprep.subr.mxu0 0.0
    %2341 = vmatpush1.msra.mxu0 0.0
    %2342 = vmatprep.subr.mxu0 0.0
    %2343 = vmatpush1.msra.mxu0 0.0
    %2344 = vmatprep.subr.mxu0 0.0
    %2345 = vmatpush1.msra.mxu0 0.0
    %2346 = vmatprep.subr.mxu0 0.0
    %2347 = vmatpush1.msra.mxu0 0.0
    %2348 = vmatprep.subr.mxu0 0.0
    %2349 = vmatpush1.msra.mxu0 0.0
    %2350 = vmatprep.subr.mxu0 0.0
    %2351 = vmatpush1.msra.mxu0 0.0
    %2352 = vmatprep.subr.mxu0 0.0
    %2353 = vmatpush1.msra.mxu0 0.0
    %2354 = vmatprep.subr.mxu0 0.0
    %2355 = vmatpush1.msra.mxu0 0.0
    %2356 = vmatprep.subr.mxu0 0.0
    %2357 = vmatpush1.msra.mxu0 0.0
    %2358 = vmatprep.subr.mxu0 0.0
    %2359 = vmatpush1.msra.mxu0 0.0
    %2360 = vmatprep.subr.mxu0 0.0
    %2361 = vmatpush1.msra.mxu0 0.0
    %2362 = vmatprep.subr.mxu0 0.0
    %2363 = vmatpush1.msra.mxu0 0.0
    %2364 = vmatprep.subr.mxu0 0.0
    %2365 = vmatpush1.msra.mxu0 0.0
    %2366 = vmatprep.subr.mxu0 0.0
    %2367 = vmatpush1.msra.mxu0 0.0
    %2368 = vmatprep.subr.mxu0 0.0
    %2369 = vmatpush1.msra.mxu0 0.0
    %2370 = vmatprep.subr.mxu0 0.0
    %2371 = vmatpush1.msra.mxu0 0.0
    %2372 = vmatprep.mubr.f32.mxu0 0.0
    %2373 = vmatmul.mubr.f32.gmra.mrb[0].mxu0 %v2303
    %v2374 = vpop.f32.mrb[0].mxu0
    %v2375 = vadd.f32 0.0, %v2374
    %v2376 = vpop.f32.mrb[0].mxu0
    %2377 = vmatprep.mubr.f32.mxu0 0.0
    %2378 = vmatmul.mubr.f32.gmra.mrb[0].mxu0 %v2306
    %v2379 = vpop.f32.mrb[0].mxu0
    %v2380 = vadd.f32 0.0, %v2379
    %v2381 = vpop.f32.mrb[0].mxu0
    %2382 = vdwg.mxu0
    %v2383 = vadd.f32 %v2092, %v2375
    %v2384 = vadd.f32 %v2097, %v2380
    %2385 = vrot.lane.b32.xlu0 %v392, 104
    %v2386 = vpop.permute.xlu0 %2385
    %2387 = vrot.lane.b32.xlu0 %v397, 104
    %v2388 = vpop.permute.xlu0 %2387
    %2389 = vrot.lane.b32.xlu0 %v392, 72
    %v2390 = vpop.permute.xlu0 %2389
    %2391 = vrot.lane.b32.xlu0 %v397, 72
    %v2392 = vpop.permute.xlu0 %2391
    %v2393 = vsel %vm406, %v2386, 0
    %v2395 = vsel %vm406, %v2388, 0
    %v2397 = vsel %vm406, %v2390, 0
    %v2399 = vsel %vm406, %v2392, 0
    %2401 = vmatprep.subr.mxu0 0.0
    %2402 = vmatpush1.xpose.msra.mxu0 %v2397
    %2403 = vmatprep.subr.mxu0 0.0
    %2404 = vmatpush1.xpose.msra.mxu0 %v2399
    %2405 = vmatprep.subr.mxu0 0.0
    %2406 = vmatpush1.xpose.msra.mxu0 0.0
    %2407 = vmatprep.subr.mxu0 0.0
    %2408 = vmatpush1.xpose.msra.mxu0 0.0
    %2409 = vmatprep.subr.mxu0 0.0
    %2410 = vmatpush1.xpose.msra.mxu0 0.0
    %2411 = vmatprep.subr.mxu0 0.0
    %2412 = vmatpush1.xpose.msra.mxu0 0.0
    %2413 = vmatprep.subr.mxu0 0.0
    %2414 = vmatpush1.xpose.msra.mxu0 0.0
    %2415 = vmatprep.subr.mxu0 0.0
    %2416 = vmatpush1.xpose.msra.mxu0 0.0
    %2417 = vmatprep.subr.mxu0 0.0
    %2418 = vmatpush1.xpose.msra.mxu0 0.0
    %2419 = vmatprep.subr.mxu0 0.0
    %2420 = vmatpush1.xpose.msra.mxu0 0.0
    %2421 = vmatprep.subr.mxu0 0.0
    %2422 = vmatpush1.xpose.msra.mxu0 0.0
    %2423 = vmatprep.subr.mxu0 0.0
    %2424 = vmatpush1.xpose.msra.mxu0 0.0
    %2425 = vmatprep.subr.mxu0 0.0
    %2426 = vmatpush1.xpose.msra.mxu0 0.0
    %2427 = vmatprep.subr.mxu0 0.0
    %2428 = vmatpush1.xpose.msra.mxu0 0.0
    %2429 = vmatprep.subr.mxu0 0.0
    %2430 = vmatpush1.xpose.msra.mxu0 0.0
    %2431 = vmatprep.subr.mxu0 0.0
    %2432 = vmatpush1.xpose.msra.mxu0 0.0
    %2433 = vmatprep.subr.mxu0 0.0
    %2434 = vmatpush1.xpose.msra.mxu0 0.0
    %2435 = vmatprep.subr.mxu0 0.0
    %2436 = vmatpush1.xpose.msra.mxu0 0.0
    %2437 = vmatprep.subr.mxu0 0.0
    %2438 = vmatpush1.xpose.msra.mxu0 0.0
    %2439 = vmatprep.subr.mxu0 0.0
    %2440 = vmatpush1.xpose.msra.mxu0 0.0
    %2441 = vmatprep.subr.mxu0 0.0
    %2442 = vmatpush1.xpose.msra.mxu0 0.0
    %2443 = vmatprep.subr.mxu0 0.0
    %2444 = vmatpush1.xpose.msra.mxu0 0.0
    %2445 = vmatprep.subr.mxu0 0.0
    %2446 = vmatpush1.xpose.msra.mxu0 0.0
    %2447 = vmatprep.subr.mxu0 0.0
    %2448 = vmatpush1.xpose.msra.mxu0 0.0
    %2449 = vmatprep.subr.mxu0 0.0
    %2450 = vmatpush1.xpose.msra.mxu0 0.0
    %2451 = vmatprep.subr.mxu0 0.0
    %2452 = vmatpush1.xpose.msra.mxu0 0.0
    %2453 = vmatprep.subr.mxu0 0.0
    %2454 = vmatpush1.xpose.msra.mxu0 0.0
    %2455 = vmatprep.subr.mxu0 0.0
    %2456 = vmatpush1.xpose.msra.mxu0 0.0
    %2457 = vmatprep.subr.mxu0 0.0
    %2458 = vmatpush1.xpose.msra.mxu0 0.0
    %2459 = vmatprep.subr.mxu0 0.0
    %2460 = vmatpush1.xpose.msra.mxu0 0.0
    %2461 = vmatprep.subr.mxu0 0.0
    %2462 = vmatpush1.xpose.msra.mxu0 0.0
    %2463 = vmatprep.subr.mxu0 0.0
    %2464 = vmatpush1.xpose.msra.mxu0 0.0
    %2465 = vmatprep.mubr.f32.mxu0 0.0
    %2466 = vmatmul.mubr.f32.gmra.mrb[0].mxu0 %v2393
    %v2467 = vpop.f32.mrb[0].mxu0
    %v2468 = vadd.f32 0.0, %v2467
    %v2469 = vpop.f32.mrb[0].mxu0
    %2470 = vmatprep.mubr.f32.mxu0 0.0
    %2471 = vmatmul.mubr.f32.gmra.mrb[0].mxu0 %v2395
    %v2472 = vpop.f32.mrb[0].mxu0
    %v2473 = vadd.f32 0.0, %v2472
    %v2474 = vpop.f32.mrb[0].mxu0
    %2475 = vdwg.mxu0
    %v2476 = vmul.f32 %v2468, 0.35355338
    %v2477 = vmul.f32 %v2473, 0.35355338
    %v2478 = vsel %vm492, %v2476, -inf
    %2479 = vmax.xlane.f32.xlu0 %v2478
    %v2480 = vpop.xlane.xlu0 %2479
    %v2481 = vsel %vm492, %v2477, -inf
    %2482 = vmax.xlane.f32.xlu0 %v2481
    %v2483 = vpop.xlane.xlu0 %2482
    %v2484 = vsub.f32 %v2476, %v2480
    %v2485 = vsub.f32 %v2477, %v2483
    %v2486 = vmul.f32 %v2484, 1.442695
    %v2487 = vpow.pop %v2486
    %v2488 = vmul.f32 %v2485, 1.442695
    %v2489 = vpow.pop %v2488
    %v2490 = vsel %vm492, %v2487, 0.0
    %2491 = vadd.xlane.f32.xlu0 %v2490
    %v2492 = vpop.xlane.xlu0 %2491
    %v2493 = vsel %vm492, %v2489, 0.0
    %2494 = vadd.xlane.f32.xlu0 %v2493
    %v2495 = vpop.xlane.xlu0 %2494
    %v2496 = vrcp.pop %v2492
    %v2497 = vrcp.pop %v2495
    %v2498 = vmul.f32 %v2487, %v2496
    %v2499 = vmul.f32 %v2489, %v2497
    %2500 = vrot.lane.b32.xlu0 %v392, 40
    %v2501 = vpop.permute.xlu0 %2500
    %2502 = vrot.lane.b32.xlu0 %v397, 40
    %v2503 = vpop.permute.xlu0 %2502
    %v2507 = vsel %vm492, %v2498, 0
    %v2510 = vsel %vm492, %v2499, 0
    %2512 = vmatprep.subr.mxu0 0.0
    %2513 = vmatpush1.msra.mxu0 %v2501
    %2514 = vmatprep.subr.mxu0 0.0
    %2515 = vmatpush1.msra.mxu0 %v2503
    %2516 = vmatprep.subr.mxu0 0.0
    %2517 = vmatpush1.msra.mxu0 0.0
    %2518 = vmatprep.subr.mxu0 0.0
    %2519 = vmatpush1.msra.mxu0 0.0
    %2520 = vmatprep.subr.mxu0 0.0
    %2521 = vmatpush1.msra.mxu0 0.0
    %2522 = vmatprep.subr.mxu0 0.0
    %2523 = vmatpush1.msra.mxu0 0.0
    %2524 = vmatprep.subr.mxu0 0.0
    %2525 = vmatpush1.msra.mxu0 0.0
    %2526 = vmatprep.subr.mxu0 0.0
    %2527 = vmatpush1.msra.mxu0 0.0
    %2528 = vmatprep.subr.mxu0 0.0
    %2529 = vmatpush1.msra.mxu0 0.0
    %2530 = vmatprep.subr.mxu0 0.0
    %2531 = vmatpush1.msra.mxu0 0.0
    %2532 = vmatprep.subr.mxu0 0.0
    %2533 = vmatpush1.msra.mxu0 0.0
    %2534 = vmatprep.subr.mxu0 0.0
    %2535 = vmatpush1.msra.mxu0 0.0
    %2536 = vmatprep.subr.mxu0 0.0
    %2537 = vmatpush1.msra.mxu0 0.0
    %2538 = vmatprep.subr.mxu0 0.0
    %2539 = vmatpush1.msra.mxu0 0.0
    %2540 = vmatprep.subr.mxu0 0.0
    %2541 = vmatpush1.msra.mxu0 0.0
    %2542 = vmatprep.subr.mxu0 0.0
    %2543 = vmatpush1.msra.mxu0 0.0
    %2544 = vmatprep.subr.mxu0 0.0
    %2545 = vmatpush1.msra.mxu0 0.0
    %2546 = vmatprep.subr.mxu0 0.0
    %2547 = vmatpush1.msra.mxu0 0.0
    %2548 = vmatprep.subr.mxu0 0.0
    %2549 = vmatpush1.msra.mxu0 0.0
    %2550 = vmatprep.subr.mxu0 0.0
    %2551 = vmatpush1.msra.mxu0 0.0
    %2552 = vmatprep.subr.mxu0 0.0
    %2553 = vmatpush1.msra.mxu0 0.0
    %2554 = vmatprep.subr.mxu0 0.0
    %2555 = vmatpush1.msra.mxu0 0.0
    %2556 = vmatprep.subr.mxu0 0.0
    %2557 = vmatpush1.msra.mxu0 0.0
    %2558 = vmatprep.subr.mxu0 0.0
    %2559 = vmatpush1.msra.mxu0 0.0
    %2560 = vmatprep.subr.mxu0 0.0
    %2561 = vmatpush1.msra.mxu0 0.0
    %2562 = vmatprep.subr.mxu0 0.0
    %2563 = vmatpush1.msra.mxu0 0.0
    %2564 = vmatprep.subr.mxu0 0.0
    %2565 = vmatpush1.msra.mxu0 0.0
    %2566 = vmatprep.subr.mxu0 0.0
    %2567 = vmatpush1.msra.mxu0 0.0
    %2568 = vmatprep.subr.mxu0 0.0
    %2569 = vmatpush1.msra.mxu0 0.0
    %2570 = vmatprep.subr.mxu0 0.0
    %2571 = vmatpush1.msra.mxu0 0.0
    %2572 = vmatprep.subr.mxu0 0.0
    %2573 = vmatpush1.msra.mxu0 0.0
    %2574 = vmatprep.subr.mxu0 0.0
    %2575 = vmatpush1.msra.mxu0 0.0
    %2576 = vmatprep.mubr.f32.mxu0 0.0
    %2577 = vmatmul.mubr.f32.gmra.mrb[0].mxu0 %v2507
    %v2578 = vpop.f32.mrb[0].mxu0
    %v2579 = vadd.f32 0.0, %v2578
    %v2580 = vpop.f32.mrb[0].mxu0
    %2581 = vmatprep.mubr.f32.mxu0 0.0
    %2582 = vmatmul.mubr.f32.gmra.mrb[0].mxu0 %v2510
    %v2583 = vpop.f32.mrb[0].mxu0
    %v2584 = vadd.f32 0.0, %v2583
    %v2585 = vpop.f32.mrb[0].mxu0
    %2586 = vdwg.mxu0
    %v2588 = vsel %vm406, %v2579, 0
    %v2591 = vsel %vm406, %v2584, 0
    %2593 = vmatprep.subr.mxu0 0.0
    %2594 = vmatpush1.msra.mxu0 %v219
    %2595 = vmatprep.subr.mxu0 0.0
    %2596 = vmatpush1.msra.mxu0 0.0
    %2597 = vmatprep.subr.mxu0 0.0
    %2598 = vmatpush1.msra.mxu0 0.0
    %2599 = vmatprep.subr.mxu0 0.0
    %2600 = vmatpush1.msra.mxu0 0.0
    %2601 = vmatprep.subr.mxu0 0.0
    %2602 = vmatpush1.msra.mxu0 0.0
    %2603 = vmatprep.subr.mxu0 0.0
    %2604 = vmatpush1.msra.mxu0 0.0
    %2605 = vmatprep.subr.mxu0 0.0
    %2606 = vmatpush1.msra.mxu0 0.0
    %2607 = vmatprep.subr.mxu0 0.0
    %2608 = vmatpush1.msra.mxu0 0.0
    %2609 = vmatprep.subr.mxu0 0.0
    %2610 = vmatpush1.msra.mxu0 0.0
    %2611 = vmatprep.subr.mxu0 0.0
    %2612 = vmatpush1.msra.mxu0 0.0
    %2613 = vmatprep.subr.mxu0 0.0
    %2614 = vmatpush1.msra.mxu0 0.0
    %2615 = vmatprep.subr.mxu0 0.0
    %2616 = vmatpush1.msra.mxu0 0.0
    %2617 = vmatprep.subr.mxu0 0.0
    %2618 = vmatpush1.msra.mxu0 0.0
    %2619 = vmatprep.subr.mxu0 0.0
    %2620 = vmatpush1.msra.mxu0 0.0
    %2621 = vmatprep.subr.mxu0 0.0
    %2622 = vmatpush1.msra.mxu0 0.0
    %2623 = vmatprep.subr.mxu0 0.0
    %2624 = vmatpush1.msra.mxu0 0.0
    %2625 = vmatprep.subr.mxu0 0.0
    %2626 = vmatpush1.msra.mxu0 0.0
    %2627 = vmatprep.subr.mxu0 0.0
    %2628 = vmatpush1.msra.mxu0 0.0
    %2629 = vmatprep.subr.mxu0 0.0
    %2630 = vmatpush1.msra.mxu0 0.0
    %2631 = vmatprep.subr.mxu0 0.0
    %2632 = vmatpush1.msra.mxu0 0.0
    %2633 = vmatprep.subr.mxu0 0.0
    %2634 = vmatpush1.msra.mxu0 0.0
    %2635 = vmatprep.subr.mxu0 0.0
    %2636 = vmatpush1.msra.mxu0 0.0
    %2637 = vmatprep.subr.mxu0 0.0
    %2638 = vmatpush1.msra.mxu0 0.0
    %2639 = vmatprep.subr.mxu0 0.0
    %2640 = vmatpush1.msra.mxu0 0.0
    %2641 = vmatprep.subr.mxu0 0.0
    %2642 = vmatpush1.msra.mxu0 0.0
    %2643 = vmatprep.subr.mxu0 0.0
    %2644 = vmatpush1.msra.mxu0 0.0
    %2645 = vmatprep.subr.mxu0 0.0
    %2646 = vmatpush1.msra.mxu0 0.0
    %2647 = vmatprep.subr.mxu0 0.0
    %2648 = vmatpush1.msra.mxu0 0.0
    %2649 = vmatprep.subr.mxu0 0.0
    %2650 = vmatpush1.msra.mxu0 0.0
    %2651 = vmatprep.subr.mxu0 0.0
    %2652 = vmatpush1.msra.mxu0 0.0
    %2653 = vmatprep.subr.mxu0 0.0
    %2654 = vmatpush1.msra.mxu0 0.0
    %2655 = vmatprep.subr.mxu0 0.0
    %2656 = vmatpush1.msra.mxu0 0.0
    %2657 = vmatprep.mubr.f32.mxu0 0.0
    %2658 = vmatmul.mubr.f32.gmra.mrb[0].mxu0 %v2588
    %v2659 = vpop.f32.mrb[0].mxu0
    %v2660 = vadd.f32 0.0, %v2659
    %v2661 = vpop.f32.mrb[0].mxu0
    %2662 = vmatprep.mubr.f32.mxu0 0.0
    %2663 = vmatmul.mubr.f32.gmra.mrb[0].mxu0 %v2591
    %v2664 = vpop.f32.mrb[0].mxu0
    %v2665 = vadd.f32 0.0, %v2664
    %v2666 = vpop.f32.mrb[0].mxu0
    %2667 = vdwg.mxu0
    %v2668 = vadd.f32 %v2383, %v2660
    %v2669 = vadd.f32 %v2384, %v2665
    %v2670 = vadd.f32 %v207, %v1534
    %v2671 = vadd.f32 %v208, %v1535
    %v2672 = vadd.f32 %v209, %v2668
    %v2673 = vadd.f32 %v210, %v2669
    %v2675 = vlaneseq
    %v2676 = vshrl.u32 %v2675, 7
    %v2677 = vsub.s32 0, %v2676
    %v2678 = vrot.slane %v220, %v2677
    %v2680 = vadd.f32 %v2670, %v2678
    %v2681 = vadd.f32 %v2671, %v2678
    %v2682 = vadd.f32 %v2672, %v2678
    %v2683 = vadd.f32 %v2673, %v2678
    %v2684 = vld [vmem:[%s10] sm:$0x1]
    %v2685 = vld [vmem:[%s11] sm:$0x1]
    %v2686 = vsel %vm223, %v2680, 0.0
    %2687 = vadd.xlane.f32.xlu0 %v2686
    %v2688 = vpop.xlane.xlu0 %2687
    %v2689 = vsel %vm223, %v2681, 0.0
    %2690 = vadd.xlane.f32.xlu0 %v2689
    %v2691 = vpop.xlane.xlu0 %2690
    %v2692 = vsel %vm223, %v2682, 0.0
    %2693 = vadd.xlane.f32.xlu0 %v2692
    %v2694 = vpop.xlane.xlu0 %2693
    %v2695 = vsel %vm223, %v2683, 0.0
    %2696 = vadd.xlane.f32.xlu0 %v2695
    %v2697 = vpop.xlane.xlu0 %2696
    %v2698 = vmul.f32 %v2688, %v236
    %v2699 = vmul.f32 %v2691, %v236
    %v2700 = vmul.f32 %v2694, %v236
    %v2701 = vmul.f32 %v2697, %v236
    %v2702 = vsub.f32 %v2680, %v2698
    %v2703 = vsub.f32 %v2681, %v2699
    %v2704 = vsub.f32 %v2682, %v2700
    %v2705 = vsub.f32 %v2683, %v2701
    %v2706 = vmul.f32 %v2702, %v2702
    %v2707 = vmul.f32 %v2703, %v2703
    %v2708 = vmul.f32 %v2704, %v2704
    %v2709 = vmul.f32 %v2705, %v2705
    %v2710 = vsel %vm223, %v2706, 0.0
    %2711 = vadd.xlane.f32.xlu0 %v2710
    %v2712 = vpop.xlane.xlu0 %2711
    %v2713 = vsel %vm223, %v2707, 0.0
    %2714 = vadd.xlane.f32.xlu0 %v2713
    %v2715 = vpop.xlane.xlu0 %2714
    %v2716 = vsel %vm223, %v2708, 0.0
    %2717 = vadd.xlane.f32.xlu0 %v2716
    %v2718 = vpop.xlane.xlu0 %2717
    %v2719 = vsel %vm223, %v2709, 0.0
    %2720 = vadd.xlane.f32.xlu0 %v2719
    %v2721 = vpop.xlane.xlu0 %2720
    %v2722 = vmul.f32 %v2712, %v236
    %v2723 = vmul.f32 %v2715, %v236
    %v2724 = vmul.f32 %v2718, %v236
    %v2725 = vmul.f32 %v2721, %v236
    %v2726 = vadd.f32 %v2722, 1e-06
    %v2727 = vadd.f32 %v2723, 1e-06
    %v2728 = vadd.f32 %v2724, 1e-06
    %v2729 = vadd.f32 %v2725, 1e-06
    %v2730 = vrsqrt.pop %v2726
    %v2731 = vrsqrt.pop %v2727
    %v2732 = vrsqrt.pop %v2728
    %v2733 = vrsqrt.pop %v2729
    %v2734 = vmul.f32 %v2702, %v2730
    %v2735 = vmul.f32 %v2703, %v2731
    %v2736 = vmul.f32 %v2704, %v2732
    %v2737 = vmul.f32 %v2705, %v2733
    %v2739 = vlaneseq
    %v2740 = vshrl.u32 %v2739, 7
    %v2741 = vsub.s32 0, %v2740
    %v2742 = vrot.slane %v2684, %v2741
    %v2744 = vmul.f32 %v2734, %v2742
    %v2745 = vmul.f32 %v2735, %v2742
    %v2746 = vmul.f32 %v2736, %v2742
    %v2747 = vmul.f32 %v2737, %v2742
    %v2749 = vlaneseq
    %v2750 = vshrl.u32 %v2749, 7
    %v2751 = vsub.s32 0, %v2750
    %v2752 = vrot.slane %v2685, %v2751
    %v2754 = vadd.f32 %v2744, %v2752
    %v2755 = vadd.f32 %v2745, %v2752
    %v2756 = vadd.f32 %v2746, %v2752
    %v2757 = vadd.f32 %v2747, %v2752
    %v2758 = vld [vmem:[%s12] sm:$0xff]
    %v2759 = vld [vmem:[%s12 + $0x8] sm:$0xff]
    %v2760 = vld [vmem:[%s12 + $0x10] sm:$0xff]
    %v2761 = vld [vmem:[%s12 + $0x18] sm:$0xff]
    %v2762 = vld [vmem:[%s13] sm:$0x1]
    %v2764 = vlaneseq
    %v2765 = vshrl.u32 %v2764, 7
    %v2766 = vsub.s32 0, %v2765
    %v2767 = vrot.slane %v2762, %v2766
    %v2770 = vsel %vm223, %v2754, 0
    %v2773 = vsel %vm223, %v2755, 0
    %v2776 = vsel %vm223, %v2756, 0
    %v2779 = vsel %vm223, %v2757, 0
    %2781 = vmatprep.subr.mxu0 0.0
    %2782 = vmatpush1.msra.mxu0 %v2758
    %2783 = vmatprep.subr.mxu0 0.0
    %2784 = vmatpush1.msra.mxu0 %v2759
    %2785 = vmatprep.subr.mxu0 0.0
    %2786 = vmatpush1.msra.mxu0 %v2760
    %2787 = vmatprep.subr.mxu0 0.0
    %2788 = vmatpush1.msra.mxu0 %v2761
    %2789 = vmatprep.subr.mxu0 0.0
    %2790 = vmatpush1.msra.mxu0 0.0
    %2791 = vmatprep.subr.mxu0 0.0
    %2792 = vmatpush1.msra.mxu0 0.0
    %2793 = vmatprep.subr.mxu0 0.0
    %2794 = vmatpush1.msra.mxu0 0.0
    %2795 = vmatprep.subr.mxu0 0.0
    %2796 = vmatpush1.msra.mxu0 0.0
    %2797 = vmatprep.subr.mxu0 0.0
    %2798 = vmatpush1.msra.mxu0 0.0
    %2799 = vmatprep.subr.mxu0 0.0
    %2800 = vmatpush1.msra.mxu0 0.0
    %2801 = vmatprep.subr.mxu0 0.0
    %2802 = vmatpush1.msra.mxu0 0.0
    %2803 = vmatprep.subr.mxu0 0.0
    %2804 = vmatpush1.msra.mxu0 0.0
    %2805 = vmatprep.subr.mxu0 0.0
    %2806 = vmatpush1.msra.mxu0 0.0
    %2807 = vmatprep.subr.mxu0 0.0
    %2808 = vmatpush1.msra.mxu0 0.0
    %2809 = vmatprep.subr.mxu0 0.0
    %2810 = vmatpush1.msra.mxu0 0.0
    %2811 = vmatprep.subr.mxu0 0.0
    %2812 = vmatpush1.msra.mxu0 0.0
    %2813 = vmatprep.subr.mxu0 0.0
    %2814 = vmatpush1.msra.mxu0 0.0
    %2815 = vmatprep.subr.mxu0 0.0
    %2816 = vmatpush1.msra.mxu0 0.0
    %2817 = vmatprep.subr.mxu0 0.0
    %2818 = vmatpush1.msra.mxu0 0.0
    %2819 = vmatprep.subr.mxu0 0.0
    %2820 = vmatpush1.msra.mxu0 0.0
    %2821 = vmatprep.subr.mxu0 0.0
    %2822 = vmatpush1.msra.mxu0 0.0
    %2823 = vmatprep.subr.mxu0 0.0
    %2824 = vmatpush1.msra.mxu0 0.0
    %2825 = vmatprep.subr.mxu0 0.0
    %2826 = vmatpush1.msra.mxu0 0.0
    %2827 = vmatprep.subr.mxu0 0.0
    %2828 = vmatpush1.msra.mxu0 0.0
    %2829 = vmatprep.subr.mxu0 0.0
    %2830 = vmatpush1.msra.mxu0 0.0
    %2831 = vmatprep.subr.mxu0 0.0
    %2832 = vmatpush1.msra.mxu0 0.0
    %2833 = vmatprep.subr.mxu0 0.0
    %2834 = vmatpush1.msra.mxu0 0.0
    %2835 = vmatprep.subr.mxu0 0.0
    %2836 = vmatpush1.msra.mxu0 0.0
    %2837 = vmatprep.subr.mxu0 0.0
    %2838 = vmatpush1.msra.mxu0 0.0
    %2839 = vmatprep.subr.mxu0 0.0
    %2840 = vmatpush1.msra.mxu0 0.0
    %2841 = vmatprep.subr.mxu0 0.0
    %2842 = vmatpush1.msra.mxu0 0.0
    %2843 = vmatprep.subr.mxu0 0.0
    %2844 = vmatpush1.msra.mxu0 0.0
    %2845 = vmatprep.mubr.f32.mxu0 0.0
    %2846 = vmatmul.mubr.f32.gmra.mrb[0].mxu0 %v2770
    %v2847 = vpop.f32.mrb[0].mxu0
    %v2848 = vadd.f32 %v2767, %v2847
    %v2849 = vpop.f32.mrb[0].mxu0
    %2850 = vmatprep.mubr.f32.mxu0 0.0
    %2851 = vmatmul.mubr.f32.gmra.mrb[0].mxu0 %v2773
    %v2852 = vpop.f32.mrb[0].mxu0
    %v2853 = vadd.f32 %v2767, %v2852
    %v2854 = vpop.f32.mrb[0].mxu0
    %2855 = vmatprep.mubr.f32.mxu0 0.0
    %2856 = vmatmul.mubr.f32.gmra.mrb[0].mxu0 %v2776
    %v2857 = vpop.f32.mrb[0].mxu0
    %v2858 = vadd.f32 %v2767, %v2857
    %v2859 = vpop.f32.mrb[0].mxu0
    %2860 = vmatprep.mubr.f32.mxu0 0.0
    %2861 = vmatmul.mubr.f32.gmra.mrb[0].mxu0 %v2779
    %v2862 = vpop.f32.mrb[0].mxu0
    %v2863 = vadd.f32 %v2767, %v2862
    %v2864 = vpop.f32.mrb[0].mxu0
    %2865 = vdwg.mxu0
    %v2866 = vmul.f32 %v2848, 0.5
    %v2867 = vmul.f32 %v2853, 0.5
    %v2868 = vmul.f32 %v2858, 0.5
    %v2869 = vmul.f32 %v2863, 0.5
    %v2870 = vmul.f32 %v2848, 0.044715
    %v2871 = vmul.f32 %v2853, 0.044715
    %v2872 = vmul.f32 %v2858, 0.044715
    %v2873 = vmul.f32 %v2863, 0.044715
    %v2874 = vmul.f32 %v2870, %v2848
    %v2875 = vmul.f32 %v2871, %v2853
    %v2876 = vmul.f32 %v2872, %v2858
    %v2877 = vmul.f32 %v2873, %v2863
    %v2878 = vmul.f32 %v2874, %v2848
    %v2879 = vmul.f32 %v2875, %v2853
    %v2880 = vmul.f32 %v2876, %v2858
    %v2881 = vmul.f32 %v2877, %v2863
    %v2882 = vadd.f32 %v2848, %v2878
    %v2883 = vadd.f32 %v2853, %v2879
    %v2884 = vadd.f32 %v2858, %v2880
    %v2885 = vadd.f32 %v2863, %v2881
    %v2886 = vmul.f32 %v2882, 0.7978846
    %v2887 = vmul.f32 %v2883, 0.7978846
    %v2888 = vmul.f32 %v2884, 0.7978846
    %v2889 = vmul.f32 %v2885, 0.7978846
    %v2890 = vtanh.pop %v2886
    %v2891 = vtanh.pop %v2887
    %v2892 = vtanh.pop %v2888
    %v2893 = vtanh.pop %v2889
    %v2894 = vadd.f32 %v2890, 1.0
    %v2895 = vadd.f32 %v2891, 1.0
    %v2896 = vadd.f32 %v2892, 1.0
    %v2897 = vadd.f32 %v2893, 1.0
    %v2898 = vmul.f32 %v2866, %v2894
    %v2899 = vmul.f32 %v2867, %v2895
    %v2900 = vmul.f32 %v2868, %v2896
    %v2901 = vmul.f32 %v2869, %v2897
    %v2902 = vld [vmem:[%s14] sm:$0xff]
    %v2903 = vld [vmem:[%s14 + $0x8] sm:$0xff]
    %v2904 = vld [vmem:[%s14 + $0x10] sm:$0xff]
    %v2905 = vld [vmem:[%s14 + $0x18] sm:$0xff]
    %v2906 = vld [vmem:[%s14 + $0x20] sm:$0xff]
    %v2907 = vld [vmem:[%s14 + $0x28] sm:$0xff]
    %v2908 = vld [vmem:[%s14 + $0x30] sm:$0xff]
    %v2909 = vld [vmem:[%s14 + $0x38] sm:$0xff]
    %v2911 = vsel %vm105, %v2898, 0
    %v2914 = vsel %vm105, %v2899, 0
    %v2917 = vsel %vm105, %v2900, 0
    %v2920 = vsel %vm105, %v2901, 0
    %2922 = vmatprep.subr.mxu0 0.0
    %2923 = vmatpush1.msra.mxu0 %v2902
    %2924 = vmatprep.subr.mxu0 0.0
    %2925 = vmatpush1.msra.mxu0 %v2903
    %2926 = vmatprep.subr.mxu0 0.0
    %2927 = vmatpush1.msra.mxu0 %v2904
    %2928 = vmatprep.subr.mxu0 0.0
    %2929 = vmatpush1.msra.mxu0 %v2905
    %2930 = vmatprep.subr.mxu0 0.0
    %2931 = vmatpush1.msra.mxu0 %v2906
    %2932 = vmatprep.subr.mxu0 0.0
    %2933 = vmatpush1.msra.mxu0 %v2907
    %2934 = vmatprep.subr.mxu0 0.0
    %2935 = vmatpush1.msra.mxu0 %v2908
    %2936 = vmatprep.subr.mxu0 0.0
    %2937 = vmatpush1.msra.mxu0 %v2909
    %2938 = vmatprep.subr.mxu0 0.0
    %2939 = vmatpush1.msra.mxu0 0.0
    %2940 = vmatprep.subr.mxu0 0.0
    %2941 = vmatpush1.msra.mxu0 0.0
    %2942 = vmatprep.subr.mxu0 0.0
    %2943 = vmatpush1.msra.mxu0 0.0
    %2944 = vmatprep.subr.mxu0 0.0
    %2945 = vmatpush1.msra.mxu0 0.0
    %2946 = vmatprep.subr.mxu0 0.0
    %2947 = vmatpush1.msra.mxu0 0.0
    %2948 = vmatprep.subr.mxu0 0.0
    %2949 = vmatpush1.msra.mxu0 0.0
    %2950 = vmatprep.subr.mxu0 0.0
    %2951 = vmatpush1.msra.mxu0 0.0
    %2952 = vmatprep.subr.mxu0 0.0
    %2953 = vmatpush1.msra.mxu0 0.0
    %2954 = vmatprep.subr.mxu0 0.0
    %2955 = vmatpush1.msra.mxu0 0.0
    %2956 = vmatprep.subr.mxu0 0.0
    %2957 = vmatpush1.msra.mxu0 0.0
    %2958 = vmatprep.subr.mxu0 0.0
    %2959 = vmatpush1.msra.mxu0 0.0
    %2960 = vmatprep.subr.mxu0 0.0
    %2961 = vmatpush1.msra.mxu0 0.0
    %2962 = vmatprep.subr.mxu0 0.0
    %2963 = vmatpush1.msra.mxu0 0.0
    %2964 = vmatprep.subr.mxu0 0.0
    %2965 = vmatpush1.msra.mxu0 0.0
    %2966 = vmatprep.subr.mxu0 0.0
    %2967 = vmatpush1.msra.mxu0 0.0
    %2968 = vmatprep.subr.mxu0 0.0
    %2969 = vmatpush1.msra.mxu0 0.0
    %2970 = vmatprep.subr.mxu0 0.0
    %2971 = vmatpush1.msra.mxu0 0.0
    %2972 = vmatprep.subr.mxu0 0.0
    %2973 = vmatpush1.msra.mxu0 0.0
    %2974 = vmatprep.subr.mxu0 0.0
    %2975 = vmatpush1.msra.mxu0 0.0
    %2976 = vmatprep.subr.mxu0 0.0
    %2977 = vmatpush1.msra.mxu0 0.0
    %2978 = vmatprep.subr.mxu0 0.0
    %2979 = vmatpush1.msra.mxu0 0.0
    %2980 = vmatprep.subr.mxu0 0.0
    %2981 = vmatpush1.msra.mxu0 0.0
    %2982 = vmatprep.subr.mxu0 0.0
    %2983 = vmatpush1.msra.mxu0 0.0
    %2984 = vmatprep.subr.mxu0 0.0
    %2985 = vmatpush1.msra.mxu0 0.0
    %2986 = vmatprep.mubr.f32.mxu0 0.0
    %2987 = vmatmul.mubr.f32.gmra.mrb[0].mxu0 %v2911
    %v2988 = vpop.f32.mrb[0].mxu0
    %v2989 = vadd.f32 0.0, %v2988
    %v2990 = vpop.f32.mrb[0].mxu0
    %2991 = vmatprep.mubr.f32.mxu0 0.0
    %2992 = vmatmul.mubr.f32.gmra.mrb[0].mxu0 %v2914
    %v2993 = vpop.f32.mrb[0].mxu0
    %v2994 = vadd.f32 0.0, %v2993
    %v2995 = vpop.f32.mrb[0].mxu0
    %2996 = vmatprep.mubr.f32.mxu0 0.0
    %2997 = vmatmul.mubr.f32.gmra.mrb[0].mxu0 %v2917
    %v2998 = vpop.f32.mrb[0].mxu0
    %v2999 = vadd.f32 0.0, %v2998
    %v3000 = vpop.f32.mrb[0].mxu0
    %3001 = vmatprep.mubr.f32.mxu0 0.0
    %3002 = vmatmul.mubr.f32.gmra.mrb[0].mxu0 %v2920
    %v3003 = vpop.f32.mrb[0].mxu0
    %v3004 = vadd.f32 0.0, %v3003
    %v3005 = vpop.f32.mrb[0].mxu0
    %3006 = vdwg.mxu0
    %v3007 = vadd.f32 %v2680, %v2989
    %v3008 = vadd.f32 %v2681, %v2994
    %v3009 = vadd.f32 %v2682, %v2999
    %v3010 = vadd.f32 %v2683, %v3004
    %v3011 = vld [vmem:[%s15] sm:$0x1]
    %v3013 = vlaneseq
    %v3014 = vshrl.u32 %v3013, 7
    %v3015 = vsub.s32 0, %v3014
    %v3016 = vrot.slane %v3011, %v3015
    %v3018 = vadd.f32 %v3007, %v3016
    %v3019 = vadd.f32 %v3008, %v3016
    %v3020 = vadd.f32 %v3009, %v3016
    %v3021 = vadd.f32 %v3010, %v3016
    %s3022 = scalar_lea.vmem %s6, 32
    %v3023 = vld [vmem:[%s3022] sm:$0xff]
    %v3024 = vld [vmem:[%s3022 + $0x8] sm:$0xff]
    %v3025 = vld [vmem:[%s3022 + $0x10] sm:$0xff]
    %v3026 = vld [vmem:[%s3022 + $0x18] sm:$0xff]
    %s3027 = scalar_lea.vmem %s7, 1
    %v3028 = vld [vmem:[%s3027] sm:$0x1]
    %s3029 = scalar_lea.vmem %s8, 32
    %v3030 = vld [vmem:[%s3029] sm:$0xff]
    %v3031 = vld [vmem:[%s3029 + $0x8] sm:$0xff]
    %v3032 = vld [vmem:[%s3029 + $0x10] sm:$0xff]
    %v3033 = vld [vmem:[%s3029 + $0x18] sm:$0xff]
    %s3034 = scalar_lea.vmem %s9, 1
    %v3035 = vld [vmem:[%s3034] sm:$0x1]
    %s3036 = scalar_lea.vmem %s4, 1
    %v3037 = vld [vmem:[%s3036] sm:$0x1]
    %s3038 = scalar_lea.vmem %s5, 1
    %v3039 = vld [vmem:[%s3038] sm:$0x1]
    %v3040 = vsel %vm223, %v3018, 0.0
    %3041 = vadd.xlane.f32.xlu0 %v3040
    %v3042 = vpop.xlane.xlu0 %3041
    %v3043 = vsel %vm223, %v3019, 0.0
    %3044 = vadd.xlane.f32.xlu0 %v3043
    %v3045 = vpop.xlane.xlu0 %3044
    %v3046 = vsel %vm223, %v3020, 0.0
    %3047 = vadd.xlane.f32.xlu0 %v3046
    %v3048 = vpop.xlane.xlu0 %3047
    %v3049 = vsel %vm223, %v3021, 0.0
    %3050 = vadd.xlane.f32.xlu0 %v3049
    %v3051 = vpop.xlane.xlu0 %3050
    %v3052 = vmul.f32 %v3042, %v236
    %v3053 = vmul.f32 %v3045, %v236
    %v3054 = vmul.f32 %v3048, %v236
    %v3055 = vmul.f32 %v3051, %v236
    %v3056 = vsub.f32 %v3018, %v3052
    %v3057 = vsub.f32 %v3019, %v3053
    %v3058 = vsub.f32 %v3020, %v3054
    %v3059 = vsub.f32 %v3021, %v3055
    %v3060 = vmul.f32 %v3056, %v3056
    %v3061 = vmul.f32 %v3057, %v3057
    %v3062 = vmul.f32 %v3058, %v3058
    %v3063 = vmul.f32 %v3059, %v3059
    %v3064 = vsel %vm223, %v3060, 0.0
    %3065 = vadd.xlane.f32.xlu0 %v3064
    %v3066 = vpop.xlane.xlu0 %3065
    %v3067 = vsel %vm223, %v3061, 0.0
    %3068 = vadd.xlane.f32.xlu0 %v3067
    %v3069 = vpop.xlane.xlu0 %3068
    %v3070 = vsel %vm223, %v3062, 0.0
    %3071 = vadd.xlane.f32.xlu0 %v3070
    %v3072 = vpop.xlane.xlu0 %3071
    %v3073 = vsel %vm223, %v3063, 0.0
    %3074 = vadd.xlane.f32.xlu0 %v3073
    %v3075 = vpop.xlane.xlu0 %3074
    %v3076 = vmul.f32 %v3066, %v236
    %v3077 = vmul.f32 %v3069, %v236
    %v3078 = vmul.f32 %v3072, %v236
    %v3079 = vmul.f32 %v3075, %v236
    %v3080 = vadd.f32 %v3076, 1e-06
    %v3081 = vadd.f32 %v3077, 1e-06
    %v3082 = vadd.f32 %v3078, 1e-06
    %v3083 = vadd.f32 %v3079, 1e-06
    %v3084 = vrsqrt.pop %v3080
    %v3085 = vrsqrt.pop %v3081
    %v3086 = vrsqrt.pop %v3082
    %v3087 = vrsqrt.pop %v3083
    %v3088 = vmul.f32 %v3056, %v3084
    %v3089 = vmul.f32 %v3057, %v3085
    %v3090 = vmul.f32 %v3058, %v3086
    %v3091 = vmul.f32 %v3059, %v3087
    %v3093 = vlaneseq
    %v3094 = vshrl.u32 %v3093, 7
    %v3095 = vsub.s32 0, %v3094
    %v3096 = vrot.slane %v3037, %v3095
    %v3098 = vmul.f32 %v3088, %v3096
    %v3099 = vmul.f32 %v3089, %v3096
    %v3100 = vmul.f32 %v3090, %v3096
    %v3101 = vmul.f32 %v3091, %v3096
    %v3103 = vlaneseq
    %v3104 = vshrl.u32 %v3103, 7
    %v3105 = vsub.s32 0, %v3104
    %v3106 = vrot.slane %v3039, %v3105
    %v3108 = vadd.f32 %v3098, %v3106
    %v3109 = vadd.f32 %v3099, %v3106
    %v3110 = vadd.f32 %v3100, %v3106
    %v3111 = vadd.f32 %v3101, %v3106
    %v3113 = vlaneseq
    %v3114 = vshrl.u32 %v3113, 7
    %v3115 = vsub.s32 0, %v3114
    %v3116 = vrot.slane %v3028, %v3115
    %v3119 = vsel %vm223, %v3108, 0
    %v3122 = vsel %vm223, %v3109, 0
    %v3125 = vsel %vm223, %v3110, 0
    %v3128 = vsel %vm223, %v3111, 0
    %3130 = vmatprep.subr.mxu0 0.0
    %3131 = vmatpush1.msra.mxu0 %v3023
    %3132 = vmatprep.subr.mxu0 0.0
    %3133 = vmatpush1.msra.mxu0 %v3024
    %3134 = vmatprep.subr.mxu0 0.0
    %3135 = vmatpush1.msra.mxu0 %v3025
    %3136 = vmatprep.subr.mxu0 0.0
    %3137 = vmatpush1.msra.mxu0 %v3026
    %3138 = vmatprep.subr.mxu0 0.0
    %3139 = vmatpush1.msra.mxu0 0.0
    %3140 = vmatprep.subr.mxu0 0.0
    %3141 = vmatpush1.msra.mxu0 0.0
    %3142 = vmatprep.subr.mxu0 0.0
    %3143 = vmatpush1.msra.mxu0 0.0
    %3144 = vmatprep.subr.mxu0 0.0
    %3145 = vmatpush1.msra.mxu0 0.0
    %3146 = vmatprep.subr.mxu0 0.0
    %3147 = vmatpush1.msra.mxu0 0.0
    %3148 = vmatprep.subr.mxu0 0.0
    %3149 = vmatpush1.msra.mxu0 0.0
    %3150 = vmatprep.subr.mxu0 0.0
    %3151 = vmatpush1.msra.mxu0 0.0
    %3152 = vmatprep.subr.mxu0 0.0
    %3153 = vmatpush1.msra.mxu0 0.0
    %3154 = vmatprep.subr.mxu0 0.0
    %3155 = vmatpush1.msra.mxu0 0.0
    %3156 = vmatprep.subr.mxu0 0.0
    %3157 = vmatpush1.msra.mxu0 0.0
    %3158 = vmatprep.subr.mxu0 0.0
    %3159 = vmatpush1.msra.mxu0 0.0
    %3160 = vmatprep.subr.mxu0 0.0
    %3161 = vmatpush1.msra.mxu0 0.0
    %3162 = vmatprep.subr.mxu0 0.0
    %3163 = vmatpush1.msra.mxu0 0.0
    %3164 = vmatprep.subr.mxu0 0.0
    %3165 = vmatpush1.msra.mxu0 0.0
    %3166 = vmatprep.subr.mxu0 0.0
    %3167 = vmatpush1.msra.mxu0 0.0
    %3168 = vmatprep.subr.mxu0 0.0
    %3169 = vmatpush1.msra.mxu0 0.0
    %3170 = vmatprep.subr.mxu0 0.0
    %3171 = vmatpush1.msra.mxu0 0.0
    %3172 = vmatprep.subr.mxu0 0.0
    %3173 = vmatpush1.msra.mxu0 0.0
    %3174 = vmatprep.subr.mxu0 0.0
    %3175 = vmatpush1.msra.mxu0 0.0
    %3176 = vmatprep.subr.mxu0 0.0
    %3177 = vmatpush1.msra.mxu0 0.0
    %3178 = vmatprep.subr.mxu0 0.0
    %3179 = vmatpush1.msra.mxu0 0.0
    %3180 = vmatprep.subr.mxu0 0.0
    %3181 = vmatpush1.msra.mxu0 0.0
    %3182 = vmatprep.subr.mxu0 0.0
    %3183 = vmatpush1.msra.mxu0 0.0
    %3184 = vmatprep.subr.mxu0 0.0
    %3185 = vmatpush1.msra.mxu0 0.0
    %3186 = vmatprep.subr.mxu0 0.0
    %3187 = vmatpush1.msra.mxu0 0.0
    %3188 = vmatprep.subr.mxu0 0.0
    %3189 = vmatpush1.msra.mxu0 0.0
    %3190 = vmatprep.subr.mxu0 0.0
    %3191 = vmatpush1.msra.mxu0 0.0
    %3192 = vmatprep.subr.mxu0 0.0
    %3193 = vmatpush1.msra.mxu0 0.0
    %3194 = vmatprep.mubr.f32.mxu0 0.0
    %3195 = vmatmul.mubr.f32.gmra.mrb[0].mxu0 %v3119
    %v3196 = vpop.f32.mrb[0].mxu0
    %v3197 = vadd.f32 %v3116, %v3196
    %v3198 = vpop.f32.mrb[0].mxu0
    %3199 = vmatprep.mubr.f32.mxu0 0.0
    %3200 = vmatmul.mubr.f32.gmra.mrb[0].mxu0 %v3122
    %v3201 = vpop.f32.mrb[0].mxu0
    %v3202 = vadd.f32 %v3116, %v3201
    %v3203 = vpop.f32.mrb[0].mxu0
    %3204 = vmatprep.mubr.f32.mxu0 0.0
    %3205 = vmatmul.mubr.f32.gmra.mrb[0].mxu0 %v3125
    %v3206 = vpop.f32.mrb[0].mxu0
    %v3207 = vadd.f32 %v3116, %v3206
    %v3208 = vpop.f32.mrb[0].mxu0
    %3209 = vmatprep.mubr.f32.mxu0 0.0
    %3210 = vmatmul.mubr.f32.gmra.mrb[0].mxu0 %v3128
    %v3211 = vpop.f32.mrb[0].mxu0
    %v3212 = vadd.f32 %v3116, %v3211
    %v3213 = vpop.f32.mrb[0].mxu0
    %3214 = vdwg.mxu0
    %3217 = vrot.lane.b32.xlu0 %v3197, 96
    %v3218 = vpop.permute.xlu0 %3217
    %3219 = vrot.lane.b32.xlu0 %v3202, 96
    %v3220 = vpop.permute.xlu0 %3219
    %v3221 = vsel %vm406, %v3197, 0
    %v3223 = vsel %vm406, %v3202, 0
    %v3225 = vsel %vm406, %v3218, 0
    %v3227 = vsel %vm406, %v3220, 0
    %3229 = vmatprep.subr.mxu0 0.0
    %3230 = vmatpush1.xpose.msra.mxu0 %v3225
    %3231 = vmatprep.subr.mxu0 0.0
    %3232 = vmatpush1.xpose.msra.mxu0 %v3227
    %3233 = vmatprep.subr.mxu0 0.0
    %3234 = vmatpush1.xpose.msra.mxu0 0.0
    %3235 = vmatprep.subr.mxu0 0.0
    %3236 = vmatpush1.xpose.msra.mxu0 0.0
    %3237 = vmatprep.subr.mxu0 0.0
    %3238 = vmatpush1.xpose.msra.mxu0 0.0
    %3239 = vmatprep.subr.mxu0 0.0
    %3240 = vmatpush1.xpose.msra.mxu0 0.0
    %3241 = vmatprep.subr.mxu0 0.0
    %3242 = vmatpush1.xpose.msra.mxu0 0.0
    %3243 = vmatprep.subr.mxu0 0.0
    %3244 = vmatpush1.xpose.msra.mxu0 0.0
    %3245 = vmatprep.subr.mxu0 0.0
    %3246 = vmatpush1.xpose.msra.mxu0 0.0
    %3247 = vmatprep.subr.mxu0 0.0
    %3248 = vmatpush1.xpose.msra.mxu0 0.0
    %3249 = vmatprep.subr.mxu0 0.0
    %3250 = vmatpush1.xpose.msra.mxu0 0.0
    %3251 = vmatprep.subr.mxu0 0.0
    %3252 = vmatpush1.xpose.msra.mxu0 0.0
    %3253 = vmatprep.subr.mxu0 0.0
    %3254 = vmatpush1.xpose.msra.mxu0 0.0
    %3255 = vmatprep.subr.mxu0 0.0
    %3256 = vmatpush1.xpose.msra.mxu0 0.0
    %3257 = vmatprep.subr.mxu0 0.0
    %3258 = vmatpush1.xpose.msra.mxu0 0.0
    %3259 = vmatprep.subr.mxu0 0.0
    %3260 = vmatpush1.xpose.msra.mxu0 0.0
    %3261 = vmatprep.subr.mxu0 0.0
    %3262 = vmatpush1.xpose.msra.mxu0 0.0
    %3263 = vmatprep.subr.mxu0 0.0
    %3264 = vmatpush1.xpose.msra.mxu0 0.0
    %3265 = vmatprep.subr.mxu0 0.0
    %3266 = vmatpush1.xpose.msra.mxu0 0.0
    %3267 = vmatprep.subr.mxu0 0.0
    %3268 = vmatpush1.xpose.msra.mxu0 0.0
    %3269 = vmatprep.subr.mxu0 0.0
    %3270 = vmatpush1.xpose.msra.mxu0 0.0
    %3271 = vmatprep.subr.mxu0 0.0
    %3272 = vmatpush1.xpose.msra.mxu0 0.0
    %3273 = vmatprep.subr.mxu0 0.0
    %3274 = vmatpush1.xpose.msra.mxu0 0.0
    %3275 = vmatprep.subr.mxu0 0.0
    %3276 = vmatpush1.xpose.msra.mxu0 0.0
    %3277 = vmatprep.subr.mxu0 0.0
    %3278 = vmatpush1.xpose.msra.mxu0 0.0
    %3279 = vmatprep.subr.mxu0 0.0
    %3280 = vmatpush1.xpose.msra.mxu0 0.0
    %3281 = vmatprep.subr.mxu0 0.0
    %3282 = vmatpush1.xpose.msra.mxu0 0.0
    %3283 = vmatprep.subr.mxu0 0.0
    %3284 = vmatpush1.xpose.msra.mxu0 0.0
    %3285 = vmatprep.subr.mxu0 0.0
    %3286 = vmatpush1.xpose.msra.mxu0 0.0
    %3287 = vmatprep.subr.mxu0 0.0
    %3288 = vmatpush1.xpose.msra.mxu0 0.0
    %3289 = vmatprep.subr.mxu0 0.0
    %3290 = vmatpush1.xpose.msra.mxu0 0.0
    %3291 = vmatprep.subr.mxu0 0.0
    %3292 = vmatpush1.xpose.msra.mxu0 0.0
    %3293 = vmatprep.mubr.f32.mxu0 0.0
    %3294 = vmatmul.mubr.f32.gmra.mrb[0].mxu0 %v3221
    %v3295 = vpop.f32.mrb[0].mxu0
    %v3296 = vadd.f32 0.0, %v3295
    %v3297 = vpop.f32.mrb[0].mxu0
    %3298 = vmatprep.mubr.f32.mxu0 0.0
    %3299 = vmatmul.mubr.f32.gmra.mrb[0].mxu0 %v3223
    %v3300 = vpop.f32.mrb[0].mxu0
    %v3301 = vadd.f32 0.0, %v3300
    %v3302 = vpop.f32.mrb[0].mxu0
    %3303 = vdwg.mxu0
    %v3304 = vmul.f32 %v3296, 0.35355338
    %v3305 = vmul.f32 %v3301, 0.35355338
    %v3306 = vsel %vm492, %v3304, -inf
    %3307 = vmax.xlane.f32.xlu0 %v3306
    %v3308 = vpop.xlane.xlu0 %3307
    %v3309 = vsel %vm492, %v3305, -inf
    %3310 = vmax.xlane.f32.xlu0 %v3309
    %v3311 = vpop.xlane.xlu0 %3310
    %v3312 = vsub.f32 %v3304, %v3308
    %v3313 = vsub.f32 %v3305, %v3311
    %v3314 = vmul.f32 %v3312, 1.442695
    %v3315 = vpow.pop %v3314
    %v3316 = vmul.f32 %v3313, 1.442695
    %v3317 = vpow.pop %v3316
    %v3318 = vsel %vm492, %v3315, 0.0
    %3319 = vadd.xlane.f32.xlu0 %v3318
    %v3320 = vpop.xlane.xlu0 %3319
    %v3321 = vsel %vm492, %v3317, 0.0
    %3322 = vadd.xlane.f32.xlu0 %v3321
    %v3323 = vpop.xlane.xlu0 %3322
    %v3324 = vrcp.pop %v3320
    %v3325 = vrcp.pop %v3323
    %v3326 = vmul.f32 %v3315, %v3324
    %v3327 = vmul.f32 %v3317, %v3325
    %3328 = vrot.lane.b32.xlu0 %v3197, 64
    %v3329 = vpop.permute.xlu0 %3328
    %3330 = vrot.lane.b32.xlu0 %v3202, 64
    %v3331 = vpop.permute.xlu0 %3330
    %v3335 = vsel %vm492, %v3326, 0
    %v3338 = vsel %vm492, %v3327, 0
    %3340 = vmatprep.subr.mxu0 0.0
    %3341 = vmatpush1.msra.mxu0 %v3329
    %3342 = vmatprep.subr.mxu0 0.0
    %3343 = vmatpush1.msra.mxu0 %v3331
    %3344 = vmatprep.subr.mxu0 0.0
    %3345 = vmatpush1.msra.mxu0 0.0
    %3346 = vmatprep.subr.mxu0 0.0
    %3347 = vmatpush1.msra.mxu0 0.0
    %3348 = vmatprep.subr.mxu0 0.0
    %3349 = vmatpush1.msra.mxu0 0.0
    %3350 = vmatprep.subr.mxu0 0.0
    %3351 = vmatpush1.msra.mxu0 0.0
    %3352 = vmatprep.subr.mxu0 0.0
    %3353 = vmatpush1.msra.mxu0 0.0
    %3354 = vmatprep.subr.mxu0 0.0
    %3355 = vmatpush1.msra.mxu0 0.0
    %3356 = vmatprep.subr.mxu0 0.0
    %3357 = vmatpush1.msra.mxu0 0.0
    %3358 = vmatprep.subr.mxu0 0.0
    %3359 = vmatpush1.msra.mxu0 0.0
    %3360 = vmatprep.subr.mxu0 0.0
    %3361 = vmatpush1.msra.mxu0 0.0
    %3362 = vmatprep.subr.mxu0 0.0
    %3363 = vmatpush1.msra.mxu0 0.0
    %3364 = vmatprep.subr.mxu0 0.0
    %3365 = vmatpush1.msra.mxu0 0.0
    %3366 = vmatprep.subr.mxu0 0.0
    %3367 = vmatpush1.msra.mxu0 0.0
    %3368 = vmatprep.subr.mxu0 0.0
    %3369 = vmatpush1.msra.mxu0 0.0
    %3370 = vmatprep.subr.mxu0 0.0
    %3371 = vmatpush1.msra.mxu0 0.0
    %3372 = vmatprep.subr.mxu0 0.0
    %3373 = vmatpush1.msra.mxu0 0.0
    %3374 = vmatprep.subr.mxu0 0.0
    %3375 = vmatpush1.msra.mxu0 0.0
    %3376 = vmatprep.subr.mxu0 0.0
    %3377 = vmatpush1.msra.mxu0 0.0
    %3378 = vmatprep.subr.mxu0 0.0
    %3379 = vmatpush1.msra.mxu0 0.0
    %3380 = vmatprep.subr.mxu0 0.0
    %3381 = vmatpush1.msra.mxu0 0.0
    %3382 = vmatprep.subr.mxu0 0.0
    %3383 = vmatpush1.msra.mxu0 0.0
    %3384 = vmatprep.subr.mxu0 0.0
    %3385 = vmatpush1.msra.mxu0 0.0
    %3386 = vmatprep.subr.mxu0 0.0
    %3387 = vmatpush1.msra.mxu0 0.0
    %3388 = vmatprep.subr.mxu0 0.0
    %3389 = vmatpush1.msra.mxu0 0.0
    %3390 = vmatprep.subr.mxu0 0.0
    %3391 = vmatpush1.msra.mxu0 0.0
    %3392 = vmatprep.subr.mxu0 0.0
    %3393 = vmatpush1.msra.mxu0 0.0
    %3394 = vmatprep.subr.mxu0 0.0
    %3395 = vmatpush1.msra.mxu0 0.0
    %3396 = vmatprep.subr.mxu0 0.0
    %3397 = vmatpush1.msra.mxu0 0.0
    %3398 = vmatprep.subr.mxu0 0.0
    %3399 = vmatpush1.msra.mxu0 0.0
    %3400 = vmatprep.subr.mxu0 0.0
    %3401 = vmatpush1.msra.mxu0 0.0
    %3402 = vmatprep.subr.mxu0 0.0
    %3403 = vmatpush1.msra.mxu0 0.0
    %3404 = vmatprep.mubr.f32.mxu0 0.0
    %3405 = vmatmul.mubr.f32.gmra.mrb[0].mxu0 %v3335
    %v3406 = vpop.f32.mrb[0].mxu0
    %v3407 = vadd.f32 0.0, %v3406
    %v3408 = vpop.f32.mrb[0].mxu0
    %3409 = vmatprep.mubr.f32.mxu0 0.0
    %3410 = vmatmul.mubr.f32.gmra.mrb[0].mxu0 %v3338
    %v3411 = vpop.f32.mrb[0].mxu0
    %v3412 = vadd.f32 0.0, %v3411
    %v3413 = vpop.f32.mrb[0].mxu0
    %3414 = vdwg.mxu0
    %3415 = vrot.lane.b32.xlu0 %v3197, 120
    %v3416 = vpop.permute.xlu0 %3415
    %3417 = vrot.lane.b32.xlu0 %v3202, 120
    %v3418 = vpop.permute.xlu0 %3417
    %3419 = vrot.lane.b32.xlu0 %v3197, 88
    %v3420 = vpop.permute.xlu0 %3419
    %3421 = vrot.lane.b32.xlu0 %v3202, 88
    %v3422 = vpop.permute.xlu0 %3421
    %v3423 = vsel %vm406, %v3416, 0
    %v3425 = vsel %vm406, %v3418, 0
    %v3427 = vsel %vm406, %v3420, 0
    %v3429 = vsel %vm406, %v3422, 0
    %3431 = vmatprep.subr.mxu0 0.0
    %3432 = vmatpush1.xpose.msra.mxu0 %v3427
    %3433 = vmatprep.subr.mxu0 0.0
    %3434 = vmatpush1.xpose.msra.mxu0 %v3429
    %3435 = vmatprep.subr.mxu0 0.0
    %3436 = vmatpush1.xpose.msra.mxu0 0.0
    %3437 = vmatprep.subr.mxu0 0.0
    %3438 = vmatpush1.xpose.msra.mxu0 0.0
    %3439 = vmatprep.subr.mxu0 0.0
    %3440 = vmatpush1.xpose.msra.mxu0 0.0
    %3441 = vmatprep.subr.mxu0 0.0
    %3442 = vmatpush1.xpose.msra.mxu0 0.0
    %3443 = vmatprep.subr.mxu0 0.0
    %3444 = vmatpush1.xpose.msra.mxu0 0.0
    %3445 = vmatprep.subr.mxu0 0.0
    %3446 = vmatpush1.xpose.msra.mxu0 0.0
    %3447 = vmatprep.subr.mxu0 0.0
    %3448 = vmatpush1.xpose.msra.mxu0 0.0
    %3449 = vmatprep.subr.mxu0 0.0
    %3450 = vmatpush1.xpose.msra.mxu0 0.0
    %3451 = vmatprep.subr.mxu0 0.0
    %3452 = vmatpush1.xpose.msra.mxu0 0.0
    %3453 = vmatprep.subr.mxu0 0.0
    %3454 = vmatpush1.xpose.msra.mxu0 0.0
    %3455 = vmatprep.subr.mxu0 0.0
    %3456 = vmatpush1.xpose.msra.mxu0 0.0
    %3457 = vmatprep.subr.mxu0 0.0
    %3458 = vmatpush1.xpose.msra.mxu0 0.0
    %3459 = vmatprep.subr.mxu0 0.0
    %3460 = vmatpush1.xpose.msra.mxu0 0.0
    %3461 = vmatprep.subr.mxu0 0.0
    %3462 = vmatpush1.xpose.msra.mxu0 0.0
    %3463 = vmatprep.subr.mxu0 0.0
    %3464 = vmatpush1.xpose.msra.mxu0 0.0
    %3465 = vmatprep.subr.mxu0 0.0
    %3466 = vmatpush1.xpose.msra.mxu0 0.0
    %3467 = vmatprep.subr.mxu0 0.0
    %3468 = vmatpush1.xpose.msra.mxu0 0.0
    %3469 = vmatprep.subr.mxu0 0.0
    %3470 = vmatpush1.xpose.msra.mxu0 0.0
    %3471 = vmatprep.subr.mxu0 0.0
    %3472 = vmatpush1.xpose.msra.mxu0 0.0
    %3473 = vmatprep.subr.mxu0 0.0
    %3474 = vmatpush1.xpose.msra.mxu0 0.0
    %3475 = vmatprep.subr.mxu0 0.0
    %3476 = vmatpush1.xpose.msra.mxu0 0.0
    %3477 = vmatprep.subr.mxu0 0.0
    %3478 = vmatpush1.xpose.msra.mxu0 0.0
    %3479 = vmatprep.subr.mxu0 0.0
    %3480 = vmatpush1.xpose.msra.mxu0 0.0
    %3481 = vmatprep.subr.mxu0 0.0
    %3482 = vmatpush1.xpose.msra.mxu0 0.0
    %3483 = vmatprep.subr.mxu0 0.0
    %3484 = vmatpush1.xpose.msra.mxu0 0.0
    %3485 = vmatprep.subr.mxu0 0.0
    %3486 = vmatpush1.xpose.msra.mxu0 0.0
    %3487 = vmatprep.subr.mxu0 0.0
    %3488 = vmatpush1.xpose.msra.mxu0 0.0
    %3489 = vmatprep.subr.mxu0 0.0
    %3490 = vmatpush1.xpose.msra.mxu0 0.0
    %3491 = vmatprep.subr.mxu0 0.0
    %3492 = vmatpush1.xpose.msra.mxu0 0.0
    %3493 = vmatprep.subr.mxu0 0.0
    %3494 = vmatpush1.xpose.msra.mxu0 0.0
    %3495 = vmatprep.mubr.f32.mxu0 0.0
    %3496 = vmatmul.mubr.f32.gmra.mrb[0].mxu0 %v3423
    %v3497 = vpop.f32.mrb[0].mxu0
    %v3498 = vadd.f32 0.0, %v3497
    %v3499 = vpop.f32.mrb[0].mxu0
    %3500 = vmatprep.mubr.f32.mxu0 0.0
    %3501 = vmatmul.mubr.f32.gmra.mrb[0].mxu0 %v3425
    %v3502 = vpop.f32.mrb[0].mxu0
    %v3503 = vadd.f32 0.0, %v3502
    %v3504 = vpop.f32.mrb[0].mxu0
    %3505 = vdwg.mxu0
    %v3506 = vmul.f32 %v3498, 0.35355338
    %v3507 = vmul.f32 %v3503, 0.35355338
    %v3508 = vsel %vm492, %v3506, -inf
    %3509 = vmax.xlane.f32.xlu0 %v3508
    %v3510 = vpop.xlane.xlu0 %3509
    %v3511 = vsel %vm492, %v3507, -inf
    %3512 = vmax.xlane.f32.xlu0 %v3511
    %v3513 = vpop.xlane.xlu0 %3512
    %v3514 = vsub.f32 %v3506, %v3510
    %v3515 = vsub.f32 %v3507, %v3513
    %v3516 = vmul.f32 %v3514, 1.442695
    %v3517 = vpow.pop %v3516
    %v3518 = vmul.f32 %v3515, 1.442695
    %v3519 = vpow.pop %v3518
    %v3520 = vsel %vm492, %v3517, 0.0
    %3521 = vadd.xlane.f32.xlu0 %v3520
    %v3522 = vpop.xlane.xlu0 %3521
    %v3523 = vsel %vm492, %v3519, 0.0
    %3524 = vadd.xlane.f32.xlu0 %v3523
    %v3525 = vpop.xlane.xlu0 %3524
    %v3526 = vrcp.pop %v3522
    %v3527 = vrcp.pop %v3525
    %v3528 = vmul.f32 %v3517, %v3526
    %v3529 = vmul.f32 %v3519, %v3527
    %3530 = vrot.lane.b32.xlu0 %v3197, 56
    %v3531 = vpop.permute.xlu0 %3530
    %3532 = vrot.lane.b32.xlu0 %v3202, 56
    %v3533 = vpop.permute.xlu0 %3532
    %v3537 = vsel %vm492, %v3528, 0
    %v3540 = vsel %vm492, %v3529, 0
    %3542 = vmatprep.subr.mxu0 0.0
    %3543 = vmatpush1.msra.mxu0 %v3531
    %3544 = vmatprep.subr.mxu0 0.0
    %3545 = vmatpush1.msra.mxu0 %v3533
    %3546 = vmatprep.subr.mxu0 0.0
    %3547 = vmatpush1.msra.mxu0 0.0
    %3548 = vmatprep.subr.mxu0 0.0
    %3549 = vmatpush1.msra.mxu0 0.0
    %3550 = vmatprep.subr.mxu0 0.0
    %3551 = vmatpush1.msra.mxu0 0.0
    %3552 = vmatprep.subr.mxu0 0.0
    %3553 = vmatpush1.msra.mxu0 0.0
    %3554 = vmatprep.subr.mxu0 0.0
    %3555 = vmatpush1.msra.mxu0 0.0
    %3556 = vmatprep.subr.mxu0 0.0
    %3557 = vmatpush1.msra.mxu0 0.0
    %3558 = vmatprep.subr.mxu0 0.0
    %3559 = vmatpush1.msra.mxu0 0.0
    %3560 = vmatprep.subr.mxu0 0.0
    %3561 = vmatpush1.msra.mxu0 0.0
    %3562 = vmatprep.subr.mxu0 0.0
    %3563 = vmatpush1.msra.mxu0 0.0
    %3564 = vmatprep.subr.mxu0 0.0
    %3565 = vmatpush1.msra.mxu0 0.0
    %3566 = vmatprep.subr.mxu0 0.0
    %3567 = vmatpush1.msra.mxu0 0.0
    %3568 = vmatprep.subr.mxu0 0.0
    %3569 = vmatpush1.msra.mxu0 0.0
    %3570 = vmatprep.subr.mxu0 0.0
    %3571 = vmatpush1.msra.mxu0 0.0
    %3572 = vmatprep.subr.mxu0 0.0
    %3573 = vmatpush1.msra.mxu0 0.0
    %3574 = vmatprep.subr.mxu0 0.0
    %3575 = vmatpush1.msra.mxu0 0.0
    %3576 = vmatprep.subr.mxu0 0.0
    %3577 = vmatpush1.msra.mxu0 0.0
    %3578 = vmatprep.subr.mxu0 0.0
    %3579 = vmatpush1.msra.mxu0 0.0
    %3580 = vmatprep.subr.mxu0 0.0
    %3581 = vmatpush1.msra.mxu0 0.0
    %3582 = vmatprep.subr.mxu0 0.0
    %3583 = vmatpush1.msra.mxu0 0.0
    %3584 = vmatprep.subr.mxu0 0.0
    %3585 = vmatpush1.msra.mxu0 0.0
    %3586 = vmatprep.subr.mxu0 0.0
    %3587 = vmatpush1.msra.mxu0 0.0
    %3588 = vmatprep.subr.mxu0 0.0
    %3589 = vmatpush1.msra.mxu0 0.0
    %3590 = vmatprep.subr.mxu0 0.0
    %3591 = vmatpush1.msra.mxu0 0.0
    %3592 = vmatprep.subr.mxu0 0.0
    %3593 = vmatpush1.msra.mxu0 0.0
    %3594 = vmatprep.subr.mxu0 0.0
    %3595 = vmatpush1.msra.mxu0 0.0
    %3596 = vmatprep.subr.mxu0 0.0
    %3597 = vmatpush1.msra.mxu0 0.0
    %3598 = vmatprep.subr.mxu0 0.0
    %3599 = vmatpush1.msra.mxu0 0.0
    %3600 = vmatprep.subr.mxu0 0.0
    %3601 = vmatpush1.msra.mxu0 0.0
    %3602 = vmatprep.subr.mxu0 0.0
    %3603 = vmatpush1.msra.mxu0 0.0
    %3604 = vmatprep.subr.mxu0 0.0
    %3605 = vmatpush1.msra.mxu0 0.0
    %3606 = vmatprep.mubr.f32.mxu0 0.0
    %3607 = vmatmul.mubr.f32.gmra.mrb[0].mxu0 %v3537
    %v3608 = vpop.f32.mrb[0].mxu0
    %v3609 = vadd.f32 0.0, %v3608
    %v3610 = vpop.f32.mrb[0].mxu0
    %3611 = vmatprep.mubr.f32.mxu0 0.0
    %3612 = vmatmul.mubr.f32.gmra.mrb[0].mxu0 %v3540
    %v3613 = vpop.f32.mrb[0].mxu0
    %v3614 = vadd.f32 0.0, %v3613
    %v3615 = vpop.f32.mrb[0].mxu0
    %3616 = vdwg.mxu0
    %v3618 = vsel %vm406, %v3609, 0
    %v3621 = vsel %vm406, %v3614, 0
    %3623 = vmatprep.subr.mxu0 0.0
    %3624 = vmatpush1.msra.mxu0 %v3031
    %3625 = vmatprep.subr.mxu0 0.0
    %3626 = vmatpush1.msra.mxu0 0.0
    %3627 = vmatprep.subr.mxu0 0.0
    %3628 = vmatpush1.msra.mxu0 0.0
    %3629 = vmatprep.subr.mxu0 0.0
    %3630 = vmatpush1.msra.mxu0 0.0
    %3631 = vmatprep.subr.mxu0 0.0
    %3632 = vmatpush1.msra.mxu0 0.0
    %3633 = vmatprep.subr.mxu0 0.0
    %3634 = vmatpush1.msra.mxu0 0.0
    %3635 = vmatprep.subr.mxu0 0.0
    %3636 = vmatpush1.msra.mxu0 0.0
    %3637 = vmatprep.subr.mxu0 0.0
    %3638 = vmatpush1.msra.mxu0 0.0
    %3639 = vmatprep.subr.mxu0 0.0
    %3640 = vmatpush1.msra.mxu0 0.0
    %3641 = vmatprep.subr.mxu0 0.0
    %3642 = vmatpush1.msra.mxu0 0.0
    %3643 = vmatprep.subr.mxu0 0.0
    %3644 = vmatpush1.msra.mxu0 0.0
    %3645 = vmatprep.subr.mxu0 0.0
    %3646 = vmatpush1.msra.mxu0 0.0
    %3647 = vmatprep.subr.mxu0 0.0
    %3648 = vmatpush1.msra.mxu0 0.0
    %3649 = vmatprep.subr.mxu0 0.0
    %3650 = vmatpush1.msra.mxu0 0.0
    %3651 = vmatprep.subr.mxu0 0.0
    %3652 = vmatpush1.msra.mxu0 0.0
    %3653 = vmatprep.subr.mxu0 0.0
    %3654 = vmatpush1.msra.mxu0 0.0
    %3655 = vmatprep.subr.mxu0 0.0
    %3656 = vmatpush1.msra.mxu0 0.0
    %3657 = vmatprep.subr.mxu0 0.0
    %3658 = vmatpush1.msra.mxu0 0.0
    %3659 = vmatprep.subr.mxu0 0.0
    %3660 = vmatpush1.msra.mxu0 0.0
    %3661 = vmatprep.subr.mxu0 0.0
    %3662 = vmatpush1.msra.mxu0 0.0
    %3663 = vmatprep.subr.mxu0 0.0
    %3664 = vmatpush1.msra.mxu0 0.0
    %3665 = vmatprep.subr.mxu0 0.0
    %3666 = vmatpush1.msra.mxu0 0.0
    %3667 = vmatprep.subr.mxu0 0.0
    %3668 = vmatpush1.msra.mxu0 0.0
    %3669 = vmatprep.subr.mxu0 0.0
    %3670 = vmatpush1.msra.mxu0 0.0
    %3671 = vmatprep.subr.mxu0 0.0
    %3672 = vmatpush1.msra.mxu0 0.0
    %3673 = vmatprep.subr.mxu0 0.0
    %3674 = vmatpush1.msra.mxu0 0.0
    %3675 = vmatprep.subr.mxu0 0.0
    %3676 = vmatpush1.msra.mxu0 0.0
    %3677 = vmatprep.subr.mxu0 0.0
    %3678 = vmatpush1.msra.mxu0 0.0
    %3679 = vmatprep.subr.mxu0 0.0
    %3680 = vmatpush1.msra.mxu0 0.0
    %3681 = vmatprep.subr.mxu0 0.0
    %3682 = vmatpush1.msra.mxu0 0.0
    %3683 = vmatprep.subr.mxu0 0.0
    %3684 = vmatpush1.msra.mxu0 0.0
    %3685 = vmatprep.subr.mxu0 0.0
    %3686 = vmatpush1.msra.mxu0 0.0
    %3687 = vmatprep.mubr.f32.mxu0 0.0
    %3688 = vmatmul.mubr.f32.gmra.mrb[0].mxu0 %v3618
    %v3689 = vpop.f32.mrb[0].mxu0
    %v3690 = vadd.f32 0.0, %v3689
    %v3691 = vpop.f32.mrb[0].mxu0
    %3692 = vmatprep.mubr.f32.mxu0 0.0
    %3693 = vmatmul.mubr.f32.gmra.mrb[0].mxu0 %v3621
    %v3694 = vpop.f32.mrb[0].mxu0
    %v3695 = vadd.f32 0.0, %v3694
    %v3696 = vpop.f32.mrb[0].mxu0
    %3697 = vdwg.mxu0
    %v3699 = vsel %vm406, %v3407, 0
    %v3702 = vsel %vm406, %v3412, 0
    %3704 = vmatprep.subr.mxu0 0.0
    %3705 = vmatpush1.msra.mxu0 %v3030
    %3706 = vmatprep.subr.mxu0 0.0
    %3707 = vmatpush1.msra.mxu0 0.0
    %3708 = vmatprep.subr.mxu0 0.0
    %3709 = vmatpush1.msra.mxu0 0.0
    %3710 = vmatprep.subr.mxu0 0.0
    %3711 = vmatpush1.msra.mxu0 0.0
    %3712 = vmatprep.subr.mxu0 0.0
    %3713 = vmatpush1.msra.mxu0 0.0
    %3714 = vmatprep.subr.mxu0 0.0
    %3715 = vmatpush1.msra.mxu0 0.0
    %3716 = vmatprep.subr.mxu0 0.0
    %3717 = vmatpush1.msra.mxu0 0.0
    %3718 = vmatprep.subr.mxu0 0.0
    %3719 = vmatpush1.msra.mxu0 0.0
    %3720 = vmatprep.subr.mxu0 0.0
    %3721 = vmatpush1.msra.mxu0 0.0
    %3722 = vmatprep.subr.mxu0 0.0
    %3723 = vmatpush1.msra.mxu0 0.0
    %3724 = vmatprep.subr.mxu0 0.0
    %3725 = vmatpush1.msra.mxu0 0.0
    %3726 = vmatprep.subr.mxu0 0.0
    %3727 = vmatpush1.msra.mxu0 0.0
    %3728 = vmatprep.subr.mxu0 0.0
    %3729 = vmatpush1.msra.mxu0 0.0
    %3730 = vmatprep.subr.mxu0 0.0
    %3731 = vmatpush1.msra.mxu0 0.0
    %3732 = vmatprep.subr.mxu0 0.0
    %3733 = vmatpush1.msra.mxu0 0.0
    %3734 = vmatprep.subr.mxu0 0.0
    %3735 = vmatpush1.msra.mxu0 0.0
    %3736 = vmatprep.subr.mxu0 0.0
    %3737 = vmatpush1.msra.mxu0 0.0
    %3738 = vmatprep.subr.mxu0 0.0
    %3739 = vmatpush1.msra.mxu0 0.0
    %3740 = vmatprep.subr.mxu0 0.0
    %3741 = vmatpush1.msra.mxu0 0.0
    %3742 = vmatprep.subr.mxu0 0.0
    %3743 = vmatpush1.msra.mxu0 0.0
    %3744 = vmatprep.subr.mxu0 0.0
    %3745 = vmatpush1.msra.mxu0 0.0
    %3746 = vmatprep.subr.mxu0 0.0
    %3747 = vmatpush1.msra.mxu0 0.0
    %3748 = vmatprep.subr.mxu0 0.0
    %3749 = vmatpush1.msra.mxu0 0.0
    %3750 = vmatprep.subr.mxu0 0.0
    %3751 = vmatpush1.msra.mxu0 0.0
    %3752 = vmatprep.subr.mxu0 0.0
    %3753 = vmatpush1.msra.mxu0 0.0
    %3754 = vmatprep.subr.mxu0 0.0
    %3755 = vmatpush1.msra.mxu0 0.0
    %3756 = vmatprep.subr.mxu0 0.0
    %3757 = vmatpush1.msra.mxu0 0.0
    %3758 = vmatprep.subr.mxu0 0.0
    %3759 = vmatpush1.msra.mxu0 0.0
    %3760 = vmatprep.subr.mxu0 0.0
    %3761 = vmatpush1.msra.mxu0 0.0
    %3762 = vmatprep.subr.mxu0 0.0
    %3763 = vmatpush1.msra.mxu0 0.0
    %3764 = vmatprep.subr.mxu0 0.0
    %3765 = vmatpush1.msra.mxu0 0.0
    %3766 = vmatprep.subr.mxu0 0.0
    %3767 = vmatpush1.msra.mxu0 0.0
    %3768 = vmatprep.mubr.f32.mxu0 0.0
    %3769 = vmatmul.mubr.f32.gmra.mrb[0].mxu0 %v3699
    %v3770 = vpop.f32.mrb[0].mxu0
    %v3771 = vadd.f32 %v3690, %v3770
    %v3772 = vpop.f32.mrb[0].mxu0
    %3773 = vmatprep.mubr.f32.mxu0 0.0
    %3774 = vmatmul.mubr.f32.gmra.mrb[0].mxu0 %v3702
    %v3775 = vpop.f32.mrb[0].mxu0
    %v3776 = vadd.f32 %v3695, %v3775
    %v3777 = vpop.f32.mrb[0].mxu0
    %3778 = vdwg.mxu0
    %3779 = vrot.lane.b32.xlu0 %v3197, 112
    %v3780 = vpop.permute.xlu0 %3779
    %3781 = vrot.lane.b32.xlu0 %v3202, 112
    %v3782 = vpop.permute.xlu0 %3781
    %3783 = vrot.lane.b32.xlu0 %v3197, 80
    %v3784 = vpop.permute.xlu0 %3783
    %3785 = vrot.lane.b32.xlu0 %v3202, 80
    %v3786 = vpop.permute.xlu0 %3785
    %v3787 = vsel %vm406, %v3780, 0
    %v3789 = vsel %vm406, %v3782, 0
    %v3791 = vsel %vm406, %v3784, 0
    %v3793 = vsel %vm406, %v3786, 0
    %3795 = vmatprep.subr.mxu0 0.0
    %3796 = vmatpush1.xpose.msra.mxu0 %v3791
    %3797 = vmatprep.subr.mxu0 0.0
    %3798 = vmatpush1.xpose.msra.mxu0 %v3793
    %3799 = vmatprep.subr.mxu0 0.0
    %3800 = vmatpush1.xpose.msra.mxu0 0.0
    %3801 = vmatprep.subr.mxu0 0.0
    %3802 = vmatpush1.xpose.msra.mxu0 0.0
    %3803 = vmatprep.subr.mxu0 0.0
    %3804 = vmatpush1.xpose.msra.mxu0 0.0
    %3805 = vmatprep.subr.mxu0 0.0
    %3806 = vmatpush1.xpose.msra.mxu0 0.0
    %3807 = vmatprep.subr.mxu0 0.0
    %3808 = vmatpush1.xpose.msra.mxu0 0.0
    %3809 = vmatprep.subr.mxu0 0.0
    %3810 = vmatpush1.xpose.msra.mxu0 0.0
    %3811 = vmatprep.subr.mxu0 0.0
    %3812 = vmatpush1.xpose.msra.mxu0 0.0
    %3813 = vmatprep.subr.mxu0 0.0
    %3814 = vmatpush1.xpose.msra.mxu0 0.0
    %3815 = vmatprep.subr.mxu0 0.0
    %3816 = vmatpush1.xpose.msra.mxu0 0.0
    %3817 = vmatprep.subr.mxu0 0.0
    %3818 = vmatpush1.xpose.msra.mxu0 0.0
    %3819 = vmatprep.subr.mxu0 0.0
    %3820 = vmatpush1.xpose.msra.mxu0 0.0
    %3821 = vmatprep.subr.mxu0 0.0
    %3822 = vmatpush1.xpose.msra.mxu0 0.0
    %3823 = vmatprep.subr.mxu0 0.0
    %3824 = vmatpush1.xpose.msra.mxu0 0.0
    %3825 = vmatprep.subr.mxu0 0.0
    %3826 = vmatpush1.xpose.msra.mxu0 0.0
    %3827 = vmatprep.subr.mxu0 0.0
    %3828 = vmatpush1.xpose.msra.mxu0 0.0
    %3829 = vmatprep.subr.mxu0 0.0
    %3830 = vmatpush1.xpose.msra.mxu0 0.0
    %3831 = vmatprep.subr.mxu0 0.0
    %3832 = vmatpush1.xpose.msra.mxu0 0.0
    %3833 = vmatprep.subr.mxu0 0.0
    %3834 = vmatpush1.xpose.msra.mxu0 0.0
    %3835 = vmatprep.subr.mxu0 0.0
    %3836 = vmatpush1.xpose.msra.mxu0 0.0
    %3837 = vmatprep.subr.mxu0 0.0
    %3838 = vmatpush1.xpose.msra.mxu0 0.0
    %3839 = vmatprep.subr.mxu0 0.0
    %3840 = vmatpush1.xpose.msra.mxu0 0.0
    %3841 = vmatprep.subr.mxu0 0.0
    %3842 = vmatpush1.xpose.msra.mxu0 0.0
    %3843 = vmatprep.subr.mxu0 0.0
    %3844 = vmatpush1.xpose.msra.mxu0 0.0
    %3845 = vmatprep.subr.mxu0 0.0
    %3846 = vmatpush1.xpose.msra.mxu0 0.0
    %3847 = vmatprep.subr.mxu0 0.0
    %3848 = vmatpush1.xpose.msra.mxu0 0.0
    %3849 = vmatprep.subr.mxu0 0.0
    %3850 = vmatpush1.xpose.msra.mxu0 0.0
    %3851 = vmatprep.subr.mxu0 0.0
    %3852 = vmatpush1.xpose.msra.mxu0 0.0
    %3853 = vmatprep.subr.mxu0 0.0
    %3854 = vmatpush1.xpose.msra.mxu0 0.0
    %3855 = vmatprep.subr.mxu0 0.0
    %3856 = vmatpush1.xpose.msra.mxu0 0.0
    %3857 = vmatprep.subr.mxu0 0.0
    %3858 = vmatpush1.xpose.msra.mxu0 0.0
    %3859 = vmatprep.mubr.f32.mxu0 0.0
    %3860 = vmatmul.mubr.f32.gmra.mrb[0].mxu0 %v3787
    %v3861 = vpop.f32.mrb[0].mxu0
    %v3862 = vadd.f32 0.0, %v3861
    %v3863 = vpop.f32.mrb[0].mxu0
    %3864 = vmatprep.mubr.f32.mxu0 0.0
    %3865 = vmatmul.mubr.f32.gmra.mrb[0].mxu0 %v3789
    %v3866 = vpop.f32.mrb[0].mxu0
    %v3867 = vadd.f32 0.0, %v3866
    %v3868 = vpop.f32.mrb[0].mxu0
    %3869 = vdwg.mxu0
    %v3870 = vmul.f32 %v3862, 0.35355338
    %v3871 = vmul.f32 %v3867, 0.35355338
    %v3872 = vsel %vm492, %v3870, -inf
    %3873 = vmax.xlane.f32.xlu0 %v3872
    %v3874 = vpop.xlane.xlu0 %3873
    %v3875 = vsel %vm492, %v3871, -inf
    %3876 = vmax.xlane.f32.xlu0 %v3875
    %v3877 = vpop.xlane.xlu0 %3876
    %v3878 = vsub.f32 %v3870, %v3874
    %v3879 = vsub.f32 %v3871, %v3877
    %v3880 = vmul.f32 %v3878, 1.442695
    %v3881 = vpow.pop %v3880
    %v3882 = vmul.f32 %v3879, 1.442695
    %v3883 = vpow.pop %v3882
    %v3884 = vsel %vm492, %v3881, 0.0
    %3885 = vadd.xlane.f32.xlu0 %v3884
    %v3886 = vpop.xlane.xlu0 %3885
    %v3887 = vsel %vm492, %v3883, 0.0
    %3888 = vadd.xlane.f32.xlu0 %v3887
    %v3889 = vpop.xlane.xlu0 %3888
    %v3890 = vrcp.pop %v3886
    %v3891 = vrcp.pop %v3889
    %v3892 = vmul.f32 %v3881, %v3890
    %v3893 = vmul.f32 %v3883, %v3891
    %3894 = vrot.lane.b32.xlu0 %v3197, 48
    %v3895 = vpop.permute.xlu0 %3894
    %3896 = vrot.lane.b32.xlu0 %v3202, 48
    %v3897 = vpop.permute.xlu0 %3896
    %v3901 = vsel %vm492, %v3892, 0
    %v3904 = vsel %vm492, %v3893, 0
    %3906 = vmatprep.subr.mxu0 0.0
    %3907 = vmatpush1.msra.mxu0 %v3895
    %3908 = vmatprep.subr.mxu0 0.0
    %3909 = vmatpush1.msra.mxu0 %v3897
    %3910 = vmatprep.subr.mxu0 0.0
    %3911 = vmatpush1.msra.mxu0 0.0
    %3912 = vmatprep.subr.mxu0 0.0
    %3913 = vmatpush1.msra.mxu0 0.0
    %3914 = vmatprep.subr.mxu0 0.0
    %3915 = vmatpush1.msra.mxu0 0.0
    %3916 = vmatprep.subr.mxu0 0.0
    %3917 = vmatpush1.msra.mxu0 0.0
    %3918 = vmatprep.subr.mxu0 0.0
    %3919 = vmatpush1.msra.mxu0 0.0
    %3920 = vmatprep.subr.mxu0 0.0
    %3921 = vmatpush1.msra.mxu0 0.0
    %3922 = vmatprep.subr.mxu0 0.0
    %3923 = vmatpush1.msra.mxu0 0.0
    %3924 = vmatprep.subr.mxu0 0.0
    %3925 = vmatpush1.msra.mxu0 0.0
    %3926 = vmatprep.subr.mxu0 0.0
    %3927 = vmatpush1.msra.mxu0 0.0
    %3928 = vmatprep.subr.mxu0 0.0
    %3929 = vmatpush1.msra.mxu0 0.0
    %3930 = vmatprep.subr.mxu0 0.0
    %3931 = vmatpush1.msra.mxu0 0.0
    %3932 = vmatprep.subr.mxu0 0.0
    %3933 = vmatpush1.msra.mxu0 0.0
    %3934 = vmatprep.subr.mxu0 0.0
    %3935 = vmatpush1.msra.mxu0 0.0
    %3936 = vmatprep.subr.mxu0 0.0
    %3937 = vmatpush1.msra.mxu0 0.0
    %3938 = vmatprep.subr.mxu0 0.0
    %3939 = vmatpush1.msra.mxu0 0.0
    %3940 = vmatprep.subr.mxu0 0.0
    %3941 = vmatpush1.msra.mxu0 0.0
    %3942 = vmatprep.subr.mxu0 0.0
    %3943 = vmatpush1.msra.mxu0 0.0
    %3944 = vmatprep.subr.mxu0 0.0
    %3945 = vmatpush1.msra.mxu0 0.0
    %3946 = vmatprep.subr.mxu0 0.0
    %3947 = vmatpush1.msra.mxu0 0.0
    %3948 = vmatprep.subr.mxu0 0.0
    %3949 = vmatpush1.msra.mxu0 0.0
    %3950 = vmatprep.subr.mxu0 0.0
    %3951 = vmatpush1.msra.mxu0 0.0
    %3952 = vmatprep.subr.mxu0 0.0
    %3953 = vmatpush1.msra.mxu0 0.0
    %3954 = vmatprep.subr.mxu0 0.0
    %3955 = vmatpush1.msra.mxu0 0.0
    %3956 = vmatprep.subr.mxu0 0.0
    %3957 = vmatpush1.msra.mxu0 0.0
    %3958 = vmatprep.subr.mxu0 0.0
    %3959 = vmatpush1.msra.mxu0 0.0
    %3960 = vmatprep.subr.mxu0 0.0
    %3961 = vmatpush1.msra.mxu0 0.0
    %3962 = vmatprep.subr.mxu0 0.0
    %3963 = vmatpush1.msra.mxu0 0.0
    %3964 = vmatprep.subr.mxu0 0.0
    %3965 = vmatpush1.msra.mxu0 0.0
    %3966 = vmatprep.subr.mxu0 0.0
    %3967 = vmatpush1.msra.mxu0 0.0
    %3968 = vmatprep.subr.mxu0 0.0
    %3969 = vmatpush1.msra.mxu0 0.0
    %3970 = vmatprep.mubr.f32.mxu0 0.0
    %3971 = vmatmul.mubr.f32.gmra.mrb[0].mxu0 %v3901
    %v3972 = vpop.f32.mrb[0].mxu0
    %v3973 = vadd.f32 0.0, %v3972
    %v3974 = vpop.f32.mrb[0].mxu0
    %3975 = vmatprep.mubr.f32.mxu0 0.0
    %3976 = vmatmul.mubr.f32.gmra.mrb[0].mxu0 %v3904
    %v3977 = vpop.f32.mrb[0].mxu0
    %v3978 = vadd.f32 0.0, %v3977
    %v3979 = vpop.f32.mrb[0].mxu0
    %3980 = vdwg.mxu0
    %v3982 = vsel %vm406, %v3973, 0
    %v3985 = vsel %vm406, %v3978, 0
    %3987 = vmatprep.subr.mxu0 0.0
    %3988 = vmatpush1.msra.mxu0 %v3032
    %3989 = vmatprep.subr.mxu0 0.0
    %3990 = vmatpush1.msra.mxu0 0.0
    %3991 = vmatprep.subr.mxu0 0.0
    %3992 = vmatpush1.msra.mxu0 0.0
    %3993 = vmatprep.subr.mxu0 0.0
    %3994 = vmatpush1.msra.mxu0 0.0
    %3995 = vmatprep.subr.mxu0 0.0
    %3996 = vmatpush1.msra.mxu0 0.0
    %3997 = vmatprep.subr.mxu0 0.0
    %3998 = vmatpush1.msra.mxu0 0.0
    %3999 = vmatprep.subr.mxu0 0.0
    %4000 = vmatpush1.msra.mxu0 0.0
    %4001 = vmatprep.subr.mxu0 0.0
    %4002 = vmatpush1.msra.mxu0 0.0
    %4003 = vmatprep.subr.mxu0 0.0
    %4004 = vmatpush1.msra.mxu0 0.0
    %4005 = vmatprep.subr.mxu0 0.0
    %4006 = vmatpush1.msra.mxu0 0.0
    %4007 = vmatprep.subr.mxu0 0.0
    %4008 = vmatpush1.msra.mxu0 0.0
    %4009 = vmatprep.subr.mxu0 0.0
    %4010 = vmatpush1.msra.mxu0 0.0
    %4011 = vmatprep.subr.mxu0 0.0
    %4012 = vmatpush1.msra.mxu0 0.0
    %4013 = vmatprep.subr.mxu0 0.0
    %4014 = vmatpush1.msra.mxu0 0.0
    %4015 = vmatprep.subr.mxu0 0.0
    %4016 = vmatpush1.msra.mxu0 0.0
    %4017 = vmatprep.subr.mxu0 0.0
    %4018 = vmatpush1.msra.mxu0 0.0
    %4019 = vmatprep.subr.mxu0 0.0
    %4020 = vmatpush1.msra.mxu0 0.0
    %4021 = vmatprep.subr.mxu0 0.0
    %4022 = vmatpush1.msra.mxu0 0.0
    %4023 = vmatprep.subr.mxu0 0.0
    %4024 = vmatpush1.msra.mxu0 0.0
    %4025 = vmatprep.subr.mxu0 0.0
    %4026 = vmatpush1.msra.mxu0 0.0
    %4027 = vmatprep.subr.mxu0 0.0
    %4028 = vmatpush1.msra.mxu0 0.0
    %4029 = vmatprep.subr.mxu0 0.0
    %4030 = vmatpush1.msra.mxu0 0.0
    %4031 = vmatprep.subr.mxu0 0.0
    %4032 = vmatpush1.msra.mxu0 0.0
    %4033 = vmatprep.subr.mxu0 0.0
    %4034 = vmatpush1.msra.mxu0 0.0
    %4035 = vmatprep.subr.mxu0 0.0
    %4036 = vmatpush1.msra.mxu0 0.0
    %4037 = vmatprep.subr.mxu0 0.0
    %4038 = vmatpush1.msra.mxu0 0.0
    %4039 = vmatprep.subr.mxu0 0.0
    %4040 = vmatpush1.msra.mxu0 0.0
    %4041 = vmatprep.subr.mxu0 0.0
    %4042 = vmatpush1.msra.mxu0 0.0
    %4043 = vmatprep.subr.mxu0 0.0
    %4044 = vmatpush1.msra.mxu0 0.0
    %4045 = vmatprep.subr.mxu0 0.0
    %4046 = vmatpush1.msra.mxu0 0.0
    %4047 = vmatprep.subr.mxu0 0.0
    %4048 = vmatpush1.msra.mxu0 0.0
    %4049 = vmatprep.subr.mxu0 0.0
    %4050 = vmatpush1.msra.mxu0 0.0
    %4051 = vmatprep.mubr.f32.mxu0 0.0
    %4052 = vmatmul.mubr.f32.gmra.mrb[0].mxu0 %v3982
    %v4053 = vpop.f32.mrb[0].mxu0
    %v4054 = vadd.f32 0.0, %v4053
    %v4055 = vpop.f32.mrb[0].mxu0
    %4056 = vmatprep.mubr.f32.mxu0 0.0
    %4057 = vmatmul.mubr.f32.gmra.mrb[0].mxu0 %v3985
    %v4058 = vpop.f32.mrb[0].mxu0
    %v4059 = vadd.f32 0.0, %v4058
    %v4060 = vpop.f32.mrb[0].mxu0
    %4061 = vdwg.mxu0
    %v4062 = vadd.f32 %v3771, %v4054
    %v4063 = vadd.f32 %v3776, %v4059
    %4064 = vrot.lane.b32.xlu0 %v3197, 104
    %v4065 = vpop.permute.xlu0 %4064
    %4066 = vrot.lane.b32.xlu0 %v3202, 104
    %v4067 = vpop.permute.xlu0 %4066
    %4068 = vrot.lane.b32.xlu0 %v3197, 72
    %v4069 = vpop.permute.xlu0 %4068
    %4070 = vrot.lane.b32.xlu0 %v3202, 72
    %v4071 = vpop.permute.xlu0 %4070
    %v4072 = vsel %vm406, %v4065, 0
    %v4074 = vsel %vm406, %v4067, 0
    %v4076 = vsel %vm406, %v4069, 0
    %v4078 = vsel %vm406, %v4071, 0
    %4080 = vmatprep.subr.mxu0 0.0
    %4081 = vmatpush1.xpose.msra.mxu0 %v4076
    %4082 = vmatprep.subr.mxu0 0.0
    %4083 = vmatpush1.xpose.msra.mxu0 %v4078
    %4084 = vmatprep.subr.mxu0 0.0
    %4085 = vmatpush1.xpose.msra.mxu0 0.0
    %4086 = vmatprep.subr.mxu0 0.0
    %4087 = vmatpush1.xpose.msra.mxu0 0.0
    %4088 = vmatprep.subr.mxu0 0.0
    %4089 = vmatpush1.xpose.msra.mxu0 0.0
    %4090 = vmatprep.subr.mxu0 0.0
    %4091 = vmatpush1.xpose.msra.mxu0 0.0
    %4092 = vmatprep.subr.mxu0 0.0
    %4093 = vmatpush1.xpose.msra.mxu0 0.0
    %4094 = vmatprep.subr.mxu0 0.0
    %4095 = vmatpush1.xpose.msra.mxu0 0.0
    %4096 = vmatprep.subr.mxu0 0.0
    %4097 = vmatpush1.xpose.msra.mxu0 0.0
    %4098 = vmatprep.subr.mxu0 0.0
    %4099 = vmatpush1.xpose.msra.mxu0 0.0
    %4100 = vmatprep.subr.mxu0 0.0
    %4101 = vmatpush1.xpose.msra.mxu0 0.0
    %4102 = vmatprep.subr.mxu0 0.0
    %4103 = vmatpush1.xpose.msra.mxu0 0.0
    %4104 = vmatprep.subr.mxu0 0.0
    %4105 = vmatpush1.xpose.msra.mxu0 0.0
    %4106 = vmatprep.subr.mxu0 0.0
    %4107 = vmatpush1.xpose.msra.mxu0 0.0
    %4108 = vmatprep.subr.mxu0 0.0
    %4109 = vmatpush1.xpose.msra.mxu0 0.0
    %4110 = vmatprep.subr.mxu0 0.0
    %4111 = vmatpush1.xpose.msra.mxu0 0.0
    %4112 = vmatprep.subr.mxu0 0.0
    %4113 = vmatpush1.xpose.msra.mxu0 0.0
    %4114 = vmatprep.subr.mxu0 0.0
    %4115 = vmatpush1.xpose.msra.mxu0 0.0
    %4116 = vmatprep.subr.mxu0 0.0
    %4117 = vmatpush1.xpose.msra.mxu0 0.0
    %4118 = vmatprep.subr.mxu0 0.0
    %4119 = vmatpush1.xpose.msra.mxu0 0.0
    %4120 = vmatprep.subr.mxu0 0.0
    %4121 = vmatpush1.xpose.msra.mxu0 0.0
    %4122 = vmatprep.subr.mxu0 0.0
    %4123 = vmatpush1.xpose.msra.mxu0 0.0
    %4124 = vmatprep.subr.mxu0 0.0
    %4125 = vmatpush1.xpose.msra.mxu0 0.0
    %4126 = vmatprep.subr.mxu0 0.0
    %4127 = vmatpush1.xpose.msra.mxu0 0.0
    %4128 = vmatprep.subr.mxu0 0.0
    %4129 = vmatpush1.xpose.msra.mxu0 0.0
    %4130 = vmatprep.subr.mxu0 0.0
    %4131 = vmatpush1.xpose.msra.mxu0 0.0
    %4132 = vmatprep.subr.mxu0 0.0
    %4133 = vmatpush1.xpose.msra.mxu0 0.0
    %4134 = vmatprep.subr.mxu0 0.0
    %4135 = vmatpush1.xpose.msra.mxu0 0.0
    %4136 = vmatprep.subr.mxu0 0.0
    %4137 = vmatpush1.xpose.msra.mxu0 0.0
    %4138 = vmatprep.subr.mxu0 0.0
    %4139 = vmatpush1.xpose.msra.mxu0 0.0
    %4140 = vmatprep.subr.mxu0 0.0
    %4141 = vmatpush1.xpose.msra.mxu0 0.0
    %4142 = vmatprep.subr.mxu0 0.0
    %4143 = vmatpush1.xpose.msra.mxu0 0.0
    %4144 = vmatprep.mubr.f32.mxu0 0.0
    %4145 = vmatmul.mubr.f32.gmra.mrb[0].mxu0 %v4072
    %v4146 = vpop.f32.mrb[0].mxu0
    %v4147 = vadd.f32 0.0, %v4146
    %v4148 = vpop.f32.mrb[0].mxu0
    %4149 = vmatprep.mubr.f32.mxu0 0.0
    %4150 = vmatmul.mubr.f32.gmra.mrb[0].mxu0 %v4074
    %v4151 = vpop.f32.mrb[0].mxu0
    %v4152 = vadd.f32 0.0, %v4151
    %v4153 = vpop.f32.mrb[0].mxu0
    %4154 = vdwg.mxu0
    %v4155 = vmul.f32 %v4147, 0.35355338
    %v4156 = vmul.f32 %v4152, 0.35355338
    %v4157 = vsel %vm492, %v4155, -inf
    %4158 = vmax.xlane.f32.xlu0 %v4157
    %v4159 = vpop.xlane.xlu0 %4158
    %v4160 = vsel %vm492, %v4156, -inf
    %4161 = vmax.xlane.f32.xlu0 %v4160
    %v4162 = vpop.xlane.xlu0 %4161
    %v4163 = vsub.f32 %v4155, %v4159
    %v4164 = vsub.f32 %v4156, %v4162
    %v4165 = vmul.f32 %v4163, 1.442695
    %v4166 = vpow.pop %v4165
    %v4167 = vmul.f32 %v4164, 1.442695
    %v4168 = vpow.pop %v4167
    %v4169 = vsel %vm492, %v4166, 0.0
    %4170 = vadd.xlane.f32.xlu0 %v4169
    %v4171 = vpop.xlane.xlu0 %4170
    %v4172 = vsel %vm492, %v4168, 0.0
    %4173 = vadd.xlane.f32.xlu0 %v4172
    %v4174 = vpop.xlane.xlu0 %4173
    %v4175 = vrcp.pop %v4171
    %v4176 = vrcp.pop %v4174
    %v4177 = vmul.f32 %v4166, %v4175
    %v4178 = vmul.f32 %v4168, %v4176
    %4179 = vrot.lane.b32.xlu0 %v3197, 40
    %v4180 = vpop.permute.xlu0 %4179
    %4181 = vrot.lane.b32.xlu0 %v3202, 40
    %v4182 = vpop.permute.xlu0 %4181
    %v4186 = vsel %vm492, %v4177, 0
    %v4189 = vsel %vm492, %v4178, 0
    %4191 = vmatprep.subr.mxu0 0.0
    %4192 = vmatpush1.msra.mxu0 %v4180
    %4193 = vmatprep.subr.mxu0 0.0
    %4194 = vmatpush1.msra.mxu0 %v4182
    %4195 = vmatprep.subr.mxu0 0.0
    %4196 = vmatpush1.msra.mxu0 0.0
    %4197 = vmatprep.subr.mxu0 0.0
    %4198 = vmatpush1.msra.mxu0 0.0
    %4199 = vmatprep.subr.mxu0 0.0
    %4200 = vmatpush1.msra.mxu0 0.0
    %4201 = vmatprep.subr.mxu0 0.0
    %4202 = vmatpush1.msra.mxu0 0.0
    %4203 = vmatprep.subr.mxu0 0.0
    %4204 = vmatpush1.msra.mxu0 0.0
    %4205 = vmatprep.subr.mxu0 0.0
    %4206 = vmatpush1.msra.mxu0 0.0
    %4207 = vmatprep.subr.mxu0 0.0
    %4208 = vmatpush1.msra.mxu0 0.0
    %4209 = vmatprep.subr.mxu0 0.0
    %4210 = vmatpush1.msra.mxu0 0.0
    %4211 = vmatprep.subr.mxu0 0.0
    %4212 = vmatpush1.msra.mxu0 0.0
    %4213 = vmatprep.subr.mxu0 0.0
    %4214 = vmatpush1.msra.mxu0 0.0
    %4215 = vmatprep.subr.mxu0 0.0
    %4216 = vmatpush1.msra.mxu0 0.0
    %4217 = vmatprep.subr.mxu0 0.0
    %4218 = vmatpush1.msra.mxu0 0.0
    %4219 = vmatprep.subr.mxu0 0.0
    %4220 = vmatpush1.msra.mxu0 0.0
    %4221 = vmatprep.subr.mxu0 0.0
    %4222 = vmatpush1.msra.mxu0 0.0
    %4223 = vmatprep.subr.mxu0 0.0
    %4224 = vmatpush1.msra.mxu0 0.0
    %4225 = vmatprep.subr.mxu0 0.0
    %4226 = vmatpush1.msra.mxu0 0.0
    %4227 = vmatprep.subr.mxu0 0.0
    %4228 = vmatpush1.msra.mxu0 0.0
    %4229 = vmatprep.subr.mxu0 0.0
    %4230 = vmatpush1.msra.mxu0 0.0
    %4231 = vmatprep.subr.mxu0 0.0
    %4232 = vmatpush1.msra.mxu0 0.0
    %4233 = vmatprep.subr.mxu0 0.0
    %4234 = vmatpush1.msra.mxu0 0.0
    %4235 = vmatprep.subr.mxu0 0.0
    %4236 = vmatpush1.msra.mxu0 0.0
    %4237 = vmatprep.subr.mxu0 0.0
    %4238 = vmatpush1.msra.mxu0 0.0
    %4239 = vmatprep.subr.mxu0 0.0
    %4240 = vmatpush1.msra.mxu0 0.0
    %4241 = vmatprep.subr.mxu0 0.0
    %4242 = vmatpush1.msra.mxu0 0.0
    %4243 = vmatprep.subr.mxu0 0.0
    %4244 = vmatpush1.msra.mxu0 0.0
    %4245 = vmatprep.subr.mxu0 0.0
    %4246 = vmatpush1.msra.mxu0 0.0
    %4247 = vmatprep.subr.mxu0 0.0
    %4248 = vmatpush1.msra.mxu0 0.0
    %4249 = vmatprep.subr.mxu0 0.0
    %4250 = vmatpush1.msra.mxu0 0.0
    %4251 = vmatprep.subr.mxu0 0.0
    %4252 = vmatpush1.msra.mxu0 0.0
    %4253 = vmatprep.subr.mxu0 0.0
    %4254 = vmatpush1.msra.mxu0 0.0
    %4255 = vmatprep.mubr.f32.mxu0 0.0
    %4256 = vmatmul.mubr.f32.gmra.mrb[0].mxu0 %v4186
    %v4257 = vpop.f32.mrb[0].mxu0
    %v4258 = vadd.f32 0.0, %v4257
    %v4259 = vpop.f32.mrb[0].mxu0
    %4260 = vmatprep.mubr.f32.mxu0 0.0
    %4261 = vmatmul.mubr.f32.gmra.mrb[0].mxu0 %v4189
    %v4262 = vpop.f32.mrb[0].mxu0
    %v4263 = vadd.f32 0.0, %v4262
    %v4264 = vpop.f32.mrb[0].mxu0
    %4265 = vdwg.mxu0
    %v4267 = vsel %vm406, %v4258, 0
    %v4270 = vsel %vm406, %v4263, 0
    %4272 = vmatprep.subr.mxu0 0.0
    %4273 = vmatpush1.msra.mxu0 %v3033
    %4274 = vmatprep.subr.mxu0 0.0
    %4275 = vmatpush1.msra.mxu0 0.0
    %4276 = vmatprep.subr.mxu0 0.0
    %4277 = vmatpush1.msra.mxu0 0.0
    %4278 = vmatprep.subr.mxu0 0.0
    %4279 = vmatpush1.msra.mxu0 0.0
    %4280 = vmatprep.subr.mxu0 0.0
    %4281 = vmatpush1.msra.mxu0 0.0
    %4282 = vmatprep.subr.mxu0 0.0
    %4283 = vmatpush1.msra.mxu0 0.0
    %4284 = vmatprep.subr.mxu0 0.0
    %4285 = vmatpush1.msra.mxu0 0.0
    %4286 = vmatprep.subr.mxu0 0.0
    %4287 = vmatpush1.msra.mxu0 0.0
    %4288 = vmatprep.subr.mxu0 0.0
    %4289 = vmatpush1.msra.mxu0 0.0
    %4290 = vmatprep.subr.mxu0 0.0
    %4291 = vmatpush1.msra.mxu0 0.0
    %4292 = vmatprep.subr.mxu0 0.0
    %4293 = vmatpush1.msra.mxu0 0.0
    %4294 = vmatprep.subr.mxu0 0.0
    %4295 = vmatpush1.msra.mxu0 0.0
    %4296 = vmatprep.subr.mxu0 0.0
    %4297 = vmatpush1.msra.mxu0 0.0
    %4298 = vmatprep.subr.mxu0 0.0
    %4299 = vmatpush1.msra.mxu0 0.0
    %4300 = vmatprep.subr.mxu0 0.0
    %4301 = vmatpush1.msra.mxu0 0.0
    %4302 = vmatprep.subr.mxu0 0.0
    %4303 = vmatpush1.msra.mxu0 0.0
    %4304 = vmatprep.subr.mxu0 0.0
    %4305 = vmatpush1.msra.mxu0 0.0
    %4306 = vmatprep.subr.mxu0 0.0
    %4307 = vmatpush1.msra.mxu0 0.0
    %4308 = vmatprep.subr.mxu0 0.0
    %4309 = vmatpush1.msra.mxu0 0.0
    %4310 = vmatprep.subr.mxu0 0.0
    %4311 = vmatpush1.msra.mxu0 0.0
    %4312 = vmatprep.subr.mxu0 0.0
    %4313 = vmatpush1.msra.mxu0 0.0
    %4314 = vmatprep.subr.mxu0 0.0
    %4315 = vmatpush1.msra.mxu0 0.0
    %4316 = vmatprep.subr.mxu0 0.0
    %4317 = vmatpush1.msra.mxu0 0.0
    %4318 = vmatprep.subr.mxu0 0.0
    %4319 = vmatpush1.msra.mxu0 0.0
    %4320 = vmatprep.subr.mxu0 0.0
    %4321 = vmatpush1.msra.mxu0 0.0
    %4322 = vmatprep.subr.mxu0 0.0
    %4323 = vmatpush1.msra.mxu0 0.0
    %4324 = vmatprep.subr.mxu0 0.0
    %4325 = vmatpush1.msra.mxu0 0.0
    %4326 = vmatprep.subr.mxu0 0.0
    %4327 = vmatpush1.msra.mxu0 0.0
    %4328 = vmatprep.subr.mxu0 0.0
    %4329 = vmatpush1.msra.mxu0 0.0
    %4330 = vmatprep.subr.mxu0 0.0
    %4331 = vmatpush1.msra.mxu0 0.0
    %4332 = vmatprep.subr.mxu0 0.0
    %4333 = vmatpush1.msra.mxu0 0.0
    %4334 = vmatprep.subr.mxu0 0.0
    %4335 = vmatpush1.msra.mxu0 0.0
    %4336 = vmatprep.mubr.f32.mxu0 0.0
    %4337 = vmatmul.mubr.f32.gmra.mrb[0].mxu0 %v4267
    %v4338 = vpop.f32.mrb[0].mxu0
    %v4339 = vadd.f32 0.0, %v4338
    %v4340 = vpop.f32.mrb[0].mxu0
    %4341 = vmatprep.mubr.f32.mxu0 0.0
    %4342 = vmatmul.mubr.f32.gmra.mrb[0].mxu0 %v4270
    %v4343 = vpop.f32.mrb[0].mxu0
    %v4344 = vadd.f32 0.0, %v4343
    %v4345 = vpop.f32.mrb[0].mxu0
    %4346 = vdwg.mxu0
    %v4347 = vadd.f32 %v4062, %v4339
    %v4348 = vadd.f32 %v4063, %v4344
    %4351 = vrot.lane.b32.xlu0 %v3207, 96
    %v4352 = vpop.permute.xlu0 %4351
    %4353 = vrot.lane.b32.xlu0 %v3212, 96
    %v4354 = vpop.permute.xlu0 %4353
    %v4355 = vsel %vm406, %v3207, 0
    %v4357 = vsel %vm406, %v3212, 0
    %v4359 = vsel %vm406, %v4352, 0
    %v4361 = vsel %vm406, %v4354, 0
    %4363 = vmatprep.subr.mxu0 0.0
    %4364 = vmatpush1.xpose.msra.mxu0 %v4359
    %4365 = vmatprep.subr.mxu0 0.0
    %4366 = vmatpush1.xpose.msra.mxu0 %v4361
    %4367 = vmatprep.subr.mxu0 0.0
    %4368 = vmatpush1.xpose.msra.mxu0 0.0
    %4369 = vmatprep.subr.mxu0 0.0
    %4370 = vmatpush1.xpose.msra.mxu0 0.0
    %4371 = vmatprep.subr.mxu0 0.0
    %4372 = vmatpush1.xpose.msra.mxu0 0.0
    %4373 = vmatprep.subr.mxu0 0.0
    %4374 = vmatpush1.xpose.msra.mxu0 0.0
    %4375 = vmatprep.subr.mxu0 0.0
    %4376 = vmatpush1.xpose.msra.mxu0 0.0
    %4377 = vmatprep.subr.mxu0 0.0
    %4378 = vmatpush1.xpose.msra.mxu0 0.0
    %4379 = vmatprep.subr.mxu0 0.0
    %4380 = vmatpush1.xpose.msra.mxu0 0.0
    %4381 = vmatprep.subr.mxu0 0.0
    %4382 = vmatpush1.xpose.msra.mxu0 0.0
    %4383 = vmatprep.subr.mxu0 0.0
    %4384 = vmatpush1.xpose.msra.mxu0 0.0
    %4385 = vmatprep.subr.mxu0 0.0
    %4386 = vmatpush1.xpose.msra.mxu0 0.0
    %4387 = vmatprep.subr.mxu0 0.0
    %4388 = vmatpush1.xpose.msra.mxu0 0.0
    %4389 = vmatprep.subr.mxu0 0.0
    %4390 = vmatpush1.xpose.msra.mxu0 0.0
    %4391 = vmatprep.subr.mxu0 0.0
    %4392 = vmatpush1.xpose.msra.mxu0 0.0
    %4393 = vmatprep.subr.mxu0 0.0
    %4394 = vmatpush1.xpose.msra.mxu0 0.0
    %4395 = vmatprep.subr.mxu0 0.0
    %4396 = vmatpush1.xpose.msra.mxu0 0.0
    %4397 = vmatprep.subr.mxu0 0.0
    %4398 = vmatpush1.xpose.msra.mxu0 0.0
    %4399 = vmatprep.subr.mxu0 0.0
    %4400 = vmatpush1.xpose.msra.mxu0 0.0
    %4401 = vmatprep.subr.mxu0 0.0
    %4402 = vmatpush1.xpose.msra.mxu0 0.0
    %4403 = vmatprep.subr.mxu0 0.0
    %4404 = vmatpush1.xpose.msra.mxu0 0.0
    %4405 = vmatprep.subr.mxu0 0.0
    %4406 = vmatpush1.xpose.msra.mxu0 0.0
    %4407 = vmatprep.subr.mxu0 0.0
    %4408 = vmatpush1.xpose.msra.mxu0 0.0
    %4409 = vmatprep.subr.mxu0 0.0
    %4410 = vmatpush1.xpose.msra.mxu0 0.0
    %4411 = vmatprep.subr.mxu0 0.0
    %4412 = vmatpush1.xpose.msra.mxu0 0.0
    %4413 = vmatprep.subr.mxu0 0.0
    %4414 = vmatpush1.xpose.msra.mxu0 0.0
    %4415 = vmatprep.subr.mxu0 0.0
    %4416 = vmatpush1.xpose.msra.mxu0 0.0
    %4417 = vmatprep.subr.mxu0 0.0
    %4418 = vmatpush1.xpose.msra.mxu0 0.0
    %4419 = vmatprep.subr.mxu0 0.0
    %4420 = vmatpush1.xpose.msra.mxu0 0.0
    %4421 = vmatprep.subr.mxu0 0.0
    %4422 = vmatpush1.xpose.msra.mxu0 0.0
    %4423 = vmatprep.subr.mxu0 0.0
    %4424 = vmatpush1.xpose.msra.mxu0 0.0
    %4425 = vmatprep.subr.mxu0 0.0
    %4426 = vmatpush1.xpose.msra.mxu0 0.0
    %4427 = vmatprep.mubr.f32.mxu0 0.0
    %4428 = vmatmul.mubr.f32.gmra.mrb[0].mxu0 %v4355
    %v4429 = vpop.f32.mrb[0].mxu0
    %v4430 = vadd.f32 0.0, %v4429
    %v4431 = vpop.f32.mrb[0].mxu0
    %4432 = vmatprep.mubr.f32.mxu0 0.0
    %4433 = vmatmul.mubr.f32.gmra.mrb[0].mxu0 %v4357
    %v4434 = vpop.f32.mrb[0].mxu0
    %v4435 = vadd.f32 0.0, %v4434
    %v4436 = vpop.f32.mrb[0].mxu0
    %4437 = vdwg.mxu0
    %v4438 = vmul.f32 %v4430, 0.35355338
    %v4439 = vmul.f32 %v4435, 0.35355338
    %v4440 = vsel %vm492, %v4438, -inf
    %4441 = vmax.xlane.f32.xlu0 %v4440
    %v4442 = vpop.xlane.xlu0 %4441
    %v4443 = vsel %vm492, %v4439, -inf
    %4444 = vmax.xlane.f32.xlu0 %v4443
    %v4445 = vpop.xlane.xlu0 %4444
    %v4446 = vsub.f32 %v4438, %v4442
    %v4447 = vsub.f32 %v4439, %v4445
    %v4448 = vmul.f32 %v4446, 1.442695
    %v4449 = vpow.pop %v4448
    %v4450 = vmul.f32 %v4447, 1.442695
    %v4451 = vpow.pop %v4450
    %v4452 = vsel %vm492, %v4449, 0.0
    %4453 = vadd.xlane.f32.xlu0 %v4452
    %v4454 = vpop.xlane.xlu0 %4453
    %v4455 = vsel %vm492, %v4451, 0.0
    %4456 = vadd.xlane.f32.xlu0 %v4455
    %v4457 = vpop.xlane.xlu0 %4456
    %v4458 = vrcp.pop %v4454
    %v4459 = vrcp.pop %v4457
    %v4460 = vmul.f32 %v4449, %v4458
    %v4461 = vmul.f32 %v4451, %v4459
    %4462 = vrot.lane.b32.xlu0 %v3207, 64
    %v4463 = vpop.permute.xlu0 %4462
    %4464 = vrot.lane.b32.xlu0 %v3212, 64
    %v4465 = vpop.permute.xlu0 %4464
    %v4469 = vsel %vm492, %v4460, 0
    %v4472 = vsel %vm492, %v4461, 0
    %4474 = vmatprep.subr.mxu0 0.0
    %4475 = vmatpush1.msra.mxu0 %v4463
    %4476 = vmatprep.subr.mxu0 0.0
    %4477 = vmatpush1.msra.mxu0 %v4465
    %4478 = vmatprep.subr.mxu0 0.0
    %4479 = vmatpush1.msra.mxu0 0.0
    %4480 = vmatprep.subr.mxu0 0.0
    %4481 = vmatpush1.msra.mxu0 0.0
    %4482 = vmatprep.subr.mxu0 0.0
    %4483 = vmatpush1.msra.mxu0 0.0
    %4484 = vmatprep.subr.mxu0 0.0
    %4485 = vmatpush1.msra.mxu0 0.0
    %4486 = vmatprep.subr.mxu0 0.0
    %4487 = vmatpush1.msra.mxu0 0.0
    %4488 = vmatprep.subr.mxu0 0.0
    %4489 = vmatpush1.msra.mxu0 0.0
    %4490 = vmatprep.subr.mxu0 0.0
    %4491 = vmatpush1.msra.mxu0 0.0
    %4492 = vmatprep.subr.mxu0 0.0
    %4493 = vmatpush1.msra.mxu0 0.0
    %4494 = vmatprep.subr.mxu0 0.0
    %4495 = vmatpush1.msra.mxu0 0.0
    %4496 = vmatprep.subr.mxu0 0.0
    %4497 = vmatpush1.msra.mxu0 0.0
    %4498 = vmatprep.subr.mxu0 0.0
    %4499 = vmatpush1.msra.mxu0 0.0
    %4500 = vmatprep.subr.mxu0 0.0
    %4501 = vmatpush1.msra.mxu0 0.0
    %4502 = vmatprep.subr.mxu0 0.0
    %4503 = vmatpush1.msra.mxu0 0.0
    %4504 = vmatprep.subr.mxu0 0.0
    %4505 = vmatpush1.msra.mxu0 0.0
    %4506 = vmatprep.subr.mxu0 0.0
    %4507 = vmatpush1.msra.mxu0 0.0
    %4508 = vmatprep.subr.mxu0 0.0
    %4509 = vmatpush1.msra.mxu0 0.0
    %4510 = vmatprep.subr.mxu0 0.0
    %4511 = vmatpush1.msra.mxu0 0.0
    %4512 = vmatprep.subr.mxu0 0.0
    %4513 = vmatpush1.msra.mxu0 0.0
    %4514 = vmatprep.subr.mxu0 0.0
    %4515 = vmatpush1.msra.mxu0 0.0
    %4516 = vmatprep.subr.mxu0 0.0
    %4517 = vmatpush1.msra.mxu0 0.0
    %4518 = vmatprep.subr.mxu0 0.0
    %4519 = vmatpush1.msra.mxu0 0.0
    %4520 = vmatprep.subr.mxu0 0.0
    %4521 = vmatpush1.msra.mxu0 0.0
    %4522 = vmatprep.subr.mxu0 0.0
    %4523 = vmatpush1.msra.mxu0 0.0
    %4524 = vmatprep.subr.mxu0 0.0
    %4525 = vmatpush1.msra.mxu0 0.0
    %4526 = vmatprep.subr.mxu0 0.0
    %4527 = vmatpush1.msra.mxu0 0.0
    %4528 = vmatprep.subr.mxu0 0.0
    %4529 = vmatpush1.msra.mxu0 0.0
    %4530 = vmatprep.subr.mxu0 0.0
    %4531 = vmatpush1.msra.mxu0 0.0
    %4532 = vmatprep.subr.mxu0 0.0
    %4533 = vmatpush1.msra.mxu0 0.0
    %4534 = vmatprep.subr.mxu0 0.0
    %4535 = vmatpush1.msra.mxu0 0.0
    %4536 = vmatprep.subr.mxu0 0.0
    %4537 = vmatpush1.msra.mxu0 0.0
    %4538 = vmatprep.mubr.f32.mxu0 0.0
    %4539 = vmatmul.mubr.f32.gmra.mrb[0].mxu0 %v4469
    %v4540 = vpop.f32.mrb[0].mxu0
    %v4541 = vadd.f32 0.0, %v4540
    %v4542 = vpop.f32.mrb[0].mxu0
    %4543 = vmatprep.mubr.f32.mxu0 0.0
    %4544 = vmatmul.mubr.f32.gmra.mrb[0].mxu0 %v4472
    %v4545 = vpop.f32.mrb[0].mxu0
    %v4546 = vadd.f32 0.0, %v4545
    %v4547 = vpop.f32.mrb[0].mxu0
    %4548 = vdwg.mxu0
    %4549 = vrot.lane.b32.xlu0 %v3207, 120
    %v4550 = vpop.permute.xlu0 %4549
    %4551 = vrot.lane.b32.xlu0 %v3212, 120
    %v4552 = vpop.permute.xlu0 %4551
    %4553 = vrot.lane.b32.xlu0 %v3207, 88
    %v4554 = vpop.permute.xlu0 %4553
    %4555 = vrot.lane.b32.xlu0 %v3212, 88
    %v4556 = vpop.permute.xlu0 %4555
    %v4557 = vsel %vm406, %v4550, 0
    %v4559 = vsel %vm406, %v4552, 0
    %v4561 = vsel %vm406, %v4554, 0
    %v4563 = vsel %vm406, %v4556, 0
    %4565 = vmatprep.subr.mxu0 0.0
    %4566 = vmatpush1.xpose.msra.mxu0 %v4561
    %4567 = vmatprep.subr.mxu0 0.0
    %4568 = vmatpush1.xpose.msra.mxu0 %v4563
    %4569 = vmatprep.subr.mxu0 0.0
    %4570 = vmatpush1.xpose.msra.mxu0 0.0
    %4571 = vmatprep.subr.mxu0 0.0
    %4572 = vmatpush1.xpose.msra.mxu0 0.0
    %4573 = vmatprep.subr.mxu0 0.0
    %4574 = vmatpush1.xpose.msra.mxu0 0.0
    %4575 = vmatprep.subr.mxu0 0.0
    %4576 = vmatpush1.xpose.msra.mxu0 0.0
    %4577 = vmatprep.subr.mxu0 0.0
    %4578 = vmatpush1.xpose.msra.mxu0 0.0
    %4579 = vmatprep.subr.mxu0 0.0
    %4580 = vmatpush1.xpose.msra.mxu0 0.0
    %4581 = vmatprep.subr.mxu0 0.0
    %4582 = vmatpush1.xpose.msra.mxu0 0.0
    %4583 = vmatprep.subr.mxu0 0.0
    %4584 = vmatpush1.xpose.msra.mxu0 0.0
    %4585 = vmatprep.subr.mxu0 0.0
    %4586 = vmatpush1.xpose.msra.mxu0 0.0
    %4587 = vmatprep.subr.mxu0 0.0
    %4588 = vmatpush1.xpose.msra.mxu0 0.0
    %4589 = vmatprep.subr.mxu0 0.0
    %4590 = vmatpush1.xpose.msra.mxu0 0.0
    %4591 = vmatprep.subr.mxu0 0.0
    %4592 = vmatpush1.xpose.msra.mxu0 0.0
    %4593 = vmatprep.subr.mxu0 0.0
    %4594 = vmatpush1.xpose.msra.mxu0 0.0
    %4595 = vmatprep.subr.mxu0 0.0
    %4596 = vmatpush1.xpose.msra.mxu0 0.0
    %4597 = vmatprep.subr.mxu0 0.0
    %4598 = vmatpush1.xpose.msra.mxu0 0.0
    %4599 = vmatprep.subr.mxu0 0.0
    %4600 = vmatpush1.xpose.msra.mxu0 0.0
    %4601 = vmatprep.subr.mxu0 0.0
    %4602 = vmatpush1.xpose.msra.mxu0 0.0
    %4603 = vmatprep.subr.mxu0 0.0
    %4604 = vmatpush1.xpose.msra.mxu0 0.0
    %4605 = vmatprep.subr.mxu0 0.0
    %4606 = vmatpush1.xpose.msra.mxu0 0.0
    %4607 = vmatprep.subr.mxu0 0.0
    %4608 = vmatpush1.xpose.msra.mxu0 0.0
    %4609 = vmatprep.subr.mxu0 0.0
    %4610 = vmatpush1.xpose.msra.mxu0 0.0
    %4611 = vmatprep.subr.mxu0 0.0
    %4612 = vmatpush1.xpose.msra.mxu0 0.0
    %4613 = vmatprep.subr.mxu0 0.0
    %4614 = vmatpush1.xpose.msra.mxu0 0.0
    %4615 = vmatprep.subr.mxu0 0.0
    %4616 = vmatpush1.xpose.msra.mxu0 0.0
    %4617 = vmatprep.subr.mxu0 0.0
    %4618 = vmatpush1.xpose.msra.mxu0 0.0
    %4619 = vmatprep.subr.mxu0 0.0
    %4620 = vmatpush1.xpose.msra.mxu0 0.0
    %4621 = vmatprep.subr.mxu0 0.0
    %4622 = vmatpush1.xpose.msra.mxu0 0.0
    %4623 = vmatprep.subr.mxu0 0.0
    %4624 = vmatpush1.xpose.msra.mxu0 0.0
    %4625 = vmatprep.subr.mxu0 0.0
    %4626 = vmatpush1.xpose.msra.mxu0 0.0
    %4627 = vmatprep.subr.mxu0 0.0
    %4628 = vmatpush1.xpose.msra.mxu0 0.0
    %4629 = vmatprep.mubr.f32.mxu0 0.0
    %4630 = vmatmul.mubr.f32.gmra.mrb[0].mxu0 %v4557
    %v4631 = vpop.f32.mrb[0].mxu0
    %v4632 = vadd.f32 0.0, %v4631
    %v4633 = vpop.f32.mrb[0].mxu0
    %4634 = vmatprep.mubr.f32.mxu0 0.0
    %4635 = vmatmul.mubr.f32.gmra.mrb[0].mxu0 %v4559
    %v4636 = vpop.f32.mrb[0].mxu0
    %v4637 = vadd.f32 0.0, %v4636
    %v4638 = vpop.f32.mrb[0].mxu0
    %4639 = vdwg.mxu0
    %v4640 = vmul.f32 %v4632, 0.35355338
    %v4641 = vmul.f32 %v4637, 0.35355338
    %v4642 = vsel %vm492, %v4640, -inf
    %4643 = vmax.xlane.f32.xlu0 %v4642
    %v4644 = vpop.xlane.xlu0 %4643
    %v4645 = vsel %vm492, %v4641, -inf
    %4646 = vmax.xlane.f32.xlu0 %v4645
    %v4647 = vpop.xlane.xlu0 %4646
    %v4648 = vsub.f32 %v4640, %v4644
    %v4649 = vsub.f32 %v4641, %v4647
    %v4650 = vmul.f32 %v4648, 1.442695
    %v4651 = vpow.pop %v4650
    %v4652 = vmul.f32 %v4649, 1.442695
    %v4653 = vpow.pop %v4652
    %v4654 = vsel %vm492, %v4651, 0.0
    %4655 = vadd.xlane.f32.xlu0 %v4654
    %v4656 = vpop.xlane.xlu0 %4655
    %v4657 = vsel %vm492, %v4653, 0.0
    %4658 = vadd.xlane.f32.xlu0 %v4657
    %v4659 = vpop.xlane.xlu0 %4658
    %v4660 = vrcp.pop %v4656
    %v4661 = vrcp.pop %v4659
    %v4662 = vmul.f32 %v4651, %v4660
    %v4663 = vmul.f32 %v4653, %v4661
    %4664 = vrot.lane.b32.xlu0 %v3207, 56
    %v4665 = vpop.permute.xlu0 %4664
    %4666 = vrot.lane.b32.xlu0 %v3212, 56
    %v4667 = vpop.permute.xlu0 %4666
    %v4671 = vsel %vm492, %v4662, 0
    %v4674 = vsel %vm492, %v4663, 0
    %4676 = vmatprep.subr.mxu0 0.0
    %4677 = vmatpush1.msra.mxu0 %v4665
    %4678 = vmatprep.subr.mxu0 0.0
    %4679 = vmatpush1.msra.mxu0 %v4667
    %4680 = vmatprep.subr.mxu0 0.0
    %4681 = vmatpush1.msra.mxu0 0.0
    %4682 = vmatprep.subr.mxu0 0.0
    %4683 = vmatpush1.msra.mxu0 0.0
    %4684 = vmatprep.subr.mxu0 0.0
    %4685 = vmatpush1.msra.mxu0 0.0
    %4686 = vmatprep.subr.mxu0 0.0
    %4687 = vmatpush1.msra.mxu0 0.0
    %4688 = vmatprep.subr.mxu0 0.0
    %4689 = vmatpush1.msra.mxu0 0.0
    %4690 = vmatprep.subr.mxu0 0.0
    %4691 = vmatpush1.msra.mxu0 0.0
    %4692 = vmatprep.subr.mxu0 0.0
    %4693 = vmatpush1.msra.mxu0 0.0
    %4694 = vmatprep.subr.mxu0 0.0
    %4695 = vmatpush1.msra.mxu0 0.0
    %4696 = vmatprep.subr.mxu0 0.0
    %4697 = vmatpush1.msra.mxu0 0.0
    %4698 = vmatprep.subr.mxu0 0.0
    %4699 = vmatpush1.msra.mxu0 0.0
    %4700 = vmatprep.subr.mxu0 0.0
    %4701 = vmatpush1.msra.mxu0 0.0
    %4702 = vmatprep.subr.mxu0 0.0
    %4703 = vmatpush1.msra.mxu0 0.0
    %4704 = vmatprep.subr.mxu0 0.0
    %4705 = vmatpush1.msra.mxu0 0.0
    %4706 = vmatprep.subr.mxu0 0.0
    %4707 = vmatpush1.msra.mxu0 0.0
    %4708 = vmatprep.subr.mxu0 0.0
    %4709 = vmatpush1.msra.mxu0 0.0
    %4710 = vmatprep.subr.mxu0 0.0
    %4711 = vmatpush1.msra.mxu0 0.0
    %4712 = vmatprep.subr.mxu0 0.0
    %4713 = vmatpush1.msra.mxu0 0.0
    %4714 = vmatprep.subr.mxu0 0.0
    %4715 = vmatpush1.msra.mxu0 0.0
    %4716 = vmatprep.subr.mxu0 0.0
    %4717 = vmatpush1.msra.mxu0 0.0
    %4718 = vmatprep.subr.mxu0 0.0
    %4719 = vmatpush1.msra.mxu0 0.0
    %4720 = vmatprep.subr.mxu0 0.0
    %4721 = vmatpush1.msra.mxu0 0.0
    %4722 = vmatprep.subr.mxu0 0.0
    %4723 = vmatpush1.msra.mxu0 0.0
    %4724 = vmatprep.subr.mxu0 0.0
    %4725 = vmatpush1.msra.mxu0 0.0
    %4726 = vmatprep.subr.mxu0 0.0
    %4727 = vmatpush1.msra.mxu0 0.0
    %4728 = vmatprep.subr.mxu0 0.0
    %4729 = vmatpush1.msra.mxu0 0.0
    %4730 = vmatprep.subr.mxu0 0.0
    %4731 = vmatpush1.msra.mxu0 0.0
    %4732 = vmatprep.subr.mxu0 0.0
    %4733 = vmatpush1.msra.mxu0 0.0
    %4734 = vmatprep.subr.mxu0 0.0
    %4735 = vmatpush1.msra.mxu0 0.0
    %4736 = vmatprep.subr.mxu0 0.0
    %4737 = vmatpush1.msra.mxu0 0.0
    %4738 = vmatprep.subr.mxu0 0.0
    %4739 = vmatpush1.msra.mxu0 0.0
    %4740 = vmatprep.mubr.f32.mxu0 0.0
    %4741 = vmatmul.mubr.f32.gmra.mrb[0].mxu0 %v4671
    %v4742 = vpop.f32.mrb[0].mxu0
    %v4743 = vadd.f32 0.0, %v4742
    %v4744 = vpop.f32.mrb[0].mxu0
    %4745 = vmatprep.mubr.f32.mxu0 0.0
    %4746 = vmatmul.mubr.f32.gmra.mrb[0].mxu0 %v4674
    %v4747 = vpop.f32.mrb[0].mxu0
    %v4748 = vadd.f32 0.0, %v4747
    %v4749 = vpop.f32.mrb[0].mxu0
    %4750 = vdwg.mxu0
    %v4752 = vsel %vm406, %v4743, 0
    %v4755 = vsel %vm406, %v4748, 0
    %4757 = vmatprep.subr.mxu0 0.0
    %4758 = vmatpush1.msra.mxu0 %v3031
    %4759 = vmatprep.subr.mxu0 0.0
    %4760 = vmatpush1.msra.mxu0 0.0
    %4761 = vmatprep.subr.mxu0 0.0
    %4762 = vmatpush1.msra.mxu0 0.0
    %4763 = vmatprep.subr.mxu0 0.0
    %4764 = vmatpush1.msra.mxu0 0.0
    %4765 = vmatprep.subr.mxu0 0.0
    %4766 = vmatpush1.msra.mxu0 0.0
    %4767 = vmatprep.subr.mxu0 0.0
    %4768 = vmatpush1.msra.mxu0 0.0
    %4769 = vmatprep.subr.mxu0 0.0
    %4770 = vmatpush1.msra.mxu0 0.0
    %4771 = vmatprep.subr.mxu0 0.0
    %4772 = vmatpush1.msra.mxu0 0.0
    %4773 = vmatprep.subr.mxu0 0.0
    %4774 = vmatpush1.msra.mxu0 0.0
    %4775 = vmatprep.subr.mxu0 0.0
    %4776 = vmatpush1.msra.mxu0 0.0
    %4777 = vmatprep.subr.mxu0 0.0
    %4778 = vmatpush1.msra.mxu0 0.0
    %4779 = vmatprep.subr.mxu0 0.0
    %4780 = vmatpush1.msra.mxu0 0.0
    %4781 = vmatprep.subr.mxu0 0.0
    %4782 = vmatpush1.msra.mxu0 0.0
    %4783 = vmatprep.subr.mxu0 0.0
    %4784 = vmatpush1.msra.mxu0 0.0
    %4785 = vmatprep.subr.mxu0 0.0
    %4786 = vmatpush1.msra.mxu0 0.0
    %4787 = vmatprep.subr.mxu0 0.0
    %4788 = vmatpush1.msra.mxu0 0.0
    %4789 = vmatprep.subr.mxu0 0.0
    %4790 = vmatpush1.msra.mxu0 0.0
    %4791 = vmatprep.subr.mxu0 0.0
    %4792 = vmatpush1.msra.mxu0 0.0
    %4793 = vmatprep.subr.mxu0 0.0
    %4794 = vmatpush1.msra.mxu0 0.0
    %4795 = vmatprep.subr.mxu0 0.0
    %4796 = vmatpush1.msra.mxu0 0.0
    %4797 = vmatprep.subr.mxu0 0.0
    %4798 = vmatpush1.msra.mxu0 0.0
    %4799 = vmatprep.subr.mxu0 0.0
    %4800 = vmatpush1.msra.mxu0 0.0
    %4801 = vmatprep.subr.mxu0 0.0
    %4802 = vmatpush1.msra.mxu0 0.0
    %4803 = vmatprep.subr.mxu0 0.0
    %4804 = vmatpush1.msra.mxu0 0.0
    %4805 = vmatprep.subr.mxu0 0.0
    %4806 = vmatpush1.msra.mxu0 0.0
    %4807 = vmatprep.subr.mxu0 0.0
    %4808 = vmatpush1.msra.mxu0 0.0
    %4809 = vmatprep.subr.mxu0 0.0
    %4810 = vmatpush1.msra.mxu0 0.0
    %4811 = vmatprep.subr.mxu0 0.0
    %4812 = vmatpush1.msra.mxu0 0.0
    %4813 = vmatprep.subr.mxu0 0.0
    %4814 = vmatpush1.msra.mxu0 0.0
    %4815 = vmatprep.subr.mxu0 0.0
    %4816 = vmatpush1.msra.mxu0 0.0
    %4817 = vmatprep.subr.mxu0 0.0
    %4818 = vmatpush1.msra.mxu0 0.0
    %4819 = vmatprep.subr.mxu0 0.0
    %4820 = vmatpush1.msra.mxu0 0.0
    %4821 = vmatprep.mubr.f32.mxu0 0.0
    %4822 = vmatmul.mubr.f32.gmra.mrb[0].mxu0 %v4752
    %v4823 = vpop.f32.mrb[0].mxu0
    %v4824 = vadd.f32 0.0, %v4823
    %v4825 = vpop.f32.mrb[0].mxu0
    %4826 = vmatprep.mubr.f32.mxu0 0.0
    %4827 = vmatmul.mubr.f32.gmra.mrb[0].mxu0 %v4755
    %v4828 = vpop.f32.mrb[0].mxu0
    %v4829 = vadd.f32 0.0, %v4828
    %v4830 = vpop.f32.mrb[0].mxu0
    %4831 = vdwg.mxu0
    %v4833 = vsel %vm406, %v4541, 0
    %v4836 = vsel %vm406, %v4546, 0
    %4838 = vmatprep.subr.mxu0 0.0
    %4839 = vmatpush1.msra.mxu0 %v3030
    %4840 = vmatprep.subr.mxu0 0.0
    %4841 = vmatpush1.msra.mxu0 0.0
    %4842 = vmatprep.subr.mxu0 0.0
    %4843 = vmatpush1.msra.mxu0 0.0
    %4844 = vmatprep.subr.mxu0 0.0
    %4845 = vmatpush1.msra.mxu0 0.0
    %4846 = vmatprep.subr.mxu0 0.0
    %4847 = vmatpush1.msra.mxu0 0.0
    %4848 = vmatprep.subr.mxu0 0.0
    %4849 = vmatpush1.msra.mxu0 0.0
    %4850 = vmatprep.subr.mxu0 0.0
    %4851 = vmatpush1.msra.mxu0 0.0
    %4852 = vmatprep.subr.mxu0 0.0
    %4853 = vmatpush1.msra.mxu0 0.0
    %4854 = vmatprep.subr.mxu0 0.0
    %4855 = vmatpush1.msra.mxu0 0.0
    %4856 = vmatprep.subr.mxu0 0.0
    %4857 = vmatpush1.msra.mxu0 0.0
    %4858 = vmatprep.subr.mxu0 0.0
    %4859 = vmatpush1.msra.mxu0 0.0
    %4860 = vmatprep.subr.mxu0 0.0
    %4861 = vmatpush1.msra.mxu0 0.0
    %4862 = vmatprep.subr.mxu0 0.0
    %4863 = vmatpush1.msra.mxu0 0.0
    %4864 = vmatprep.subr.mxu0 0.0
    %4865 = vmatpush1.msra.mxu0 0.0
    %4866 = vmatprep.subr.mxu0 0.0
    %4867 = vmatpush1.msra.mxu0 0.0
    %4868 = vmatprep.subr.mxu0 0.0
    %4869 = vmatpush1.msra.mxu0 0.0
    %4870 = vmatprep.subr.mxu0 0.0
    %4871 = vmatpush1.msra.mxu0 0.0
    %4872 = vmatprep.subr.mxu0 0.0
    %4873 = vmatpush1.msra.mxu0 0.0
    %4874 = vmatprep.subr.mxu0 0.0
    %4875 = vmatpush1.msra.mxu0 0.0
    %4876 = vmatprep.subr.mxu0 0.0
    %4877 = vmatpush1.msra.mxu0 0.0
    %4878 = vmatprep.subr.mxu0 0.0
    %4879 = vmatpush1.msra.mxu0 0.0
    %4880 = vmatprep.subr.mxu0 0.0
    %4881 = vmatpush1.msra.mxu0 0.0
    %4882 = vmatprep.subr.mxu0 0.0
    %4883 = vmatpush1.msra.mxu0 0.0
    %4884 = vmatprep.subr.mxu0 0.0
    %4885 = vmatpush1.msra.mxu0 0.0
    %4886 = vmatprep.subr.mxu0 0.0
    %4887 = vmatpush1.msra.mxu0 0.0
    %4888 = vmatprep.subr.mxu0 0.0
    %4889 = vmatpush1.msra.mxu0 0.0
    %4890 = vmatprep.subr.mxu0 0.0
    %4891 = vmatpush1.msra.mxu0 0.0
    %4892 = vmatprep.subr.mxu0 0.0
    %4893 = vmatpush1.msra.mxu0 0.0
    %4894 = vmatprep.subr.mxu0 0.0
    %4895 = vmatpush1.msra.mxu0 0.0
    %4896 = vmatprep.subr.mxu0 0.0
    %4897 = vmatpush1.msra.mxu0 0.0
    %4898 = vmatprep.subr.mxu0 0.0
    %4899 = vmatpush1.msra.mxu0 0.0
    %4900 = vmatprep.subr.mxu0 0.0
    %4901 = vmatpush1.msra.mxu0 0.0
    %4902 = vmatprep.mubr.f32.mxu0 0.0
    %4903 = vmatmul.mubr.f32.gmra.mrb[0].mxu0 %v4833
    %v4904 = vpop.f32.mrb[0].mxu0
    %v4905 = vadd.f32 %v4824, %v4904
    %v4906 = vpop.f32.mrb[0].mxu0
    %4907 = vmatprep.mubr.f32.mxu0 0.0
    %4908 = vmatmul.mubr.f32.gmra.mrb[0].mxu0 %v4836
    %v4909 = vpop.f32.mrb[0].mxu0
    %v4910 = vadd.f32 %v4829, %v4909
    %v4911 = vpop.f32.mrb[0].mxu0
    %4912 = vdwg.mxu0
    %4913 = vrot.lane.b32.xlu0 %v3207, 112
    %v4914 = vpop.permute.xlu0 %4913
    %4915 = vrot.lane.b32.xlu0 %v3212, 112
    %v4916 = vpop.permute.xlu0 %4915
    %4917 = vrot.lane.b32.xlu0 %v3207, 80
    %v4918 = vpop.permute.xlu0 %4917
    %4919 = vrot.lane.b32.xlu0 %v3212, 80
    %v4920 = vpop.permute.xlu0 %4919
    %v4921 = vsel %vm406, %v4914, 0
    %v4923 = vsel %vm406, %v4916, 0
    %v4925 = vsel %vm406, %v4918, 0
    %v4927 = vsel %vm406, %v4920, 0
    %4929 = vmatprep.subr.mxu0 0.0
    %4930 = vmatpush1.xpose.msra.mxu0 %v4925
    %4931 = vmatprep.subr.mxu0 0.0
    %4932 = vmatpush1.xpose.msra.mxu0 %v4927
    %4933 = vmatprep.subr.mxu0 0.0
    %4934 = vmatpush1.xpose.msra.mxu0 0.0
    %4935 = vmatprep.subr.mxu0 0.0
    %4936 = vmatpush1.xpose.msra.mxu0 0.0
    %4937 = vmatprep.subr.mxu0 0.0
    %4938 = vmatpush1.xpose.msra.mxu0 0.0
    %4939 = vmatprep.subr.mxu0 0.0
    %4940 = vmatpush1.xpose.msra.mxu0 0.0
    %4941 = vmatprep.subr.mxu0 0.0
    %4942 = vmatpush1.xpose.msra.mxu0 0.0
    %4943 = vmatprep.subr.mxu0 0.0
    %4944 = vmatpush1.xpose.msra.mxu0 0.0
    %4945 = vmatprep.subr.mxu0 0.0
    %4946 = vmatpush1.xpose.msra.mxu0 0.0
    %4947 = vmatprep.subr.mxu0 0.0
    %4948 = vmatpush1.xpose.msra.mxu0 0.0
    %4949 = vmatprep.subr.mxu0 0.0
    %4950 = vmatpush1.xpose.msra.mxu0 0.0
    %4951 = vmatprep.subr.mxu0 0.0
    %4952 = vmatpush1.xpose.msra.mxu0 0.0
    %4953 = vmatprep.subr.mxu0 0.0
    %4954 = vmatpush1.xpose.msra.mxu0 0.0
    %4955 = vmatprep.subr.mxu0 0.0
    %4956 = vmatpush1.xpose.msra.mxu0 0.0
    %4957 = vmatprep.subr.mxu0 0.0
    %4958 = vmatpush1.xpose.msra.mxu0 0.0
    %4959 = vmatprep.subr.mxu0 0.0
    %4960 = vmatpush1.xpose.msra.mxu0 0.0
    %4961 = vmatprep.subr.mxu0 0.0
    %4962 = vmatpush1.xpose.msra.mxu0 0.0
    %4963 = vmatprep.subr.mxu0 0.0
    %4964 = vmatpush1.xpose.msra.mxu0 0.0
    %4965 = vmatprep.subr.mxu0 0.0
    %4966 = vmatpush1.xpose.msra.mxu0 0.0
    %4967 = vmatprep.subr.mxu0 0.0
    %4968 = vmatpush1.xpose.msra.mxu0 0.0
    %4969 = vmatprep.subr.mxu0 0.0
    %4970 = vmatpush1.xpose.msra.mxu0 0.0
    %4971 = vmatprep.subr.mxu0 0.0
    %4972 = vmatpush1.xpose.msra.mxu0 0.0
    %4973 = vmatprep.subr.mxu0 0.0
    %4974 = vmatpush1.xpose.msra.mxu0 0.0
    %4975 = vmatprep.subr.mxu0 0.0
    %4976 = vmatpush1.xpose.msra.mxu0 0.0
    %4977 = vmatprep.subr.mxu0 0.0
    %4978 = vmatpush1.xpose.msra.mxu0 0.0
    %4979 = vmatprep.subr.mxu0 0.0
    %4980 = vmatpush1.xpose.msra.mxu0 0.0
    %4981 = vmatprep.subr.mxu0 0.0
    %4982 = vmatpush1.xpose.msra.mxu0 0.0
    %4983 = vmatprep.subr.mxu0 0.0
    %4984 = vmatpush1.xpose.msra.mxu0 0.0
    %4985 = vmatprep.subr.mxu0 0.0
    %4986 = vmatpush1.xpose.msra.mxu0 0.0
    %4987 = vmatprep.subr.mxu0 0.0
    %4988 = vmatpush1.xpose.msra.mxu0 0.0
    %4989 = vmatprep.subr.mxu0 0.0
    %4990 = vmatpush1.xpose.msra.mxu0 0.0
    %4991 = vmatprep.subr.mxu0 0.0
    %4992 = vmatpush1.xpose.msra.mxu0 0.0
    %4993 = vmatprep.mubr.f32.mxu0 0.0
    %4994 = vmatmul.mubr.f32.gmra.mrb[0].mxu0 %v4921
    %v4995 = vpop.f32.mrb[0].mxu0
    %v4996 = vadd.f32 0.0, %v4995
    %v4997 = vpop.f32.mrb[0].mxu0
    %4998 = vmatprep.mubr.f32.mxu0 0.0
    %4999 = vmatmul.mubr.f32.gmra.mrb[0].mxu0 %v4923
    %v5000 = vpop.f32.mrb[0].mxu0
    %v5001 = vadd.f32 0.0, %v5000
    %v5002 = vpop.f32.mrb[0].mxu0
    %5003 = vdwg.mxu0
    %v5004 = vmul.f32 %v4996, 0.35355338
    %v5005 = vmul.f32 %v5001, 0.35355338
    %v5006 = vsel %vm492, %v5004, -inf
    %5007 = vmax.xlane.f32.xlu0 %v5006
    %v5008 = vpop.xlane.xlu0 %5007
    %v5009 = vsel %vm492, %v5005, -inf
    %5010 = vmax.xlane.f32.xlu0 %v5009
    %v5011 = vpop.xlane.xlu0 %5010
    %v5012 = vsub.f32 %v5004, %v5008
    %v5013 = vsub.f32 %v5005, %v5011
    %v5014 = vmul.f32 %v5012, 1.442695
    %v5015 = vpow.pop %v5014
    %v5016 = vmul.f32 %v5013, 1.442695
    %v5017 = vpow.pop %v5016
    %v5018 = vsel %vm492, %v5015, 0.0
    %5019 = vadd.xlane.f32.xlu0 %v5018
    %v5020 = vpop.xlane.xlu0 %5019
    %v5021 = vsel %vm492, %v5017, 0.0
    %5022 = vadd.xlane.f32.xlu0 %v5021
    %v5023 = vpop.xlane.xlu0 %5022
    %v5024 = vrcp.pop %v5020
    %v5025 = vrcp.pop %v5023
    %v5026 = vmul.f32 %v5015, %v5024
    %v5027 = vmul.f32 %v5017, %v5025
    %5028 = vrot.lane.b32.xlu0 %v3207, 48
    %v5029 = vpop.permute.xlu0 %5028
    %5030 = vrot.lane.b32.xlu0 %v3212, 48
    %v5031 = vpop.permute.xlu0 %5030
    %v5035 = vsel %vm492, %v5026, 0
    %v5038 = vsel %vm492, %v5027, 0
    %5040 = vmatprep.subr.mxu0 0.0
    %5041 = vmatpush1.msra.mxu0 %v5029
    %5042 = vmatprep.subr.mxu0 0.0
    %5043 = vmatpush1.msra.mxu0 %v5031
    %5044 = vmatprep.subr.mxu0 0.0
    %5045 = vmatpush1.msra.mxu0 0.0
    %5046 = vmatprep.subr.mxu0 0.0
    %5047 = vmatpush1.msra.mxu0 0.0
    %5048 = vmatprep.subr.mxu0 0.0
    %5049 = vmatpush1.msra.mxu0 0.0
    %5050 = vmatprep.subr.mxu0 0.0
    %5051 = vmatpush1.msra.mxu0 0.0
    %5052 = vmatprep.subr.mxu0 0.0
    %5053 = vmatpush1.msra.mxu0 0.0
    %5054 = vmatprep.subr.mxu0 0.0
    %5055 = vmatpush1.msra.mxu0 0.0
    %5056 = vmatprep.subr.mxu0 0.0
    %5057 = vmatpush1.msra.mxu0 0.0
    %5058 = vmatprep.subr.mxu0 0.0
    %5059 = vmatpush1.msra.mxu0 0.0
    %5060 = vmatprep.subr.mxu0 0.0
    %5061 = vmatpush1.msra.mxu0 0.0
    %5062 = vmatprep.subr.mxu0 0.0
    %5063 = vmatpush1.msra.mxu0 0.0
    %5064 = vmatprep.subr.mxu0 0.0
    %5065 = vmatpush1.msra.mxu0 0.0
    %5066 = vmatprep.subr.mxu0 0.0
    %5067 = vmatpush1.msra.mxu0 0.0
    %5068 = vmatprep.subr.mxu0 0.0
    %5069 = vmatpush1.msra.mxu0 0.0
    %5070 = vmatprep.subr.mxu0 0.0
    %5071 = vmatpush1.msra.mxu0 0.0
    %5072 = vmatprep.subr.mxu0 0.0
    %5073 = vmatpush1.msra.mxu0 0.0
    %5074 = vmatprep.subr.mxu0 0.0
    %5075 = vmatpush1.msra.mxu0 0.0
    %5076 = vmatprep.subr.mxu0 0.0
    %5077 = vmatpush1.msra.mxu0 0.0
    %5078 = vmatprep.subr.mxu0 0.0
    %5079 = vmatpush1.msra.mxu0 0.0
    %5080 = vmatprep.subr.mxu0 0.0
    %5081 = vmatpush1.msra.mxu0 0.0
    %5082 = vmatprep.subr.mxu0 0.0
    %5083 = vmatpush1.msra.mxu0 0.0
    %5084 = vmatprep.subr.mxu0 0.0
    %5085 = vmatpush1.msra.mxu0 0.0
    %5086 = vmatprep.subr.mxu0 0.0
    %5087 = vmatpush1.msra.mxu0 0.0
    %5088 = vmatprep.subr.mxu0 0.0
    %5089 = vmatpush1.msra.mxu0 0.0
    %5090 = vmatprep.subr.mxu0 0.0
    %5091 = vmatpush1.msra.mxu0 0.0
    %5092 = vmatprep.subr.mxu0 0.0
    %5093 = vmatpush1.msra.mxu0 0.0
    %5094 = vmatprep.subr.mxu0 0.0
    %5095 = vmatpush1.msra.mxu0 0.0
    %5096 = vmatprep.subr.mxu0 0.0
    %5097 = vmatpush1.msra.mxu0 0.0
    %5098 = vmatprep.subr.mxu0 0.0
    %5099 = vmatpush1.msra.mxu0 0.0
    %5100 = vmatprep.subr.mxu0 0.0
    %5101 = vmatpush1.msra.mxu0 0.0
    %5102 = vmatprep.subr.mxu0 0.0
    %5103 = vmatpush1.msra.mxu0 0.0
    %5104 = vmatprep.mubr.f32.mxu0 0.0
    %5105 = vmatmul.mubr.f32.gmra.mrb[0].mxu0 %v5035
    %v5106 = vpop.f32.mrb[0].mxu0
    %v5107 = vadd.f32 0.0, %v5106
    %v5108 = vpop.f32.mrb[0].mxu0
    %5109 = vmatprep.mubr.f32.mxu0 0.0
    %5110 = vmatmul.mubr.f32.gmra.mrb[0].mxu0 %v5038
    %v5111 = vpop.f32.mrb[0].mxu0
    %v5112 = vadd.f32 0.0, %v5111
    %v5113 = vpop.f32.mrb[0].mxu0
    %5114 = vdwg.mxu0
    %v5116 = vsel %vm406, %v5107, 0
    %v5119 = vsel %vm406, %v5112, 0
    %5121 = vmatprep.subr.mxu0 0.0
    %5122 = vmatpush1.msra.mxu0 %v3032
    %5123 = vmatprep.subr.mxu0 0.0
    %5124 = vmatpush1.msra.mxu0 0.0
    %5125 = vmatprep.subr.mxu0 0.0
    %5126 = vmatpush1.msra.mxu0 0.0
    %5127 = vmatprep.subr.mxu0 0.0
    %5128 = vmatpush1.msra.mxu0 0.0
    %5129 = vmatprep.subr.mxu0 0.0
    %5130 = vmatpush1.msra.mxu0 0.0
    %5131 = vmatprep.subr.mxu0 0.0
    %5132 = vmatpush1.msra.mxu0 0.0
    %5133 = vmatprep.subr.mxu0 0.0
    %5134 = vmatpush1.msra.mxu0 0.0
    %5135 = vmatprep.subr.mxu0 0.0
    %5136 = vmatpush1.msra.mxu0 0.0
    %5137 = vmatprep.subr.mxu0 0.0
    %5138 = vmatpush1.msra.mxu0 0.0
    %5139 = vmatprep.subr.mxu0 0.0
    %5140 = vmatpush1.msra.mxu0 0.0
    %5141 = vmatprep.subr.mxu0 0.0
    %5142 = vmatpush1.msra.mxu0 0.0
    %5143 = vmatprep.subr.mxu0 0.0
    %5144 = vmatpush1.msra.mxu0 0.0
    %5145 = vmatprep.subr.mxu0 0.0
    %5146 = vmatpush1.msra.mxu0 0.0
    %5147 = vmatprep.subr.mxu0 0.0
    %5148 = vmatpush1.msra.mxu0 0.0
    %5149 = vmatprep.subr.mxu0 0.0
    %5150 = vmatpush1.msra.mxu0 0.0
    %5151 = vmatprep.subr.mxu0 0.0
    %5152 = vmatpush1.msra.mxu0 0.0
    %5153 = vmatprep.subr.mxu0 0.0
    %5154 = vmatpush1.msra.mxu0 0.0
    %5155 = vmatprep.subr.mxu0 0.0
    %5156 = vmatpush1.msra.mxu0 0.0
    %5157 = vmatprep.subr.mxu0 0.0
    %5158 = vmatpush1.msra.mxu0 0.0
    %5159 = vmatprep.subr.mxu0 0.0
    %5160 = vmatpush1.msra.mxu0 0.0
    %5161 = vmatprep.subr.mxu0 0.0
    %5162 = vmatpush1.msra.mxu0 0.0
    %5163 = vmatprep.subr.mxu0 0.0
    %5164 = vmatpush1.msra.mxu0 0.0
    %5165 = vmatprep.subr.mxu0 0.0
    %5166 = vmatpush1.msra.mxu0 0.0
    %5167 = vmatprep.subr.mxu0 0.0
    %5168 = vmatpush1.msra.mxu0 0.0
    %5169 = vmatprep.subr.mxu0 0.0
    %5170 = vmatpush1.msra.mxu0 0.0
    %5171 = vmatprep.subr.mxu0 0.0
    %5172 = vmatpush1.msra.mxu0 0.0
    %5173 = vmatprep.subr.mxu0 0.0
    %5174 = vmatpush1.msra.mxu0 0.0
    %5175 = vmatprep.subr.mxu0 0.0
    %5176 = vmatpush1.msra.mxu0 0.0
    %5177 = vmatprep.subr.mxu0 0.0
    %5178 = vmatpush1.msra.mxu0 0.0
    %5179 = vmatprep.subr.mxu0 0.0
    %5180 = vmatpush1.msra.mxu0 0.0
    %5181 = vmatprep.subr.mxu0 0.0
    %5182 = vmatpush1.msra.mxu0 0.0
    %5183 = vmatprep.subr.mxu0 0.0
    %5184 = vmatpush1.msra.mxu0 0.0
    %5185 = vmatprep.mubr.f32.mxu0 0.0
    %5186 = vmatmul.mubr.f32.gmra.mrb[0].mxu0 %v5116
    %v5187 = vpop.f32.mrb[0].mxu0
    %v5188 = vadd.f32 0.0, %v5187
    %v5189 = vpop.f32.mrb[0].mxu0
    %5190 = vmatprep.mubr.f32.mxu0 0.0
    %5191 = vmatmul.mubr.f32.gmra.mrb[0].mxu0 %v5119
    %v5192 = vpop.f32.mrb[0].mxu0
    %v5193 = vadd.f32 0.0, %v5192
    %v5194 = vpop.f32.mrb[0].mxu0
    %5195 = vdwg.mxu0
    %v5196 = vadd.f32 %v4905, %v5188
    %v5197 = vadd.f32 %v4910, %v5193
    %5198 = vrot.lane.b32.xlu0 %v3207, 104
    %v5199 = vpop.permute.xlu0 %5198
    %5200 = vrot.lane.b32.xlu0 %v3212, 104
    %v5201 = vpop.permute.xlu0 %5200
    %5202 = vrot.lane.b32.xlu0 %v3207, 72
    %v5203 = vpop.permute.xlu0 %5202
    %5204 = vrot.lane.b32.xlu0 %v3212, 72
    %v5205 = vpop.permute.xlu0 %5204
    %v5206 = vsel %vm406, %v5199, 0
    %v5208 = vsel %vm406, %v5201, 0
    %v5210 = vsel %vm406, %v5203, 0
    %v5212 = vsel %vm406, %v5205, 0
    %5214 = vmatprep.subr.mxu0 0.0
    %5215 = vmatpush1.xpose.msra.mxu0 %v5210
    %5216 = vmatprep.subr.mxu0 0.0
    %5217 = vmatpush1.xpose.msra.mxu0 %v5212
    %5218 = vmatprep.subr.mxu0 0.0
    %5219 = vmatpush1.xpose.msra.mxu0 0.0
    %5220 = vmatprep.subr.mxu0 0.0
    %5221 = vmatpush1.xpose.msra.mxu0 0.0
    %5222 = vmatprep.subr.mxu0 0.0
    %5223 = vmatpush1.xpose.msra.mxu0 0.0
    %5224 = vmatprep.subr.mxu0 0.0
    %5225 = vmatpush1.xpose.msra.mxu0 0.0
    %5226 = vmatprep.subr.mxu0 0.0
    %5227 = vmatpush1.xpose.msra.mxu0 0.0
    %5228 = vmatprep.subr.mxu0 0.0
    %5229 = vmatpush1.xpose.msra.mxu0 0.0
    %5230 = vmatprep.subr.mxu0 0.0
    %5231 = vmatpush1.xpose.msra.mxu0 0.0
    %5232 = vmatprep.subr.mxu0 0.0
    %5233 = vmatpush1.xpose.msra.mxu0 0.0
    %5234 = vmatprep.subr.mxu0 0.0
    %5235 = vmatpush1.xpose.msra.mxu0 0.0
    %5236 = vmatprep.subr.mxu0 0.0
    %5237 = vmatpush1.xpose.msra.mxu0 0.0
    %5238 = vmatprep.subr.mxu0 0.0
    %5239 = vmatpush1.xpose.msra.mxu0 0.0
    %5240 = vmatprep.subr.mxu0 0.0
    %5241 = vmatpush1.xpose.msra.mxu0 0.0
    %5242 = vmatprep.subr.mxu0 0.0
    %5243 = vmatpush1.xpose.msra.mxu0 0.0
    %5244 = vmatprep.subr.mxu0 0.0
    %5245 = vmatpush1.xpose.msra.mxu0 0.0
    %5246 = vmatprep.subr.mxu0 0.0
    %5247 = vmatpush1.xpose.msra.mxu0 0.0
    %5248 = vmatprep.subr.mxu0 0.0
    %5249 = vmatpush1.xpose.msra.mxu0 0.0
    %5250 = vmatprep.subr.mxu0 0.0
    %5251 = vmatpush1.xpose.msra.mxu0 0.0
    %5252 = vmatprep.subr.mxu0 0.0
    %5253 = vmatpush1.xpose.msra.mxu0 0.0
    %5254 = vmatprep.subr.mxu0 0.0
    %5255 = vmatpush1.xpose.msra.mxu0 0.0
    %5256 = vmatprep.subr.mxu0 0.0
    %5257 = vmatpush1.xpose.msra.mxu0 0.0
    %5258 = vmatprep.subr.mxu0 0.0
    %5259 = vmatpush1.xpose.msra.mxu0 0.0
    %5260 = vmatprep.subr.mxu0 0.0
    %5261 = vmatpush1.xpose.msra.mxu0 0.0
    %5262 = vmatprep.subr.mxu0 0.0
    %5263 = vmatpush1.xpose.msra.mxu0 0.0
    %5264 = vmatprep.subr.mxu0 0.0
    %5265 = vmatpush1.xpose.msra.mxu0 0.0
    %5266 = vmatprep.subr.mxu0 0.0
    %5267 = vmatpush1.xpose.msra.mxu0 0.0
    %5268 = vmatprep.subr.mxu0 0.0
    %5269 = vmatpush1.xpose.msra.mxu0 0.0
    %5270 = vmatprep.subr.mxu0 0.0
    %5271 = vmatpush1.xpose.msra.mxu0 0.0
    %5272 = vmatprep.subr.mxu0 0.0
    %5273 = vmatpush1.xpose.msra.mxu0 0.0
    %5274 = vmatprep.subr.mxu0 0.0
    %5275 = vmatpush1.xpose.msra.mxu0 0.0
    %5276 = vmatprep.subr.mxu0 0.0
    %5277 = vmatpush1.xpose.msra.mxu0 0.0
    %5278 = vmatprep.mubr.f32.mxu0 0.0
    %5279 = vmatmul.mubr.f32.gmra.mrb[0].mxu0 %v5206
    %v5280 = vpop.f32.mrb[0].mxu0
    %v5281 = vadd.f32 0.0, %v5280
    %v5282 = vpop.f32.mrb[0].mxu0
    %5283 = vmatprep.mubr.f32.mxu0 0.0
    %5284 = vmatmul.mubr.f32.gmra.mrb[0].mxu0 %v5208
    %v5285 = vpop.f32.mrb[0].mxu0
    %v5286 = vadd.f32 0.0, %v5285
    %v5287 = vpop.f32.mrb[0].mxu0
    %5288 = vdwg.mxu0
    %v5289 = vmul.f32 %v5281, 0.35355338
    %v5290 = vmul.f32 %v5286, 0.35355338
    %v5291 = vsel %vm492, %v5289, -inf
    %5292 = vmax.xlane.f32.xlu0 %v5291
    %v5293 = vpop.xlane.xlu0 %5292
    %v5294 = vsel %vm492, %v5290, -inf
    %5295 = vmax.xlane.f32.xlu0 %v5294
    %v5296 = vpop.xlane.xlu0 %5295
    %v5297 = vsub.f32 %v5289, %v5293
    %v5298 = vsub.f32 %v5290, %v5296
    %v5299 = vmul.f32 %v5297, 1.442695
    %v5300 = vpow.pop %v5299
    %v5301 = vmul.f32 %v5298, 1.442695
    %v5302 = vpow.pop %v5301
    %v5303 = vsel %vm492, %v5300, 0.0
    %5304 = vadd.xlane.f32.xlu0 %v5303
    %v5305 = vpop.xlane.xlu0 %5304
    %v5306 = vsel %vm492, %v5302, 0.0
    %5307 = vadd.xlane.f32.xlu0 %v5306
    %v5308 = vpop.xlane.xlu0 %5307
    %v5309 = vrcp.pop %v5305
    %v5310 = vrcp.pop %v5308
    %v5311 = vmul.f32 %v5300, %v5309
    %v5312 = vmul.f32 %v5302, %v5310
    %5313 = vrot.lane.b32.xlu0 %v3207, 40
    %v5314 = vpop.permute.xlu0 %5313
    %5315 = vrot.lane.b32.xlu0 %v3212, 40
    %v5316 = vpop.permute.xlu0 %5315
    %v5320 = vsel %vm492, %v5311, 0
    %v5323 = vsel %vm492, %v5312, 0
    %5325 = vmatprep.subr.mxu0 0.0
    %5326 = vmatpush1.msra.mxu0 %v5314
    %5327 = vmatprep.subr.mxu0 0.0
    %5328 = vmatpush1.msra.mxu0 %v5316
    %5329 = vmatprep.subr.mxu0 0.0
    %5330 = vmatpush1.msra.mxu0 0.0
    %5331 = vmatprep.subr.mxu0 0.0
    %5332 = vmatpush1.msra.mxu0 0.0
    %5333 = vmatprep.subr.mxu0 0.0
    %5334 = vmatpush1.msra.mxu0 0.0
    %5335 = vmatprep.subr.mxu0 0.0
    %5336 = vmatpush1.msra.mxu0 0.0
    %5337 = vmatprep.subr.mxu0 0.0
    %5338 = vmatpush1.msra.mxu0 0.0
    %5339 = vmatprep.subr.mxu0 0.0
    %5340 = vmatpush1.msra.mxu0 0.0
    %5341 = vmatprep.subr.mxu0 0.0
    %5342 = vmatpush1.msra.mxu0 0.0
    %5343 = vmatprep.subr.mxu0 0.0
    %5344 = vmatpush1.msra.mxu0 0.0
    %5345 = vmatprep.subr.mxu0 0.0
    %5346 = vmatpush1.msra.mxu0 0.0
    %5347 = vmatprep.subr.mxu0 0.0
    %5348 = vmatpush1.msra.mxu0 0.0
    %5349 = vmatprep.subr.mxu0 0.0
    %5350 = vmatpush1.msra.mxu0 0.0
    %5351 = vmatprep.subr.mxu0 0.0
    %5352 = vmatpush1.msra.mxu0 0.0
    %5353 = vmatprep.subr.mxu0 0.0
    %5354 = vmatpush1.msra.mxu0 0.0
    %5355 = vmatprep.subr.mxu0 0.0
    %5356 = vmatpush1.msra.mxu0 0.0
    %5357 = vmatprep.subr.mxu0 0.0
    %5358 = vmatpush1.msra.mxu0 0.0
    %5359 = vmatprep.subr.mxu0 0.0
    %5360 = vmatpush1.msra.mxu0 0.0
    %5361 = vmatprep.subr.mxu0 0.0
    %5362 = vmatpush1.msra.mxu0 0.0
    %5363 = vmatprep.subr.mxu0 0.0
    %5364 = vmatpush1.msra.mxu0 0.0
    %5365 = vmatprep.subr.mxu0 0.0
    %5366 = vmatpush1.msra.mxu0 0.0
    %5367 = vmatprep.subr.mxu0 0.0
    %5368 = vmatpush1.msra.mxu0 0.0
    %5369 = vmatprep.subr.mxu0 0.0
    %5370 = vmatpush1.msra.mxu0 0.0
    %5371 = vmatprep.subr.mxu0 0.0
    %5372 = vmatpush1.msra.mxu0 0.0
    %5373 = vmatprep.subr.mxu0 0.0
    %5374 = vmatpush1.msra.mxu0 0.0
    %5375 = vmatprep.subr.mxu0 0.0
    %5376 = vmatpush1.msra.mxu0 0.0
    %5377 = vmatprep.subr.mxu0 0.0
    %5378 = vmatpush1.msra.mxu0 0.0
    %5379 = vmatprep.subr.mxu0 0.0
    %5380 = vmatpush1.msra.mxu0 0.0
    %5381 = vmatprep.subr.mxu0 0.0
    %5382 = vmatpush1.msra.mxu0 0.0
    %5383 = vmatprep.subr.mxu0 0.0
    %5384 = vmatpush1.msra.mxu0 0.0
    %5385 = vmatprep.subr.mxu0 0.0
    %5386 = vmatpush1.msra.mxu0 0.0
    %5387 = vmatprep.subr.mxu0 0.0
    %5388 = vmatpush1.msra.mxu0 0.0
    %5389 = vmatprep.mubr.f32.mxu0 0.0
    %5390 = vmatmul.mubr.f32.gmra.mrb[0].mxu0 %v5320
    %v5391 = vpop.f32.mrb[0].mxu0
    %v5392 = vadd.f32 0.0, %v5391
    %v5393 = vpop.f32.mrb[0].mxu0
    %5394 = vmatprep.mubr.f32.mxu0 0.0
    %5395 = vmatmul.mubr.f32.gmra.mrb[0].mxu0 %v5323
    %v5396 = vpop.f32.mrb[0].mxu0
    %v5397 = vadd.f32 0.0, %v5396
    %v5398 = vpop.f32.mrb[0].mxu0
    %5399 = vdwg.mxu0
    %v5401 = vsel %vm406, %v5392, 0
    %v5404 = vsel %vm406, %v5397, 0
    %5406 = vmatprep.subr.mxu0 0.0
    %5407 = vmatpush1.msra.mxu0 %v3033
    %5408 = vmatprep.subr.mxu0 0.0
    %5409 = vmatpush1.msra.mxu0 0.0
    %5410 = vmatprep.subr.mxu0 0.0
    %5411 = vmatpush1.msra.mxu0 0.0
    %5412 = vmatprep.subr.mxu0 0.0
    %5413 = vmatpush1.msra.mxu0 0.0
    %5414 = vmatprep.subr.mxu0 0.0
    %5415 = vmatpush1.msra.mxu0 0.0
    %5416 = vmatprep.subr.mxu0 0.0
    %5417 = vmatpush1.msra.mxu0 0.0
    %5418 = vmatprep.subr.mxu0 0.0
    %5419 = vmatpush1.msra.mxu0 0.0
    %5420 = vmatprep.subr.mxu0 0.0
    %5421 = vmatpush1.msra.mxu0 0.0
    %5422 = vmatprep.subr.mxu0 0.0
    %5423 = vmatpush1.msra.mxu0 0.0
    %5424 = vmatprep.subr.mxu0 0.0
    %5425 = vmatpush1.msra.mxu0 0.0
    %5426 = vmatprep.subr.mxu0 0.0
    %5427 = vmatpush1.msra.mxu0 0.0
    %5428 = vmatprep.subr.mxu0 0.0
    %5429 = vmatpush1.msra.mxu0 0.0
    %5430 = vmatprep.subr.mxu0 0.0
    %5431 = vmatpush1.msra.mxu0 0.0
    %5432 = vmatprep.subr.mxu0 0.0
    %5433 = vmatpush1.msra.mxu0 0.0
    %5434 = vmatprep.subr.mxu0 0.0
    %5435 = vmatpush1.msra.mxu0 0.0
    %5436 = vmatprep.subr.mxu0 0.0
    %5437 = vmatpush1.msra.mxu0 0.0
    %5438 = vmatprep.subr.mxu0 0.0
    %5439 = vmatpush1.msra.mxu0 0.0
    %5440 = vmatprep.subr.mxu0 0.0
    %5441 = vmatpush1.msra.mxu0 0.0
    %5442 = vmatprep.subr.mxu0 0.0
    %5443 = vmatpush1.msra.mxu0 0.0
    %5444 = vmatprep.subr.mxu0 0.0
    %5445 = vmatpush1.msra.mxu0 0.0
    %5446 = vmatprep.subr.mxu0 0.0
    %5447 = vmatpush1.msra.mxu0 0.0
    %5448 = vmatprep.subr.mxu0 0.0
    %5449 = vmatpush1.msra.mxu0 0.0
    %5450 = vmatprep.subr.mxu0 0.0
    %5451 = vmatpush1.msra.mxu0 0.0
    %5452 = vmatprep.subr.mxu0 0.0
    %5453 = vmatpush1.msra.mxu0 0.0
    %5454 = vmatprep.subr.mxu0 0.0
    %5455 = vmatpush1.msra.mxu0 0.0
    %5456 = vmatprep.subr.mxu0 0.0
    %5457 = vmatpush1.msra.mxu0 0.0
    %5458 = vmatprep.subr.mxu0 0.0
    %5459 = vmatpush1.msra.mxu0 0.0
    %5460 = vmatprep.subr.mxu0 0.0
    %5461 = vmatpush1.msra.mxu0 0.0
    %5462 = vmatprep.subr.mxu0 0.0
    %5463 = vmatpush1.msra.mxu0 0.0
    %5464 = vmatprep.subr.mxu0 0.0
    %5465 = vmatpush1.msra.mxu0 0.0
    %5466 = vmatprep.subr.mxu0 0.0
    %5467 = vmatpush1.msra.mxu0 0.0
    %5468 = vmatprep.subr.mxu0 0.0
    %5469 = vmatpush1.msra.mxu0 0.0
    %5470 = vmatprep.mubr.f32.mxu0 0.0
    %5471 = vmatmul.mubr.f32.gmra.mrb[0].mxu0 %v5401
    %v5472 = vpop.f32.mrb[0].mxu0
    %v5473 = vadd.f32 0.0, %v5472
    %v5474 = vpop.f32.mrb[0].mxu0
    %5475 = vmatprep.mubr.f32.mxu0 0.0
    %5476 = vmatmul.mubr.f32.gmra.mrb[0].mxu0 %v5404
    %v5477 = vpop.f32.mrb[0].mxu0
    %v5478 = vadd.f32 0.0, %v5477
    %v5479 = vpop.f32.mrb[0].mxu0
    %5480 = vdwg.mxu0
    %v5481 = vadd.f32 %v5196, %v5473
    %v5482 = vadd.f32 %v5197, %v5478
    %v5483 = vadd.f32 %v3018, %v4347
    %v5484 = vadd.f32 %v3019, %v4348
    %v5485 = vadd.f32 %v3020, %v5481
    %v5486 = vadd.f32 %v3021, %v5482
    %v5488 = vlaneseq
    %v5489 = vshrl.u32 %v5488, 7
    %v5490 = vsub.s32 0, %v5489
    %v5491 = vrot.slane %v3035, %v5490
    %v5493 = vadd.f32 %v5483, %v5491
    %v5494 = vadd.f32 %v5484, %v5491
    %v5495 = vadd.f32 %v5485, %v5491
    %v5496 = vadd.f32 %v5486, %v5491
    %s5497 = scalar_lea.vmem %s10, 1
    %v5498 = vld [vmem:[%s5497] sm:$0x1]
    %s5499 = scalar_lea.vmem %s11, 1
    %v5500 = vld [vmem:[%s5499] sm:$0x1]
    %v5501 = vsel %vm223, %v5493, 0.0
    %5502 = vadd.xlane.f32.xlu0 %v5501
    %v5503 = vpop.xlane.xlu0 %5502
    %v5504 = vsel %vm223, %v5494, 0.0
    %5505 = vadd.xlane.f32.xlu0 %v5504
    %v5506 = vpop.xlane.xlu0 %5505
    %v5507 = vsel %vm223, %v5495, 0.0
    %5508 = vadd.xlane.f32.xlu0 %v5507
    %v5509 = vpop.xlane.xlu0 %5508
    %v5510 = vsel %vm223, %v5496, 0.0
    %5511 = vadd.xlane.f32.xlu0 %v5510
    %v5512 = vpop.xlane.xlu0 %5511
    %v5513 = vmul.f32 %v5503, %v236
    %v5514 = vmul.f32 %v5506, %v236
    %v5515 = vmul.f32 %v5509, %v236
    %v5516 = vmul.f32 %v5512, %v236
    %v5517 = vsub.f32 %v5493, %v5513
    %v5518 = vsub.f32 %v5494, %v5514
    %v5519 = vsub.f32 %v5495, %v5515
    %v5520 = vsub.f32 %v5496, %v5516
    %v5521 = vmul.f32 %v5517, %v5517
    %v5522 = vmul.f32 %v5518, %v5518
    %v5523 = vmul.f32 %v5519, %v5519
    %v5524 = vmul.f32 %v5520, %v5520
    %v5525 = vsel %vm223, %v5521, 0.0
    %5526 = vadd.xlane.f32.xlu0 %v5525
    %v5527 = vpop.xlane.xlu0 %5526
    %v5528 = vsel %vm223, %v5522, 0.0
    %5529 = vadd.xlane.f32.xlu0 %v5528
    %v5530 = vpop.xlane.xlu0 %5529
    %v5531 = vsel %vm223, %v5523, 0.0
    %5532 = vadd.xlane.f32.xlu0 %v5531
    %v5533 = vpop.xlane.xlu0 %5532
    %v5534 = vsel %vm223, %v5524, 0.0
    %5535 = vadd.xlane.f32.xlu0 %v5534
    %v5536 = vpop.xlane.xlu0 %5535
    %v5537 = vmul.f32 %v5527, %v236
    %v5538 = vmul.f32 %v5530, %v236
    %v5539 = vmul.f32 %v5533, %v236
    %v5540 = vmul.f32 %v5536, %v236
    %v5541 = vadd.f32 %v5537, 1e-06
    %v5542 = vadd.f32 %v5538, 1e-06
    %v5543 = vadd.f32 %v5539, 1e-06
    %v5544 = vadd.f32 %v5540, 1e-06
    %v5545 = vrsqrt.pop %v5541
    %v5546 = vrsqrt.pop %v5542
    %v5547 = vrsqrt.pop %v5543
    %v5548 = vrsqrt.pop %v5544
    %v5549 = vmul.f32 %v5517, %v5545
    %v5550 = vmul.f32 %v5518, %v5546
    %v5551 = vmul.f32 %v5519, %v5547
    %v5552 = vmul.f32 %v5520, %v5548
    %v5554 = vlaneseq
    %v5555 = vshrl.u32 %v5554, 7
    %v5556 = vsub.s32 0, %v5555
    %v5557 = vrot.slane %v5498, %v5556
    %v5559 = vmul.f32 %v5549, %v5557
    %v5560 = vmul.f32 %v5550, %v5557
    %v5561 = vmul.f32 %v5551, %v5557
    %v5562 = vmul.f32 %v5552, %v5557
    %v5564 = vlaneseq
    %v5565 = vshrl.u32 %v5564, 7
    %v5566 = vsub.s32 0, %v5565
    %v5567 = vrot.slane %v5500, %v5566
    %v5569 = vadd.f32 %v5559, %v5567
    %v5570 = vadd.f32 %v5560, %v5567
    %v5571 = vadd.f32 %v5561, %v5567
    %v5572 = vadd.f32 %v5562, %v5567
    %s5573 = scalar_lea.vmem %s12, 32
    %v5574 = vld [vmem:[%s5573] sm:$0xff]
    %v5575 = vld [vmem:[%s5573 + $0x8] sm:$0xff]
    %v5576 = vld [vmem:[%s5573 + $0x10] sm:$0xff]
    %v5577 = vld [vmem:[%s5573 + $0x18] sm:$0xff]
    %s5578 = scalar_lea.vmem %s13, 1
    %v5579 = vld [vmem:[%s5578] sm:$0x1]
    %v5581 = vlaneseq
    %v5582 = vshrl.u32 %v5581, 7
    %v5583 = vsub.s32 0, %v5582
    %v5584 = vrot.slane %v5579, %v5583
    %v5587 = vsel %vm223, %v5569, 0
    %v5590 = vsel %vm223, %v5570, 0
    %v5593 = vsel %vm223, %v5571, 0
    %v5596 = vsel %vm223, %v5572, 0
    %5598 = vmatprep.subr.mxu0 0.0
    %5599 = vmatpush1.msra.mxu0 %v5574
    %5600 = vmatprep.subr.mxu0 0.0
    %5601 = vmatpush1.msra.mxu0 %v5575
    %5602 = vmatprep.subr.mxu0 0.0
    %5603 = vmatpush1.msra.mxu0 %v5576
    %5604 = vmatprep.subr.mxu0 0.0
    %5605 = vmatpush1.msra.mxu0 %v5577
    %5606 = vmatprep.subr.mxu0 0.0
    %5607 = vmatpush1.msra.mxu0 0.0
    %5608 = vmatprep.subr.mxu0 0.0
    %5609 = vmatpush1.msra.mxu0 0.0
    %5610 = vmatprep.subr.mxu0 0.0
    %5611 = vmatpush1.msra.mxu0 0.0
    %5612 = vmatprep.subr.mxu0 0.0
    %5613 = vmatpush1.msra.mxu0 0.0
    %5614 = vmatprep.subr.mxu0 0.0
    %5615 = vmatpush1.msra.mxu0 0.0
    %5616 = vmatprep.subr.mxu0 0.0
    %5617 = vmatpush1.msra.mxu0 0.0
    %5618 = vmatprep.subr.mxu0 0.0
    %5619 = vmatpush1.msra.mxu0 0.0
    %5620 = vmatprep.subr.mxu0 0.0
    %5621 = vmatpush1.msra.mxu0 0.0
    %5622 = vmatprep.subr.mxu0 0.0
    %5623 = vmatpush1.msra.mxu0 0.0
    %5624 = vmatprep.subr.mxu0 0.0
    %5625 = vmatpush1.msra.mxu0 0.0
    %5626 = vmatprep.subr.mxu0 0.0
    %5627 = vmatpush1.msra.mxu0 0.0
    %5628 = vmatprep.subr.mxu0 0.0
    %5629 = vmatpush1.msra.mxu0 0.0
    %5630 = vmatprep.subr.mxu0 0.0
    %5631 = vmatpush1.msra.mxu0 0.0
    %5632 = vmatprep.subr.mxu0 0.0
    %5633 = vmatpush1.msra.mxu0 0.0
    %5634 = vmatprep.subr.mxu0 0.0
    %5635 = vmatpush1.msra.mxu0 0.0
    %5636 = vmatprep.subr.mxu0 0.0
    %5637 = vmatpush1.msra.mxu0 0.0
    %5638 = vmatprep.subr.mxu0 0.0
    %5639 = vmatpush1.msra.mxu0 0.0
    %5640 = vmatprep.subr.mxu0 0.0
    %5641 = vmatpush1.msra.mxu0 0.0
    %5642 = vmatprep.subr.mxu0 0.0
    %5643 = vmatpush1.msra.mxu0 0.0
    %5644 = vmatprep.subr.mxu0 0.0
    %5645 = vmatpush1.msra.mxu0 0.0
    %5646 = vmatprep.subr.mxu0 0.0
    %5647 = vmatpush1.msra.mxu0 0.0
    %5648 = vmatprep.subr.mxu0 0.0
    %5649 = vmatpush1.msra.mxu0 0.0
    %5650 = vmatprep.subr.mxu0 0.0
    %5651 = vmatpush1.msra.mxu0 0.0
    %5652 = vmatprep.subr.mxu0 0.0
    %5653 = vmatpush1.msra.mxu0 0.0
    %5654 = vmatprep.subr.mxu0 0.0
    %5655 = vmatpush1.msra.mxu0 0.0
    %5656 = vmatprep.subr.mxu0 0.0
    %5657 = vmatpush1.msra.mxu0 0.0
    %5658 = vmatprep.subr.mxu0 0.0
    %5659 = vmatpush1.msra.mxu0 0.0
    %5660 = vmatprep.subr.mxu0 0.0
    %5661 = vmatpush1.msra.mxu0 0.0
    %5662 = vmatprep.mubr.f32.mxu0 0.0
    %5663 = vmatmul.mubr.f32.gmra.mrb[0].mxu0 %v5587
    %v5664 = vpop.f32.mrb[0].mxu0
    %v5665 = vadd.f32 %v5584, %v5664
    %v5666 = vpop.f32.mrb[0].mxu0
    %5667 = vmatprep.mubr.f32.mxu0 0.0
    %5668 = vmatmul.mubr.f32.gmra.mrb[0].mxu0 %v5590
    %v5669 = vpop.f32.mrb[0].mxu0
    %v5670 = vadd.f32 %v5584, %v5669
    %v5671 = vpop.f32.mrb[0].mxu0
    %5672 = vmatprep.mubr.f32.mxu0 0.0
    %5673 = vmatmul.mubr.f32.gmra.mrb[0].mxu0 %v5593
    %v5674 = vpop.f32.mrb[0].mxu0
    %v5675 = vadd.f32 %v5584, %v5674
    %v5676 = vpop.f32.mrb[0].mxu0
    %5677 = vmatprep.mubr.f32.mxu0 0.0
    %5678 = vmatmul.mubr.f32.gmra.mrb[0].mxu0 %v5596
    %v5679 = vpop.f32.mrb[0].mxu0
    %v5680 = vadd.f32 %v5584, %v5679
    %v5681 = vpop.f32.mrb[0].mxu0
    %5682 = vdwg.mxu0
    %v5683 = vmul.f32 %v5665, 0.5
    %v5684 = vmul.f32 %v5670, 0.5
    %v5685 = vmul.f32 %v5675, 0.5
    %v5686 = vmul.f32 %v5680, 0.5
    %v5687 = vmul.f32 %v5665, 0.044715
    %v5688 = vmul.f32 %v5670, 0.044715
    %v5689 = vmul.f32 %v5675, 0.044715
    %v5690 = vmul.f32 %v5680, 0.044715
    %v5691 = vmul.f32 %v5687, %v5665
    %v5692 = vmul.f32 %v5688, %v5670
    %v5693 = vmul.f32 %v5689, %v5675
    %v5694 = vmul.f32 %v5690, %v5680
    %v5695 = vmul.f32 %v5691, %v5665
    %v5696 = vmul.f32 %v5692, %v5670
    %v5697 = vmul.f32 %v5693, %v5675
    %v5698 = vmul.f32 %v5694, %v5680
    %v5699 = vadd.f32 %v5665, %v5695
    %v5700 = vadd.f32 %v5670, %v5696
    %v5701 = vadd.f32 %v5675, %v5697
    %v5702 = vadd.f32 %v5680, %v5698
    %v5703 = vmul.f32 %v5699, 0.7978846
    %v5704 = vmul.f32 %v5700, 0.7978846
    %v5705 = vmul.f32 %v5701, 0.7978846
    %v5706 = vmul.f32 %v5702, 0.7978846
    %v5707 = vtanh.pop %v5703
    %v5708 = vtanh.pop %v5704
    %v5709 = vtanh.pop %v5705
    %v5710 = vtanh.pop %v5706
    %v5711 = vadd.f32 %v5707, 1.0
    %v5712 = vadd.f32 %v5708, 1.0
    %v5713 = vadd.f32 %v5709, 1.0
    %v5714 = vadd.f32 %v5710, 1.0
    %v5715 = vmul.f32 %v5683, %v5711
    %v5716 = vmul.f32 %v5684, %v5712
    %v5717 = vmul.f32 %v5685, %v5713
    %v5718 = vmul.f32 %v5686, %v5714
    %s5719 = scalar_lea.vmem %s14, 64
    %v5720 = vld [vmem:[%s5719] sm:$0xff]
    %v5721 = vld [vmem:[%s5719 + $0x8] sm:$0xff]
    %v5722 = vld [vmem:[%s5719 + $0x10] sm:$0xff]
    %v5723 = vld [vmem:[%s5719 + $0x18] sm:$0xff]
    %v5724 = vld [vmem:[%s5719 + $0x20] sm:$0xff]
    %v5725 = vld [vmem:[%s5719 + $0x28] sm:$0xff]
    %v5726 = vld [vmem:[%s5719 + $0x30] sm:$0xff]
    %v5727 = vld [vmem:[%s5719 + $0x38] sm:$0xff]
    %v5729 = vsel %vm105, %v5715, 0
    %v5732 = vsel %vm105, %v5716, 0
    %v5735 = vsel %vm105, %v5717, 0
    %v5738 = vsel %vm105, %v5718, 0
    %5740 = vmatprep.subr.mxu0 0.0
    %5741 = vmatpush1.msra.mxu0 %v5720
    %5742 = vmatprep.subr.mxu0 0.0
    %5743 = vmatpush1.msra.mxu0 %v5721
    %5744 = vmatprep.subr.mxu0 0.0
    %5745 = vmatpush1.msra.mxu0 %v5722
    %5746 = vmatprep.subr.mxu0 0.0
    %5747 = vmatpush1.msra.mxu0 %v5723
    %5748 = vmatprep.subr.mxu0 0.0
    %5749 = vmatpush1.msra.mxu0 %v5724
    %5750 = vmatprep.subr.mxu0 0.0
    %5751 = vmatpush1.msra.mxu0 %v5725
    %5752 = vmatprep.subr.mxu0 0.0
    %5753 = vmatpush1.msra.mxu0 %v5726
    %5754 = vmatprep.subr.mxu0 0.0
    %5755 = vmatpush1.msra.mxu0 %v5727
    %5756 = vmatprep.subr.mxu0 0.0
    %5757 = vmatpush1.msra.mxu0 0.0
    %5758 = vmatprep.subr.mxu0 0.0
    %5759 = vmatpush1.msra.mxu0 0.0
    %5760 = vmatprep.subr.mxu0 0.0
    %5761 = vmatpush1.msra.mxu0 0.0
    %5762 = vmatprep.subr.mxu0 0.0
    %5763 = vmatpush1.msra.mxu0 0.0
    %5764 = vmatprep.subr.mxu0 0.0
    %5765 = vmatpush1.msra.mxu0 0.0
    %5766 = vmatprep.subr.mxu0 0.0
    %5767 = vmatpush1.msra.mxu0 0.0
    %5768 = vmatprep.subr.mxu0 0.0
    %5769 = vmatpush1.msra.mxu0 0.0
    %5770 = vmatprep.subr.mxu0 0.0
    %5771 = vmatpush1.msra.mxu0 0.0
    %5772 = vmatprep.subr.mxu0 0.0
    %5773 = vmatpush1.msra.mxu0 0.0
    %5774 = vmatprep.subr.mxu0 0.0
    %5775 = vmatpush1.msra.mxu0 0.0
    %5776 = vmatprep.subr.mxu0 0.0
    %5777 = vmatpush1.msra.mxu0 0.0
    %5778 = vmatprep.subr.mxu0 0.0
    %5779 = vmatpush1.msra.mxu0 0.0
    %5780 = vmatprep.subr.mxu0 0.0
    %5781 = vmatpush1.msra.mxu0 0.0
    %5782 = vmatprep.subr.mxu0 0.0
    %5783 = vmatpush1.msra.mxu0 0.0
    %5784 = vmatprep.subr.mxu0 0.0
    %5785 = vmatpush1.msra.mxu0 0.0
    %5786 = vmatprep.subr.mxu0 0.0
    %5787 = vmatpush1.msra.mxu0 0.0
    %5788 = vmatprep.subr.mxu0 0.0
    %5789 = vmatpush1.msra.mxu0 0.0
    %5790 = vmatprep.subr.mxu0 0.0
    %5791 = vmatpush1.msra.mxu0 0.0
    %5792 = vmatprep.subr.mxu0 0.0
    %5793 = vmatpush1.msra.mxu0 0.0
    %5794 = vmatprep.subr.mxu0 0.0
    %5795 = vmatpush1.msra.mxu0 0.0
    %5796 = vmatprep.subr.mxu0 0.0
    %5797 = vmatpush1.msra.mxu0 0.0
    %5798 = vmatprep.subr.mxu0 0.0
    %5799 = vmatpush1.msra.mxu0 0.0
    %5800 = vmatprep.subr.mxu0 0.0
    %5801 = vmatpush1.msra.mxu0 0.0
    %5802 = vmatprep.subr.mxu0 0.0
    %5803 = vmatpush1.msra.mxu0 0.0
    %5804 = vmatprep.mubr.f32.mxu0 0.0
    %5805 = vmatmul.mubr.f32.gmra.mrb[0].mxu0 %v5729
    %v5806 = vpop.f32.mrb[0].mxu0
    %v5807 = vadd.f32 0.0, %v5806
    %v5808 = vpop.f32.mrb[0].mxu0
    %5809 = vmatprep.mubr.f32.mxu0 0.0
    %5810 = vmatmul.mubr.f32.gmra.mrb[0].mxu0 %v5732
    %v5811 = vpop.f32.mrb[0].mxu0
    %v5812 = vadd.f32 0.0, %v5811
    %v5813 = vpop.f32.mrb[0].mxu0
    %5814 = vmatprep.mubr.f32.mxu0 0.0
    %5815 = vmatmul.mubr.f32.gmra.mrb[0].mxu0 %v5735
    %v5816 = vpop.f32.mrb[0].mxu0
    %v5817 = vadd.f32 0.0, %v5816
    %v5818 = vpop.f32.mrb[0].mxu0
    %5819 = vmatprep.mubr.f32.mxu0 0.0
    %5820 = vmatmul.mubr.f32.gmra.mrb[0].mxu0 %v5738
    %v5821 = vpop.f32.mrb[0].mxu0
    %v5822 = vadd.f32 0.0, %v5821
    %v5823 = vpop.f32.mrb[0].mxu0
    %5824 = vdwg.mxu0
    %v5825 = vadd.f32 %v5493, %v5807
    %v5826 = vadd.f32 %v5494, %v5812
    %v5827 = vadd.f32 %v5495, %v5817
    %v5828 = vadd.f32 %v5496, %v5822
    %s5829 = scalar_lea.vmem %s15, 1
    %v5830 = vld [vmem:[%s5829] sm:$0x1]
    %v5832 = vlaneseq
    %v5833 = vshrl.u32 %v5832, 7
    %v5834 = vsub.s32 0, %v5833
    %v5835 = vrot.slane %v5830, %v5834
    %v5837 = vadd.f32 %v5825, %v5835
    %v5838 = vadd.f32 %v5826, %v5835
    %v5839 = vadd.f32 %v5827, %v5835
    %v5840 = vadd.f32 %v5828, %v5835
    %v5841 = vld [vmem:[%s16] sm:$0x1]
    %v5842 = vld [vmem:[%s17] sm:$0x1]
    %v5843 = vsel %vm223, %v5837, 0.0
    %5844 = vadd.xlane.f32.xlu0 %v5843
    %v5845 = vpop.xlane.xlu0 %5844
    %v5846 = vsel %vm223, %v5838, 0.0
    %5847 = vadd.xlane.f32.xlu0 %v5846
    %v5848 = vpop.xlane.xlu0 %5847
    %v5849 = vsel %vm223, %v5839, 0.0
    %5850 = vadd.xlane.f32.xlu0 %v5849
    %v5851 = vpop.xlane.xlu0 %5850
    %v5852 = vsel %vm223, %v5840, 0.0
    %5853 = vadd.xlane.f32.xlu0 %v5852
    %v5854 = vpop.xlane.xlu0 %5853
    %v5855 = vmul.f32 %v5845, %v236
    %v5856 = vmul.f32 %v5848, %v236
    %v5857 = vmul.f32 %v5851, %v236
    %v5858 = vmul.f32 %v5854, %v236
    %v5859 = vsub.f32 %v5837, %v5855
    %v5860 = vsub.f32 %v5838, %v5856
    %v5861 = vsub.f32 %v5839, %v5857
    %v5862 = vsub.f32 %v5840, %v5858
    %v5863 = vmul.f32 %v5859, %v5859
    %v5864 = vmul.f32 %v5860, %v5860
    %v5865 = vmul.f32 %v5861, %v5861
    %v5866 = vmul.f32 %v5862, %v5862
    %v5867 = vsel %vm223, %v5863, 0.0
    %5868 = vadd.xlane.f32.xlu0 %v5867
    %v5869 = vpop.xlane.xlu0 %5868
    %v5870 = vsel %vm223, %v5864, 0.0
    %5871 = vadd.xlane.f32.xlu0 %v5870
    %v5872 = vpop.xlane.xlu0 %5871
    %v5873 = vsel %vm223, %v5865, 0.0
    %5874 = vadd.xlane.f32.xlu0 %v5873
    %v5875 = vpop.xlane.xlu0 %5874
    %v5876 = vsel %vm223, %v5866, 0.0
    %5877 = vadd.xlane.f32.xlu0 %v5876
    %v5878 = vpop.xlane.xlu0 %5877
    %v5879 = vmul.f32 %v5869, %v236
    %v5880 = vmul.f32 %v5872, %v236
    %v5881 = vmul.f32 %v5875, %v236
    %v5882 = vmul.f32 %v5878, %v236
    %v5883 = vadd.f32 %v5879, 1e-06
    %v5884 = vadd.f32 %v5880, 1e-06
    %v5885 = vadd.f32 %v5881, 1e-06
    %v5886 = vadd.f32 %v5882, 1e-06
    %v5887 = vrsqrt.pop %v5883
    %v5888 = vrsqrt.pop %v5884
    %v5889 = vrsqrt.pop %v5885
    %v5890 = vrsqrt.pop %v5886
    %v5891 = vmul.f32 %v5859, %v5887
    %v5892 = vmul.f32 %v5860, %v5888
    %v5893 = vmul.f32 %v5861, %v5889
    %v5894 = vmul.f32 %v5862, %v5890
    %v5896 = vlaneseq
    %v5897 = vshrl.u32 %v5896, 7
    %v5898 = vsub.s32 0, %v5897
    %v5899 = vrot.slane %v5841, %v5898
    %v5901 = vmul.f32 %v5891, %v5899
    %v5902 = vmul.f32 %v5892, %v5899
    %v5903 = vmul.f32 %v5893, %v5899
    %v5904 = vmul.f32 %v5894, %v5899
    %v5906 = vlaneseq
    %v5907 = vshrl.u32 %v5906, 7
    %v5908 = vsub.s32 0, %v5907
    %v5909 = vrot.slane %v5842, %v5908
    %v5911 = vadd.f32 %v5901, %v5909
    %v5912 = vadd.f32 %v5902, %v5909
    %v5913 = vadd.f32 %v5903, %v5909
    %v5914 = vadd.f32 %v5904, %v5909
    %v5915 = vld [vmem:[%s18] sm:$0xff]
    %v5916 = vld [vmem:[%s18 + $0x8] sm:$0xff]
    %v5917 = vld [vmem:[%s18 + $0x10] sm:$0xff]
    %v5918 = vld [vmem:[%s18 + $0x18] sm:$0xff]
    %v5920 = vsel %vm223, %v5915, 0
    %v5923 = vsel %vm223, %v5916, 0
    %v5926 = vsel %vm223, %v5917, 0
    %v5929 = vsel %vm223, %v5918, 0
    %5931 = vmatprep.subr.mxu0 0.0
    %5932 = vmatpush1.msra.mxu0 %v5911
    %5933 = vmatprep.subr.mxu0 0.0
    %5934 = vmatpush1.msra.mxu0 %v5912
    %5935 = vmatprep.subr.mxu0 0.0
    %5936 = vmatpush1.msra.mxu0 %v5913
    %5937 = vmatprep.subr.mxu0 0.0
    %5938 = vmatpush1.msra.mxu0 %v5914
    %5939 = vmatprep.subr.mxu0 0.0
    %5940 = vmatpush1.msra.mxu0 0.0
    %5941 = vmatprep.subr.mxu0 0.0
    %5942 = vmatpush1.msra.mxu0 0.0
    %5943 = vmatprep.subr.mxu0 0.0
    %5944 = vmatpush1.msra.mxu0 0.0
    %5945 = vmatprep.subr.mxu0 0.0
    %5946 = vmatpush1.msra.mxu0 0.0
    %5947 = vmatprep.subr.mxu0 0.0
    %5948 = vmatpush1.msra.mxu0 0.0
    %5949 = vmatprep.subr.mxu0 0.0
    %5950 = vmatpush1.msra.mxu0 0.0
    %5951 = vmatprep.subr.mxu0 0.0
    %5952 = vmatpush1.msra.mxu0 0.0
    %5953 = vmatprep.subr.mxu0 0.0
    %5954 = vmatpush1.msra.mxu0 0.0
    %5955 = vmatprep.subr.mxu0 0.0
    %5956 = vmatpush1.msra.mxu0 0.0
    %5957 = vmatprep.subr.mxu0 0.0
    %5958 = vmatpush1.msra.mxu0 0.0
    %5959 = vmatprep.subr.mxu0 0.0
    %5960 = vmatpush1.msra.mxu0 0.0
    %5961 = vmatprep.subr.mxu0 0.0
    %5962 = vmatpush1.msra.mxu0 0.0
    %5963 = vmatprep.subr.mxu0 0.0
    %5964 = vmatpush1.msra.mxu0 0.0
    %5965 = vmatprep.subr.mxu0 0.0
    %5966 = vmatpush1.msra.mxu0 0.0
    %5967 = vmatprep.subr.mxu0 0.0
    %5968 = vmatpush1.msra.mxu0 0.0
    %5969 = vmatprep.subr.mxu0 0.0
    %5970 = vmatpush1.msra.mxu0 0.0
    %5971 = vmatprep.subr.mxu0 0.0
    %5972 = vmatpush1.msra.mxu0 0.0
    %5973 = vmatprep.subr.mxu0 0.0
    %5974 = vmatpush1.msra.mxu0 0.0
    %5975 = vmatprep.subr.mxu0 0.0
    %5976 = vmatpush1.msra.mxu0 0.0
    %5977 = vmatprep.subr.mxu0 0.0
    %5978 = vmatpush1.msra.mxu0 0.0
    %5979 = vmatprep.subr.mxu0 0.0
    %5980 = vmatpush1.msra.mxu0 0.0
    %5981 = vmatprep.subr.mxu0 0.0
    %5982 = vmatpush1.msra.mxu0 0.0
    %5983 = vmatprep.subr.mxu0 0.0
    %5984 = vmatpush1.msra.mxu0 0.0
    %5985 = vmatprep.subr.mxu0 0.0
    %5986 = vmatpush1.msra.mxu0 0.0
    %5987 = vmatprep.subr.mxu0 0.0
    %5988 = vmatpush1.msra.mxu0 0.0
    %5989 = vmatprep.subr.mxu0 0.0
    %5990 = vmatpush1.msra.mxu0 0.0
    %5991 = vmatprep.subr.mxu0 0.0
    %5992 = vmatpush1.msra.mxu0 0.0
    %5993 = vmatprep.subr.mxu0 0.0
    %5994 = vmatpush1.msra.mxu0 0.0
    %5995 = vmatprep.mubr.f32.mxu0 0.0
    %5996 = vmatmul.mubr.f32.gmra.mrb[0].mxu0 %v5920
    %v5997 = vpop.f32.mrb[0].mxu0
    %v5998 = vadd.f32 0.0, %v5997
    %v5999 = vpop.f32.mrb[0].mxu0
    %6000 = vmatprep.mubr.f32.mxu0 0.0
    %6001 = vmatmul.mubr.f32.gmra.mrb[0].mxu0 %v5923
    %v6002 = vpop.f32.mrb[0].mxu0
    %v6003 = vadd.f32 0.0, %v6002
    %v6004 = vpop.f32.mrb[0].mxu0
    %6005 = vmatprep.mubr.f32.mxu0 0.0
    %6006 = vmatmul.mubr.f32.gmra.mrb[0].mxu0 %v5926
    %v6007 = vpop.f32.mrb[0].mxu0
    %v6008 = vadd.f32 0.0, %v6007
    %v6009 = vpop.f32.mrb[0].mxu0
    %6010 = vmatprep.mubr.f32.mxu0 0.0
    %6011 = vmatmul.mubr.f32.gmra.mrb[0].mxu0 %v5929
    %v6012 = vpop.f32.mrb[0].mxu0
    %v6013 = vadd.f32 0.0, %v6012
    %v6014 = vpop.f32.mrb[0].mxu0
    %6015 = vdwg.mxu0
    %v6016 = vld [vmem:[%s19] sm:$0xff]
    %v6017 = vld [vmem:[%s19 + $0x8] sm:$0xff]
    %v6018 = vld [vmem:[%s19 + $0x10] sm:$0xff]
    %v6019 = vld [vmem:[%s19 + $0x18] sm:$0xff]
    %v6020 = vld [vmem:[%s19 + $0x20] sm:$0xff]
    %v6021 = vld [vmem:[%s19 + $0x28] sm:$0xff]
    %v6022 = vld [vmem:[%s19 + $0x30] sm:$0xff]
    %v6023 = vld [vmem:[%s19 + $0x38] sm:$0xff]
    %v6025 = vsel %vm223, %v6003, 0
    %6027 = vmatprep.subr.mxu0 0.0
    %6028 = vmatpush1.msra.mxu0 %v6020
    %6029 = vmatprep.subr.mxu0 0.0
    %6030 = vmatpush1.msra.mxu0 %v6021
    %6031 = vmatprep.subr.mxu0 0.0
    %6032 = vmatpush1.msra.mxu0 %v6022
    %6033 = vmatprep.subr.mxu0 0.0
    %6034 = vmatpush1.msra.mxu0 %v6023
    %6035 = vmatprep.subr.mxu0 0.0
    %6036 = vmatpush1.msra.mxu0 0.0
    %6037 = vmatprep.subr.mxu0 0.0
    %6038 = vmatpush1.msra.mxu0 0.0
    %6039 = vmatprep.subr.mxu0 0.0
    %6040 = vmatpush1.msra.mxu0 0.0
    %6041 = vmatprep.subr.mxu0 0.0
    %6042 = vmatpush1.msra.mxu0 0.0
    %6043 = vmatprep.subr.mxu0 0.0
    %6044 = vmatpush1.msra.mxu0 0.0
    %6045 = vmatprep.subr.mxu0 0.0
    %6046 = vmatpush1.msra.mxu0 0.0
    %6047 = vmatprep.subr.mxu0 0.0
    %6048 = vmatpush1.msra.mxu0 0.0
    %6049 = vmatprep.subr.mxu0 0.0
    %6050 = vmatpush1.msra.mxu0 0.0
    %6051 = vmatprep.subr.mxu0 0.0
    %6052 = vmatpush1.msra.mxu0 0.0
    %6053 = vmatprep.subr.mxu0 0.0
    %6054 = vmatpush1.msra.mxu0 0.0
    %6055 = vmatprep.subr.mxu0 0.0
    %6056 = vmatpush1.msra.mxu0 0.0
    %6057 = vmatprep.subr.mxu0 0.0
    %6058 = vmatpush1.msra.mxu0 0.0
    %6059 = vmatprep.subr.mxu0 0.0
    %6060 = vmatpush1.msra.mxu0 0.0
    %6061 = vmatprep.subr.mxu0 0.0
    %6062 = vmatpush1.msra.mxu0 0.0
    %6063 = vmatprep.subr.mxu0 0.0
    %6064 = vmatpush1.msra.mxu0 0.0
    %6065 = vmatprep.subr.mxu0 0.0
    %6066 = vmatpush1.msra.mxu0 0.0
    %6067 = vmatprep.subr.mxu0 0.0
    %6068 = vmatpush1.msra.mxu0 0.0
    %6069 = vmatprep.subr.mxu0 0.0
    %6070 = vmatpush1.msra.mxu0 0.0
    %6071 = vmatprep.subr.mxu0 0.0
    %6072 = vmatpush1.msra.mxu0 0.0
    %6073 = vmatprep.subr.mxu0 0.0
    %6074 = vmatpush1.msra.mxu0 0.0
    %6075 = vmatprep.subr.mxu0 0.0
    %6076 = vmatpush1.msra.mxu0 0.0
    %6077 = vmatprep.subr.mxu0 0.0
    %6078 = vmatpush1.msra.mxu0 0.0
    %6079 = vmatprep.subr.mxu0 0.0
    %6080 = vmatpush1.msra.mxu0 0.0
    %6081 = vmatprep.subr.mxu0 0.0
    %6082 = vmatpush1.msra.mxu0 0.0
    %6083 = vmatprep.subr.mxu0 0.0
    %6084 = vmatpush1.msra.mxu0 0.0
    %6085 = vmatprep.subr.mxu0 0.0
    %6086 = vmatpush1.msra.mxu0 0.0
    %6087 = vmatprep.subr.mxu0 0.0
    %6088 = vmatpush1.msra.mxu0 0.0
    %6089 = vmatprep.subr.mxu0 0.0
    %6090 = vmatpush1.msra.mxu0 0.0
    %6091 = vmatprep.mubr.f32.mxu0 0.0
    %6092 = vmatmul.mubr.f32.gmra.mrb[0].mxu0 %v6025
    %v6093 = vpop.f32.mrb[0].mxu0
    %v6094 = vadd.f32 0.0, %v6093
    %v6095 = vpop.f32.mrb[0].mxu0
    %6096 = vdwg.mxu0
    %v6098 = vsel %vm223, %v5998, 0
    %6100 = vmatprep.subr.mxu0 0.0
    %6101 = vmatpush1.msra.mxu0 %v6016
    %6102 = vmatprep.subr.mxu0 0.0
    %6103 = vmatpush1.msra.mxu0 %v6017
    %6104 = vmatprep.subr.mxu0 0.0
    %6105 = vmatpush1.msra.mxu0 %v6018
    %6106 = vmatprep.subr.mxu0 0.0
    %6107 = vmatpush1.msra.mxu0 %v6019
    %6108 = vmatprep.subr.mxu0 0.0
    %6109 = vmatpush1.msra.mxu0 0.0
    %6110 = vmatprep.subr.mxu0 0.0
    %6111 = vmatpush1.msra.mxu0 0.0
    %6112 = vmatprep.subr.mxu0 0.0
    %6113 = vmatpush1.msra.mxu0 0.0
    %6114 = vmatprep.subr.mxu0 0.0
    %6115 = vmatpush1.msra.mxu0 0.0
    %6116 = vmatprep.subr.mxu0 0.0
    %6117 = vmatpush1.msra.mxu0 0.0
    %6118 = vmatprep.subr.mxu0 0.0
    %6119 = vmatpush1.msra.mxu0 0.0
    %6120 = vmatprep.subr.mxu0 0.0
    %6121 = vmatpush1.msra.mxu0 0.0
    %6122 = vmatprep.subr.mxu0 0.0
    %6123 = vmatpush1.msra.mxu0 0.0
    %6124 = vmatprep.subr.mxu0 0.0
    %6125 = vmatpush1.msra.mxu0 0.0
    %6126 = vmatprep.subr.mxu0 0.0
    %6127 = vmatpush1.msra.mxu0 0.0
    %6128 = vmatprep.subr.mxu0 0.0
    %6129 = vmatpush1.msra.mxu0 0.0
    %6130 = vmatprep.subr.mxu0 0.0
    %6131 = vmatpush1.msra.mxu0 0.0
    %6132 = vmatprep.subr.mxu0 0.0
    %6133 = vmatpush1.msra.mxu0 0.0
    %6134 = vmatprep.subr.mxu0 0.0
    %6135 = vmatpush1.msra.mxu0 0.0
    %6136 = vmatprep.subr.mxu0 0.0
    %6137 = vmatpush1.msra.mxu0 0.0
    %6138 = vmatprep.subr.mxu0 0.0
    %6139 = vmatpush1.msra.mxu0 0.0
    %6140 = vmatprep.subr.mxu0 0.0
    %6141 = vmatpush1.msra.mxu0 0.0
    %6142 = vmatprep.subr.mxu0 0.0
    %6143 = vmatpush1.msra.mxu0 0.0
    %6144 = vmatprep.subr.mxu0 0.0
    %6145 = vmatpush1.msra.mxu0 0.0
    %6146 = vmatprep.subr.mxu0 0.0
    %6147 = vmatpush1.msra.mxu0 0.0
    %6148 = vmatprep.subr.mxu0 0.0
    %6149 = vmatpush1.msra.mxu0 0.0
    %6150 = vmatprep.subr.mxu0 0.0
    %6151 = vmatpush1.msra.mxu0 0.0
    %6152 = vmatprep.subr.mxu0 0.0
    %6153 = vmatpush1.msra.mxu0 0.0
    %6154 = vmatprep.subr.mxu0 0.0
    %6155 = vmatpush1.msra.mxu0 0.0
    %6156 = vmatprep.subr.mxu0 0.0
    %6157 = vmatpush1.msra.mxu0 0.0
    %6158 = vmatprep.subr.mxu0 0.0
    %6159 = vmatpush1.msra.mxu0 0.0
    %6160 = vmatprep.subr.mxu0 0.0
    %6161 = vmatpush1.msra.mxu0 0.0
    %6162 = vmatprep.subr.mxu0 0.0
    %6163 = vmatpush1.msra.mxu0 0.0
    %6164 = vmatprep.mubr.f32.mxu0 0.0
    %6165 = vmatmul.mubr.f32.gmra.mrb[0].mxu0 %v6098
    %v6166 = vpop.f32.mrb[0].mxu0
    %v6167 = vadd.f32 %v6094, %v6166
    %v6168 = vpop.f32.mrb[0].mxu0
    %6169 = vdwg.mxu0
    %v6170 = vld [vmem:[%s19 + $0x40] sm:$0xff]
    %v6171 = vld [vmem:[%s19 + $0x48] sm:$0xff]
    %v6172 = vld [vmem:[%s19 + $0x50] sm:$0xff]
    %v6173 = vld [vmem:[%s19 + $0x58] sm:$0xff]
    %v6175 = vsel %vm223, %v6008, 0
    %6177 = vmatprep.subr.mxu0 0.0
    %6178 = vmatpush1.msra.mxu0 %v6170
    %6179 = vmatprep.subr.mxu0 0.0
    %6180 = vmatpush1.msra.mxu0 %v6171
    %6181 = vmatprep.subr.mxu0 0.0
    %6182 = vmatpush1.msra.mxu0 %v6172
    %6183 = vmatprep.subr.mxu0 0.0
    %6184 = vmatpush1.msra.mxu0 %v6173
    %6185 = vmatprep.subr.mxu0 0.0
    %6186 = vmatpush1.msra.mxu0 0.0
    %6187 = vmatprep.subr.mxu0 0.0
    %6188 = vmatpush1.msra.mxu0 0.0
    %6189 = vmatprep.subr.mxu0 0.0
    %6190 = vmatpush1.msra.mxu0 0.0
    %6191 = vmatprep.subr.mxu0 0.0
    %6192 = vmatpush1.msra.mxu0 0.0
    %6193 = vmatprep.subr.mxu0 0.0
    %6194 = vmatpush1.msra.mxu0 0.0
    %6195 = vmatprep.subr.mxu0 0.0
    %6196 = vmatpush1.msra.mxu0 0.0
    %6197 = vmatprep.subr.mxu0 0.0
    %6198 = vmatpush1.msra.mxu0 0.0
    %6199 = vmatprep.subr.mxu0 0.0
    %6200 = vmatpush1.msra.mxu0 0.0
    %6201 = vmatprep.subr.mxu0 0.0
    %6202 = vmatpush1.msra.mxu0 0.0
    %6203 = vmatprep.subr.mxu0 0.0
    %6204 = vmatpush1.msra.mxu0 0.0
    %6205 = vmatprep.subr.mxu0 0.0
    %6206 = vmatpush1.msra.mxu0 0.0
    %6207 = vmatprep.subr.mxu0 0.0
    %6208 = vmatpush1.msra.mxu0 0.0
    %6209 = vmatprep.subr.mxu0 0.0
    %6210 = vmatpush1.msra.mxu0 0.0
    %6211 = vmatprep.subr.mxu0 0.0
    %6212 = vmatpush1.msra.mxu0 0.0
    %6213 = vmatprep.subr.mxu0 0.0
    %6214 = vmatpush1.msra.mxu0 0.0
    %6215 = vmatprep.subr.mxu0 0.0
    %6216 = vmatpush1.msra.mxu0 0.0
    %6217 = vmatprep.subr.mxu0 0.0
    %6218 = vmatpush1.msra.mxu0 0.0
    %6219 = vmatprep.subr.mxu0 0.0
    %6220 = vmatpush1.msra.mxu0 0.0
    %6221 = vmatprep.subr.mxu0 0.0
    %6222 = vmatpush1.msra.mxu0 0.0
    %6223 = vmatprep.subr.mxu0 0.0
    %6224 = vmatpush1.msra.mxu0 0.0
    %6225 = vmatprep.subr.mxu0 0.0
    %6226 = vmatpush1.msra.mxu0 0.0
    %6227 = vmatprep.subr.mxu0 0.0
    %6228 = vmatpush1.msra.mxu0 0.0
    %6229 = vmatprep.subr.mxu0 0.0
    %6230 = vmatpush1.msra.mxu0 0.0
    %6231 = vmatprep.subr.mxu0 0.0
    %6232 = vmatpush1.msra.mxu0 0.0
    %6233 = vmatprep.subr.mxu0 0.0
    %6234 = vmatpush1.msra.mxu0 0.0
    %6235 = vmatprep.subr.mxu0 0.0
    %6236 = vmatpush1.msra.mxu0 0.0
    %6237 = vmatprep.subr.mxu0 0.0
    %6238 = vmatpush1.msra.mxu0 0.0
    %6239 = vmatprep.subr.mxu0 0.0
    %6240 = vmatpush1.msra.mxu0 0.0
    %6241 = vmatprep.mubr.f32.mxu0 0.0
    %6242 = vmatmul.mubr.f32.gmra.mrb[0].mxu0 %v6175
    %v6243 = vpop.f32.mrb[0].mxu0
    %v6244 = vadd.f32 0.0, %v6243
    %v6245 = vpop.f32.mrb[0].mxu0
    %6246 = vdwg.mxu0
    %v6247 = vadd.f32 %v6167, %v6244
    %v6248 = vld [vmem:[%s19 + $0x60] sm:$0xff]
    %v6249 = vld [vmem:[%s19 + $0x68] sm:$0xff]
    %v6250 = vld [vmem:[%s19 + $0x70] sm:$0xff]
    %v6251 = vld [vmem:[%s19 + $0x78] sm:$0xff]
    %v6253 = vsel %vm223, %v6013, 0
    %6255 = vmatprep.subr.mxu0 0.0
    %6256 = vmatpush1.msra.mxu0 %v6248
    %6257 = vmatprep.subr.mxu0 0.0
    %6258 = vmatpush1.msra.mxu0 %v6249
    %6259 = vmatprep.subr.mxu0 0.0
    %6260 = vmatpush1.msra.mxu0 %v6250
    %6261 = vmatprep.subr.mxu0 0.0
    %6262 = vmatpush1.msra.mxu0 %v6251
    %6263 = vmatprep.subr.mxu0 0.0
    %6264 = vmatpush1.msra.mxu0 0.0
    %6265 = vmatprep.subr.mxu0 0.0
    %6266 = vmatpush1.msra.mxu0 0.0
    %6267 = vmatprep.subr.mxu0 0.0
    %6268 = vmatpush1.msra.mxu0 0.0
    %6269 = vmatprep.subr.mxu0 0.0
    %6270 = vmatpush1.msra.mxu0 0.0
    %6271 = vmatprep.subr.mxu0 0.0
    %6272 = vmatpush1.msra.mxu0 0.0
    %6273 = vmatprep.subr.mxu0 0.0
    %6274 = vmatpush1.msra.mxu0 0.0
    %6275 = vmatprep.subr.mxu0 0.0
    %6276 = vmatpush1.msra.mxu0 0.0
    %6277 = vmatprep.subr.mxu0 0.0
    %6278 = vmatpush1.msra.mxu0 0.0
    %6279 = vmatprep.subr.mxu0 0.0
    %6280 = vmatpush1.msra.mxu0 0.0
    %6281 = vmatprep.subr.mxu0 0.0
    %6282 = vmatpush1.msra.mxu0 0.0
    %6283 = vmatprep.subr.mxu0 0.0
    %6284 = vmatpush1.msra.mxu0 0.0
    %6285 = vmatprep.subr.mxu0 0.0
    %6286 = vmatpush1.msra.mxu0 0.0
    %6287 = vmatprep.subr.mxu0 0.0
    %6288 = vmatpush1.msra.mxu0 0.0
    %6289 = vmatprep.subr.mxu0 0.0
    %6290 = vmatpush1.msra.mxu0 0.0
    %6291 = vmatprep.subr.mxu0 0.0
    %6292 = vmatpush1.msra.mxu0 0.0
    %6293 = vmatprep.subr.mxu0 0.0
    %6294 = vmatpush1.msra.mxu0 0.0
    %6295 = vmatprep.subr.mxu0 0.0
    %6296 = vmatpush1.msra.mxu0 0.0
    %6297 = vmatprep.subr.mxu0 0.0
    %6298 = vmatpush1.msra.mxu0 0.0
    %6299 = vmatprep.subr.mxu0 0.0
    %6300 = vmatpush1.msra.mxu0 0.0
    %6301 = vmatprep.subr.mxu0 0.0
    %6302 = vmatpush1.msra.mxu0 0.0
    %6303 = vmatprep.subr.mxu0 0.0
    %6304 = vmatpush1.msra.mxu0 0.0
    %6305 = vmatprep.subr.mxu0 0.0
    %6306 = vmatpush1.msra.mxu0 0.0
    %6307 = vmatprep.subr.mxu0 0.0
    %6308 = vmatpush1.msra.mxu0 0.0
    %6309 = vmatprep.subr.mxu0 0.0
    %6310 = vmatpush1.msra.mxu0 0.0
    %6311 = vmatprep.subr.mxu0 0.0
    %6312 = vmatpush1.msra.mxu0 0.0
    %6313 = vmatprep.subr.mxu0 0.0
    %6314 = vmatpush1.msra.mxu0 0.0
    %6315 = vmatprep.subr.mxu0 0.0
    %6316 = vmatpush1.msra.mxu0 0.0
    %6317 = vmatprep.subr.mxu0 0.0
    %6318 = vmatpush1.msra.mxu0 0.0
    %6319 = vmatprep.mubr.f32.mxu0 0.0
    %6320 = vmatmul.mubr.f32.gmra.mrb[0].mxu0 %v6253
    %v6321 = vpop.f32.mrb[0].mxu0
    %v6322 = vadd.f32 0.0, %v6321
    %v6323 = vpop.f32.mrb[0].mxu0
    %6324 = vdwg.mxu0
    %v6325 = vadd.f32 %v6247, %v6322
    %vm6326 = vcmask 392192
    %6327 = vst.msk [vmem:[#allocation2] sm:$0xff] %vm6326, %v6325
    // Predicated region
    $region82: #{full_vision_encoder.1} parent=1 // pred_check
      _
    $region83: #{full_vision_encoder.1} parent=1 // pred_check_branch
      %6329 = sbr.rel (0) target = $region85
    $region84: #{full_vision_encoder.1} parent=1 // pred_region
      %s6331 = ssub.s32 128, 128
      %6332 = vsyncadd [#allocation3], %s6331
      %s6334 = sshll.u32 [#allocation2], 4
      %s6335 = int_to_ptr.vmem [resolvable:$true] %s6334
      %6337 = dma.vmem_to_hbm [thread:$0]  %s6335, 128, %s20, [#allocation3]
    $region85: #{full_vision_encoder.1} parent=1 // pred_fallthru
      _
    // Predicated region
    $region86: #{full_vision_encoder.1} parent=1 // pred_check
      _
    $region87: #{full_vision_encoder.1} parent=1 // pred_check_branch
      %6339 = sbr.rel (0) target = $region89
    $region88: #{full_vision_encoder.1} parent=1 // pred_region
      %6340 = dma.done [#allocation3], 128
    $region89: #{full_vision_encoder.1} parent=1 // pred_fallthru
      _
    %6341 = vsyncpa [#allocation3], 1

</llo_original>
